<compile_context>
chip_gen: v7x
topology: tpu7x:2x2x1
jax: 0.10.0
libtpu: 0.0.40
codegen_flags: <defaults>
</compile_context>

<pallas_src>
import collections
import functools

import jax
import jax.numpy as jnp
import numpy as np
from jax.experimental import pallas as pl
from jax.experimental.pallas import tpu as pltpu

LANE_TARGET = 4096               # target core (lane) width per fused-conv grid step
VMEM_LIMIT = 64 * 1024 * 1024    # explicit scoped-VMEM budget for all kernels

CL = collections.namedtuple("CL", ["act", "h", "w", "tb", "nb", "np_"])


# ----------------------------------------------------------------------------
# Layout helpers (flat channel-major, per-group rows with 128-aligned margins)
# ----------------------------------------------------------------------------
def _round_up(a, b):
    return (a + b - 1) // b * b


def _cl_dims(h, w, tb):
    hp, wp = h + 2, w + 2
    hwl = hp * wp                      # flattened padded image
    core = tb * hwl                    # lanes of real data per group row
    ml = _round_up(wp + 1, 128)        # lane-aligned margin (>= max tap shift)
    return hp, wp, hwl, core, ml


def _choose_groups(n, hwl):
    tb = max(1, min(LANE_TARGET // max(hwl, 1), n))
    nb = -(-n // tb)
    tb = -(-n // nb)
    if nb < 2 and n >= 2:              # keep >=2 parallel grid steps (v7x: 2 TCs)
        nb, tb = 2, -(-n // 2)
    return tb, nb, tb * nb


def to_cl(xp4, h, w, tb, nb):
    """[C, Np, Hp, Wp] (zero-padded, bf16) -> group rows [NB, C, RW]."""
    c = xp4.shape[0]
    _, _, hwl, core, ml = _cl_dims(h, w, tb)
    x = xp4.reshape(c, nb, tb, hwl)
    x = jnp.transpose(x, (1, 0, 2, 3)).reshape(nb, c, core)
    return jnp.pad(x, ((0, 0), (0, 0), (ml, ml)))


def build_state(x4, h, w):
    """[C, n, H, W] bf16 (unpadded) -> CL state (pads batch + spatial)."""
    n = x4.shape[1]
    _, _, hwl, _, _ = _cl_dims(h, w, 1)
    tb, nb, n_pad = _choose_groups(n, hwl)
    if n_pad > n:
        x4 = jnp.pad(x4, ((0, 0), (0, n_pad - n), (0, 0), (0, 0)))
    xp4 = jnp.pad(x4, ((0, 0), (0, 0), (1, 1), (1, 1)))
    return CL(act=to_cl(xp4, h, w, tb, nb), h=h, w=w, tb=tb, nb=nb, np_=n_pad)


def from_cl(st):
    """CL state -> zero-padded 4-D activation [C, Np, Hp, Wp] bf16."""
    hp, wp, hwl, core, ml = _cl_dims(st.h, st.w, st.tb)
    c = st.act.shape[1]
    x = st.act[:, :, ml:ml + core].reshape(st.nb, c, st.tb, hwl)
    return jnp.transpose(x, (1, 0, 2, 3)).reshape(c, st.np_, hp, wp)


def bn_fold(bn, eps=1e-5):
    scale = bn["gamma"] / jnp.sqrt(bn["var"] + eps)
    shift = bn["beta"] - bn["mean"] * scale
    return scale, shift


def _interior_mask(st):
    """float32 [1, core] mask: 1 at interior (real conv output) lanes, 0 at padding."""
    _, wp, hwl, core, _ = _cl_dims(st.h, st.w, st.tb)
    jj = np.arange(hwl)
    hh, ww = jj // wp, jj % wp
    valid = (hh >= 1) & (hh <= st.h) & (ww >= 1) & (ww <= st.w)
    return jnp.asarray(np.tile(valid.astype(np.float32), st.tb).reshape(1, core))


# ----------------------------------------------------------------------------
# Fused stride-1 conv3x3 + BN + (residual) + ReLU Pallas kernel
# ----------------------------------------------------------------------------
def _taps_matmul(x_ref, w_ref, shifts, core):
    acc = None
    for t, s in enumerate(shifts):
        part = jnp.dot(w_ref[t], x_ref[:, s:s + core],
                       preferred_element_type=jnp.float32)
        acc = part if acc is None else acc + part
    return acc


def _store_row(o_ref, y, ml, core):
    oc = o_ref.shape[0]
    o_ref[:, ml:ml + core] = y.astype(o_ref.dtype)
    o_ref[:, :ml] = jnp.zeros((oc, ml), o_ref.dtype)
    o_ref[:, ml + core:] = jnp.zeros((oc, o_ref.shape[1] - ml - core), o_ref.dtype)


def _fused_conv_kernel(x_ref, w_ref, shift_ref, mask_ref, o_ref, *,
                       shifts, core, ml, relu):
    y = _taps_matmul(x_ref, w_ref, shifts, core) + shift_ref[...]
    if relu:
        y = jnp.maximum(y, 0.0)
    y = jnp.where(mask_ref[...] > 0.0, y, 0.0)
    _store_row(o_ref, y, ml, core)


def _fused_conv_res_kernel(x_ref, w_ref, shift_ref, mask_ref, res_ref, o_ref, *,
                           shifts, core, ml, relu):
    y = _taps_matmul(x_ref, w_ref, shifts, core) + shift_ref[...]
    y = y + res_ref[:, ml:ml + core].astype(jnp.float32)
    if relu:
        y = jnp.maximum(y, 0.0)
    y = jnp.where(mask_ref[...] > 0.0, y, 0.0)
    _store_row(o_ref, y, ml, core)


def fused_conv_bn(st, w_oihw, bn, relu, residual=None):
    """3x3 stride-1 conv + folded BN + optional residual + optional ReLU."""
    _, wp, _, core, ml = _cl_dims(st.h, st.w, st.tb)
    nb = st.nb
    rw = core + 2 * ml
    oc, ic, k, _ = w_oihw.shape
    assert k == 3
    c_arr = st.act.shape[1]

    scale, shift = bn_fold(bn)
    w_f = w_oihw * scale[:, None, None, None]                    # fold BN scale
    w_t = jnp.transpose(w_f, (2, 3, 0, 1)).reshape(k * k, oc, ic)
    if c_arr > ic:                                               # first conv: 3->8 ch pad
        w_t = jnp.pad(w_t, ((0, 0), (0, 0), (0, c_arr - ic)))
    w_t = w_t.astype(jnp.bfloat16)
    shift2 = shift.reshape(oc, 1).astype(jnp.float32)
    mask = _interior_mask(st)

    # static lane shift of each (kh, kw) tap inside the group row
    shifts = tuple(ml - (wp + 1) + kh * wp + kw
                   for kh in range(k) for kw in range(k))

    in_specs = [
        pl.BlockSpec((None, c_arr, rw), lambda g: (g, 0, 0)),
        pl.BlockSpec((k * k, oc, c_arr), lambda g: (0, 0, 0)),
        pl.BlockSpec((oc, 1), lambda g: (0, 0)),
        pl.BlockSpec((1, core), lambda g: (0, 0)),
    ]
    args = [st.act, w_t, shift2, mask]
    if residual is not None:
        in_specs.append(pl.BlockSpec((None, oc, rw), lambda g: (g, 0, 0)))
        args.append(residual)
        kernel = functools.partial(_fused_conv_res_kernel, shifts=shifts,
                                   core=core, ml=ml, relu=relu)
    else:
        kernel = functools.partial(_fused_conv_kernel, shifts=shifts,
                                   core=core, ml=ml, relu=relu)

    out = pl.pallas_call(
        kernel,
        out_shape=jax.ShapeDtypeStruct((nb, oc, rw), jnp.bfloat16),
        grid=(nb,),
        in_specs=in_specs,
        out_specs=pl.BlockSpec((None, oc, rw), lambda g: (g, 0, 0)),
        compiler_params=pltpu.CompilerParams(
            dimension_semantics=("parallel",),
            vmem_limit_bytes=VMEM_LIMIT),
    )(*args)
    return st._replace(act=out)


# ----------------------------------------------------------------------------
# Fallback path for strided convs: bf16 im2col + tiled matmul kernel
# ----------------------------------------------------------------------------
def _matmul_bn_kernel(w_ref, p_ref, shift_ref, o_ref, *, relu):
    y = jnp.dot(w_ref[...], p_ref[...], preferred_element_type=jnp.float32)
    y = y + shift_ref[...]
    if relu:
        y = jnp.maximum(y, 0.0)
    o_ref[...] = y.astype(o_ref.dtype)


def matmul_bn(w2, patches, shift, relu):
    """out[OC, M] = relu_opt(w2 @ patches + shift), bf16 in/out, f32 accumulate."""
    oc, kk = w2.shape
    _, m = patches.shape
    if m >= 4096:
        tn = 2048
    elif m >= 2048:
        tn = 1024
    elif m >= 1024:
        tn = 512
    elif m >= 512:
        tn = 256
    else:
        tn = 128
    mr = _round_up(m, tn)
    if mr > m:
        patches = jnp.pad(patches, ((0, 0), (0, mr - m)))
    shift2 = shift.reshape(oc, 1).astype(jnp.float32)
    out = pl.pallas_call(
        functools.partial(_matmul_bn_kernel, relu=relu),
        out_shape=jax.ShapeDtypeStruct((oc, mr), jnp.bfloat16),
        grid=(mr // tn,),
        in_specs=[
            pl.BlockSpec((oc, kk), lambda i: (0, 0)),
            pl.BlockSpec((kk, tn), lambda i: (0, i)),
            pl.BlockSpec((oc, 1), lambda i: (0, 0)),
        ],
        out_specs=pl.BlockSpec((oc, tn), lambda i: (0, i)),
        compiler_params=pltpu.CompilerParams(
            dimension_semantics=("parallel",),
            vmem_limit_bytes=VMEM_LIMIT),
    )(w2, patches, shift2)
    return out[:, :m]


def im2col(x4, k, stride):
    """[C, n, H', W'] -> patches [k*k*C, n*OH*OW] (K ordered (kh, kw, c)), bf16."""
    c, n, hh, ww = x4.shape
    oh = (hh - k) // stride + 1
    ow = (ww - k) // stride + 1
    cols = []
    for i in range(k):
        for j in range(k):
            cols.append(x4[:, :, i:i + stride * oh:stride, j:j + stride * ow:stride])
    p = jnp.stack(cols, axis=0).reshape(k * k * c, n * oh * ow)
    return p, (oh, ow)


def strided_conv_bn(xp4, h, w, w_oihw, bn, stride, relu):
    """Conv (pad=1 for 3x3 / pad=0 for 1x1) + folded BN + opt ReLU, any stride."""
    oc, ic, k, _ = w_oihw.shape
    x_in = xp4 if k == 3 else xp4[:, :, 1:1 + h, 1:1 + w]
    patches, (oh, ow) = im2col(x_in, k, stride)
    scale, shift = bn_fold(bn)
    w2 = jnp.transpose(w_oihw, (0, 2, 3, 1)).reshape(oc, k * k * ic)
    w2 = (w2 * scale[:, None]).astype(jnp.bfloat16)
    return matmul_bn(w2, patches, shift, relu), oh, ow


def flat_to_state(y_flat, n, oh, ow):
    oc = y_flat.shape[0]
    return build_state(y_flat.reshape(oc, n, oh, ow), oh, ow)


# ----------------------------------------------------------------------------
# Fused global average pool + final linear
# ----------------------------------------------------------------------------
def _pool_linear_kernel(x_ref, w_ref, b_ref, o_ref, *, inv_hw):
    pooled = jnp.sum(x_ref[...].astype(jnp.float32), axis=2) * inv_hw   # [C, N]
    o_ref[...] = (
        jnp.dot(w_ref[...], pooled, preferred_element_type=jnp.float32)
        + b_ref[...]
    )


def pool_linear(st, linear_w, linear_b, n_orig):
    _, _, hwl, core, ml = _cl_dims(st.h, st.w, st.tb)
    c = st.act.shape[1]
    x = st.act[:, :, ml:ml + core].reshape(st.nb, c, st.tb, hwl)
    x = jnp.transpose(x, (1, 0, 2, 3)).reshape(c, st.np_, hwl)
    nc = linear_w.shape[0]
    logits_t = pl.pallas_call(
        functools.partial(_pool_linear_kernel, inv_hw=1.0 / float(st.h * st.w)),
        out_shape=jax.ShapeDtypeStruct((nc, st.np_), jnp.float32),
    )(x, linear_w.astype(jnp.float32),
      linear_b.reshape(nc, 1).astype(jnp.float32))
    return logits_t.T[:n_orig]                                           # [N, classes]


# ----------------------------------------------------------------------------
# ResNet definition (BasicBlock, expansion=1, 1x1 conv shortcut when needed)
# ----------------------------------------------------------------------------
def _conv_w(key, oc, ic, k):
    fan_in = ic * k * k
    return jax.random.normal(key, (oc, ic, k, k), jnp.float32) / np.sqrt(fan_in)


def _bn_p(key, c):
    k1, k2, k3, k4 = jax.random.split(key, 4)
    return {
        "gamma": 1.0 + 0.1 * jax.random.normal(k1, (c,), jnp.float32),
        "beta": 0.1 * jax.random.normal(k2, (c,), jnp.float32),
        "mean": 0.1 * jax.random.normal(k3, (c,), jnp.float32),
        "var": 0.5 + jax.random.uniform(k4, (c,), jnp.float32),
    }


def make_params(key, num_blocks=(1, 1, 1), num_classes=10):
    keys = iter(jax.random.split(key, 256))
    p = {"conv1": _conv_w(next(keys), 16, 3, 3), "bn1": _bn_p(next(keys), 16)}
    in_planes = 16
    for li, (planes, stride0) in enumerate([(16, 1), (32, 2), (64, 2)], start=1):
        blocks = []
        strides = [stride0] + [1] * (num_blocks[li - 1] - 1)
        for s in strides:
            b = {
                "stride": s,
                "conv1": _conv_w(next(keys), planes, in_planes, 3),
                "bn1": _bn_p(next(keys), planes),
                "conv2": _conv_w(next(keys), planes, planes, 3),
                "bn2": _bn_p(next(keys), planes),
            }
            if s != 1 or in_planes != planes:
                b["sc_conv"] = _conv_w(next(keys), planes, in_planes, 1)
                b["sc_bn"] = _bn_p(next(keys), planes)
            blocks.append(b)
            in_planes = planes
        p[f"layer{li}"] = blocks
    p["linear_w"] = jax.random.normal(next(keys), (num_classes, 64), jnp.float32) / 8.0
    p["linear_b"] = 0.1 * jax.random.normal(next(keys), (num_classes,), jnp.float32)
    return p


def basic_block(st, bp):
    s = bp["stride"]
    if s == 1 and "sc_conv" not in bp:
        h1 = fused_conv_bn(st, bp["conv1"], bp["bn1"], relu=True)
        return fused_conv_bn(h1, bp["conv2"], bp["bn2"], relu=True, residual=st.act)
    xp4 = from_cl(st)
    if s == 1:
        h1 = fused_conv_bn(st, bp["conv1"], bp["bn1"], relu=True)
    else:
        y, oh, ow = strided_conv_bn(xp4, st.h, st.w, bp["conv1"], bp["bn1"], s, True)
        h1 = flat_to_state(y, st.np_, oh, ow)
    sc, oh2, ow2 = strided_conv_bn(xp4, st.h, st.w, bp["sc_conv"], bp["sc_bn"], s, False)
    res = flat_to_state(sc, st.np_, oh2, ow2).act
    return fused_conv_bn(h1, bp["conv2"], bp["bn2"], relu=True, residual=res)


def resnet_forward(params, x_nchw):
    # Input is NCHW (PyTorch); internal layout is flat channel-major bf16.
    n, c, h, w = x_nchw.shape
    x = jnp.transpose(x_nchw.astype(jnp.bfloat16), (1, 0, 2, 3))    # [C, N, H, W]
    c_pad = max(8, c)                                               # pad conv1 K dim
    if c_pad > c:
        x = jnp.pad(x, ((0, c_pad - c), (0, 0), (0, 0), (0, 0)))
    st = build_state(x, h, w)
    st = fused_conv_bn(st, params["conv1"], params["bn1"], relu=True)
    for li in (1, 2, 3):
        for bp in params[f"layer{li}"]:
            st = basic_block(st, bp)
    return pool_linear(st, params["linear_w"], params["linear_b"], n)   # [N, 10]


# ----------------------------------------------------------------------------
if __name__ == "__main__":
    key = jax.random.PRNGKey(0)
    k_param, k_in = jax.random.split(key)
    # Small CIFAR-like input: batch=2, 3 channels, 16x16 spatial.
    x = jax.random.normal(k_in, (2, 3, 16, 16), jnp.float32)
    params = make_params(k_param, num_blocks=(1, 1, 1), num_classes=10)

    fwd = jax.jit(lambda inp: resnet_forward(params, inp))
    logits = fwd(x)
    jax.block_until_ready(logits)
    assert logits.shape == (2, 10)
    assert bool(jnp.all(jnp.isfinite(logits)))
    print("KERNEL_OK")
</pallas_src>

<mosaic_0001>
module attributes {stable_mosaic.version = 11 : i64} {
  func.func @_fused_conv_res_kernel(%arg0: i32, %arg1: memref<1x16x580xbf16, #tpu.memory_space<vmem>>, %arg2: memref<9x16x16xbf16, #tpu.memory_space<vmem>>, %arg3: memref<16x1xf32, #tpu.memory_space<vmem>>, %arg4: memref<1x324xf32, #tpu.memory_space<vmem>>, %arg5: memref<1x16x580xbf16, #tpu.memory_space<vmem>>, %arg6: memref<1x16x580xbf16, #tpu.memory_space<vmem>>) attributes {dimension_semantics = [#tpu.dimension_semantics<parallel>], iteration_bounds = array<i64: 2>, scalar_prefetch = 0 : i64, scratch_operands = 0 : i64, tpu.core_type = #tpu.core_type<tc>, window_params = [{transform_indices = @transform_0, window_bounds = array<i64: 1, 16, 580>}, {pipeline_mode = #tpu.pipeline_mode<synchronous>, transform_indices = @transform_1, window_bounds = array<i64: 9, 16, 16>}, {pipeline_mode = #tpu.pipeline_mode<synchronous>, transform_indices = @transform_2, window_bounds = array<i64: 16, 1>}, {pipeline_mode = #tpu.pipeline_mode<synchronous>, transform_indices = @transform_3, window_bounds = array<i64: 1, 324>}, {transform_indices = @transform_4, window_bounds = array<i64: 1, 16, 580>}, {transform_indices = @transform_5, window_bounds = array<i64: 1, 16, 580>}]} {
    %c0 = arith.constant 0 : index
    %c0_0 = arith.constant 0 : index
    %c0_1 = arith.constant 0 : index
    %0 = vector.load %arg2[%c0, %c0_0, %c0_1] : memref<9x16x16xbf16, #tpu.memory_space<vmem>>, vector<1x16x16xbf16>
    %1 = vector.shape_cast %0 : vector<1x16x16xbf16> to vector<16x16xbf16>
    %c0_2 = arith.constant 0 : index
    %c0_3 = arith.constant 0 : index
    %c109 = arith.constant 109 : index
    %2 = vector.load %arg1[%c0_2, %c0_3, %c109] : memref<1x16x580xbf16, #tpu.memory_space<vmem>>, vector<1x16x324xbf16>
    %3 = vector.shape_cast %2 : vector<1x16x324xbf16> to vector<16x324xbf16>
    %cst = arith.constant dense<0.000000e+00> : vector<16x324xf32>
    %4 = tpu.matmul %1, %3, %cst {dimension_numbers = #tpu.dot_dimension_numbers<[1], [0], [0], [1], [0, 0, 1, 1], [], []>} : vector<16x16xbf16>, vector<16x324xbf16>, vector<16x324xf32> -> vector<16x324xf32>
    %c1 = arith.constant 1 : index
    %c0_4 = arith.constant 0 : index
    %c0_5 = arith.constant 0 : index
    %5 = vector.load %arg2[%c1, %c0_4, %c0_5] : memref<9x16x16xbf16, #tpu.memory_space<vmem>>, vector<1x16x16xbf16>
    %6 = vector.shape_cast %5 : vector<1x16x16xbf16> to vector<16x16xbf16>
    %c0_6 = arith.constant 0 : index
    %c0_7 = arith.constant 0 : index
    %c110 = arith.constant 110 : index
    %7 = vector.load %arg1[%c0_6, %c0_7, %c110] : memref<1x16x580xbf16, #tpu.memory_space<vmem>>, vector<1x16x324xbf16>
    %8 = vector.shape_cast %7 : vector<1x16x324xbf16> to vector<16x324xbf16>
    %cst_8 = arith.constant dense<0.000000e+00> : vector<16x324xf32>
    %9 = tpu.matmul %6, %8, %cst_8 {dimension_numbers = #tpu.dot_dimension_numbers<[1], [0], [0], [1], [0, 0, 1, 1], [], []>} : vector<16x16xbf16>, vector<16x324xbf16>, vector<16x324xf32> -> vector<16x324xf32>
    %10 = arith.addf %4, %9 : vector<16x324xf32>
    %c2 = arith.constant 2 : index
    %c0_9 = arith.constant 0 : index
    %c0_10 = arith.constant 0 : index
    %11 = vector.load %arg2[%c2, %c0_9, %c0_10] : memref<9x16x16xbf16, #tpu.memory_space<vmem>>, vector<1x16x16xbf16>
    %12 = vector.shape_cast %11 : vector<1x16x16xbf16> to vector<16x16xbf16>
    %c0_11 = arith.constant 0 : index
    %c0_12 = arith.constant 0 : index
    %c111 = arith.constant 111 : index
    %13 = vector.load %arg1[%c0_11, %c0_12, %c111] : memref<1x16x580xbf16, #tpu.memory_space<vmem>>, vector<1x16x324xbf16>
    %14 = vector.shape_cast %13 : vector<1x16x324xbf16> to vector<16x324xbf16>
    %cst_13 = arith.constant dense<0.000000e+00> : vector<16x324xf32>
    %15 = tpu.matmul %12, %14, %cst_13 {dimension_numbers = #tpu.dot_dimension_numbers<[1], [0], [0], [1], [0, 0, 1, 1], [], []>} : vector<16x16xbf16>, vector<16x324xbf16>, vector<16x324xf32> -> vector<16x324xf32>
    %16 = arith.addf %10, %15 : vector<16x324xf32>
    %c3 = arith.constant 3 : index
    %c0_14 = arith.constant 0 : index
    %c0_15 = arith.constant 0 : index
    %17 = vector.load %arg2[%c3, %c0_14, %c0_15] : memref<9x16x16xbf16, #tpu.memory_space<vmem>>, vector<1x16x16xbf16>
    %18 = vector.shape_cast %17 : vector<1x16x16xbf16> to vector<16x16xbf16>
    %c0_16 = arith.constant 0 : index
    %c0_17 = arith.constant 0 : index
    %c127 = arith.constant 127 : index
    %19 = vector.load %arg1[%c0_16, %c0_17, %c127] : memref<1x16x580xbf16, #tpu.memory_space<vmem>>, vector<1x16x324xbf16>
    %20 = vector.shape_cast %19 : vector<1x16x324xbf16> to vector<16x324xbf16>
    %cst_18 = arith.constant dense<0.000000e+00> : vector<16x324xf32>
    %21 = tpu.matmul %18, %20, %cst_18 {dimension_numbers = #tpu.dot_dimension_numbers<[1], [0], [0], [1], [0, 0, 1, 1], [], []>} : vector<16x16xbf16>, vector<16x324xbf16>, vector<16x324xf32> -> vector<16x324xf32>
    %22 = arith.addf %16, %21 : vector<16x324xf32>
    %c4 = arith.constant 4 : index
    %c0_19 = arith.constant 0 : index
    %c0_20 = arith.constant 0 : index
    %23 = vector.load %arg2[%c4, %c0_19, %c0_20] : memref<9x16x16xbf16, #tpu.memory_space<vmem>>, vector<1x16x16xbf16>
    %24 = vector.shape_cast %23 : vector<1x16x16xbf16> to vector<16x16xbf16>
    %c0_21 = arith.constant 0 : index
    %c0_22 = arith.constant 0 : index
    %c128 = arith.constant 128 : index
    %25 = vector.load %arg1[%c0_21, %c0_22, %c128] : memref<1x16x580xbf16, #tpu.memory_space<vmem>>, vector<1x16x324xbf16>
    %26 = vector.shape_cast %25 : vector<1x16x324xbf16> to vector<16x324xbf16>
    %cst_23 = arith.constant dense<0.000000e+00> : vector<16x324xf32>
    %27 = tpu.matmul %24, %26, %cst_23 {dimension_numbers = #tpu.dot_dimension_numbers<[1], [0], [0], [1], [0, 0, 1, 1], [], []>} : vector<16x16xbf16>, vector<16x324xbf16>, vector<16x324xf32> -> vector<16x324xf32>
    %28 = arith.addf %22, %27 : vector<16x324xf32>
    %c5 = arith.constant 5 : index
    %c0_24 = arith.constant 0 : index
    %c0_25 = arith.constant 0 : index
    %29 = vector.load %arg2[%c5, %c0_24, %c0_25] : memref<9x16x16xbf16, #tpu.memory_space<vmem>>, vector<1x16x16xbf16>
    %30 = vector.shape_cast %29 : vector<1x16x16xbf16> to vector<16x16xbf16>
    %c0_26 = arith.constant 0 : index
    %c0_27 = arith.constant 0 : index
    %c129 = arith.constant 129 : index
    %31 = vector.load %arg1[%c0_26, %c0_27, %c129] : memref<1x16x580xbf16, #tpu.memory_space<vmem>>, vector<1x16x324xbf16>
    %32 = vector.shape_cast %31 : vector<1x16x324xbf16> to vector<16x324xbf16>
    %cst_28 = arith.constant dense<0.000000e+00> : vector<16x324xf32>
    %33 = tpu.matmul %30, %32, %cst_28 {dimension_numbers = #tpu.dot_dimension_numbers<[1], [0], [0], [1], [0, 0, 1, 1], [], []>} : vector<16x16xbf16>, vector<16x324xbf16>, vector<16x324xf32> -> vector<16x324xf32>
    %34 = arith.addf %28, %33 : vector<16x324xf32>
    %c6 = arith.constant 6 : index
    %c0_29 = arith.constant 0 : index
    %c0_30 = arith.constant 0 : index
    %35 = vector.load %arg2[%c6, %c0_29, %c0_30] : memref<9x16x16xbf16, #tpu.memory_space<vmem>>, vector<1x16x16xbf16>
    %36 = vector.shape_cast %35 : vector<1x16x16xbf16> to vector<16x16xbf16>
    %c0_31 = arith.constant 0 : index
    %c0_32 = arith.constant 0 : index
    %c145 = arith.constant 145 : index
    %37 = vector.load %arg1[%c0_31, %c0_32, %c145] : memref<1x16x580xbf16, #tpu.memory_space<vmem>>, vector<1x16x324xbf16>
    %38 = vector.shape_cast %37 : vector<1x16x324xbf16> to vector<16x324xbf16>
    %cst_33 = arith.constant dense<0.000000e+00> : vector<16x324xf32>
    %39 = tpu.matmul %36, %38, %cst_33 {dimension_numbers = #tpu.dot_dimension_numbers<[1], [0], [0], [1], [0, 0, 1, 1], [], []>} : vector<16x16xbf16>, vector<16x324xbf16>, vector<16x324xf32> -> vector<16x324xf32>
    %40 = arith.addf %34, %39 : vector<16x324xf32>
    %c7 = arith.constant 7 : index
    %c0_34 = arith.constant 0 : index
    %c0_35 = arith.constant 0 : index
    %41 = vector.load %arg2[%c7, %c0_34, %c0_35] : memref<9x16x16xbf16, #tpu.memory_space<vmem>>, vector<1x16x16xbf16>
    %42 = vector.shape_cast %41 : vector<1x16x16xbf16> to vector<16x16xbf16>
    %c0_36 = arith.constant 0 : index
    %c0_37 = arith.constant 0 : index
    %c146 = arith.constant 146 : index
    %43 = vector.load %arg1[%c0_36, %c0_37, %c146] : memref<1x16x580xbf16, #tpu.memory_space<vmem>>, vector<1x16x324xbf16>
    %44 = vector.shape_cast %43 : vector<1x16x324xbf16> to vector<16x324xbf16>
    %cst_38 = arith.constant dense<0.000000e+00> : vector<16x324xf32>
    %45 = tpu.matmul %42, %44, %cst_38 {dimension_numbers = #tpu.dot_dimension_numbers<[1], [0], [0], [1], [0, 0, 1, 1], [], []>} : vector<16x16xbf16>, vector<16x324xbf16>, vector<16x324xf32> -> vector<16x324xf32>
    %46 = arith.addf %40, %45 : vector<16x324xf32>
    %c8 = arith.constant 8 : index
    %c0_39 = arith.constant 0 : index
    %c0_40 = arith.constant 0 : index
    %47 = vector.load %arg2[%c8, %c0_39, %c0_40] : memref<9x16x16xbf16, #tpu.memory_space<vmem>>, vector<1x16x16xbf16>
    %48 = vector.shape_cast %47 : vector<1x16x16xbf16> to vector<16x16xbf16>
    %c0_41 = arith.constant 0 : index
    %c0_42 = arith.constant 0 : index
    %c147 = arith.constant 147 : index
    %49 = vector.load %arg1[%c0_41, %c0_42, %c147] : memref<1x16x580xbf16, #tpu.memory_space<vmem>>, vector<1x16x324xbf16>
    %50 = vector.shape_cast %49 : vector<1x16x324xbf16> to vector<16x324xbf16>
    %cst_43 = arith.constant dense<0.000000e+00> : vector<16x324xf32>
    %51 = tpu.matmul %48, %50, %cst_43 {dimension_numbers = #tpu.dot_dimension_numbers<[1], [0], [0], [1], [0, 0, 1, 1], [], []>} : vector<16x16xbf16>, vector<16x324xbf16>, vector<16x324xf32> -> vector<16x324xf32>
    %52 = arith.addf %46, %51 : vector<16x324xf32>
    %c0_44 = arith.constant 0 : index
    %c0_45 = arith.constant 0 : index
    %53 = vector.load %arg3[%c0_44, %c0_45] : memref<16x1xf32, #tpu.memory_space<vmem>>, vector<16x1xf32>
    %54 = vector.broadcast %53 : vector<16x1xf32> to vector<16x324xf32>
    %55 = arith.addf %52, %54 : vector<16x324xf32>
    %c0_46 = arith.constant 0 : index
    %c0_47 = arith.constant 0 : index
    %c128_48 = arith.constant 128 : index
    %56 = vector.load %arg5[%c0_46, %c0_47, %c128_48] : memref<1x16x580xbf16, #tpu.memory_space<vmem>>, vector<1x16x324xbf16>
    %57 = vector.shape_cast %56 : vector<1x16x324xbf16> to vector<16x324xbf16>
    %58 = arith.extf %57 : vector<16x324xbf16> to vector<16x324xf32>
    %59 = arith.addf %55, %58 : vector<16x324xf32>
    %cst_49 = arith.constant 0.000000e+00 : f32
    %60 = vector.broadcast %cst_49 : f32 to vector<16x324xf32>
    %61 = arith.maximumf %59, %60 : vector<16x324xf32>
    %c0_50 = arith.constant 0 : index
    %c0_51 = arith.constant 0 : index
    %62 = vector.load %arg4[%c0_50, %c0_51] : memref<1x324xf32, #tpu.memory_space<vmem>>, vector<1x324xf32>
    %cst_52 = arith.constant 0.000000e+00 : f32
    %63 = vector.broadcast %cst_52 : f32 to vector<1x324xf32>
    %64 = arith.cmpf ogt, %62, %63 : vector<1x324xf32>
    %cst_53 = arith.constant 0.000000e+00 : f32
    %65 = vector.shape_cast %64 : vector<1x324xi1> to vector<1x324xi1>
    %66 = vector.broadcast %65 : vector<1x324xi1> to vector<16x324xi1>
    %67 = vector.broadcast %cst_53 : f32 to vector<16x324xf32>
    %68 = arith.select %66, %61, %67 : vector<16x324xi1>, vector<16x324xf32>
    %69 = arith.truncf %68 : vector<16x324xf32> to vector<16x324xbf16>
    %c0_54 = arith.constant 0 : index
    %c0_55 = arith.constant 0 : index
    %c128_56 = arith.constant 128 : index
    %70 = vector.load %arg6[%c0_54, %c0_55, %c128_56] : memref<1x16x580xbf16, #tpu.memory_space<vmem>>, vector<1x16x324xbf16>
    %71 = vector.shape_cast %70 : vector<1x16x324xbf16> to vector<16x324xbf16>
    %72 = vector.shape_cast %69 : vector<16x324xbf16> to vector<1x16x324xbf16>
    tpu.vector_store %arg6[%c0_54, %c0_55, %c128_56], %72 {strides = array<i32>} : memref<1x16x580xbf16, #tpu.memory_space<vmem>>, vector<1x16x324xbf16>,
    %cst_57 = arith.constant 0.000000e+00 : bf16
    %73 = vector.broadcast %cst_57 : bf16 to vector<16x128xbf16>
    %c0_58 = arith.constant 0 : index
    %c0_59 = arith.constant 0 : index
    %c0_60 = arith.constant 0 : index
    %74 = vector.load %arg6[%c0_58, %c0_59, %c0_60] : memref<1x16x580xbf16, #tpu.memory_space<vmem>>, vector<1x16x128xbf16>
    %75 = vector.shape_cast %74 : vector<1x16x128xbf16> to vector<16x128xbf16>
    %76 = vector.shape_cast %73 : vector<16x128xbf16> to vector<1x16x128xbf16>
    tpu.vector_store %arg6[%c0_58, %c0_59, %c0_60], %76 {strides = array<i32>} : memref<1x16x580xbf16, #tpu.memory_space<vmem>>, vector<1x16x128xbf16>,
    %cst_61 = arith.constant 0.000000e+00 : bf16
    %77 = vector.broadcast %cst_61 : bf16 to vector<16x128xbf16>
    %c0_62 = arith.constant 0 : index
    %c0_63 = arith.constant 0 : index
    %c452 = arith.constant 452 : index
    %78 = vector.load %arg6[%c0_62, %c0_63, %c452] : memref<1x16x580xbf16, #tpu.memory_space<vmem>>, vector<1x16x128xbf16>
    %79 = vector.shape_cast %78 : vector<1x16x128xbf16> to vector<16x128xbf16>
    %80 = vector.shape_cast %77 : vector<16x128xbf16> to vector<1x16x128xbf16>
    tpu.vector_store %arg6[%c0_62, %c0_63, %c452], %80 {strides = array<i32>} : memref<1x16x580xbf16, #tpu.memory_space<vmem>>, vector<1x16x128xbf16>,
    return
  }
  func.func @transform_0(%arg0: i32) -> (i32, i32, i32) {
    %c0_i32 = arith.constant 0 : i32
    %c0_i32_0 = arith.constant 0 : i32
    %c0_i32_1 = arith.constant 0 : i32
    return %arg0, %c0_i32, %c0_i32_0 : i32, i32, i32
  }
  func.func @transform_1(%arg0: i32) -> (i32, i32, i32) {
    %c0_i32 = arith.constant 0 : i32
    %c0_i32_0 = arith.constant 0 : i32
    %c0_i32_1 = arith.constant 0 : i32
    %c0_i32_2 = arith.constant 0 : i32
    return %c0_i32, %c0_i32_0, %c0_i32_1 : i32, i32, i32
  }
  func.func @transform_2(%arg0: i32) -> (i32, i32) {
    %c0_i32 = arith.constant 0 : i32
    %c0_i32_0 = arith.constant 0 : i32
    %c0_i32_1 = arith.constant 0 : i32
    return %c0_i32, %c0_i32_0 : i32, i32
  }
  func.func @transform_3(%arg0: i32) -> (i32, i32) {
    %c0_i32 = arith.constant 0 : i32
    %c0_i32_0 = arith.constant 0 : i32
    %c0_i32_1 = arith.constant 0 : i32
    return %c0_i32, %c0_i32_0 : i32, i32
  }
  func.func @transform_4(%arg0: i32) -> (i32, i32, i32) {
    %c0_i32 = arith.constant 0 : i32
    %c0_i32_0 = arith.constant 0 : i32
    %c0_i32_1 = arith.constant 0 : i32
    return %arg0, %c0_i32, %c0_i32_0 : i32, i32, i32
  }
  func.func @transform_5(%arg0: i32) -> (i32, i32, i32) {
    %c0_i32 = arith.constant 0 : i32
    %c0_i32_0 = arith.constant 0 : i32
    %c0_i32_1 = arith.constant 0 : i32
    return %arg0, %c0_i32, %c0_i32_0 : i32, i32, i32
  }
}

module attributes {stable_mosaic.version = 11 : i64} {
  func.func @_fused_conv_kernel(%arg0: i32, %arg1: memref<1x8x580xbf16, #tpu.memory_space<vmem>>, %arg2: memref<9x16x8xbf16, #tpu.memory_space<vmem>>, %arg3: memref<16x1xf32, #tpu.memory_space<vmem>>, %arg4: memref<1x324xf32, #tpu.memory_space<vmem>>, %arg5: memref<1x16x580xbf16, #tpu.memory_space<vmem>>) attributes {dimension_semantics = [#tpu.dimension_semantics<parallel>], iteration_bounds = array<i64: 2>, scalar_prefetch = 0 : i64, scratch_operands = 0 : i64, tpu.core_type = #tpu.core_type<tc>, window_params = [{transform_indices = @transform_0, window_bounds = array<i64: 1, 8, 580>}, {pipeline_mode = #tpu.pipeline_mode<synchronous>, transform_indices = @transform_1, window_bounds = array<i64: 9, 16, 8>}, {pipeline_mode = #tpu.pipeline_mode<synchronous>, transform_indices = @transform_2, window_bounds = array<i64: 16, 1>}, {pipeline_mode = #tpu.pipeline_mode<synchronous>, transform_indices = @transform_3, window_bounds = array<i64: 1, 324>}, {transform_indices = @transform_4, window_bounds = array<i64: 1, 16, 580>}]} {
    %c0 = arith.constant 0 : index
    %c0_0 = arith.constant 0 : index
    %c0_1 = arith.constant 0 : index
    %0 = vector.load %arg2[%c0, %c0_0, %c0_1] : memref<9x16x8xbf16, #tpu.memory_space<vmem>>, vector<1x16x8xbf16>
    %1 = vector.shape_cast %0 : vector<1x16x8xbf16> to vector<16x8xbf16>
    %c0_2 = arith.constant 0 : index
    %c0_3 = arith.constant 0 : index
    %c109 = arith.constant 109 : index
    %2 = vector.load %arg1[%c0_2, %c0_3, %c109] : memref<1x8x580xbf16, #tpu.memory_space<vmem>>, vector<1x8x324xbf16>
    %3 = vector.shape_cast %2 : vector<1x8x324xbf16> to vector<8x324xbf16>
    %cst = arith.constant dense<0.000000e+00> : vector<16x324xf32>
    %4 = tpu.matmul %1, %3, %cst {dimension_numbers = #tpu.dot_dimension_numbers<[1], [0], [0], [1], [0, 0, 1, 1], [], []>} : vector<16x8xbf16>, vector<8x324xbf16>, vector<16x324xf32> -> vector<16x324xf32>
    %c1 = arith.constant 1 : index
    %c0_4 = arith.constant 0 : index
    %c0_5 = arith.constant 0 : index
    %5 = vector.load %arg2[%c1, %c0_4, %c0_5] : memref<9x16x8xbf16, #tpu.memory_space<vmem>>, vector<1x16x8xbf16>
    %6 = vector.shape_cast %5 : vector<1x16x8xbf16> to vector<16x8xbf16>
    %c0_6 = arith.constant 0 : index
    %c0_7 = arith.constant 0 : index
    %c110 = arith.constant 110 : index
    %7 = vector.load %arg1[%c0_6, %c0_7, %c110] : memref<1x8x580xbf16, #tpu.memory_space<vmem>>, vector<1x8x324xbf16>
    %8 = vector.shape_cast %7 : vector<1x8x324xbf16> to vector<8x324xbf16>
    %cst_8 = arith.constant dense<0.000000e+00> : vector<16x324xf32>
    %9 = tpu.matmul %6, %8, %cst_8 {dimension_numbers = #tpu.dot_dimension_numbers<[1], [0], [0], [1], [0, 0, 1, 1], [], []>} : vector<16x8xbf16>, vector<8x324xbf16>, vector<16x324xf32> -> vector<16x324xf32>
    %10 = arith.addf %4, %9 : vector<16x324xf32>
    %c2 = arith.constant 2 : index
    %c0_9 = arith.constant 0 : index
    %c0_10 = arith.constant 0 : index
    %11 = vector.load %arg2[%c2, %c0_9, %c0_10] : memref<9x16x8xbf16, #tpu.memory_space<vmem>>, vector<1x16x8xbf16>
    %12 = vector.shape_cast %11 : vector<1x16x8xbf16> to vector<16x8xbf16>
    %c0_11 = arith.constant 0 : index
    %c0_12 = arith.constant 0 : index
    %c111 = arith.constant 111 : index
    %13 = vector.load %arg1[%c0_11, %c0_12, %c111] : memref<1x8x580xbf16, #tpu.memory_space<vmem>>, vector<1x8x324xbf16>
    %14 = vector.shape_cast %13 : vector<1x8x324xbf16> to vector<8x324xbf16>
    %cst_13 = arith.constant dense<0.000000e+00> : vector<16x324xf32>
    %15 = tpu.matmul %12, %14, %cst_13 {dimension_numbers = #tpu.dot_dimension_numbers<[1], [0], [0], [1], [0, 0, 1, 1], [], []>} : vector<16x8xbf16>, vector<8x324xbf16>, vector<16x324xf32> -> vector<16x324xf32>
    %16 = arith.addf %10, %15 : vector<16x324xf32>
    %c3 = arith.constant 3 : index
    %c0_14 = arith.constant 0 : index
    %c0_15 = arith.constant 0 : index
    %17 = vector.load %arg2[%c3, %c0_14, %c0_15] : memref<9x16x8xbf16, #tpu.memory_space<vmem>>, vector<1x16x8xbf16>
    %18 = vector.shape_cast %17 : vector<1x16x8xbf16> to vector<16x8xbf16>
    %c0_16 = arith.constant 0 : index
    %c0_17 = arith.constant 0 : index
    %c127 = arith.constant 127 : index
    %19 = vector.load %arg1[%c0_16, %c0_17, %c127] : memref<1x8x580xbf16, #tpu.memory_space<vmem>>, vector<1x8x324xbf16>
    %20 = vector.shape_cast %19 : vector<1x8x324xbf16> to vector<8x324xbf16>
    %cst_18 = arith.constant dense<0.000000e+00> : vector<16x324xf32>
    %21 = tpu.matmul %18, %20, %cst_18 {dimension_numbers = #tpu.dot_dimension_numbers<[1], [0], [0], [1], [0, 0, 1, 1], [], []>} : vector<16x8xbf16>, vector<8x324xbf16>, vector<16x324xf32> -> vector<16x324xf32>
    %22 = arith.addf %16, %21 : vector<16x324xf32>
    %c4 = arith.constant 4 : index
    %c0_19 = arith.constant 0 : index
    %c0_20 = arith.constant 0 : index
    %23 = vector.load %arg2[%c4, %c0_19, %c0_20] : memref<9x16x8xbf16, #tpu.memory_space<vmem>>, vector<1x16x8xbf16>
    %24 = vector.shape_cast %23 : vector<1x16x8xbf16> to vector<16x8xbf16>
    %c0_21 = arith.constant 0 : index
    %c0_22 = arith.constant 0 : index
    %c128 = arith.constant 128 : index
    %25 = vector.load %arg1[%c0_21, %c0_22, %c128] : memref<1x8x580xbf16, #tpu.memory_space<vmem>>, vector<1x8x324xbf16>
    %26 = vector.shape_cast %25 : vector<1x8x324xbf16> to vector<8x324xbf16>
    %cst_23 = arith.constant dense<0.000000e+00> : vector<16x324xf32>
    %27 = tpu.matmul %24, %26, %cst_23 {dimension_numbers = #tpu.dot_dimension_numbers<[1], [0], [0], [1], [0, 0, 1, 1], [], []>} : vector<16x8xbf16>, vector<8x324xbf16>, vector<16x324xf32> -> vector<16x324xf32>
    %28 = arith.addf %22, %27 : vector<16x324xf32>
    %c5 = arith.constant 5 : index
    %c0_24 = arith.constant 0 : index
    %c0_25 = arith.constant 0 : index
    %29 = vector.load %arg2[%c5, %c0_24, %c0_25] : memref<9x16x8xbf16, #tpu.memory_space<vmem>>, vector<1x16x8xbf16>
    %30 = vector.shape_cast %29 : vector<1x16x8xbf16> to vector<16x8xbf16>
    %c0_26 = arith.constant 0 : index
    %c0_27 = arith.constant 0 : index
    %c129 = arith.constant 129 : index
    %31 = vector.load %arg1[%c0_26, %c0_27, %c129] : memref<1x8x580xbf16, #tpu.memory_space<vmem>>, vector<1x8x324xbf16>
    %32 = vector.shape_cast %31 : vector<1x8x324xbf16> to vector<8x324xbf16>
    %cst_28 = arith.constant dense<0.000000e+00> : vector<16x324xf32>
    %33 = tpu.matmul %30, %32, %cst_28 {dimension_numbers = #tpu.dot_dimension_numbers<[1], [0], [0], [1], [0, 0, 1, 1], [], []>} : vector<16x8xbf16>, vector<8x324xbf16>, vector<16x324xf32> -> vector<16x324xf32>
    %34 = arith.addf %28, %33 : vector<16x324xf32>
    %c6 = arith.constant 6 : index
    %c0_29 = arith.constant 0 : index
    %c0_30 = arith.constant 0 : index
    %35 = vector.load %arg2[%c6, %c0_29, %c0_30] : memref<9x16x8xbf16, #tpu.memory_space<vmem>>, vector<1x16x8xbf16>
    %36 = vector.shape_cast %35 : vector<1x16x8xbf16> to vector<16x8xbf16>
    %c0_31 = arith.constant 0 : index
    %c0_32 = arith.constant 0 : index
    %c145 = arith.constant 145 : index
    %37 = vector.load %arg1[%c0_31, %c0_32, %c145] : memref<1x8x580xbf16, #tpu.memory_space<vmem>>, vector<1x8x324xbf16>
    %38 = vector.shape_cast %37 : vector<1x8x324xbf16> to vector<8x324xbf16>
    %cst_33 = arith.constant dense<0.000000e+00> : vector<16x324xf32>
    %39 = tpu.matmul %36, %38, %cst_33 {dimension_numbers = #tpu.dot_dimension_numbers<[1], [0], [0], [1], [0, 0, 1, 1], [], []>} : vector<16x8xbf16>, vector<8x324xbf16>, vector<16x324xf32> -> vector<16x324xf32>
    %40 = arith.addf %34, %39 : vector<16x324xf32>
    %c7 = arith.constant 7 : index
    %c0_34 = arith.constant 0 : index
    %c0_35 = arith.constant 0 : index
    %41 = vector.load %arg2[%c7, %c0_34, %c0_35] : memref<9x16x8xbf16, #tpu.memory_space<vmem>>, vector<1x16x8xbf16>
    %42 = vector.shape_cast %41 : vector<1x16x8xbf16> to vector<16x8xbf16>
    %c0_36 = arith.constant 0 : index
    %c0_37 = arith.constant 0 : index
    %c146 = arith.constant 146 : index
    %43 = vector.load %arg1[%c0_36, %c0_37, %c146] : memref<1x8x580xbf16, #tpu.memory_space<vmem>>, vector<1x8x324xbf16>
    %44 = vector.shape_cast %43 : vector<1x8x324xbf16> to vector<8x324xbf16>
    %cst_38 = arith.constant dense<0.000000e+00> : vector<16x324xf32>
    %45 = tpu.matmul %42, %44, %cst_38 {dimension_numbers = #tpu.dot_dimension_numbers<[1], [0], [0], [1], [0, 0, 1, 1], [], []>} : vector<16x8xbf16>, vector<8x324xbf16>, vector<16x324xf32> -> vector<16x324xf32>
    %46 = arith.addf %40, %45 : vector<16x324xf32>
    %c8 = arith.constant 8 : index
    %c0_39 = arith.constant 0 : index
    %c0_40 = arith.constant 0 : index
    %47 = vector.load %arg2[%c8, %c0_39, %c0_40] : memref<9x16x8xbf16, #tpu.memory_space<vmem>>, vector<1x16x8xbf16>
    %48 = vector.shape_cast %47 : vector<1x16x8xbf16> to vector<16x8xbf16>
    %c0_41 = arith.constant 0 : index
    %c0_42 = arith.constant 0 : index
    %c147 = arith.constant 147 : index
    %49 = vector.load %arg1[%c0_41, %c0_42, %c147] : memref<1x8x580xbf16, #tpu.memory_space<vmem>>, vector<1x8x324xbf16>
    %50 = vector.shape_cast %49 : vector<1x8x324xbf16> to vector<8x324xbf16>
    %cst_43 = arith.constant dense<0.000000e+00> : vector<16x324xf32>
    %51 = tpu.matmul %48, %50, %cst_43 {dimension_numbers = #tpu.dot_dimension_numbers<[1], [0], [0], [1], [0, 0, 1, 1], [], []>} : vector<16x8xbf16>, vector<8x324xbf16>, vector<16x324xf32> -> vector<16x324xf32>
    %52 = arith.addf %46, %51 : vector<16x324xf32>
    %c0_44 = arith.constant 0 : index
    %c0_45 = arith.constant 0 : index
    %53 = vector.load %arg3[%c0_44, %c0_45] : memref<16x1xf32, #tpu.memory_space<vmem>>, vector<16x1xf32>
    %54 = vector.broadcast %53 : vector<16x1xf32> to vector<16x324xf32>
    %55 = arith.addf %52, %54 : vector<16x324xf32>
    %cst_46 = arith.constant 0.000000e+00 : f32
    %56 = vector.broadcast %cst_46 : f32 to vector<16x324xf32>
    %57 = arith.maximumf %55, %56 : vector<16x324xf32>
    %c0_47 = arith.constant 0 : index
    %c0_48 = arith.constant 0 : index
    %58 = vector.load %arg4[%c0_47, %c0_48] : memref<1x324xf32, #tpu.memory_space<vmem>>, vector<1x324xf32>
    %cst_49 = arith.constant 0.000000e+00 : f32
    %59 = vector.broadcast %cst_49 : f32 to vector<1x324xf32>
    %60 = arith.cmpf ogt, %58, %59 : vector<1x324xf32>
    %cst_50 = arith.constant 0.000000e+00 : f32
    %61 = vector.shape_cast %60 : vector<1x324xi1> to vector<1x324xi1>
    %62 = vector.broadcast %61 : vector<1x324xi1> to vector<16x324xi1>
    %63 = vector.broadcast %cst_50 : f32 to vector<16x324xf32>
    %64 = arith.select %62, %57, %63 : vector<16x324xi1>, vector<16x324xf32>
    %65 = arith.truncf %64 : vector<16x324xf32> to vector<16x324xbf16>
    %c0_51 = arith.constant 0 : index
    %c0_52 = arith.constant 0 : index
    %c128_53 = arith.constant 128 : index
    %66 = vector.load %arg5[%c0_51, %c0_52, %c128_53] : memref<1x16x580xbf16, #tpu.memory_space<vmem>>, vector<1x16x324xbf16>
    %67 = vector.shape_cast %66 : vector<1x16x324xbf16> to vector<16x324xbf16>
    %68 = vector.shape_cast %65 : vector<16x324xbf16> to vector<1x16x324xbf16>
    tpu.vector_store %arg5[%c0_51, %c0_52, %c128_53], %68 {strides = array<i32>} : memref<1x16x580xbf16, #tpu.memory_space<vmem>>, vector<1x16x324xbf16>,
    %cst_54 = arith.constant 0.000000e+00 : bf16
    %69 = vector.broadcast %cst_54 : bf16 to vector<16x128xbf16>
    %c0_55 = arith.constant 0 : index
    %c0_56 = arith.constant 0 : index
    %c0_57 = arith.constant 0 : index
    %70 = vector.load %arg5[%c0_55, %c0_56, %c0_57] : memref<1x16x580xbf16, #tpu.memory_space<vmem>>, vector<1x16x128xbf16>
    %71 = vector.shape_cast %70 : vector<1x16x128xbf16> to vector<16x128xbf16>
    %72 = vector.shape_cast %69 : vector<16x128xbf16> to vector<1x16x128xbf16>
    tpu.vector_store %arg5[%c0_55, %c0_56, %c0_57], %72 {strides = array<i32>} : memref<1x16x580xbf16, #tpu.memory_space<vmem>>, vector<1x16x128xbf16>,
    %cst_58 = arith.constant 0.000000e+00 : bf16
    %73 = vector.broadcast %cst_58 : bf16 to vector<16x128xbf16>
    %c0_59 = arith.constant 0 : index
    %c0_60 = arith.constant 0 : index
    %c452 = arith.constant 452 : index
    %74 = vector.load %arg5[%c0_59, %c0_60, %c452] : memref<1x16x580xbf16, #tpu.memory_space<vmem>>, vector<1x16x128xbf16>
    %75 = vector.shape_cast %74 : vector<1x16x128xbf16> to vector<16x128xbf16>
    %76 = vector.shape_cast %73 : vector<16x128xbf16> to vector<1x16x128xbf16>
    tpu.vector_store %arg5[%c0_59, %c0_60, %c452], %76 {strides = array<i32>} : memref<1x16x580xbf16, #tpu.memory_space<vmem>>, vector<1x16x128xbf16>,
    return
  }
  func.func @transform_0(%arg0: i32) -> (i32, i32, i32) {
    %c0_i32 = arith.constant 0 : i32
    %c0_i32_0 = arith.constant 0 : i32
    %c0_i32_1 = arith.constant 0 : i32
    return %arg0, %c0_i32, %c0_i32_0 : i32, i32, i32
  }
  func.func @transform_1(%arg0: i32) -> (i32, i32, i32) {
    %c0_i32 = arith.constant 0 : i32
    %c0_i32_0 = arith.constant 0 : i32
    %c0_i32_1 = arith.constant 0 : i32
    %c0_i32_2 = arith.constant 0 : i32
    return %c0_i32, %c0_i32_0, %c0_i32_1 : i32, i32, i32
  }
  func.func @transform_2(%arg0: i32) -> (i32, i32) {
    %c0_i32 = arith.constant 0 : i32
    %c0_i32_0 = arith.constant 0 : i32
    %c0_i32_1 = arith.constant 0 : i32
    return %c0_i32, %c0_i32_0 : i32, i32
  }
  func.func @transform_3(%arg0: i32) -> (i32, i32) {
    %c0_i32 = arith.constant 0 : i32
    %c0_i32_0 = arith.constant 0 : i32
    %c0_i32_1 = arith.constant 0 : i32
    return %c0_i32, %c0_i32_0 : i32, i32
  }
  func.func @transform_4(%arg0: i32) -> (i32, i32, i32) {
    %c0_i32 = arith.constant 0 : i32
    %c0_i32_0 = arith.constant 0 : i32
    %c0_i32_1 = arith.constant 0 : i32
    return %arg0, %c0_i32, %c0_i32_0 : i32, i32, i32
  }
}

module attributes {stable_mosaic.version = 11 : i64} {
  func.func @_fused_conv_kernel(%arg0: i32, %arg1: memref<1x16x580xbf16, #tpu.memory_space<vmem>>, %arg2: memref<9x16x16xbf16, #tpu.memory_space<vmem>>, %arg3: memref<16x1xf32, #tpu.memory_space<vmem>>, %arg4: memref<1x324xf32, #tpu.memory_space<vmem>>, %arg5: memref<1x16x580xbf16, #tpu.memory_space<vmem>>) attributes {dimension_semantics = [#tpu.dimension_semantics<parallel>], iteration_bounds = array<i64: 2>, scalar_prefetch = 0 : i64, scratch_operands = 0 : i64, tpu.core_type = #tpu.core_type<tc>, window_params = [{transform_indices = @transform_0, window_bounds = array<i64: 1, 16, 580>}, {pipeline_mode = #tpu.pipeline_mode<synchronous>, transform_indices = @transform_1, window_bounds = array<i64: 9, 16, 16>}, {pipeline_mode = #tpu.pipeline_mode<synchronous>, transform_indices = @transform_2, window_bounds = array<i64: 16, 1>}, {pipeline_mode = #tpu.pipeline_mode<synchronous>, transform_indices = @transform_3, window_bounds = array<i64: 1, 324>}, {transform_indices = @transform_4, window_bounds = array<i64: 1, 16, 580>}]} {
    %c0 = arith.constant 0 : index
    %c0_0 = arith.constant 0 : index
    %c0_1 = arith.constant 0 : index
    %0 = vector.load %arg2[%c0, %c0_0, %c0_1] : memref<9x16x16xbf16, #tpu.memory_space<vmem>>, vector<1x16x16xbf16>
    %1 = vector.shape_cast %0 : vector<1x16x16xbf16> to vector<16x16xbf16>
    %c0_2 = arith.constant 0 : index
    %c0_3 = arith.constant 0 : index
    %c109 = arith.constant 109 : index
    %2 = vector.load %arg1[%c0_2, %c0_3, %c109] : memref<1x16x580xbf16, #tpu.memory_space<vmem>>, vector<1x16x324xbf16>
    %3 = vector.shape_cast %2 : vector<1x16x324xbf16> to vector<16x324xbf16>
    %cst = arith.constant dense<0.000000e+00> : vector<16x324xf32>
    %4 = tpu.matmul %1, %3, %cst {dimension_numbers = #tpu.dot_dimension_numbers<[1], [0], [0], [1], [0, 0, 1, 1], [], []>} : vector<16x16xbf16>, vector<16x324xbf16>, vector<16x324xf32> -> vector<16x324xf32>
    %c1 = arith.constant 1 : index
    %c0_4 = arith.constant 0 : index
    %c0_5 = arith.constant 0 : index
    %5 = vector.load %arg2[%c1, %c0_4, %c0_5] : memref<9x16x16xbf16, #tpu.memory_space<vmem>>, vector<1x16x16xbf16>
    %6 = vector.shape_cast %5 : vector<1x16x16xbf16> to vector<16x16xbf16>
    %c0_6 = arith.constant 0 : index
    %c0_7 = arith.constant 0 : index
    %c110 = arith.constant 110 : index
    %7 = vector.load %arg1[%c0_6, %c0_7, %c110] : memref<1x16x580xbf16, #tpu.memory_space<vmem>>, vector<1x16x324xbf16>
    %8 = vector.shape_cast %7 : vector<1x16x324xbf16> to vector<16x324xbf16>
    %cst_8 = arith.constant dense<0.000000e+00> : vector<16x324xf32>
    %9 = tpu.matmul %6, %8, %cst_8 {dimension_numbers = #tpu.dot_dimension_numbers<[1], [0], [0], [1], [0, 0, 1, 1], [], []>} : vector<16x16xbf16>, vector<16x324xbf16>, vector<16x324xf32> -> vector<16x324xf32>
    %10 = arith.addf %4, %9 : vector<16x324xf32>
    %c2 = arith.constant 2 : index
    %c0_9 = arith.constant 0 : index
    %c0_10 = arith.constant 0 : index
    %11 = vector.load %arg2[%c2, %c0_9, %c0_10] : memref<9x16x16xbf16, #tpu.memory_space<vmem>>, vector<1x16x16xbf16>
    %12 = vector.shape_cast %11 : vector<1x16x16xbf16> to vector<16x16xbf16>
    %c0_11 = arith.constant 0 : index
    %c0_12 = arith.constant 0 : index
    %c111 = arith.constant 111 : index
    %13 = vector.load %arg1[%c0_11, %c0_12, %c111] : memref<1x16x580xbf16, #tpu.memory_space<vmem>>, vector<1x16x324xbf16>
    %14 = vector.shape_cast %13 : vector<1x16x324xbf16> to vector<16x324xbf16>
    %cst_13 = arith.constant dense<0.000000e+00> : vector<16x324xf32>
    %15 = tpu.matmul %12, %14, %cst_13 {dimension_numbers = #tpu.dot_dimension_numbers<[1], [0], [0], [1], [0, 0, 1, 1], [], []>} : vector<16x16xbf16>, vector<16x324xbf16>, vector<16x324xf32> -> vector<16x324xf32>
    %16 = arith.addf %10, %15 : vector<16x324xf32>
    %c3 = arith.constant 3 : index
    %c0_14 = arith.constant 0 : index
    %c0_15 = arith.constant 0 : index
    %17 = vector.load %arg2[%c3, %c0_14, %c0_15] : memref<9x16x16xbf16, #tpu.memory_space<vmem>>, vector<1x16x16xbf16>
    %18 = vector.shape_cast %17 : vector<1x16x16xbf16> to vector<16x16xbf16>
    %c0_16 = arith.constant 0 : index
    %c0_17 = arith.constant 0 : index
    %c127 = arith.constant 127 : index
    %19 = vector.load %arg1[%c0_16, %c0_17, %c127] : memref<1x16x580xbf16, #tpu.memory_space<vmem>>, vector<1x16x324xbf16>
    %20 = vector.shape_cast %19 : vector<1x16x324xbf16> to vector<16x324xbf16>
    %cst_18 = arith.constant dense<0.000000e+00> : vector<16x324xf32>
    %21 = tpu.matmul %18, %20, %cst_18 {dimension_numbers = #tpu.dot_dimension_numbers<[1], [0], [0], [1], [0, 0, 1, 1], [], []>} : vector<16x16xbf16>, vector<16x324xbf16>, vector<16x324xf32> -> vector<16x324xf32>
    %22 = arith.addf %16, %21 : vector<16x324xf32>
    %c4 = arith.constant 4 : index
    %c0_19 = arith.constant 0 : index
    %c0_20 = arith.constant 0 : index
    %23 = vector.load %arg2[%c4, %c0_19, %c0_20] : memref<9x16x16xbf16, #tpu.memory_space<vmem>>, vector<1x16x16xbf16>
    %24 = vector.shape_cast %23 : vector<1x16x16xbf16> to vector<16x16xbf16>
    %c0_21 = arith.constant 0 : index
    %c0_22 = arith.constant 0 : index
    %c128 = arith.constant 128 : index
    %25 = vector.load %arg1[%c0_21, %c0_22, %c128] : memref<1x16x580xbf16, #tpu.memory_space<vmem>>, vector<1x16x324xbf16>
    %26 = vector.shape_cast %25 : vector<1x16x324xbf16> to vector<16x324xbf16>
    %cst_23 = arith.constant dense<0.000000e+00> : vector<16x324xf32>
    %27 = tpu.matmul %24, %26, %cst_23 {dimension_numbers = #tpu.dot_dimension_numbers<[1], [0], [0], [1], [0, 0, 1, 1], [], []>} : vector<16x16xbf16>, vector<16x324xbf16>, vector<16x324xf32> -> vector<16x324xf32>
    %28 = arith.addf %22, %27 : vector<16x324xf32>
    %c5 = arith.constant 5 : index
    %c0_24 = arith.constant 0 : index
    %c0_25 = arith.constant 0 : index
    %29 = vector.load %arg2[%c5, %c0_24, %c0_25] : memref<9x16x16xbf16, #tpu.memory_space<vmem>>, vector<1x16x16xbf16>
    %30 = vector.shape_cast %29 : vector<1x16x16xbf16> to vector<16x16xbf16>
    %c0_26 = arith.constant 0 : index
    %c0_27 = arith.constant 0 : index
    %c129 = arith.constant 129 : index
    %31 = vector.load %arg1[%c0_26, %c0_27, %c129] : memref<1x16x580xbf16, #tpu.memory_space<vmem>>, vector<1x16x324xbf16>
    %32 = vector.shape_cast %31 : vector<1x16x324xbf16> to vector<16x324xbf16>
    %cst_28 = arith.constant dense<0.000000e+00> : vector<16x324xf32>
    %33 = tpu.matmul %30, %32, %cst_28 {dimension_numbers = #tpu.dot_dimension_numbers<[1], [0], [0], [1], [0, 0, 1, 1], [], []>} : vector<16x16xbf16>, vector<16x324xbf16>, vector<16x324xf32> -> vector<16x324xf32>
    %34 = arith.addf %28, %33 : vector<16x324xf32>
    %c6 = arith.constant 6 : index
    %c0_29 = arith.constant 0 : index
    %c0_30 = arith.constant 0 : index
    %35 = vector.load %arg2[%c6, %c0_29, %c0_30] : memref<9x16x16xbf16, #tpu.memory_space<vmem>>, vector<1x16x16xbf16>
    %36 = vector.shape_cast %35 : vector<1x16x16xbf16> to vector<16x16xbf16>
    %c0_31 = arith.constant 0 : index
    %c0_32 = arith.constant 0 : index
    %c145 = arith.constant 145 : index
    %37 = vector.load %arg1[%c0_31, %c0_32, %c145] : memref<1x16x580xbf16, #tpu.memory_space<vmem>>, vector<1x16x324xbf16>
    %38 = vector.shape_cast %37 : vector<1x16x324xbf16> to vector<16x324xbf16>
    %cst_33 = arith.constant dense<0.000000e+00> : vector<16x324xf32>
    %39 = tpu.matmul %36, %38, %cst_33 {dimension_numbers = #tpu.dot_dimension_numbers<[1], [0], [0], [1], [0, 0, 1, 1], [], []>} : vector<16x16xbf16>, vector<16x324xbf16>, vector<16x324xf32> -> vector<16x324xf32>
    %40 = arith.addf %34, %39 : vector<16x324xf32>
    %c7 = arith.constant 7 : index
    %c0_34 = arith.constant 0 : index
    %c0_35 = arith.constant 0 : index
    %41 = vector.load %arg2[%c7, %c0_34, %c0_35] : memref<9x16x16xbf16, #tpu.memory_space<vmem>>, vector<1x16x16xbf16>
    %42 = vector.shape_cast %41 : vector<1x16x16xbf16> to vector<16x16xbf16>
    %c0_36 = arith.constant 0 : index
    %c0_37 = arith.constant 0 : index
    %c146 = arith.constant 146 : index
    %43 = vector.load %arg1[%c0_36, %c0_37, %c146] : memref<1x16x580xbf16, #tpu.memory_space<vmem>>, vector<1x16x324xbf16>
    %44 = vector.shape_cast %43 : vector<1x16x324xbf16> to vector<16x324xbf16>
    %cst_38 = arith.constant dense<0.000000e+00> : vector<16x324xf32>
    %45 = tpu.matmul %42, %44, %cst_38 {dimension_numbers = #tpu.dot_dimension_numbers<[1], [0], [0], [1], [0, 0, 1, 1], [], []>} : vector<16x16xbf16>, vector<16x324xbf16>, vector<16x324xf32> -> vector<16x324xf32>
    %46 = arith.addf %40, %45 : vector<16x324xf32>
    %c8 = arith.constant 8 : index
    %c0_39 = arith.constant 0 : index
    %c0_40 = arith.constant 0 : index
    %47 = vector.load %arg2[%c8, %c0_39, %c0_40] : memref<9x16x16xbf16, #tpu.memory_space<vmem>>, vector<1x16x16xbf16>
    %48 = vector.shape_cast %47 : vector<1x16x16xbf16> to vector<16x16xbf16>
    %c0_41 = arith.constant 0 : index
    %c0_42 = arith.constant 0 : index
    %c147 = arith.constant 147 : index
    %49 = vector.load %arg1[%c0_41, %c0_42, %c147] : memref<1x16x580xbf16, #tpu.memory_space<vmem>>, vector<1x16x324xbf16>
    %50 = vector.shape_cast %49 : vector<1x16x324xbf16> to vector<16x324xbf16>
    %cst_43 = arith.constant dense<0.000000e+00> : vector<16x324xf32>
    %51 = tpu.matmul %48, %50, %cst_43 {dimension_numbers = #tpu.dot_dimension_numbers<[1], [0], [0], [1], [0, 0, 1, 1], [], []>} : vector<16x16xbf16>, vector<16x324xbf16>, vector<16x324xf32> -> vector<16x324xf32>
    %52 = arith.addf %46, %51 : vector<16x324xf32>
    %c0_44 = arith.constant 0 : index
    %c0_45 = arith.constant 0 : index
    %53 = vector.load %arg3[%c0_44, %c0_45] : memref<16x1xf32, #tpu.memory_space<vmem>>, vector<16x1xf32>
    %54 = vector.broadcast %53 : vector<16x1xf32> to vector<16x324xf32>
    %55 = arith.addf %52, %54 : vector<16x324xf32>
    %cst_46 = arith.constant 0.000000e+00 : f32
    %56 = vector.broadcast %cst_46 : f32 to vector<16x324xf32>
    %57 = arith.maximumf %55, %56 : vector<16x324xf32>
    %c0_47 = arith.constant 0 : index
    %c0_48 = arith.constant 0 : index
    %58 = vector.load %arg4[%c0_47, %c0_48] : memref<1x324xf32, #tpu.memory_space<vmem>>, vector<1x324xf32>
    %cst_49 = arith.constant 0.000000e+00 : f32
    %59 = vector.broadcast %cst_49 : f32 to vector<1x324xf32>
    %60 = arith.cmpf ogt, %58, %59 : vector<1x324xf32>
    %cst_50 = arith.constant 0.000000e+00 : f32
    %61 = vector.shape_cast %60 : vector<1x324xi1> to vector<1x324xi1>
    %62 = vector.broadcast %61 : vector<1x324xi1> to vector<16x324xi1>
    %63 = vector.broadcast %cst_50 : f32 to vector<16x324xf32>
    %64 = arith.select %62, %57, %63 : vector<16x324xi1>, vector<16x324xf32>
    %65 = arith.truncf %64 : vector<16x324xf32> to vector<16x324xbf16>
    %c0_51 = arith.constant 0 : index
    %c0_52 = arith.constant 0 : index
    %c128_53 = arith.constant 128 : index
    %66 = vector.load %arg5[%c0_51, %c0_52, %c128_53] : memref<1x16x580xbf16, #tpu.memory_space<vmem>>, vector<1x16x324xbf16>
    %67 = vector.shape_cast %66 : vector<1x16x324xbf16> to vector<16x324xbf16>
    %68 = vector.shape_cast %65 : vector<16x324xbf16> to vector<1x16x324xbf16>
    tpu.vector_store %arg5[%c0_51, %c0_52, %c128_53], %68 {strides = array<i32>} : memref<1x16x580xbf16, #tpu.memory_space<vmem>>, vector<1x16x324xbf16>,
    %cst_54 = arith.constant 0.000000e+00 : bf16
    %69 = vector.broadcast %cst_54 : bf16 to vector<16x128xbf16>
    %c0_55 = arith.constant 0 : index
    %c0_56 = arith.constant 0 : index
    %c0_57 = arith.constant 0 : index
    %70 = vector.load %arg5[%c0_55, %c0_56, %c0_57] : memref<1x16x580xbf16, #tpu.memory_space<vmem>>, vector<1x16x128xbf16>
    %71 = vector.shape_cast %70 : vector<1x16x128xbf16> to vector<16x128xbf16>
    %72 = vector.shape_cast %69 : vector<16x128xbf16> to vector<1x16x128xbf16>
    tpu.vector_store %arg5[%c0_55, %c0_56, %c0_57], %72 {strides = array<i32>} : memref<1x16x580xbf16, #tpu.memory_space<vmem>>, vector<1x16x128xbf16>,
    %cst_58 = arith.constant 0.000000e+00 : bf16
    %73 = vector.broadcast %cst_58 : bf16 to vector<16x128xbf16>
    %c0_59 = arith.constant 0 : index
    %c0_60 = arith.constant 0 : index
    %c452 = arith.constant 452 : index
    %74 = vector.load %arg5[%c0_59, %c0_60, %c452] : memref<1x16x580xbf16, #tpu.memory_space<vmem>>, vector<1x16x128xbf16>
    %75 = vector.shape_cast %74 : vector<1x16x128xbf16> to vector<16x128xbf16>
    %76 = vector.shape_cast %73 : vector<16x128xbf16> to vector<1x16x128xbf16>
    tpu.vector_store %arg5[%c0_59, %c0_60, %c452], %76 {strides = array<i32>} : memref<1x16x580xbf16, #tpu.memory_space<vmem>>, vector<1x16x128xbf16>,
    return
  }
  func.func @transform_0(%arg0: i32) -> (i32, i32, i32) {
    %c0_i32 = arith.constant 0 : i32
    %c0_i32_0 = arith.constant 0 : i32
    %c0_i32_1 = arith.constant 0 : i32
    return %arg0, %c0_i32, %c0_i32_0 : i32, i32, i32
  }
  func.func @transform_1(%arg0: i32) -> (i32, i32, i32) {
    %c0_i32 = arith.constant 0 : i32
    %c0_i32_0 = arith.constant 0 : i32
    %c0_i32_1 = arith.constant 0 : i32
    %c0_i32_2 = arith.constant 0 : i32
    return %c0_i32, %c0_i32_0, %c0_i32_1 : i32, i32, i32
  }
  func.func @transform_2(%arg0: i32) -> (i32, i32) {
    %c0_i32 = arith.constant 0 : i32
    %c0_i32_0 = arith.constant 0 : i32
    %c0_i32_1 = arith.constant 0 : i32
    return %c0_i32, %c0_i32_0 : i32, i32
  }
  func.func @transform_3(%arg0: i32) -> (i32, i32) {
    %c0_i32 = arith.constant 0 : i32
    %c0_i32_0 = arith.constant 0 : i32
    %c0_i32_1 = arith.constant 0 : i32
    return %c0_i32, %c0_i32_0 : i32, i32
  }
  func.func @transform_4(%arg0: i32) -> (i32, i32, i32) {
    %c0_i32 = arith.constant 0 : i32
    %c0_i32_0 = arith.constant 0 : i32
    %c0_i32_1 = arith.constant 0 : i32
    return %arg0, %c0_i32, %c0_i32_0 : i32, i32, i32
  }
}

module attributes {stable_mosaic.version = 11 : i64} {
  func.func @_matmul_bn_kernel(%arg0: i32, %arg1: memref<32x144xbf16, #tpu.memory_space<vmem>>, %arg2: memref<144x128xbf16, #tpu.memory_space<vmem>>, %arg3: memref<32x1xf32, #tpu.memory_space<vmem>>, %arg4: memref<32x128xbf16, #tpu.memory_space<vmem>>) attributes {dimension_semantics = [#tpu.dimension_semantics<parallel>], iteration_bounds = array<i64: 1>, scalar_prefetch = 0 : i64, scratch_operands = 0 : i64, tpu.core_type = #tpu.core_type<tc>, window_params = [{pipeline_mode = #tpu.pipeline_mode<synchronous>, transform_indices = @transform_0, window_bounds = array<i64: 32, 144>}, {transform_indices = @transform_1, window_bounds = array<i64: 144, 128>}, {pipeline_mode = #tpu.pipeline_mode<synchronous>, transform_indices = @transform_2, window_bounds = array<i64: 32, 1>}, {transform_indices = @transform_3, window_bounds = array<i64: 32, 128>}]} {
    %c0 = arith.constant 0 : index
    %c0_0 = arith.constant 0 : index
    %0 = vector.load %arg1[%c0, %c0_0] : memref<32x144xbf16, #tpu.memory_space<vmem>>, vector<32x144xbf16>
    %c0_1 = arith.constant 0 : index
    %c0_2 = arith.constant 0 : index
    %1 = vector.load %arg2[%c0_1, %c0_2] : memref<144x128xbf16, #tpu.memory_space<vmem>>, vector<144x128xbf16>
    %cst = arith.constant dense<0.000000e+00> : vector<32x128xf32>
    %2 = tpu.matmul %0, %1, %cst {dimension_numbers = #tpu.dot_dimension_numbers<[1], [0], [0], [1], [0, 0, 1, 1], [], []>} : vector<32x144xbf16>, vector<144x128xbf16>, vector<32x128xf32> -> vector<32x128xf32>
    %c0_3 = arith.constant 0 : index
    %c0_4 = arith.constant 0 : index
    %3 = vector.load %arg3[%c0_3, %c0_4] : memref<32x1xf32, #tpu.memory_space<vmem>>, vector<32x1xf32>
    %4 = vector.broadcast %3 : vector<32x1xf32> to vector<32x128xf32>
    %5 = arith.addf %2, %4 : vector<32x128xf32>
    %cst_5 = arith.constant 0.000000e+00 : f32
    %6 = vector.broadcast %cst_5 : f32 to vector<32x128xf32>
    %7 = arith.maximumf %5, %6 : vector<32x128xf32>
    %8 = arith.truncf %7 : vector<32x128xf32> to vector<32x128xbf16>
    %c0_6 = arith.constant 0 : index
    %c0_7 = arith.constant 0 : index
    %9 = vector.load %arg4[%c0_6, %c0_7] : memref<32x128xbf16, #tpu.memory_space<vmem>>, vector<32x128xbf16>
    tpu.vector_store %arg4[%c0_6, %c0_7], %8 {strides = array<i32>} : memref<32x128xbf16, #tpu.memory_space<vmem>>, vector<32x128xbf16>,
    return
  }
  func.func @transform_0(%arg0: i32) -> (i32, i32) {
    %c0_i32 = arith.constant 0 : i32
    %c0_i32_0 = arith.constant 0 : i32
    %c0_i32_1 = arith.constant 0 : i32
    return %c0_i32, %c0_i32_0 : i32, i32
  }
  func.func @transform_1(%arg0: i32) -> (i32, i32) {
    %c0_i32 = arith.constant 0 : i32
    %c0_i32_0 = arith.constant 0 : i32
    return %c0_i32, %arg0 : i32, i32
  }
  func.func @transform_2(%arg0: i32) -> (i32, i32) {
    %c0_i32 = arith.constant 0 : i32
    %c0_i32_0 = arith.constant 0 : i32
    %c0_i32_1 = arith.constant 0 : i32
    return %c0_i32, %c0_i32_0 : i32, i32
  }
  func.func @transform_3(%arg0: i32) -> (i32, i32) {
    %c0_i32 = arith.constant 0 : i32
    %c0_i32_0 = arith.constant 0 : i32
    return %c0_i32, %arg0 : i32, i32
  }
}

module attributes {stable_mosaic.version = 11 : i64} {
  func.func @_matmul_bn_kernel(%arg0: i32, %arg1: memref<32x16xbf16, #tpu.memory_space<vmem>>, %arg2: memref<16x128xbf16, #tpu.memory_space<vmem>>, %arg3: memref<32x1xf32, #tpu.memory_space<vmem>>, %arg4: memref<32x128xbf16, #tpu.memory_space<vmem>>) attributes {dimension_semantics = [#tpu.dimension_semantics<parallel>], iteration_bounds = array<i64: 1>, scalar_prefetch = 0 : i64, scratch_operands = 0 : i64, tpu.core_type = #tpu.core_type<tc>, window_params = [{pipeline_mode = #tpu.pipeline_mode<synchronous>, transform_indices = @transform_0, window_bounds = array<i64: 32, 16>}, {transform_indices = @transform_1, window_bounds = array<i64: 16, 128>}, {pipeline_mode = #tpu.pipeline_mode<synchronous>, transform_indices = @transform_2, window_bounds = array<i64: 32, 1>}, {transform_indices = @transform_3, window_bounds = array<i64: 32, 128>}]} {
    %c0 = arith.constant 0 : index
    %c0_0 = arith.constant 0 : index
    %0 = vector.load %arg1[%c0, %c0_0] : memref<32x16xbf16, #tpu.memory_space<vmem>>, vector<32x16xbf16>
    %c0_1 = arith.constant 0 : index
    %c0_2 = arith.constant 0 : index
    %1 = vector.load %arg2[%c0_1, %c0_2] : memref<16x128xbf16, #tpu.memory_space<vmem>>, vector<16x128xbf16>
    %cst = arith.constant dense<0.000000e+00> : vector<32x128xf32>
    %2 = tpu.matmul %0, %1, %cst {dimension_numbers = #tpu.dot_dimension_numbers<[1], [0], [0], [1], [0, 0, 1, 1], [], []>} : vector<32x16xbf16>, vector<16x128xbf16>, vector<32x128xf32> -> vector<32x128xf32>
    %c0_3 = arith.constant 0 : index
    %c0_4 = arith.constant 0 : index
    %3 = vector.load %arg3[%c0_3, %c0_4] : memref<32x1xf32, #tpu.memory_space<vmem>>, vector<32x1xf32>
    %4 = vector.broadcast %3 : vector<32x1xf32> to vector<32x128xf32>
    %5 = arith.addf %2, %4 : vector<32x128xf32>
    %6 = arith.truncf %5 : vector<32x128xf32> to vector<32x128xbf16>
    %c0_5 = arith.constant 0 : index
    %c0_6 = arith.constant 0 : index
    %7 = vector.load %arg4[%c0_5, %c0_6] : memref<32x128xbf16, #tpu.memory_space<vmem>>, vector<32x128xbf16>
    tpu.vector_store %arg4[%c0_5, %c0_6], %6 {strides = array<i32>} : memref<32x128xbf16, #tpu.memory_space<vmem>>, vector<32x128xbf16>,
    return
  }
  func.func @transform_0(%arg0: i32) -> (i32, i32) {
    %c0_i32 = arith.constant 0 : i32
    %c0_i32_0 = arith.constant 0 : i32
    %c0_i32_1 = arith.constant 0 : i32
    return %c0_i32, %c0_i32_0 : i32, i32
  }
  func.func @transform_1(%arg0: i32) -> (i32, i32) {
    %c0_i32 = arith.constant 0 : i32
    %c0_i32_0 = arith.constant 0 : i32
    return %c0_i32, %arg0 : i32, i32
  }
  func.func @transform_2(%arg0: i32) -> (i32, i32) {
    %c0_i32 = arith.constant 0 : i32
    %c0_i32_0 = arith.constant 0 : i32
    %c0_i32_1 = arith.constant 0 : i32
    return %c0_i32, %c0_i32_0 : i32, i32
  }
  func.func @transform_3(%arg0: i32) -> (i32, i32) {
    %c0_i32 = arith.constant 0 : i32
    %c0_i32_0 = arith.constant 0 : i32
    return %c0_i32, %arg0 : i32, i32
  }
}

module attributes {stable_mosaic.version = 11 : i64} {
  func.func @_fused_conv_res_kernel(%arg0: i32, %arg1: memref<1x32x356xbf16, #tpu.memory_space<vmem>>, %arg2: memref<9x32x32xbf16, #tpu.memory_space<vmem>>, %arg3: memref<32x1xf32, #tpu.memory_space<vmem>>, %arg4: memref<1x100xf32, #tpu.memory_space<vmem>>, %arg5: memref<1x32x356xbf16, #tpu.memory_space<vmem>>, %arg6: memref<1x32x356xbf16, #tpu.memory_space<vmem>>) attributes {dimension_semantics = [#tpu.dimension_semantics<parallel>], iteration_bounds = array<i64: 2>, scalar_prefetch = 0 : i64, scratch_operands = 0 : i64, tpu.core_type = #tpu.core_type<tc>, window_params = [{transform_indices = @transform_0, window_bounds = array<i64: 1, 32, 356>}, {pipeline_mode = #tpu.pipeline_mode<synchronous>, transform_indices = @transform_1, window_bounds = array<i64: 9, 32, 32>}, {pipeline_mode = #tpu.pipeline_mode<synchronous>, transform_indices = @transform_2, window_bounds = array<i64: 32, 1>}, {pipeline_mode = #tpu.pipeline_mode<synchronous>, transform_indices = @transform_3, window_bounds = array<i64: 1, 100>}, {transform_indices = @transform_4, window_bounds = array<i64: 1, 32, 356>}, {transform_indices = @transform_5, window_bounds = array<i64: 1, 32, 356>}]} {
    %c0 = arith.constant 0 : index
    %c0_0 = arith.constant 0 : index
    %c0_1 = arith.constant 0 : index
    %0 = vector.load %arg2[%c0, %c0_0, %c0_1] : memref<9x32x32xbf16, #tpu.memory_space<vmem>>, vector<1x32x32xbf16>
    %1 = vector.shape_cast %0 : vector<1x32x32xbf16> to vector<32x32xbf16>
    %c0_2 = arith.constant 0 : index
    %c0_3 = arith.constant 0 : index
    %c117 = arith.constant 117 : index
    %2 = vector.load %arg1[%c0_2, %c0_3, %c117] : memref<1x32x356xbf16, #tpu.memory_space<vmem>>, vector<1x32x100xbf16>
    %3 = vector.shape_cast %2 : vector<1x32x100xbf16> to vector<32x100xbf16>
    %cst = arith.constant dense<0.000000e+00> : vector<32x100xf32>
    %4 = tpu.matmul %1, %3, %cst {dimension_numbers = #tpu.dot_dimension_numbers<[1], [0], [0], [1], [0, 0, 1, 1], [], []>} : vector<32x32xbf16>, vector<32x100xbf16>, vector<32x100xf32> -> vector<32x100xf32>
    %c1 = arith.constant 1 : index
    %c0_4 = arith.constant 0 : index
    %c0_5 = arith.constant 0 : index
    %5 = vector.load %arg2[%c1, %c0_4, %c0_5] : memref<9x32x32xbf16, #tpu.memory_space<vmem>>, vector<1x32x32xbf16>
    %6 = vector.shape_cast %5 : vector<1x32x32xbf16> to vector<32x32xbf16>
    %c0_6 = arith.constant 0 : index
    %c0_7 = arith.constant 0 : index
    %c118 = arith.constant 118 : index
    %7 = vector.load %arg1[%c0_6, %c0_7, %c118] : memref<1x32x356xbf16, #tpu.memory_space<vmem>>, vector<1x32x100xbf16>
    %8 = vector.shape_cast %7 : vector<1x32x100xbf16> to vector<32x100xbf16>
    %cst_8 = arith.constant dense<0.000000e+00> : vector<32x100xf32>
    %9 = tpu.matmul %6, %8, %cst_8 {dimension_numbers = #tpu.dot_dimension_numbers<[1], [0], [0], [1], [0, 0, 1, 1], [], []>} : vector<32x32xbf16>, vector<32x100xbf16>, vector<32x100xf32> -> vector<32x100xf32>
    %10 = arith.addf %4, %9 : vector<32x100xf32>
    %c2 = arith.constant 2 : index
    %c0_9 = arith.constant 0 : index
    %c0_10 = arith.constant 0 : index
    %11 = vector.load %arg2[%c2, %c0_9, %c0_10] : memref<9x32x32xbf16, #tpu.memory_space<vmem>>, vector<1x32x32xbf16>
    %12 = vector.shape_cast %11 : vector<1x32x32xbf16> to vector<32x32xbf16>
    %c0_11 = arith.constant 0 : index
    %c0_12 = arith.constant 0 : index
    %c119 = arith.constant 119 : index
    %13 = vector.load %arg1[%c0_11, %c0_12, %c119] : memref<1x32x356xbf16, #tpu.memory_space<vmem>>, vector<1x32x100xbf16>
    %14 = vector.shape_cast %13 : vector<1x32x100xbf16> to vector<32x100xbf16>
    %cst_13 = arith.constant dense<0.000000e+00> : vector<32x100xf32>
    %15 = tpu.matmul %12, %14, %cst_13 {dimension_numbers = #tpu.dot_dimension_numbers<[1], [0], [0], [1], [0, 0, 1, 1], [], []>} : vector<32x32xbf16>, vector<32x100xbf16>, vector<32x100xf32> -> vector<32x100xf32>
    %16 = arith.addf %10, %15 : vector<32x100xf32>
    %c3 = arith.constant 3 : index
    %c0_14 = arith.constant 0 : index
    %c0_15 = arith.constant 0 : index
    %17 = vector.load %arg2[%c3, %c0_14, %c0_15] : memref<9x32x32xbf16, #tpu.memory_space<vmem>>, vector<1x32x32xbf16>
    %18 = vector.shape_cast %17 : vector<1x32x32xbf16> to vector<32x32xbf16>
    %c0_16 = arith.constant 0 : index
    %c0_17 = arith.constant 0 : index
    %c127 = arith.constant 127 : index
    %19 = vector.load %arg1[%c0_16, %c0_17, %c127] : memref<1x32x356xbf16, #tpu.memory_space<vmem>>, vector<1x32x100xbf16>
    %20 = vector.shape_cast %19 : vector<1x32x100xbf16> to vector<32x100xbf16>
    %cst_18 = arith.constant dense<0.000000e+00> : vector<32x100xf32>
    %21 = tpu.matmul %18, %20, %cst_18 {dimension_numbers = #tpu.dot_dimension_numbers<[1], [0], [0], [1], [0, 0, 1, 1], [], []>} : vector<32x32xbf16>, vector<32x100xbf16>, vector<32x100xf32> -> vector<32x100xf32>
    %22 = arith.addf %16, %21 : vector<32x100xf32>
    %c4 = arith.constant 4 : index
    %c0_19 = arith.constant 0 : index
    %c0_20 = arith.constant 0 : index
    %23 = vector.load %arg2[%c4, %c0_19, %c0_20] : memref<9x32x32xbf16, #tpu.memory_space<vmem>>, vector<1x32x32xbf16>
    %24 = vector.shape_cast %23 : vector<1x32x32xbf16> to vector<32x32xbf16>
    %c0_21 = arith.constant 0 : index
    %c0_22 = arith.constant 0 : index
    %c128 = arith.constant 128 : index
    %25 = vector.load %arg1[%c0_21, %c0_22, %c128] : memref<1x32x356xbf16, #tpu.memory_space<vmem>>, vector<1x32x100xbf16>
    %26 = vector.shape_cast %25 : vector<1x32x100xbf16> to vector<32x100xbf16>
    %cst_23 = arith.constant dense<0.000000e+00> : vector<32x100xf32>
    %27 = tpu.matmul %24, %26, %cst_23 {dimension_numbers = #tpu.dot_dimension_numbers<[1], [0], [0], [1], [0, 0, 1, 1], [], []>} : vector<32x32xbf16>, vector<32x100xbf16>, vector<32x100xf32> -> vector<32x100xf32>
    %28 = arith.addf %22, %27 : vector<32x100xf32>
    %c5 = arith.constant 5 : index
    %c0_24 = arith.constant 0 : index
    %c0_25 = arith.constant 0 : index
    %29 = vector.load %arg2[%c5, %c0_24, %c0_25] : memref<9x32x32xbf16, #tpu.memory_space<vmem>>, vector<1x32x32xbf16>
    %30 = vector.shape_cast %29 : vector<1x32x32xbf16> to vector<32x32xbf16>
    %c0_26 = arith.constant 0 : index
    %c0_27 = arith.constant 0 : index
    %c129 = arith.constant 129 : index
    %31 = vector.load %arg1[%c0_26, %c0_27, %c129] : memref<1x32x356xbf16, #tpu.memory_space<vmem>>, vector<1x32x100xbf16>
    %32 = vector.shape_cast %31 : vector<1x32x100xbf16> to vector<32x100xbf16>
    %cst_28 = arith.constant dense<0.000000e+00> : vector<32x100xf32>
    %33 = tpu.matmul %30, %32, %cst_28 {dimension_numbers = #tpu.dot_dimension_numbers<[1], [0], [0], [1], [0, 0, 1, 1], [], []>} : vector<32x32xbf16>, vector<32x100xbf16>, vector<32x100xf32> -> vector<32x100xf32>
    %34 = arith.addf %28, %33 : vector<32x100xf32>
    %c6 = arith.constant 6 : index
    %c0_29 = arith.constant 0 : index
    %c0_30 = arith.constant 0 : index
    %35 = vector.load %arg2[%c6, %c0_29, %c0_30] : memref<9x32x32xbf16, #tpu.memory_space<vmem>>, vector<1x32x32xbf16>
    %36 = vector.shape_cast %35 : vector<1x32x32xbf16> to vector<32x32xbf16>
    %c0_31 = arith.constant 0 : index
    %c0_32 = arith.constant 0 : index
    %c137 = arith.constant 137 : index
    %37 = vector.load %arg1[%c0_31, %c0_32, %c137] : memref<1x32x356xbf16, #tpu.memory_space<vmem>>, vector<1x32x100xbf16>
    %38 = vector.shape_cast %37 : vector<1x32x100xbf16> to vector<32x100xbf16>
    %cst_33 = arith.constant dense<0.000000e+00> : vector<32x100xf32>
    %39 = tpu.matmul %36, %38, %cst_33 {dimension_numbers = #tpu.dot_dimension_numbers<[1], [0], [0], [1], [0, 0, 1, 1], [], []>} : vector<32x32xbf16>, vector<32x100xbf16>, vector<32x100xf32> -> vector<32x100xf32>
    %40 = arith.addf %34, %39 : vector<32x100xf32>
    %c7 = arith.constant 7 : index
    %c0_34 = arith.constant 0 : index
    %c0_35 = arith.constant 0 : index
    %41 = vector.load %arg2[%c7, %c0_34, %c0_35] : memref<9x32x32xbf16, #tpu.memory_space<vmem>>, vector<1x32x32xbf16>
    %42 = vector.shape_cast %41 : vector<1x32x32xbf16> to vector<32x32xbf16>
    %c0_36 = arith.constant 0 : index
    %c0_37 = arith.constant 0 : index
    %c138 = arith.constant 138 : index
    %43 = vector.load %arg1[%c0_36, %c0_37, %c138] : memref<1x32x356xbf16, #tpu.memory_space<vmem>>, vector<1x32x100xbf16>
    %44 = vector.shape_cast %43 : vector<1x32x100xbf16> to vector<32x100xbf16>
    %cst_38 = arith.constant dense<0.000000e+00> : vector<32x100xf32>
    %45 = tpu.matmul %42, %44, %cst_38 {dimension_numbers = #tpu.dot_dimension_numbers<[1], [0], [0], [1], [0, 0, 1, 1], [], []>} : vector<32x32xbf16>, vector<32x100xbf16>, vector<32x100xf32> -> vector<32x100xf32>
    %46 = arith.addf %40, %45 : vector<32x100xf32>
    %c8 = arith.constant 8 : index
    %c0_39 = arith.constant 0 : index
    %c0_40 = arith.constant 0 : index
    %47 = vector.load %arg2[%c8, %c0_39, %c0_40] : memref<9x32x32xbf16, #tpu.memory_space<vmem>>, vector<1x32x32xbf16>
    %48 = vector.shape_cast %47 : vector<1x32x32xbf16> to vector<32x32xbf16>
    %c0_41 = arith.constant 0 : index
    %c0_42 = arith.constant 0 : index
    %c139 = arith.constant 139 : index
    %49 = vector.load %arg1[%c0_41, %c0_42, %c139] : memref<1x32x356xbf16, #tpu.memory_space<vmem>>, vector<1x32x100xbf16>
    %50 = vector.shape_cast %49 : vector<1x32x100xbf16> to vector<32x100xbf16>
    %cst_43 = arith.constant dense<0.000000e+00> : vector<32x100xf32>
    %51 = tpu.matmul %48, %50, %cst_43 {dimension_numbers = #tpu.dot_dimension_numbers<[1], [0], [0], [1], [0, 0, 1, 1], [], []>} : vector<32x32xbf16>, vector<32x100xbf16>, vector<32x100xf32> -> vector<32x100xf32>
    %52 = arith.addf %46, %51 : vector<32x100xf32>
    %c0_44 = arith.constant 0 : index
    %c0_45 = arith.constant 0 : index
    %53 = vector.load %arg3[%c0_44, %c0_45] : memref<32x1xf32, #tpu.memory_space<vmem>>, vector<32x1xf32>
    %54 = vector.broadcast %53 : vector<32x1xf32> to vector<32x100xf32>
    %55 = arith.addf %52, %54 : vector<32x100xf32>
    %c0_46 = arith.constant 0 : index
    %c0_47 = arith.constant 0 : index
    %c128_48 = arith.constant 128 : index
    %56 = vector.load %arg5[%c0_46, %c0_47, %c128_48] : memref<1x32x356xbf16, #tpu.memory_space<vmem>>, vector<1x32x100xbf16>
    %57 = vector.shape_cast %56 : vector<1x32x100xbf16> to vector<32x100xbf16>
    %58 = arith.extf %57 : vector<32x100xbf16> to vector<32x100xf32>
    %59 = arith.addf %55, %58 : vector<32x100xf32>
    %cst_49 = arith.constant 0.000000e+00 : f32
    %60 = vector.broadcast %cst_49 : f32 to vector<32x100xf32>
    %61 = arith.maximumf %59, %60 : vector<32x100xf32>
    %c0_50 = arith.constant 0 : index
    %c0_51 = arith.constant 0 : index
    %62 = vector.load %arg4[%c0_50, %c0_51] : memref<1x100xf32, #tpu.memory_space<vmem>>, vector<1x100xf32>
    %cst_52 = arith.constant 0.000000e+00 : f32
    %63 = vector.broadcast %cst_52 : f32 to vector<1x100xf32>
    %64 = arith.cmpf ogt, %62, %63 : vector<1x100xf32>
    %cst_53 = arith.constant 0.000000e+00 : f32
    %65 = vector.shape_cast %64 : vector<1x100xi1> to vector<1x100xi1>
    %66 = vector.broadcast %65 : vector<1x100xi1> to vector<32x100xi1>
    %67 = vector.broadcast %cst_53 : f32 to vector<32x100xf32>
    %68 = arith.select %66, %61, %67 : vector<32x100xi1>, vector<32x100xf32>
    %69 = arith.truncf %68 : vector<32x100xf32> to vector<32x100xbf16>
    %c0_54 = arith.constant 0 : index
    %c0_55 = arith.constant 0 : index
    %c128_56 = arith.constant 128 : index
    %70 = vector.load %arg6[%c0_54, %c0_55, %c128_56] : memref<1x32x356xbf16, #tpu.memory_space<vmem>>, vector<1x32x100xbf16>
    %71 = vector.shape_cast %70 : vector<1x32x100xbf16> to vector<32x100xbf16>
    %72 = vector.shape_cast %69 : vector<32x100xbf16> to vector<1x32x100xbf16>
    tpu.vector_store %arg6[%c0_54, %c0_55, %c128_56], %72 {strides = array<i32>} : memref<1x32x356xbf16, #tpu.memory_space<vmem>>, vector<1x32x100xbf16>,
    %cst_57 = arith.constant 0.000000e+00 : bf16
    %73 = vector.broadcast %cst_57 : bf16 to vector<32x128xbf16>
    %c0_58 = arith.constant 0 : index
    %c0_59 = arith.constant 0 : index
    %c0_60 = arith.constant 0 : index
    %74 = vector.load %arg6[%c0_58, %c0_59, %c0_60] : memref<1x32x356xbf16, #tpu.memory_space<vmem>>, vector<1x32x128xbf16>
    %75 = vector.shape_cast %74 : vector<1x32x128xbf16> to vector<32x128xbf16>
    %76 = vector.shape_cast %73 : vector<32x128xbf16> to vector<1x32x128xbf16>
    tpu.vector_store %arg6[%c0_58, %c0_59, %c0_60], %76 {strides = array<i32>} : memref<1x32x356xbf16, #tpu.memory_space<vmem>>, vector<1x32x128xbf16>,
    %cst_61 = arith.constant 0.000000e+00 : bf16
    %77 = vector.broadcast %cst_61 : bf16 to vector<32x128xbf16>
    %c0_62 = arith.constant 0 : index
    %c0_63 = arith.constant 0 : index
    %c228 = arith.constant 228 : index
    %78 = vector.load %arg6[%c0_62, %c0_63, %c228] : memref<1x32x356xbf16, #tpu.memory_space<vmem>>, vector<1x32x128xbf16>
    %79 = vector.shape_cast %78 : vector<1x32x128xbf16> to vector<32x128xbf16>
    %80 = vector.shape_cast %77 : vector<32x128xbf16> to vector<1x32x128xbf16>
    tpu.vector_store %arg6[%c0_62, %c0_63, %c228], %80 {strides = array<i32>} : memref<1x32x356xbf16, #tpu.memory_space<vmem>>, vector<1x32x128xbf16>,
    return
  }
  func.func @transform_0(%arg0: i32) -> (i32, i32, i32) {
    %c0_i32 = arith.constant 0 : i32
    %c0_i32_0 = arith.constant 0 : i32
    %c0_i32_1 = arith.constant 0 : i32
    return %arg0, %c0_i32, %c0_i32_0 : i32, i32, i32
  }
  func.func @transform_1(%arg0: i32) -> (i32, i32, i32) {
    %c0_i32 = arith.constant 0 : i32
    %c0_i32_0 = arith.constant 0 : i32
    %c0_i32_1 = arith.constant 0 : i32
    %c0_i32_2 = arith.constant 0 : i32
    return %c0_i32, %c0_i32_0, %c0_i32_1 : i32, i32, i32
  }
  func.func @transform_2(%arg0: i32) -> (i32, i32) {
    %c0_i32 = arith.constant 0 : i32
    %c0_i32_0 = arith.constant 0 : i32
    %c0_i32_1 = arith.constant 0 : i32
    return %c0_i32, %c0_i32_0 : i32, i32
  }
  func.func @transform_3(%arg0: i32) -> (i32, i32) {
    %c0_i32 = arith.constant 0 : i32
    %c0_i32_0 = arith.constant 0 : i32
    %c0_i32_1 = arith.constant 0 : i32
    return %c0_i32, %c0_i32_0 : i32, i32
  }
  func.func @transform_4(%arg0: i32) -> (i32, i32, i32) {
    %c0_i32 = arith.constant 0 : i32
    %c0_i32_0 = arith.constant 0 : i32
    %c0_i32_1 = arith.constant 0 : i32
    return %arg0, %c0_i32, %c0_i32_0 : i32, i32, i32
  }
  func.func @transform_5(%arg0: i32) -> (i32, i32, i32) {
    %c0_i32 = arith.constant 0 : i32
    %c0_i32_0 = arith.constant 0 : i32
    %c0_i32_1 = arith.constant 0 : i32
    return %arg0, %c0_i32, %c0_i32_0 : i32, i32, i32
  }
}

module attributes {stable_mosaic.version = 11 : i64} {
  func.func @_matmul_bn_kernel(%arg0: i32, %arg1: memref<64x288xbf16, #tpu.memory_space<vmem>>, %arg2: memref<288x128xbf16, #tpu.memory_space<vmem>>, %arg3: memref<64x1xf32, #tpu.memory_space<vmem>>, %arg4: memref<64x128xbf16, #tpu.memory_space<vmem>>) attributes {dimension_semantics = [#tpu.dimension_semantics<parallel>], iteration_bounds = array<i64: 1>, scalar_prefetch = 0 : i64, scratch_operands = 0 : i64, tpu.core_type = #tpu.core_type<tc>, window_params = [{pipeline_mode = #tpu.pipeline_mode<synchronous>, transform_indices = @transform_0, window_bounds = array<i64: 64, 288>}, {transform_indices = @transform_1, window_bounds = array<i64: 288, 128>}, {pipeline_mode = #tpu.pipeline_mode<synchronous>, transform_indices = @transform_2, window_bounds = array<i64: 64, 1>}, {transform_indices = @transform_3, window_bounds = array<i64: 64, 128>}]} {
    %c0 = arith.constant 0 : index
    %c0_0 = arith.constant 0 : index
    %0 = vector.load %arg1[%c0, %c0_0] : memref<64x288xbf16, #tpu.memory_space<vmem>>, vector<64x288xbf16>
    %c0_1 = arith.constant 0 : index
    %c0_2 = arith.constant 0 : index
    %1 = vector.load %arg2[%c0_1, %c0_2] : memref<288x128xbf16, #tpu.memory_space<vmem>>, vector<288x128xbf16>
    %cst = arith.constant dense<0.000000e+00> : vector<64x128xf32>
    %2 = tpu.matmul %0, %1, %cst {dimension_numbers = #tpu.dot_dimension_numbers<[1], [0], [0], [1], [0, 0, 1, 1], [], []>} : vector<64x288xbf16>, vector<288x128xbf16>, vector<64x128xf32> -> vector<64x128xf32>
    %c0_3 = arith.constant 0 : index
    %c0_4 = arith.constant 0 : index
    %3 = vector.load %arg3[%c0_3, %c0_4] : memref<64x1xf32, #tpu.memory_space<vmem>>, vector<64x1xf32>
    %4 = vector.broadcast %3 : vector<64x1xf32> to vector<64x128xf32>
    %5 = arith.addf %2, %4 : vector<64x128xf32>
    %cst_5 = arith.constant 0.000000e+00 : f32
    %6 = vector.broadcast %cst_5 : f32 to vector<64x128xf32>
    %7 = arith.maximumf %5, %6 : vector<64x128xf32>
    %8 = arith.truncf %7 : vector<64x128xf32> to vector<64x128xbf16>
    %c0_6 = arith.constant 0 : index
    %c0_7 = arith.constant 0 : index
    %9 = vector.load %arg4[%c0_6, %c0_7] : memref<64x128xbf16, #tpu.memory_space<vmem>>, vector<64x128xbf16>
    tpu.vector_store %arg4[%c0_6, %c0_7], %8 {strides = array<i32>} : memref<64x128xbf16, #tpu.memory_space<vmem>>, vector<64x128xbf16>,
    return
  }
  func.func @transform_0(%arg0: i32) -> (i32, i32) {
    %c0_i32 = arith.constant 0 : i32
    %c0_i32_0 = arith.constant 0 : i32
    %c0_i32_1 = arith.constant 0 : i32
    return %c0_i32, %c0_i32_0 : i32, i32
  }
  func.func @transform_1(%arg0: i32) -> (i32, i32) {
    %c0_i32 = arith.constant 0 : i32
    %c0_i32_0 = arith.constant 0 : i32
    return %c0_i32, %arg0 : i32, i32
  }
  func.func @transform_2(%arg0: i32) -> (i32, i32) {
    %c0_i32 = arith.constant 0 : i32
    %c0_i32_0 = arith.constant 0 : i32
    %c0_i32_1 = arith.constant 0 : i32
    return %c0_i32, %c0_i32_0 : i32, i32
  }
  func.func @transform_3(%arg0: i32) -> (i32, i32) {
    %c0_i32 = arith.constant 0 : i32
    %c0_i32_0 = arith.constant 0 : i32
    return %c0_i32, %arg0 : i32, i32
  }
}

module attributes {stable_mosaic.version = 11 : i64} {
  func.func @_pool_linear_kernel(%arg0: memref<64x2x36xbf16, #tpu.memory_space<vmem>>, %arg1: memref<10x64xf32, #tpu.memory_space<vmem>>, %arg2: memref<10x1xf32, #tpu.memory_space<vmem>>, %arg3: memref<10x2xf32, #tpu.memory_space<vmem>>) attributes {dimension_semantics = [], scalar_prefetch = 0 : i64, scratch_operands = 0 : i64, tpu.core_type = #tpu.core_type<tc>} {
    %c0 = arith.constant 0 : index
    %c0_0 = arith.constant 0 : index
    %c0_1 = arith.constant 0 : index
    %0 = vector.load %arg0[%c0, %c0_0, %c0_1] : memref<64x2x36xbf16, #tpu.memory_space<vmem>>, vector<64x2x36xbf16>
    %1 = arith.extf %0 : vector<64x2x36xbf16> to vector<64x2x36xf32>
    %cst = arith.constant dense<0.000000e+00> : vector<64x2xf32>
    %2 = vector.multi_reduction <add>, %1, %cst [2] : vector<64x2x36xf32> to vector<64x2xf32>
    %cst_2 = arith.constant 6.250000e-02 : f32
    %3 = vector.broadcast %cst_2 : f32 to vector<64x2xf32>
    %4 = arith.mulf %2, %3 : vector<64x2xf32>
    %c0_3 = arith.constant 0 : index
    %c0_4 = arith.constant 0 : index
    %5 = vector.load %arg1[%c0_3, %c0_4] : memref<10x64xf32, #tpu.memory_space<vmem>>, vector<10x64xf32>
    %cst_5 = arith.constant dense<0.000000e+00> : vector<10x2xf32>
    %6 = tpu.matmul %5, %4, %cst_5 {dimension_numbers = #tpu.dot_dimension_numbers<[1], [0], [0], [1], [0, 0, 1, 1], [], []>} : vector<10x64xf32>, vector<64x2xf32>, vector<10x2xf32> -> vector<10x2xf32>
    %c0_6 = arith.constant 0 : index
    %c0_7 = arith.constant 0 : index
    %7 = vector.load %arg2[%c0_6, %c0_7] : memref<10x1xf32, #tpu.memory_space<vmem>>, vector<10x1xf32>
    %8 = vector.broadcast %7 : vector<10x1xf32> to vector<10x2xf32>
    %9 = arith.addf %6, %8 : vector<10x2xf32>
    %c0_8 = arith.constant 0 : index
    %c0_9 = arith.constant 0 : index
    %10 = vector.load %arg3[%c0_8, %c0_9] : memref<10x2xf32, #tpu.memory_space<vmem>>, vector<10x2xf32>
    tpu.vector_store %arg3[%c0_8, %c0_9], %9 {strides = array<i32>} : memref<10x2xf32, #tpu.memory_space<vmem>>, vector<10x2xf32>,
    return
  }
}

module attributes {stable_mosaic.version = 11 : i64} {
  func.func @_fused_conv_res_kernel(%arg0: i32, %arg1: memref<1x64x292xbf16, #tpu.memory_space<vmem>>, %arg2: memref<9x64x64xbf16, #tpu.memory_space<vmem>>, %arg3: memref<64x1xf32, #tpu.memory_space<vmem>>, %arg4: memref<1x36xf32, #tpu.memory_space<vmem>>, %arg5: memref<1x64x292xbf16, #tpu.memory_space<vmem>>, %arg6: memref<1x64x292xbf16, #tpu.memory_space<vmem>>) attributes {dimension_semantics = [#tpu.dimension_semantics<parallel>], iteration_bounds = array<i64: 2>, scalar_prefetch = 0 : i64, scratch_operands = 0 : i64, tpu.core_type = #tpu.core_type<tc>, window_params = [{transform_indices = @transform_0, window_bounds = array<i64: 1, 64, 292>}, {pipeline_mode = #tpu.pipeline_mode<synchronous>, transform_indices = @transform_1, window_bounds = array<i64: 9, 64, 64>}, {pipeline_mode = #tpu.pipeline_mode<synchronous>, transform_indices = @transform_2, window_bounds = array<i64: 64, 1>}, {pipeline_mode = #tpu.pipeline_mode<synchronous>, transform_indices = @transform_3, window_bounds = array<i64: 1, 36>}, {transform_indices = @transform_4, window_bounds = array<i64: 1, 64, 292>}, {transform_indices = @transform_5, window_bounds = array<i64: 1, 64, 292>}]} {
    %c0 = arith.constant 0 : index
    %c0_0 = arith.constant 0 : index
    %c0_1 = arith.constant 0 : index
    %0 = vector.load %arg2[%c0, %c0_0, %c0_1] : memref<9x64x64xbf16, #tpu.memory_space<vmem>>, vector<1x64x64xbf16>
    %1 = vector.shape_cast %0 : vector<1x64x64xbf16> to vector<64x64xbf16>
    %c0_2 = arith.constant 0 : index
    %c0_3 = arith.constant 0 : index
    %c121 = arith.constant 121 : index
    %2 = vector.load %arg1[%c0_2, %c0_3, %c121] : memref<1x64x292xbf16, #tpu.memory_space<vmem>>, vector<1x64x36xbf16>
    %3 = vector.shape_cast %2 : vector<1x64x36xbf16> to vector<64x36xbf16>
    %cst = arith.constant dense<0.000000e+00> : vector<64x36xf32>
    %4 = tpu.matmul %1, %3, %cst {dimension_numbers = #tpu.dot_dimension_numbers<[1], [0], [0], [1], [0, 0, 1, 1], [], []>} : vector<64x64xbf16>, vector<64x36xbf16>, vector<64x36xf32> -> vector<64x36xf32>
    %c1 = arith.constant 1 : index
    %c0_4 = arith.constant 0 : index
    %c0_5 = arith.constant 0 : index
    %5 = vector.load %arg2[%c1, %c0_4, %c0_5] : memref<9x64x64xbf16, #tpu.memory_space<vmem>>, vector<1x64x64xbf16>
    %6 = vector.shape_cast %5 : vector<1x64x64xbf16> to vector<64x64xbf16>
    %c0_6 = arith.constant 0 : index
    %c0_7 = arith.constant 0 : index
    %c122 = arith.constant 122 : index
    %7 = vector.load %arg1[%c0_6, %c0_7, %c122] : memref<1x64x292xbf16, #tpu.memory_space<vmem>>, vector<1x64x36xbf16>
    %8 = vector.shape_cast %7 : vector<1x64x36xbf16> to vector<64x36xbf16>
    %cst_8 = arith.constant dense<0.000000e+00> : vector<64x36xf32>
    %9 = tpu.matmul %6, %8, %cst_8 {dimension_numbers = #tpu.dot_dimension_numbers<[1], [0], [0], [1], [0, 0, 1, 1], [], []>} : vector<64x64xbf16>, vector<64x36xbf16>, vector<64x36xf32> -> vector<64x36xf32>
    %10 = arith.addf %4, %9 : vector<64x36xf32>
    %c2 = arith.constant 2 : index
    %c0_9 = arith.constant 0 : index
    %c0_10 = arith.constant 0 : index
    %11 = vector.load %arg2[%c2, %c0_9, %c0_10] : memref<9x64x64xbf16, #tpu.memory_space<vmem>>, vector<1x64x64xbf16>
    %12 = vector.shape_cast %11 : vector<1x64x64xbf16> to vector<64x64xbf16>
    %c0_11 = arith.constant 0 : index
    %c0_12 = arith.constant 0 : index
    %c123 = arith.constant 123 : index
    %13 = vector.load %arg1[%c0_11, %c0_12, %c123] : memref<1x64x292xbf16, #tpu.memory_space<vmem>>, vector<1x64x36xbf16>
    %14 = vector.shape_cast %13 : vector<1x64x36xbf16> to vector<64x36xbf16>
    %cst_13 = arith.constant dense<0.000000e+00> : vector<64x36xf32>
    %15 = tpu.matmul %12, %14, %cst_13 {dimension_numbers = #tpu.dot_dimension_numbers<[1], [0], [0], [1], [0, 0, 1, 1], [], []>} : vector<64x64xbf16>, vector<64x36xbf16>, vector<64x36xf32> -> vector<64x36xf32>
    %16 = arith.addf %10, %15 : vector<64x36xf32>
    %c3 = arith.constant 3 : index
    %c0_14 = arith.constant 0 : index
    %c0_15 = arith.constant 0 : index
    %17 = vector.load %arg2[%c3, %c0_14, %c0_15] : memref<9x64x64xbf16, #tpu.memory_space<vmem>>, vector<1x64x64xbf16>
    %18 = vector.shape_cast %17 : vector<1x64x64xbf16> to vector<64x64xbf16>
    %c0_16 = arith.constant 0 : index
    %c0_17 = arith.constant 0 : index
    %c127 = arith.constant 127 : index
    %19 = vector.load %arg1[%c0_16, %c0_17, %c127] : memref<1x64x292xbf16, #tpu.memory_space<vmem>>, vector<1x64x36xbf16>
    %20 = vector.shape_cast %19 : vector<1x64x36xbf16> to vector<64x36xbf16>
    %cst_18 = arith.constant dense<0.000000e+00> : vector<64x36xf32>
    %21 = tpu.matmul %18, %20, %cst_18 {dimension_numbers = #tpu.dot_dimension_numbers<[1], [0], [0], [1], [0, 0, 1, 1], [], []>} : vector<64x64xbf16>, vector<64x36xbf16>, vector<64x36xf32> -> vector<64x36xf32>
    %22 = arith.addf %16, %21 : vector<64x36xf32>
    %c4 = arith.constant 4 : index
    %c0_19 = arith.constant 0 : index
    %c0_20 = arith.constant 0 : index
    %23 = vector.load %arg2[%c4, %c0_19, %c0_20] : memref<9x64x64xbf16, #tpu.memory_space<vmem>>, vector<1x64x64xbf16>
    %24 = vector.shape_cast %23 : vector<1x64x64xbf16> to vector<64x64xbf16>
    %c0_21 = arith.constant 0 : index
    %c0_22 = arith.constant 0 : index
    %c128 = arith.constant 128 : index
    %25 = vector.load %arg1[%c0_21, %c0_22, %c128] : memref<1x64x292xbf16, #tpu.memory_space<vmem>>, vector<1x64x36xbf16>
    %26 = vector.shape_cast %25 : vector<1x64x36xbf16> to vector<64x36xbf16>
    %cst_23 = arith.constant dense<0.000000e+00> : vector<64x36xf32>
    %27 = tpu.matmul %24, %26, %cst_23 {dimension_numbers = #tpu.dot_dimension_numbers<[1], [0], [0], [1], [0, 0, 1, 1], [], []>} : vector<64x64xbf16>, vector<64x36xbf16>, vector<64x36xf32> -> vector<64x36xf32>
    %28 = arith.addf %22, %27 : vector<64x36xf32>
    %c5 = arith.constant 5 : index
    %c0_24 = arith.constant 0 : index
    %c0_25 = arith.constant 0 : index
    %29 = vector.load %arg2[%c5, %c0_24, %c0_25] : memref<9x64x64xbf16, #tpu.memory_space<vmem>>, vector<1x64x64xbf16>
    %30 = vector.shape_cast %29 : vector<1x64x64xbf16> to vector<64x64xbf16>
    %c0_26 = arith.constant 0 : index
    %c0_27 = arith.constant 0 : index
    %c129 = arith.constant 129 : index
    %31 = vector.load %arg1[%c0_26, %c0_27, %c129] : memref<1x64x292xbf16, #tpu.memory_space<vmem>>, vector<1x64x36xbf16>
    %32 = vector.shape_cast %31 : vector<1x64x36xbf16> to vector<64x36xbf16>
    %cst_28 = arith.constant dense<0.000000e+00> : vector<64x36xf32>
    %33 = tpu.matmul %30, %32, %cst_28 {dimension_numbers = #tpu.dot_dimension_numbers<[1], [0], [0], [1], [0, 0, 1, 1], [], []>} : vector<64x64xbf16>, vector<64x36xbf16>, vector<64x36xf32> -> vector<64x36xf32>
    %34 = arith.addf %28, %33 : vector<64x36xf32>
    %c6 = arith.constant 6 : index
    %c0_29 = arith.constant 0 : index
    %c0_30 = arith.constant 0 : index
    %35 = vector.load %arg2[%c6, %c0_29, %c0_30] : memref<9x64x64xbf16, #tpu.memory_space<vmem>>, vector<1x64x64xbf16>
    %36 = vector.shape_cast %35 : vector<1x64x64xbf16> to vector<64x64xbf16>
    %c0_31 = arith.constant 0 : index
    %c0_32 = arith.constant 0 : index
    %c133 = arith.constant 133 : index
    %37 = vector.load %arg1[%c0_31, %c0_32, %c133] : memref<1x64x292xbf16, #tpu.memory_space<vmem>>, vector<1x64x36xbf16>
    %38 = vector.shape_cast %37 : vector<1x64x36xbf16> to vector<64x36xbf16>
    %cst_33 = arith.constant dense<0.000000e+00> : vector<64x36xf32>
    %39 = tpu.matmul %36, %38, %cst_33 {dimension_numbers = #tpu.dot_dimension_numbers<[1], [0], [0], [1], [0, 0, 1, 1], [], []>} : vector<64x64xbf16>, vector<64x36xbf16>, vector<64x36xf32> -> vector<64x36xf32>
    %40 = arith.addf %34, %39 : vector<64x36xf32>
    %c7 = arith.constant 7 : index
    %c0_34 = arith.constant 0 : index
    %c0_35 = arith.constant 0 : index
    %41 = vector.load %arg2[%c7, %c0_34, %c0_35] : memref<9x64x64xbf16, #tpu.memory_space<vmem>>, vector<1x64x64xbf16>
    %42 = vector.shape_cast %41 : vector<1x64x64xbf16> to vector<64x64xbf16>
    %c0_36 = arith.constant 0 : index
    %c0_37 = arith.constant 0 : index
    %c134 = arith.constant 134 : index
    %43 = vector.load %arg1[%c0_36, %c0_37, %c134] : memref<1x64x292xbf16, #tpu.memory_space<vmem>>, vector<1x64x36xbf16>
    %44 = vector.shape_cast %43 : vector<1x64x36xbf16> to vector<64x36xbf16>
    %cst_38 = arith.constant dense<0.000000e+00> : vector<64x36xf32>
    %45 = tpu.matmul %42, %44, %cst_38 {dimension_numbers = #tpu.dot_dimension_numbers<[1], [0], [0], [1], [0, 0, 1, 1], [], []>} : vector<64x64xbf16>, vector<64x36xbf16>, vector<64x36xf32> -> vector<64x36xf32>
    %46 = arith.addf %40, %45 : vector<64x36xf32>
    %c8 = arith.constant 8 : index
    %c0_39 = arith.constant 0 : index
    %c0_40 = arith.constant 0 : index
    %47 = vector.load %arg2[%c8, %c0_39, %c0_40] : memref<9x64x64xbf16, #tpu.memory_space<vmem>>, vector<1x64x64xbf16>
    %48 = vector.shape_cast %47 : vector<1x64x64xbf16> to vector<64x64xbf16>
    %c0_41 = arith.constant 0 : index
    %c0_42 = arith.constant 0 : index
    %c135 = arith.constant 135 : index
    %49 = vector.load %arg1[%c0_41, %c0_42, %c135] : memref<1x64x292xbf16, #tpu.memory_space<vmem>>, vector<1x64x36xbf16>
    %50 = vector.shape_cast %49 : vector<1x64x36xbf16> to vector<64x36xbf16>
    %cst_43 = arith.constant dense<0.000000e+00> : vector<64x36xf32>
    %51 = tpu.matmul %48, %50, %cst_43 {dimension_numbers = #tpu.dot_dimension_numbers<[1], [0], [0], [1], [0, 0, 1, 1], [], []>} : vector<64x64xbf16>, vector<64x36xbf16>, vector<64x36xf32> -> vector<64x36xf32>
    %52 = arith.addf %46, %51 : vector<64x36xf32>
    %c0_44 = arith.constant 0 : index
    %c0_45 = arith.constant 0 : index
    %53 = vector.load %arg3[%c0_44, %c0_45] : memref<64x1xf32, #tpu.memory_space<vmem>>, vector<64x1xf32>
    %54 = vector.broadcast %53 : vector<64x1xf32> to vector<64x36xf32>
    %55 = arith.addf %52, %54 : vector<64x36xf32>
    %c0_46 = arith.constant 0 : index
    %c0_47 = arith.constant 0 : index
    %c128_48 = arith.constant 128 : index
    %56 = vector.load %arg5[%c0_46, %c0_47, %c128_48] : memref<1x64x292xbf16, #tpu.memory_space<vmem>>, vector<1x64x36xbf16>
    %57 = vector.shape_cast %56 : vector<1x64x36xbf16> to vector<64x36xbf16>
    %58 = arith.extf %57 : vector<64x36xbf16> to vector<64x36xf32>
    %59 = arith.addf %55, %58 : vector<64x36xf32>
    %cst_49 = arith.constant 0.000000e+00 : f32
    %60 = vector.broadcast %cst_49 : f32 to vector<64x36xf32>
    %61 = arith.maximumf %59, %60 : vector<64x36xf32>
    %c0_50 = arith.constant 0 : index
    %c0_51 = arith.constant 0 : index
    %62 = vector.load %arg4[%c0_50, %c0_51] : memref<1x36xf32, #tpu.memory_space<vmem>>, vector<1x36xf32>
    %cst_52 = arith.constant 0.000000e+00 : f32
    %63 = vector.broadcast %cst_52 : f32 to vector<1x36xf32>
    %64 = arith.cmpf ogt, %62, %63 : vector<1x36xf32>
    %cst_53 = arith.constant 0.000000e+00 : f32
    %65 = vector.shape_cast %64 : vector<1x36xi1> to vector<1x36xi1>
    %66 = vector.broadcast %65 : vector<1x36xi1> to vector<64x36xi1>
    %67 = vector.broadcast %cst_53 : f32 to vector<64x36xf32>
    %68 = arith.select %66, %61, %67 : vector<64x36xi1>, vector<64x36xf32>
    %69 = arith.truncf %68 : vector<64x36xf32> to vector<64x36xbf16>
    %c0_54 = arith.constant 0 : index
    %c0_55 = arith.constant 0 : index
    %c128_56 = arith.constant 128 : index
    %70 = vector.load %arg6[%c0_54, %c0_55, %c128_56] : memref<1x64x292xbf16, #tpu.memory_space<vmem>>, vector<1x64x36xbf16>
    %71 = vector.shape_cast %70 : vector<1x64x36xbf16> to vector<64x36xbf16>
    %72 = vector.shape_cast %69 : vector<64x36xbf16> to vector<1x64x36xbf16>
    tpu.vector_store %arg6[%c0_54, %c0_55, %c128_56], %72 {strides = array<i32>} : memref<1x64x292xbf16, #tpu.memory_space<vmem>>, vector<1x64x36xbf16>,
    %cst_57 = arith.constant 0.000000e+00 : bf16
    %73 = vector.broadcast %cst_57 : bf16 to vector<64x128xbf16>
    %c0_58 = arith.constant 0 : index
    %c0_59 = arith.constant 0 : index
    %c0_60 = arith.constant 0 : index
    %74 = vector.load %arg6[%c0_58, %c0_59, %c0_60] : memref<1x64x292xbf16, #tpu.memory_space<vmem>>, vector<1x64x128xbf16>
    %75 = vector.shape_cast %74 : vector<1x64x128xbf16> to vector<64x128xbf16>
    %76 = vector.shape_cast %73 : vector<64x128xbf16> to vector<1x64x128xbf16>
    tpu.vector_store %arg6[%c0_58, %c0_59, %c0_60], %76 {strides = array<i32>} : memref<1x64x292xbf16, #tpu.memory_space<vmem>>, vector<1x64x128xbf16>,
    %cst_61 = arith.constant 0.000000e+00 : bf16
    %77 = vector.broadcast %cst_61 : bf16 to vector<64x128xbf16>
    %c0_62 = arith.constant 0 : index
    %c0_63 = arith.constant 0 : index
    %c164 = arith.constant 164 : index
    %78 = vector.load %arg6[%c0_62, %c0_63, %c164] : memref<1x64x292xbf16, #tpu.memory_space<vmem>>, vector<1x64x128xbf16>
    %79 = vector.shape_cast %78 : vector<1x64x128xbf16> to vector<64x128xbf16>
    %80 = vector.shape_cast %77 : vector<64x128xbf16> to vector<1x64x128xbf16>
    tpu.vector_store %arg6[%c0_62, %c0_63, %c164], %80 {strides = array<i32>} : memref<1x64x292xbf16, #tpu.memory_space<vmem>>, vector<1x64x128xbf16>,
    return
  }
  func.func @transform_0(%arg0: i32) -> (i32, i32, i32) {
    %c0_i32 = arith.constant 0 : i32
    %c0_i32_0 = arith.constant 0 : i32
    %c0_i32_1 = arith.constant 0 : i32
    return %arg0, %c0_i32, %c0_i32_0 : i32, i32, i32
  }
  func.func @transform_1(%arg0: i32) -> (i32, i32, i32) {
    %c0_i32 = arith.constant 0 : i32
    %c0_i32_0 = arith.constant 0 : i32
    %c0_i32_1 = arith.constant 0 : i32
    %c0_i32_2 = arith.constant 0 : i32
    return %c0_i32, %c0_i32_0, %c0_i32_1 : i32, i32, i32
  }
  func.func @transform_2(%arg0: i32) -> (i32, i32) {
    %c0_i32 = arith.constant 0 : i32
    %c0_i32_0 = arith.constant 0 : i32
    %c0_i32_1 = arith.constant 0 : i32
    return %c0_i32, %c0_i32_0 : i32, i32
  }
  func.func @transform_3(%arg0: i32) -> (i32, i32) {
    %c0_i32 = arith.constant 0 : i32
    %c0_i32_0 = arith.constant 0 : i32
    %c0_i32_1 = arith.constant 0 : i32
    return %c0_i32, %c0_i32_0 : i32, i32
  }
  func.func @transform_4(%arg0: i32) -> (i32, i32, i32) {
    %c0_i32 = arith.constant 0 : i32
    %c0_i32_0 = arith.constant 0 : i32
    %c0_i32_1 = arith.constant 0 : i32
    return %arg0, %c0_i32, %c0_i32_0 : i32, i32, i32
  }
  func.func @transform_5(%arg0: i32) -> (i32, i32, i32) {
    %c0_i32 = arith.constant 0 : i32
    %c0_i32_0 = arith.constant 0 : i32
    %c0_i32_1 = arith.constant 0 : i32
    return %arg0, %c0_i32, %c0_i32_0 : i32, i32, i32
  }
}

module attributes {stable_mosaic.version = 11 : i64} {
  func.func @_matmul_bn_kernel(%arg0: i32, %arg1: memref<64x32xbf16, #tpu.memory_space<vmem>>, %arg2: memref<32x128xbf16, #tpu.memory_space<vmem>>, %arg3: memref<64x1xf32, #tpu.memory_space<vmem>>, %arg4: memref<64x128xbf16, #tpu.memory_space<vmem>>) attributes {dimension_semantics = [#tpu.dimension_semantics<parallel>], iteration_bounds = array<i64: 1>, scalar_prefetch = 0 : i64, scratch_operands = 0 : i64, tpu.core_type = #tpu.core_type<tc>, window_params = [{pipeline_mode = #tpu.pipeline_mode<synchronous>, transform_indices = @transform_0, window_bounds = array<i64: 64, 32>}, {transform_indices = @transform_1, window_bounds = array<i64: 32, 128>}, {pipeline_mode = #tpu.pipeline_mode<synchronous>, transform_indices = @transform_2, window_bounds = array<i64: 64, 1>}, {transform_indices = @transform_3, window_bounds = array<i64: 64, 128>}]} {
    %c0 = arith.constant 0 : index
    %c0_0 = arith.constant 0 : index
    %0 = vector.load %arg1[%c0, %c0_0] : memref<64x32xbf16, #tpu.memory_space<vmem>>, vector<64x32xbf16>
    %c0_1 = arith.constant 0 : index
    %c0_2 = arith.constant 0 : index
    %1 = vector.load %arg2[%c0_1, %c0_2] : memref<32x128xbf16, #tpu.memory_space<vmem>>, vector<32x128xbf16>
    %cst = arith.constant dense<0.000000e+00> : vector<64x128xf32>
    %2 = tpu.matmul %0, %1, %cst {dimension_numbers = #tpu.dot_dimension_numbers<[1], [0], [0], [1], [0, 0, 1, 1], [], []>} : vector<64x32xbf16>, vector<32x128xbf16>, vector<64x128xf32> -> vector<64x128xf32>
    %c0_3 = arith.constant 0 : index
    %c0_4 = arith.constant 0 : index
    %3 = vector.load %arg3[%c0_3, %c0_4] : memref<64x1xf32, #tpu.memory_space<vmem>>, vector<64x1xf32>
    %4 = vector.broadcast %3 : vector<64x1xf32> to vector<64x128xf32>
    %5 = arith.addf %2, %4 : vector<64x128xf32>
    %6 = arith.truncf %5 : vector<64x128xf32> to vector<64x128xbf16>
    %c0_5 = arith.constant 0 : index
    %c0_6 = arith.constant 0 : index
    %7 = vector.load %arg4[%c0_5, %c0_6] : memref<64x128xbf16, #tpu.memory_space<vmem>>, vector<64x128xbf16>
    tpu.vector_store %arg4[%c0_5, %c0_6], %6 {strides = array<i32>} : memref<64x128xbf16, #tpu.memory_space<vmem>>, vector<64x128xbf16>,
    return
  }
  func.func @transform_0(%arg0: i32) -> (i32, i32) {
    %c0_i32 = arith.constant 0 : i32
    %c0_i32_0 = arith.constant 0 : i32
    %c0_i32_1 = arith.constant 0 : i32
    return %c0_i32, %c0_i32_0 : i32, i32
  }
  func.func @transform_1(%arg0: i32) -> (i32, i32) {
    %c0_i32 = arith.constant 0 : i32
    %c0_i32_0 = arith.constant 0 : i32
    return %c0_i32, %arg0 : i32, i32
  }
  func.func @transform_2(%arg0: i32) -> (i32, i32) {
    %c0_i32 = arith.constant 0 : i32
    %c0_i32_0 = arith.constant 0 : i32
    %c0_i32_1 = arith.constant 0 : i32
    return %c0_i32, %c0_i32_0 : i32, i32
  }
  func.func @transform_3(%arg0: i32) -> (i32, i32) {
    %c0_i32 = arith.constant 0 : i32
    %c0_i32_0 = arith.constant 0 : i32
    return %c0_i32, %arg0 : i32, i32
  }
}

</mosaic_0001>

<llo_original>
// kernel: _lambda_.12
$region0: #{_lambda_.12}
  #allocation0 [shape = 'u32[]', space=smem, size = 0x4, offset = 0x4, fixed_abs, tag = 'smem constant byte address 0x4 - core index']
  #allocation1 [shape = 'u32[144,128]{1,0:T(1,128)}', space=vmem, size = 0x12000, scoped, tag = 'internal scratch']
  %s0 = inlined_call_operand.hbm [shape: bf16[2,16,580], index: 0, kind: input, shape index: {}]
  %s1 = inlined_call_operand.hbm [shape: bf16[9,16,16], index: 1, kind: input, shape index: {}]
  %s2 = inlined_call_operand.hbm [shape: f32[16,1], index: 2, kind: input, shape index: {}]
  %s3 = inlined_call_operand.hbm [shape: f32[1,324], index: 3, kind: input, shape index: {}]
  %s4 = inlined_call_operand.hbm [shape: bf16[2,16,580], index: 4, kind: input, shape index: {}]
  %s5 = inlined_call_operand.hbm [shape: bf16[2,16,580], index: 5, kind: output, shape index: {}]
  %s6 = sld [smem:[#allocation0]]
  $region73: #{_lambda_.12} parent=0
    _
  %s8 = ssub.s32 1, %s6
  %s9 = scalar_select 0, %s8, %s6
  $region1: #{_lambda_.12} parent=0
    #allocation2 [shape = 'u8[40960]{0}', space=vmem, size = 0xa000, scoped, tag = 'input window, operand 0']
    #allocation3 [shape = 's32[2]{0}', space=sflag, size = 0x8, scoped, tag = 'scoped memory for _lambda_.12']
    #allocation4 [shape = 's32[2]{0}', space=sflag, size = 0x8, scoped, tag = 'scoped memory for _lambda_.12']
    #allocation5 [shape = 'u8[36864]{0}', space=vmem, size = 0x9000, scoped, tag = 'input window, operand 1, single buffered']
    #allocation6 [shape = 's32[1]{0}', space=sflag, size = 0x4, scoped, tag = 'scoped memory for _lambda_.12']
    #allocation7 [shape = 'u8[8192]{0}', space=vmem, size = 0x2000, scoped, tag = 'input window, operand 2, single buffered']
    #allocation8 [shape = 'u8[1536]{0}', space=vmem, size = 0x800, scoped, tag = 'input window, operand 3, single buffered']
    #allocation9 [shape = 's32[1]{0}', space=sflag, size = 0x4, scoped, tag = 'scoped memory for _lambda_.12']
    #allocation10 [shape = 'u8[40960]{0}', space=vmem, size = 0xa000, scoped, tag = 'input window, operand 4']
    #allocation11 [shape = 'u8[40960]{0}', space=vmem, size = 0xa000, scoped, tag = 'output window, operand 0']
    %10 = vsyncpa [#allocation3], 0
    %s11 = scalar_lea.sflag [#allocation3], 1
    %12 = vsyncpa %s11, 0
    %13 = vsyncpa [#allocation6], 0
    %14 = vsyncpa [#allocation9], 0
    %15 = vsyncpa [#allocation4], 0
    %s16 = scalar_lea.sflag [#allocation4], 1
    %17 = vsyncpa %s16, 0
    loop: start=0, step=1, limit=4
    $region2: #{_lambda_.12} parent=1 // loop_pre_header
      _
    $region3: #{_lambda_.12} parent=1 // loop_header
      %s19 = sphi 0, %s23
      %p20 = scmp.ge.s32.totalorder %s19, 4
      %s29 = sphi 0, %s31
      %s32 = sphi 0, %s29
      %s33 = sphi 0, %s32
      %s49 = sphi 0, %s33
      %s53 = sphi 0, %s53
      %s55 = sphi 0, %s53
      %s56 = sphi 0, %s55
      %s70 = sphi 0, %s56
      %s74 = sphi 0, %s74
      %s76 = sphi 0, %s74
      %s77 = sphi 0, %s76
      %s91 = sphi 0, %s77
      %s95 = sphi 0, %s95
      %s97 = sphi 0, %s95
      %s98 = sphi 0, %s97
      %s112 = sphi 0, %s98
      %s118 = sphi 0, %s120
      %s121 = sphi 0, %s118
      %s122 = sphi 0, %s121
      %s138 = sphi 0, %s122
      %s144 = sphi 0, %s146
      %s147 = sphi 0, %s144
      %s148 = sphi 0, %s147
      %s164 = sphi 0, %s148
    $region4: #{_lambda_.12} parent=1 // loop_header_branch
      %22 = sbr.rel (%p20) target = $region8
    $region5: #{_lambda_.12} parent=1 // loop_body
      %s24 = ssub.s32 %s19, 1
      %s25 = ssub.s32 %s19, 2
      %s26 = sadd.s32 %s19, 1
      %s27 = ssub.s32 %s19, %s26
      %p28 = scmp.eq.s32.totalorder %s27, 0
      %s30 = sadd.s32 %s29, 1
      %s31 = scalar_select %p28, %s29, %s30
      %p34 = pneg %p28
      %p35 = scmp.eq.s32.totalorder %s19, 1
      %p36 = por %p34, %p35
      %p37 = scmp.ne.s32.totalorder %s29, %s32
      %p38 = scmp.eq.s32.totalorder %s19, 0
      %p39 = por %p37, %p38
      %p40 = scmp.ne.s32.totalorder %s29, %s32
      %p41 = scmp.eq.s32.totalorder %s24, 1
      %p42 = por %p40, %p41
      %p43 = scmp.ne.s32.totalorder %s32, %s33
      %p44 = scmp.eq.s32.totalorder %s24, 0
      %p45 = por %p43, %p44
      %p46 = scmp.ne.s32.totalorder %s32, %s33
      %p47 = scmp.eq.s32.totalorder %s25, 1
      %p48 = por %p46, %p47
      %p50 = scmp.ne.s32.totalorder %s33, %s49
      %p51 = scmp.eq.s32.totalorder %s25, 0
      %p52 = por %p50, %p51
      %s54 = sadd.s32 %s53, 1
      %p57 = scmp.eq.s32.totalorder %s19, 1
      %p58 = scmp.ne.s32.totalorder %s53, %s55
      %p59 = scmp.eq.s32.totalorder %s19, 0
      %p60 = por %p58, %p59
      %p61 = scmp.ne.s32.totalorder %s53, %s55
      %p62 = scmp.eq.s32.totalorder %s24, 1
      %p63 = por %p61, %p62
      %p64 = scmp.ne.s32.totalorder %s55, %s56
      %p65 = scmp.eq.s32.totalorder %s24, 0
      %p66 = por %p64, %p65
      %p67 = scmp.ne.s32.totalorder %s55, %s56
      %p68 = scmp.eq.s32.totalorder %s25, 1
      %p69 = por %p67, %p68
      %p71 = scmp.ne.s32.totalorder %s56, %s70
      %p72 = scmp.eq.s32.totalorder %s25, 0
      %p73 = por %p71, %p72
      %s75 = sadd.s32 %s74, 1
      %p78 = scmp.eq.s32.totalorder %s19, 1
      %p79 = scmp.ne.s32.totalorder %s74, %s76
      %p80 = scmp.eq.s32.totalorder %s19, 0
      %p81 = por %p79, %p80
      %p82 = scmp.ne.s32.totalorder %s74, %s76
      %p83 = scmp.eq.s32.totalorder %s24, 1
      %p84 = por %p82, %p83
      %p85 = scmp.ne.s32.totalorder %s76, %s77
      %p86 = scmp.eq.s32.totalorder %s24, 0
      %p87 = por %p85, %p86
      %p88 = scmp.ne.s32.totalorder %s76, %s77
      %p89 = scmp.eq.s32.totalorder %s25, 1
      %p90 = por %p88, %p89
      %p92 = scmp.ne.s32.totalorder %s77, %s91
      %p93 = scmp.eq.s32.totalorder %s25, 0
      %p94 = por %p92, %p93
      %s96 = sadd.s32 %s95, 1
      %p99 = scmp.eq.s32.totalorder %s19, 1
      %p100 = scmp.ne.s32.totalorder %s95, %s97
      %p101 = scmp.eq.s32.totalorder %s19, 0
      %p102 = por %p100, %p101
      %p103 = scmp.ne.s32.totalorder %s95, %s97
      %p104 = scmp.eq.s32.totalorder %s24, 1
      %p105 = por %p103, %p104
      %p106 = scmp.ne.s32.totalorder %s97, %s98
      %p107 = scmp.eq.s32.totalorder %s24, 0
      %p108 = por %p106, %p107
      %p109 = scmp.ne.s32.totalorder %s97, %s98
      %p110 = scmp.eq.s32.totalorder %s25, 1
      %p111 = por %p109, %p110
      %p113 = scmp.ne.s32.totalorder %s98, %s112
      %p114 = scmp.eq.s32.totalorder %s25, 0
      %p115 = por %p113, %p114
      %s116 = ssub.s32 %s19, %s26
      %p117 = scmp.eq.s32.totalorder %s116, 0
      %s119 = sadd.s32 %s118, 1
      %s120 = scalar_select %p117, %s118, %s119
      %p123 = pneg %p117
      %p124 = scmp.eq.s32.totalorder %s19, 1
      %p125 = por %p123, %p124
      %p126 = scmp.ne.s32.totalorder %s118, %s121
      %p127 = scmp.eq.s32.totalorder %s19, 0
      %p128 = por %p126, %p127
      %p129 = scmp.ne.s32.totalorder %s118, %s121
      %p130 = scmp.eq.s32.totalorder %s24, 1
      %p131 = por %p129, %p130
      %p132 = scmp.ne.s32.totalorder %s121, %s122
      %p133 = scmp.eq.s32.totalorder %s24, 0
      %p134 = por %p132, %p133
      %p135 = scmp.ne.s32.totalorder %s121, %s122
      %p136 = scmp.eq.s32.totalorder %s25, 1
      %p137 = por %p135, %p136
      %p139 = scmp.ne.s32.totalorder %s122, %s138
      %p140 = scmp.eq.s32.totalorder %s25, 0
      %p141 = por %p139, %p140
      %s142 = ssub.s32 %s19, %s26
      %p143 = scmp.eq.s32.totalorder %s142, 0
      %s145 = sadd.s32 %s144, 1
      %s146 = scalar_select %p143, %s144, %s145
      %p149 = pneg %p143
      %p150 = scmp.eq.s32.totalorder %s19, 1
      %p151 = por %p149, %p150
      %p152 = scmp.ne.s32.totalorder %s144, %s147
      %p153 = scmp.eq.s32.totalorder %s19, 0
      %p154 = por %p152, %p153
      %p155 = scmp.ne.s32.totalorder %s144, %s147
      %p156 = scmp.eq.s32.totalorder %s24, 1
      %p157 = por %p155, %p156
      %p158 = scmp.ne.s32.totalorder %s147, %s148
      %p159 = scmp.eq.s32.totalorder %s24, 0
      %p160 = por %p158, %p159
      %p161 = scmp.ne.s32.totalorder %s147, %s148
      %p162 = scmp.eq.s32.totalorder %s25, 1
      %p163 = por %p161, %p162
      %p165 = scmp.ne.s32.totalorder %s148, %s164
      %p166 = scmp.eq.s32.totalorder %s25, 0
      %p167 = por %p165, %p166
      %p168 = scmp.le.s32.totalorder 1, %s19
      %p169 = scmp.lt.s32.totalorder %s19, 3
      %p170 = pnand %p168, %p169
      %p171 = pneg %p170
      // Predicated region
      $region9: #{_lambda_.12} parent=5 // pred_check
        _
      $region10: #{_lambda_.12} parent=5 // pred_check_branch
        %173 = sbr.rel (%p170) target = $region12
      $region11: #{_lambda_.12} parent=5 // pred_region
        %s174 = ssub.s32 %s19, 1
        // Predicated region
        $region13: #{_lambda_.12} parent=11 // pred_check
          %p175 = pneg %p66
        $region14: #{_lambda_.12} parent=11 // pred_check_branch
          %177 = sbr.rel (%p175) target = $region16
        $region15: #{_lambda_.12} parent=11 // pred_region
          %s179 = ssub.s32 1152, 1152
          %180 = vsyncadd [#allocation6], %s179
          %s181 = sshll.u32 [#allocation5], 4
          %s182 = int_to_ptr.vmem [resolvable:$true] %s181
          %187 = dma.hbm_to_vmem [thread:$0]  %s1, 1152, %s182, [#allocation6], 64, 64, 4
        $region16: #{_lambda_.12} parent=11 // pred_fallthru
          _
        // Predicated region
        $region17: #{_lambda_.12} parent=11 // pred_check
          %p188 = pneg %p87
        $region18: #{_lambda_.12} parent=11 // pred_check_branch
          %190 = sbr.rel (%p188) target = $region20
        $region19: #{_lambda_.12} parent=11 // pred_region
          %s192 = ssub.s32 256, 256
          %193 = vsyncadd [#allocation6], %s192
          %s194 = sshll.u32 [#allocation7], 4
          %s195 = int_to_ptr.vmem [resolvable:$true] %s194
          %200 = dma.hbm_to_vmem [thread:$0]  %s2, 256, %s195, [#allocation6], 128, 128, 8
        $region20: #{_lambda_.12} parent=11 // pred_fallthru
          _
        // Predicated region
        $region21: #{_lambda_.12} parent=11 // pred_check
          %p201 = pneg %p108
        $region22: #{_lambda_.12} parent=11 // pred_check_branch
          %203 = sbr.rel (%p201) target = $region24
        $region23: #{_lambda_.12} parent=11 // pred_region
          %s205 = ssub.s32 48, 48
          %206 = vsyncadd [#allocation9], %s205
          %s208 = sshll.u32 [#allocation8], 4
          %s209 = int_to_ptr.vmem [resolvable:$true] %s208
          %211 = dma.hbm_to_vmem [thread:$0]  %s3, 48, %s209, [#allocation9]
        $region24: #{_lambda_.12} parent=11 // pred_fallthru
          _
      $region12: #{_lambda_.12} parent=5 // pred_fallthru
        _
      %p212 = scmp.lt.s32.totalorder %s19, 2
      // Predicated region
      $region25: #{_lambda_.12} parent=5 // pred_check
        %p213 = pneg %p212
      $region26: #{_lambda_.12} parent=5 // pred_check_branch
        %215 = sbr.rel (%p213) target = $region28
      $region27: #{_lambda_.12} parent=5 // pred_region
        // Predicated region
        $region29: #{_lambda_.12} parent=27 // pred_check
          %p216 = pneg %p39
        $region30: #{_lambda_.12} parent=27 // pred_check_branch
          %218 = sbr.rel (%p216) target = $region32
        $region31: #{_lambda_.12} parent=27 // pred_region
          %s219 = sand.u32 %s19, 1
          %s220 = scalar_lea.sflag [#allocation3], %s219
          %s221 = sand.u32 %s29, 1
          %s222 = smul.addr %s221, 40
          %s223 = scalar_lea.vmem [#allocation2], %s222
          %s225 = ssub.s32 640, 640
          %226 = vsyncadd %s220, %s225
          %s227 = smul.addr %s19, 10
          %s228 = smul.addr %s227, 64
          %s229 = scalar_lea.hbm %s0, %s228
          %s230 = sshll.u32 %s223, 4
          %s231 = int_to_ptr.vmem [resolvable:$true] %s230
          %236 = dma.hbm_to_vmem [thread:$0]  %s229, 640, %s231, %s220, 320, 320, 20
        $region32: #{_lambda_.12} parent=27 // pred_fallthru
          _
        // Predicated region
        $region33: #{_lambda_.12} parent=27 // pred_check
          %p237 = pneg %p128
        $region34: #{_lambda_.12} parent=27 // pred_check_branch
          %239 = sbr.rel (%p237) target = $region36
        $region35: #{_lambda_.12} parent=27 // pred_region
          %s240 = sand.u32 %s19, 1
          %s241 = scalar_lea.sflag [#allocation3], %s240
          %s242 = sand.u32 %s118, 1
          %s243 = smul.addr %s242, 40
          %s244 = scalar_lea.vmem [#allocation10], %s243
          %s246 = ssub.s32 640, 640
          %247 = vsyncadd %s241, %s246
          %s248 = smul.addr %s19, 10
          %s249 = smul.addr %s248, 64
          %s250 = scalar_lea.hbm %s4, %s249
          %s251 = sshll.u32 %s244, 4
          %s252 = int_to_ptr.vmem [resolvable:$true] %s251
          %257 = dma.hbm_to_vmem [thread:$0]  %s250, 640, %s252, %s241, 320, 320, 20
        $region36: #{_lambda_.12} parent=27 // pred_fallthru
          _
      $region28: #{_lambda_.12} parent=5 // pred_fallthru
        _
      %p258 = scmp.le.s32.totalorder 1, %s19
      %p259 = scmp.lt.s32.totalorder %s19, 3
      %p260 = pnand %p258, %p259
      %p261 = pneg %p260
      // Predicated region
      $region37: #{_lambda_.12} parent=5 // pred_check
        _
      $region38: #{_lambda_.12} parent=5 // pred_check_branch
        %263 = sbr.rel (%p260) target = $region40
      $region39: #{_lambda_.12} parent=5 // pred_region
        %s264 = ssub.s32 %s19, 1
        %s265 = sand.u32 %s24, 1
        %s266 = scalar_lea.sflag [#allocation3], %s265
        %s267 = sand.u32 %s32, 1
        %s268 = smul.addr %s267, 40
        %s269 = scalar_lea.vmem [#allocation2], %s268
        // Predicated region
        $region41: #{_lambda_.12} parent=39 // pred_check
          %p270 = pneg %p45
        $region42: #{_lambda_.12} parent=39 // pred_check_branch
          %272 = sbr.rel (%p270) target = $region44
        $region43: #{_lambda_.12} parent=39 // pred_region
          %273 = dma.done %s266, 640
        $region44: #{_lambda_.12} parent=39 // pred_fallthru
          _
        // Predicated region
        $region45: #{_lambda_.12} parent=39 // pred_check
          %p274 = pneg %p66
        $region46: #{_lambda_.12} parent=39 // pred_check_branch
          %276 = sbr.rel (%p274) target = $region48
        $region47: #{_lambda_.12} parent=39 // pred_region
          %277 = dma.done [#allocation6], 1152
        $region48: #{_lambda_.12} parent=39 // pred_fallthru
          _
        // Predicated region
        $region49: #{_lambda_.12} parent=39 // pred_check
          %p278 = pneg %p87
        $region50: #{_lambda_.12} parent=39 // pred_check_branch
          %280 = sbr.rel (%p278) target = $region52
        $region51: #{_lambda_.12} parent=39 // pred_region
          %281 = dma.done [#allocation6], 256
        $region52: #{_lambda_.12} parent=39 // pred_fallthru
          _
        // Predicated region
        $region53: #{_lambda_.12} parent=39 // pred_check
          %p282 = pneg %p108
        $region54: #{_lambda_.12} parent=39 // pred_check_branch
          %284 = sbr.rel (%p282) target = $region56
        $region55: #{_lambda_.12} parent=39 // pred_region
          %285 = dma.done [#allocation9], 48
        $region56: #{_lambda_.12} parent=39 // pred_fallthru
          _
        %s286 = sand.u32 %s24, 1
        %s287 = scalar_lea.sflag [#allocation3], %s286
        %s288 = sand.u32 %s121, 1
        %s289 = smul.addr %s288, 40
        %s290 = scalar_lea.vmem [#allocation10], %s289
        // Predicated region
        $region57: #{_lambda_.12} parent=39 // pred_check
          %p291 = pneg %p134
        $region58: #{_lambda_.12} parent=39 // pred_check_branch
          %293 = sbr.rel (%p291) target = $region60
        $region59: #{_lambda_.12} parent=39 // pred_region
          %294 = dma.done %s287, 640
        $region60: #{_lambda_.12} parent=39 // pred_fallthru
          _
        %s295 = sand.u32 %s24, 1
        %s296 = scalar_lea.sflag [#allocation3], %s295
        %s297 = sand.u32 %s32, 1
        %s298 = smul.addr %s297, 40
        %s299 = scalar_lea.vmem [#allocation2], %s298
        %p300 = pneg %p45
        %p301 = pneg %p42
        %p302 = pneg %p66
        %p303 = pneg %p63
        %p304 = pneg %p87
        %p305 = pneg %p84
        %p306 = pneg %p108
        %p307 = pneg %p105
        %s308 = sand.u32 %s24, 1
        %s309 = scalar_lea.sflag [#allocation3], %s308
        %s310 = sand.u32 %s121, 1
        %s311 = smul.addr %s310, 40
        %s312 = scalar_lea.vmem [#allocation10], %s311
        %p313 = pneg %p134
        %p314 = pneg %p131
        %p315 = pneg %p160
        %p316 = pneg %p157
        %s317 = sand.u32 %s147, 1
        %s318 = scalar_lea.sflag [#allocation4], %s317
        %s319 = sand.u32 %s147, 1
        %s320 = smul.addr %s319, 40
        %s321 = scalar_lea.vmem [#allocation11], %s320
        %v323 = vld [vmem:[#allocation5] sm:$0xf]
        %v324 = vld [vmem:[#allocation5 + $0x4] sm:$0xf]
        %v325 = vld [vmem:[%s269] sm:$0xff]
        %v326 = vld [vmem:[%s269 + $0x8] sm:$0xff]
        %v327 = vld [vmem:[%s269 + $0x14] sm:$0xff]
        %v328 = vld [vmem:[%s269 + $0x1c] sm:$0xff]
        %s329 = scalar_lea.vmem [#allocation5], 8
        %v330 = vld [vmem:[%s329] sm:$0xf]
        %v331 = vld [vmem:[%s329 + $0x4] sm:$0xf]
        %v334 = vunpack.c.l.b16 %v330
        %v335 = vunpack.c.l.b16 %v331
        %v336 = vpack.c.b16 %v335, %v334
        %v341 = vunpack.c.l.b16 %v325
        %v342 = vunpack.c.h.b16 %v325
        %v343 = vunpack.c.l.b16 %v326
        %v344 = vunpack.c.h.b16 %v326
        %v345 = vunpack.c.l.b16 %v327
        %v346 = vunpack.c.h.b16 %v327
        %v347 = vunpack.c.l.b16 %v328
        %v348 = vunpack.c.h.b16 %v328
        %v349 = vpack.c.b16 %v345, %v341
        %v350 = vpack.c.b16 %v346, %v342
        %v351 = vpack.c.b16 %v347, %v343
        %v352 = vpack.c.b16 %v348, %v344
        %353 = vrot.lane.b32.xlu0 %v349, 18
        %v354 = vpop.permute.xlu0 %353
        %355 = vrot.lane.b32.xlu0 %v350, 18
        %v356 = vpop.permute.xlu0 %355
        %357 = vrot.lane.b32.xlu0 %v351, 18
        %v358 = vpop.permute.xlu0 %357
        %359 = vrot.lane.b32.xlu0 %v352, 18
        %v360 = vpop.permute.xlu0 %359
        %vm361 = vcmask 146432
        %v362 = vsel %vm361, %v354, %v356
        %v363 = vsel %vm361, %v356, %v358
        %v364 = vsel %vm361, %v358, %v360
        %vm368 = vcmask 130048
        %v370 = vsel %vm368, %v336, 0
        %372 = vmatprep.subr.bf16.mxu0 %v363
        %373 = vmatpush1.bf16.msra.mxu0 %v362
        %374 = vmatprep.subr.bf16.mxu0 0
        %375 = vmatpush1.bf16.msra.mxu0 0
        %376 = vmatprep.subr.bf16.mxu0 0
        %377 = vmatpush1.bf16.msra.mxu0 0
        %378 = vmatprep.subr.bf16.mxu0 0
        %379 = vmatpush1.bf16.msra.mxu0 0
        %380 = vmatprep.subr.bf16.mxu0 0
        %381 = vmatpush1.bf16.msra.mxu0 0
        %382 = vmatprep.subr.bf16.mxu0 0
        %383 = vmatpush1.bf16.msra.mxu0 0
        %384 = vmatprep.subr.bf16.mxu0 0
        %385 = vmatpush1.bf16.msra.mxu0 0
        %386 = vmatprep.subr.bf16.mxu0 0
        %387 = vmatpush1.bf16.msra.mxu0 0
        %388 = vmatprep.subr.bf16.mxu0 0
        %389 = vmatpush1.bf16.msra.mxu0 0
        %390 = vmatprep.subr.bf16.mxu0 0
        %391 = vmatpush1.bf16.msra.mxu0 0
        %392 = vmatprep.subr.bf16.mxu0 0
        %393 = vmatpush1.bf16.msra.mxu0 0
        %394 = vmatprep.subr.bf16.mxu0 0
        %395 = vmatpush1.bf16.msra.mxu0 0
        %396 = vmatprep.subr.bf16.mxu0 0
        %397 = vmatpush1.bf16.msra.mxu0 0
        %398 = vmatprep.subr.bf16.mxu0 0
        %399 = vmatpush1.bf16.msra.mxu0 0
        %400 = vmatprep.subr.bf16.mxu0 0
        %401 = vmatpush1.bf16.msra.mxu0 0
        %402 = vmatprep.subr.bf16.mxu0 0
        %403 = vmatpush1.bf16.msra.mxu0 0
        %404 = vmatprep.mubr.bf16.mxu0 0
        %405 = vmatmul.mubr.bf16.gmra.mrb[0].mxu0 %v370
        %v406 = vpop.f32.mrb[0].mxu0
        %v407 = vadd.f32 0.0, %v406
        %v408 = vpop.f32.mrb[0].mxu0
        %v409 = vadd.f32 0.0, %v408
        %v410 = vpop.f32.mrb[0].mxu0
        %v411 = vadd.f32 0.0, %v410
        %v412 = vpop.f32.mrb[0].mxu0
        %v413 = vadd.f32 0.0, %v412
        %414 = vdwg.mxu0
        %415 = vmatprep.subr.bf16.mxu0 0
        %416 = vmatpush1.bf16.msra.mxu0 %v364
        %417 = vmatprep.subr.bf16.mxu0 0
        %418 = vmatpush1.bf16.msra.mxu0 0
        %419 = vmatprep.subr.bf16.mxu0 0
        %420 = vmatpush1.bf16.msra.mxu0 0
        %421 = vmatprep.subr.bf16.mxu0 0
        %422 = vmatpush1.bf16.msra.mxu0 0
        %423 = vmatprep.subr.bf16.mxu0 0
        %424 = vmatpush1.bf16.msra.mxu0 0
        %425 = vmatprep.subr.bf16.mxu0 0
        %426 = vmatpush1.bf16.msra.mxu0 0
        %427 = vmatprep.subr.bf16.mxu0 0
        %428 = vmatpush1.bf16.msra.mxu0 0
        %429 = vmatprep.subr.bf16.mxu0 0
        %430 = vmatpush1.bf16.msra.mxu0 0
        %431 = vmatprep.subr.bf16.mxu0 0
        %432 = vmatpush1.bf16.msra.mxu0 0
        %433 = vmatprep.subr.bf16.mxu0 0
        %434 = vmatpush1.bf16.msra.mxu0 0
        %435 = vmatprep.subr.bf16.mxu0 0
        %436 = vmatpush1.bf16.msra.mxu0 0
        %437 = vmatprep.subr.bf16.mxu0 0
        %438 = vmatpush1.bf16.msra.mxu0 0
        %439 = vmatprep.subr.bf16.mxu0 0
        %440 = vmatpush1.bf16.msra.mxu0 0
        %441 = vmatprep.subr.bf16.mxu0 0
        %442 = vmatpush1.bf16.msra.mxu0 0
        %443 = vmatprep.subr.bf16.mxu0 0
        %444 = vmatpush1.bf16.msra.mxu0 0
        %445 = vmatprep.subr.bf16.mxu0 0
        %446 = vmatpush1.bf16.msra.mxu0 0
        %447 = vmatprep.mubr.bf16.mxu0 0
        %448 = vmatmul.mubr.bf16.gmra.mrb[0].mxu0 %v370
        %v449 = vpop.f32.mrb[0].mxu0
        %v450 = vadd.f32 0.0, %v449
        %v451 = vpop.f32.mrb[0].mxu0
        %v452 = vpop.f32.mrb[0].mxu0
        %v453 = vadd.f32 0.0, %v452
        %v454 = vpop.f32.mrb[0].mxu0
        %455 = vdwg.mxu0
        %v458 = vunpack.c.l.b16 %v323
        %v459 = vunpack.c.l.b16 %v324
        %v460 = vpack.c.b16 %v459, %v458
        %461 = vrot.lane.b32.xlu0 %v349, 19
        %v462 = vpop.permute.xlu0 %461
        %463 = vrot.lane.b32.xlu0 %v350, 19
        %v464 = vpop.permute.xlu0 %463
        %465 = vrot.lane.b32.xlu0 %v351, 19
        %v466 = vpop.permute.xlu0 %465
        %467 = vrot.lane.b32.xlu0 %v352, 19
        %v468 = vpop.permute.xlu0 %467
        %vm469 = vcmask 154624
        %v470 = vsel %vm469, %v462, %v464
        %v471 = vsel %vm469, %v464, %v466
        %v472 = vsel %vm469, %v466, %v468
        %v477 = vsel %vm368, %v460, 0
        %479 = vmatprep.subr.bf16.mxu0 %v471
        %480 = vmatpush1.bf16.msra.mxu0 %v470
        %481 = vmatprep.subr.bf16.mxu0 0
        %482 = vmatpush1.bf16.msra.mxu0 0
        %483 = vmatprep.subr.bf16.mxu0 0
        %484 = vmatpush1.bf16.msra.mxu0 0
        %485 = vmatprep.subr.bf16.mxu0 0
        %486 = vmatpush1.bf16.msra.mxu0 0
        %487 = vmatprep.subr.bf16.mxu0 0
        %488 = vmatpush1.bf16.msra.mxu0 0
        %489 = vmatprep.subr.bf16.mxu0 0
        %490 = vmatpush1.bf16.msra.mxu0 0
        %491 = vmatprep.subr.bf16.mxu0 0
        %492 = vmatpush1.bf16.msra.mxu0 0
        %493 = vmatprep.subr.bf16.mxu0 0
        %494 = vmatpush1.bf16.msra.mxu0 0
        %495 = vmatprep.subr.bf16.mxu0 0
        %496 = vmatpush1.bf16.msra.mxu0 0
        %497 = vmatprep.subr.bf16.mxu0 0
        %498 = vmatpush1.bf16.msra.mxu0 0
        %499 = vmatprep.subr.bf16.mxu0 0
        %500 = vmatpush1.bf16.msra.mxu0 0
        %501 = vmatprep.subr.bf16.mxu0 0
        %502 = vmatpush1.bf16.msra.mxu0 0
        %503 = vmatprep.subr.bf16.mxu0 0
        %504 = vmatpush1.bf16.msra.mxu0 0
        %505 = vmatprep.subr.bf16.mxu0 0
        %506 = vmatpush1.bf16.msra.mxu0 0
        %507 = vmatprep.subr.bf16.mxu0 0
        %508 = vmatpush1.bf16.msra.mxu0 0
        %509 = vmatprep.subr.bf16.mxu0 0
        %510 = vmatpush1.bf16.msra.mxu0 0
        %511 = vmatprep.mubr.bf16.mxu0 0
        %512 = vmatmul.mubr.bf16.gmra.mrb[0].mxu0 %v477
        %v513 = vpop.f32.mrb[0].mxu0
        %v514 = vadd.f32 %v407, %v513
        %v515 = vpop.f32.mrb[0].mxu0
        %v516 = vadd.f32 %v409, %v515
        %v517 = vpop.f32.mrb[0].mxu0
        %v518 = vadd.f32 %v411, %v517
        %v519 = vpop.f32.mrb[0].mxu0
        %v520 = vadd.f32 %v413, %v519
        %521 = vdwg.mxu0
        %522 = vmatprep.subr.bf16.mxu0 0
        %523 = vmatpush1.bf16.msra.mxu0 %v472
        %524 = vmatprep.subr.bf16.mxu0 0
        %525 = vmatpush1.bf16.msra.mxu0 0
        %526 = vmatprep.subr.bf16.mxu0 0
        %527 = vmatpush1.bf16.msra.mxu0 0
        %528 = vmatprep.subr.bf16.mxu0 0
        %529 = vmatpush1.bf16.msra.mxu0 0
        %530 = vmatprep.subr.bf16.mxu0 0
        %531 = vmatpush1.bf16.msra.mxu0 0
        %532 = vmatprep.subr.bf16.mxu0 0
        %533 = vmatpush1.bf16.msra.mxu0 0
        %534 = vmatprep.subr.bf16.mxu0 0
        %535 = vmatpush1.bf16.msra.mxu0 0
        %536 = vmatprep.subr.bf16.mxu0 0
        %537 = vmatpush1.bf16.msra.mxu0 0
        %538 = vmatprep.subr.bf16.mxu0 0
        %539 = vmatpush1.bf16.msra.mxu0 0
        %540 = vmatprep.subr.bf16.mxu0 0
        %541 = vmatpush1.bf16.msra.mxu0 0
        %542 = vmatprep.subr.bf16.mxu0 0
        %543 = vmatpush1.bf16.msra.mxu0 0
        %544 = vmatprep.subr.bf16.mxu0 0
        %545 = vmatpush1.bf16.msra.mxu0 0
        %546 = vmatprep.subr.bf16.mxu0 0
        %547 = vmatpush1.bf16.msra.mxu0 0
        %548 = vmatprep.subr.bf16.mxu0 0
        %549 = vmatpush1.bf16.msra.mxu0 0
        %550 = vmatprep.subr.bf16.mxu0 0
        %551 = vmatpush1.bf16.msra.mxu0 0
        %552 = vmatprep.subr.bf16.mxu0 0
        %553 = vmatpush1.bf16.msra.mxu0 0
        %554 = vmatprep.mubr.bf16.mxu0 0
        %555 = vmatmul.mubr.bf16.gmra.mrb[0].mxu0 %v477
        %v556 = vpop.f32.mrb[0].mxu0
        %v557 = vadd.f32 %v450, %v556
        %v558 = vpop.f32.mrb[0].mxu0
        %v559 = vpop.f32.mrb[0].mxu0
        %v560 = vadd.f32 %v453, %v559
        %v561 = vpop.f32.mrb[0].mxu0
        %562 = vdwg.mxu0
        %s563 = scalar_lea.vmem [#allocation5], 16
        %v564 = vld [vmem:[%s563] sm:$0xf]
        %v565 = vld [vmem:[%s563 + $0x4] sm:$0xf]
        %v568 = vunpack.c.l.b16 %v564
        %v569 = vunpack.c.l.b16 %v565
        %v570 = vpack.c.b16 %v569, %v568
        %571 = vrot.lane.b32.xlu0 %v349, 17
        %v572 = vpop.permute.xlu0 %571
        %573 = vrot.lane.b32.xlu0 %v350, 17
        %v574 = vpop.permute.xlu0 %573
        %575 = vrot.lane.b32.xlu0 %v351, 17
        %v576 = vpop.permute.xlu0 %575
        %577 = vrot.lane.b32.xlu0 %v352, 17
        %v578 = vpop.permute.xlu0 %577
        %vm579 = vcmask 138240
        %v580 = vsel %vm579, %v572, %v574
        %v581 = vsel %vm579, %v574, %v576
        %v582 = vsel %vm579, %v576, %v578
        %v587 = vsel %vm368, %v570, 0
        %589 = vmatprep.subr.bf16.mxu0 %v581
        %590 = vmatpush1.bf16.msra.mxu0 %v580
        %591 = vmatprep.subr.bf16.mxu0 0
        %592 = vmatpush1.bf16.msra.mxu0 0
        %593 = vmatprep.subr.bf16.mxu0 0
        %594 = vmatpush1.bf16.msra.mxu0 0
        %595 = vmatprep.subr.bf16.mxu0 0
        %596 = vmatpush1.bf16.msra.mxu0 0
        %597 = vmatprep.subr.bf16.mxu0 0
        %598 = vmatpush1.bf16.msra.mxu0 0
        %599 = vmatprep.subr.bf16.mxu0 0
        %600 = vmatpush1.bf16.msra.mxu0 0
        %601 = vmatprep.subr.bf16.mxu0 0
        %602 = vmatpush1.bf16.msra.mxu0 0
        %603 = vmatprep.subr.bf16.mxu0 0
        %604 = vmatpush1.bf16.msra.mxu0 0
        %605 = vmatprep.subr.bf16.mxu0 0
        %606 = vmatpush1.bf16.msra.mxu0 0
        %607 = vmatprep.subr.bf16.mxu0 0
        %608 = vmatpush1.bf16.msra.mxu0 0
        %609 = vmatprep.subr.bf16.mxu0 0
        %610 = vmatpush1.bf16.msra.mxu0 0
        %611 = vmatprep.subr.bf16.mxu0 0
        %612 = vmatpush1.bf16.msra.mxu0 0
        %613 = vmatprep.subr.bf16.mxu0 0
        %614 = vmatpush1.bf16.msra.mxu0 0
        %615 = vmatprep.subr.bf16.mxu0 0
        %616 = vmatpush1.bf16.msra.mxu0 0
        %617 = vmatprep.subr.bf16.mxu0 0
        %618 = vmatpush1.bf16.msra.mxu0 0
        %619 = vmatprep.subr.bf16.mxu0 0
        %620 = vmatpush1.bf16.msra.mxu0 0
        %621 = vmatprep.mubr.bf16.mxu0 0
        %622 = vmatmul.mubr.bf16.gmra.mrb[0].mxu0 %v587
        %v623 = vpop.f32.mrb[0].mxu0
        %v624 = vadd.f32 0.0, %v623
        %v625 = vpop.f32.mrb[0].mxu0
        %v626 = vadd.f32 0.0, %v625
        %v627 = vpop.f32.mrb[0].mxu0
        %v628 = vadd.f32 0.0, %v627
        %v629 = vpop.f32.mrb[0].mxu0
        %v630 = vadd.f32 0.0, %v629
        %631 = vdwg.mxu0
        %632 = vmatprep.subr.bf16.mxu0 0
        %633 = vmatpush1.bf16.msra.mxu0 %v582
        %634 = vmatprep.subr.bf16.mxu0 0
        %635 = vmatpush1.bf16.msra.mxu0 0
        %636 = vmatprep.subr.bf16.mxu0 0
        %637 = vmatpush1.bf16.msra.mxu0 0
        %638 = vmatprep.subr.bf16.mxu0 0
        %639 = vmatpush1.bf16.msra.mxu0 0
        %640 = vmatprep.subr.bf16.mxu0 0
        %641 = vmatpush1.bf16.msra.mxu0 0
        %642 = vmatprep.subr.bf16.mxu0 0
        %643 = vmatpush1.bf16.msra.mxu0 0
        %644 = vmatprep.subr.bf16.mxu0 0
        %645 = vmatpush1.bf16.msra.mxu0 0
        %646 = vmatprep.subr.bf16.mxu0 0
        %647 = vmatpush1.bf16.msra.mxu0 0
        %648 = vmatprep.subr.bf16.mxu0 0
        %649 = vmatpush1.bf16.msra.mxu0 0
        %650 = vmatprep.subr.bf16.mxu0 0
        %651 = vmatpush1.bf16.msra.mxu0 0
        %652 = vmatprep.subr.bf16.mxu0 0
        %653 = vmatpush1.bf16.msra.mxu0 0
        %654 = vmatprep.subr.bf16.mxu0 0
        %655 = vmatpush1.bf16.msra.mxu0 0
        %656 = vmatprep.subr.bf16.mxu0 0
        %657 = vmatpush1.bf16.msra.mxu0 0
        %658 = vmatprep.subr.bf16.mxu0 0
        %659 = vmatpush1.bf16.msra.mxu0 0
        %660 = vmatprep.subr.bf16.mxu0 0
        %661 = vmatpush1.bf16.msra.mxu0 0
        %662 = vmatprep.subr.bf16.mxu0 0
        %663 = vmatpush1.bf16.msra.mxu0 0
        %664 = vmatprep.mubr.bf16.mxu0 0
        %665 = vmatmul.mubr.bf16.gmra.mrb[0].mxu0 %v587
        %v666 = vpop.f32.mrb[0].mxu0
        %v667 = vadd.f32 0.0, %v666
        %v668 = vpop.f32.mrb[0].mxu0
        %v669 = vpop.f32.mrb[0].mxu0
        %v670 = vadd.f32 0.0, %v669
        %v671 = vpop.f32.mrb[0].mxu0
        %672 = vdwg.mxu0
        %v673 = vadd.f32 %v514, %v624
        %v674 = vadd.f32 %v516, %v626
        %v675 = vadd.f32 %v557, %v667
        %v676 = vadd.f32 %v518, %v628
        %v677 = vadd.f32 %v520, %v630
        %v678 = vadd.f32 %v560, %v670
        %s679 = scalar_lea.vmem [#allocation5], 24
        %v680 = vld [vmem:[%s679] sm:$0xf]
        %v681 = vld [vmem:[%s679 + $0x4] sm:$0xf]
        %v684 = vunpack.c.l.b16 %v680
        %v685 = vunpack.c.l.b16 %v681
        %v686 = vpack.c.b16 %v685, %v684
        %687 = vrot.lane.b32.xlu0 %v349, 1
        %v688 = vpop.permute.xlu0 %687
        %689 = vrot.lane.b32.xlu0 %v350, 1
        %v690 = vpop.permute.xlu0 %689
        %691 = vrot.lane.b32.xlu0 %v351, 1
        %v692 = vpop.permute.xlu0 %691
        %693 = vrot.lane.b32.xlu0 %v352, 1
        %v694 = vpop.permute.xlu0 %693
        %vm695 = vcmask 7168
        %v696 = vsel %vm695, %v688, %v690
        %v697 = vsel %vm695, %v690, %v692
        %v698 = vsel %vm695, %v692, %v694
        %v703 = vsel %vm368, %v686, 0
        %705 = vmatprep.subr.bf16.mxu0 %v697
        %706 = vmatpush1.bf16.msra.mxu0 %v696
        %707 = vmatprep.subr.bf16.mxu0 0
        %708 = vmatpush1.bf16.msra.mxu0 0
        %709 = vmatprep.subr.bf16.mxu0 0
        %710 = vmatpush1.bf16.msra.mxu0 0
        %711 = vmatprep.subr.bf16.mxu0 0
        %712 = vmatpush1.bf16.msra.mxu0 0
        %713 = vmatprep.subr.bf16.mxu0 0
        %714 = vmatpush1.bf16.msra.mxu0 0
        %715 = vmatprep.subr.bf16.mxu0 0
        %716 = vmatpush1.bf16.msra.mxu0 0
        %717 = vmatprep.subr.bf16.mxu0 0
        %718 = vmatpush1.bf16.msra.mxu0 0
        %719 = vmatprep.subr.bf16.mxu0 0
        %720 = vmatpush1.bf16.msra.mxu0 0
        %721 = vmatprep.subr.bf16.mxu0 0
        %722 = vmatpush1.bf16.msra.mxu0 0
        %723 = vmatprep.subr.bf16.mxu0 0
        %724 = vmatpush1.bf16.msra.mxu0 0
        %725 = vmatprep.subr.bf16.mxu0 0
        %726 = vmatpush1.bf16.msra.mxu0 0
        %727 = vmatprep.subr.bf16.mxu0 0
        %728 = vmatpush1.bf16.msra.mxu0 0
        %729 = vmatprep.subr.bf16.mxu0 0
        %730 = vmatpush1.bf16.msra.mxu0 0
        %731 = vmatprep.subr.bf16.mxu0 0
        %732 = vmatpush1.bf16.msra.mxu0 0
        %733 = vmatprep.subr.bf16.mxu0 0
        %734 = vmatpush1.bf16.msra.mxu0 0
        %735 = vmatprep.subr.bf16.mxu0 0
        %736 = vmatpush1.bf16.msra.mxu0 0
        %737 = vmatprep.mubr.bf16.mxu0 0
        %738 = vmatmul.mubr.bf16.gmra.mrb[0].mxu0 %v703
        %v739 = vpop.f32.mrb[0].mxu0
        %v740 = vadd.f32 0.0, %v739
        %v741 = vpop.f32.mrb[0].mxu0
        %v742 = vadd.f32 0.0, %v741
        %v743 = vpop.f32.mrb[0].mxu0
        %v744 = vadd.f32 0.0, %v743
        %v745 = vpop.f32.mrb[0].mxu0
        %v746 = vadd.f32 0.0, %v745
        %747 = vdwg.mxu0
        %748 = vmatprep.subr.bf16.mxu0 0
        %749 = vmatpush1.bf16.msra.mxu0 %v698
        %750 = vmatprep.subr.bf16.mxu0 0
        %751 = vmatpush1.bf16.msra.mxu0 0
        %752 = vmatprep.subr.bf16.mxu0 0
        %753 = vmatpush1.bf16.msra.mxu0 0
        %754 = vmatprep.subr.bf16.mxu0 0
        %755 = vmatpush1.bf16.msra.mxu0 0
        %756 = vmatprep.subr.bf16.mxu0 0
        %757 = vmatpush1.bf16.msra.mxu0 0
        %758 = vmatprep.subr.bf16.mxu0 0
        %759 = vmatpush1.bf16.msra.mxu0 0
        %760 = vmatprep.subr.bf16.mxu0 0
        %761 = vmatpush1.bf16.msra.mxu0 0
        %762 = vmatprep.subr.bf16.mxu0 0
        %763 = vmatpush1.bf16.msra.mxu0 0
        %764 = vmatprep.subr.bf16.mxu0 0
        %765 = vmatpush1.bf16.msra.mxu0 0
        %766 = vmatprep.subr.bf16.mxu0 0
        %767 = vmatpush1.bf16.msra.mxu0 0
        %768 = vmatprep.subr.bf16.mxu0 0
        %769 = vmatpush1.bf16.msra.mxu0 0
        %770 = vmatprep.subr.bf16.mxu0 0
        %771 = vmatpush1.bf16.msra.mxu0 0
        %772 = vmatprep.subr.bf16.mxu0 0
        %773 = vmatpush1.bf16.msra.mxu0 0
        %774 = vmatprep.subr.bf16.mxu0 0
        %775 = vmatpush1.bf16.msra.mxu0 0
        %776 = vmatprep.subr.bf16.mxu0 0
        %777 = vmatpush1.bf16.msra.mxu0 0
        %778 = vmatprep.subr.bf16.mxu0 0
        %779 = vmatpush1.bf16.msra.mxu0 0
        %780 = vmatprep.mubr.bf16.mxu0 0
        %781 = vmatmul.mubr.bf16.gmra.mrb[0].mxu0 %v703
        %v782 = vpop.f32.mrb[0].mxu0
        %v783 = vadd.f32 0.0, %v782
        %v784 = vpop.f32.mrb[0].mxu0
        %v785 = vpop.f32.mrb[0].mxu0
        %v786 = vadd.f32 0.0, %v785
        %v787 = vpop.f32.mrb[0].mxu0
        %788 = vdwg.mxu0
        %v789 = vadd.f32 %v673, %v740
        %v790 = vadd.f32 %v674, %v742
        %v791 = vadd.f32 %v675, %v783
        %v792 = vadd.f32 %v676, %v744
        %v793 = vadd.f32 %v677, %v746
        %v794 = vadd.f32 %v678, %v786
        %s795 = scalar_lea.vmem [#allocation5], 32
        %v796 = vld [vmem:[%s795] sm:$0xf]
        %v797 = vld [vmem:[%s795 + $0x4] sm:$0xf]
        %v798 = vld [vmem:[%s269 + $0x4] sm:$0xff]
        %v799 = vld [vmem:[%s269 + $0xc] sm:$0xf]
        %v800 = vld [vmem:[%s269 + $0x18] sm:$0xff]
        %v801 = vld [vmem:[%s269 + $0x20] sm:$0xf]
        %v804 = vunpack.c.l.b16 %v796
        %v805 = vunpack.c.l.b16 %v797
        %v806 = vpack.c.b16 %v805, %v804
        %v811 = vunpack.c.l.b16 %v798
        %v812 = vunpack.c.h.b16 %v798
        %v813 = vunpack.c.l.b16 %v799
        %v814 = vunpack.c.l.b16 %v800
        %v815 = vunpack.c.h.b16 %v800
        %v816 = vunpack.c.l.b16 %v801
        %v817 = vpack.c.b16 %v814, %v811
        %v818 = vpack.c.b16 %v815, %v812
        %v819 = vpack.c.b16 %v816, %v813
        %v824 = vsel %vm368, %v806, 0
        %826 = vmatprep.subr.bf16.mxu0 %v818
        %827 = vmatpush1.bf16.msra.mxu0 %v817
        %828 = vmatprep.subr.bf16.mxu0 0
        %829 = vmatpush1.bf16.msra.mxu0 0
        %830 = vmatprep.subr.bf16.mxu0 0
        %831 = vmatpush1.bf16.msra.mxu0 0
        %832 = vmatprep.subr.bf16.mxu0 0
        %833 = vmatpush1.bf16.msra.mxu0 0
        %834 = vmatprep.subr.bf16.mxu0 0
        %835 = vmatpush1.bf16.msra.mxu0 0
        %836 = vmatprep.subr.bf16.mxu0 0
        %837 = vmatpush1.bf16.msra.mxu0 0
        %838 = vmatprep.subr.bf16.mxu0 0
        %839 = vmatpush1.bf16.msra.mxu0 0
        %840 = vmatprep.subr.bf16.mxu0 0
        %841 = vmatpush1.bf16.msra.mxu0 0
        %842 = vmatprep.subr.bf16.mxu0 0
        %843 = vmatpush1.bf16.msra.mxu0 0
        %844 = vmatprep.subr.bf16.mxu0 0
        %845 = vmatpush1.bf16.msra.mxu0 0
        %846 = vmatprep.subr.bf16.mxu0 0
        %847 = vmatpush1.bf16.msra.mxu0 0
        %848 = vmatprep.subr.bf16.mxu0 0
        %849 = vmatpush1.bf16.msra.mxu0 0
        %850 = vmatprep.subr.bf16.mxu0 0
        %851 = vmatpush1.bf16.msra.mxu0 0
        %852 = vmatprep.subr.bf16.mxu0 0
        %853 = vmatpush1.bf16.msra.mxu0 0
        %854 = vmatprep.subr.bf16.mxu0 0
        %855 = vmatpush1.bf16.msra.mxu0 0
        %856 = vmatprep.subr.bf16.mxu0 0
        %857 = vmatpush1.bf16.msra.mxu0 0
        %858 = vmatprep.mubr.bf16.mxu0 0
        %859 = vmatmul.mubr.bf16.gmra.mrb[0].mxu0 %v824
        %v860 = vpop.f32.mrb[0].mxu0
        %v861 = vadd.f32 0.0, %v860
        %v862 = vpop.f32.mrb[0].mxu0
        %v863 = vadd.f32 0.0, %v862
        %v864 = vpop.f32.mrb[0].mxu0
        %v865 = vadd.f32 0.0, %v864
        %v866 = vpop.f32.mrb[0].mxu0
        %v867 = vadd.f32 0.0, %v866
        %868 = vdwg.mxu0
        %869 = vmatprep.subr.bf16.mxu0 0
        %870 = vmatpush1.bf16.msra.mxu0 %v819
        %871 = vmatprep.subr.bf16.mxu0 0
        %872 = vmatpush1.bf16.msra.mxu0 0
        %873 = vmatprep.subr.bf16.mxu0 0
        %874 = vmatpush1.bf16.msra.mxu0 0
        %875 = vmatprep.subr.bf16.mxu0 0
        %876 = vmatpush1.bf16.msra.mxu0 0
        %877 = vmatprep.subr.bf16.mxu0 0
        %878 = vmatpush1.bf16.msra.mxu0 0
        %879 = vmatprep.subr.bf16.mxu0 0
        %880 = vmatpush1.bf16.msra.mxu0 0
        %881 = vmatprep.subr.bf16.mxu0 0
        %882 = vmatpush1.bf16.msra.mxu0 0
        %883 = vmatprep.subr.bf16.mxu0 0
        %884 = vmatpush1.bf16.msra.mxu0 0
        %885 = vmatprep.subr.bf16.mxu0 0
        %886 = vmatpush1.bf16.msra.mxu0 0
        %887 = vmatprep.subr.bf16.mxu0 0
        %888 = vmatpush1.bf16.msra.mxu0 0
        %889 = vmatprep.subr.bf16.mxu0 0
        %890 = vmatpush1.bf16.msra.mxu0 0
        %891 = vmatprep.subr.bf16.mxu0 0
        %892 = vmatpush1.bf16.msra.mxu0 0
        %893 = vmatprep.subr.bf16.mxu0 0
        %894 = vmatpush1.bf16.msra.mxu0 0
        %895 = vmatprep.subr.bf16.mxu0 0
        %896 = vmatpush1.bf16.msra.mxu0 0
        %897 = vmatprep.subr.bf16.mxu0 0
        %898 = vmatpush1.bf16.msra.mxu0 0
        %899 = vmatprep.subr.bf16.mxu0 0
        %900 = vmatpush1.bf16.msra.mxu0 0
        %901 = vmatprep.mubr.bf16.mxu0 0
        %902 = vmatmul.mubr.bf16.gmra.mrb[0].mxu0 %v824
        %v903 = vpop.f32.mrb[0].mxu0
        %v904 = vadd.f32 0.0, %v903
        %v905 = vpop.f32.mrb[0].mxu0
        %v906 = vpop.f32.mrb[0].mxu0
        %v907 = vadd.f32 0.0, %v906
        %v908 = vpop.f32.mrb[0].mxu0
        %909 = vdwg.mxu0
        %v910 = vadd.f32 %v789, %v861
        %v911 = vadd.f32 %v790, %v863
        %v912 = vadd.f32 %v791, %v904
        %v913 = vadd.f32 %v792, %v865
        %v914 = vadd.f32 %v793, %v867
        %v915 = vadd.f32 %v794, %v907
        %s916 = scalar_lea.vmem [#allocation5], 40
        %v917 = vld [vmem:[%s916] sm:$0xf]
        %v918 = vld [vmem:[%s916 + $0x4] sm:$0xf]
        %v921 = vunpack.c.l.b16 %v917
        %v922 = vunpack.c.l.b16 %v918
        %v923 = vpack.c.b16 %v922, %v921
        %924 = vrot.lane.b32.xlu0 %v817, 127
        %v925 = vpop.permute.xlu0 %924
        %926 = vrot.lane.b32.xlu0 %v818, 127
        %v927 = vpop.permute.xlu0 %926
        %928 = vrot.lane.b32.xlu0 %v819, 127
        %v929 = vpop.permute.xlu0 %928
        %vm930 = vcmask 1039360
        %v931 = vsel %vm930, %v925, %v927
        %v932 = vsel %vm930, %v927, %v929
        %v937 = vsel %vm368, %v923, 0
        %939 = vmatprep.subr.bf16.mxu0 %v932
        %940 = vmatpush1.bf16.msra.mxu0 %v931
        %941 = vmatprep.subr.bf16.mxu0 0
        %942 = vmatpush1.bf16.msra.mxu0 0
        %943 = vmatprep.subr.bf16.mxu0 0
        %944 = vmatpush1.bf16.msra.mxu0 0
        %945 = vmatprep.subr.bf16.mxu0 0
        %946 = vmatpush1.bf16.msra.mxu0 0
        %947 = vmatprep.subr.bf16.mxu0 0
        %948 = vmatpush1.bf16.msra.mxu0 0
        %949 = vmatprep.subr.bf16.mxu0 0
        %950 = vmatpush1.bf16.msra.mxu0 0
        %951 = vmatprep.subr.bf16.mxu0 0
        %952 = vmatpush1.bf16.msra.mxu0 0
        %953 = vmatprep.subr.bf16.mxu0 0
        %954 = vmatpush1.bf16.msra.mxu0 0
        %955 = vmatprep.subr.bf16.mxu0 0
        %956 = vmatpush1.bf16.msra.mxu0 0
        %957 = vmatprep.subr.bf16.mxu0 0
        %958 = vmatpush1.bf16.msra.mxu0 0
        %959 = vmatprep.subr.bf16.mxu0 0
        %960 = vmatpush1.bf16.msra.mxu0 0
        %961 = vmatprep.subr.bf16.mxu0 0
        %962 = vmatpush1.bf16.msra.mxu0 0
        %963 = vmatprep.subr.bf16.mxu0 0
        %964 = vmatpush1.bf16.msra.mxu0 0
        %965 = vmatprep.subr.bf16.mxu0 0
        %966 = vmatpush1.bf16.msra.mxu0 0
        %967 = vmatprep.subr.bf16.mxu0 0
        %968 = vmatpush1.bf16.msra.mxu0 0
        %969 = vmatprep.subr.bf16.mxu0 0
        %970 = vmatpush1.bf16.msra.mxu0 0
        %971 = vmatprep.mubr.bf16.mxu0 0
        %972 = vmatmul.mubr.bf16.gmra.mrb[0].mxu0 %v937
        %v973 = vpop.f32.mrb[0].mxu0
        %v974 = vadd.f32 0.0, %v973
        %v975 = vpop.f32.mrb[0].mxu0
        %v976 = vadd.f32 0.0, %v975
        %v977 = vpop.f32.mrb[0].mxu0
        %v978 = vadd.f32 0.0, %v977
        %v979 = vpop.f32.mrb[0].mxu0
        %v980 = vadd.f32 0.0, %v979
        %981 = vdwg.mxu0
        %982 = vmatprep.subr.bf16.mxu0 0
        %983 = vmatpush1.bf16.msra.mxu0 %v929
        %984 = vmatprep.subr.bf16.mxu0 0
        %985 = vmatpush1.bf16.msra.mxu0 0
        %986 = vmatprep.subr.bf16.mxu0 0
        %987 = vmatpush1.bf16.msra.mxu0 0
        %988 = vmatprep.subr.bf16.mxu0 0
        %989 = vmatpush1.bf16.msra.mxu0 0
        %990 = vmatprep.subr.bf16.mxu0 0
        %991 = vmatpush1.bf16.msra.mxu0 0
        %992 = vmatprep.subr.bf16.mxu0 0
        %993 = vmatpush1.bf16.msra.mxu0 0
        %994 = vmatprep.subr.bf16.mxu0 0
        %995 = vmatpush1.bf16.msra.mxu0 0
        %996 = vmatprep.subr.bf16.mxu0 0
        %997 = vmatpush1.bf16.msra.mxu0 0
        %998 = vmatprep.subr.bf16.mxu0 0
        %999 = vmatpush1.bf16.msra.mxu0 0
        %1000 = vmatprep.subr.bf16.mxu0 0
        %1001 = vmatpush1.bf16.msra.mxu0 0
        %1002 = vmatprep.subr.bf16.mxu0 0
        %1003 = vmatpush1.bf16.msra.mxu0 0
        %1004 = vmatprep.subr.bf16.mxu0 0
        %1005 = vmatpush1.bf16.msra.mxu0 0
        %1006 = vmatprep.subr.bf16.mxu0 0
        %1007 = vmatpush1.bf16.msra.mxu0 0
        %1008 = vmatprep.subr.bf16.mxu0 0
        %1009 = vmatpush1.bf16.msra.mxu0 0
        %1010 = vmatprep.subr.bf16.mxu0 0
        %1011 = vmatpush1.bf16.msra.mxu0 0
        %1012 = vmatprep.subr.bf16.mxu0 0
        %1013 = vmatpush1.bf16.msra.mxu0 0
        %1014 = vmatprep.mubr.bf16.mxu0 0
        %1015 = vmatmul.mubr.bf16.gmra.mrb[0].mxu0 %v937
        %v1016 = vpop.f32.mrb[0].mxu0
        %v1017 = vadd.f32 0.0, %v1016
        %v1018 = vpop.f32.mrb[0].mxu0
        %v1019 = vpop.f32.mrb[0].mxu0
        %v1020 = vadd.f32 0.0, %v1019
        %v1021 = vpop.f32.mrb[0].mxu0
        %1022 = vdwg.mxu0
        %v1023 = vadd.f32 %v910, %v974
        %v1024 = vadd.f32 %v911, %v976
        %v1025 = vadd.f32 %v912, %v1017
        %v1026 = vadd.f32 %v913, %v978
        %v1027 = vadd.f32 %v914, %v980
        %v1028 = vadd.f32 %v915, %v1020
        %s1029 = scalar_lea.vmem [#allocation5], 48
        %v1030 = vld [vmem:[%s1029] sm:$0xf]
        %v1031 = vld [vmem:[%s1029 + $0x4] sm:$0xf]
        %v1034 = vunpack.c.l.b16 %v1030
        %v1035 = vunpack.c.l.b16 %v1031
        %v1036 = vpack.c.b16 %v1035, %v1034
        %1037 = vrot.lane.b32.xlu0 %v817, 111
        %v1038 = vpop.permute.xlu0 %1037
        %1039 = vrot.lane.b32.xlu0 %v818, 111
        %v1040 = vpop.permute.xlu0 %1039
        %1041 = vrot.lane.b32.xlu0 %v819, 111
        %v1042 = vpop.permute.xlu0 %1041
        %vm1043 = vcmask 908288
        %v1044 = vsel %vm1043, %v1038, %v1040
        %v1045 = vsel %vm1043, %v1040, %v1042
        %v1050 = vsel %vm368, %v1036, 0
        %1052 = vmatprep.subr.bf16.mxu0 %v1045
        %1053 = vmatpush1.bf16.msra.mxu0 %v1044
        %1054 = vmatprep.subr.bf16.mxu0 0
        %1055 = vmatpush1.bf16.msra.mxu0 0
        %1056 = vmatprep.subr.bf16.mxu0 0
        %1057 = vmatpush1.bf16.msra.mxu0 0
        %1058 = vmatprep.subr.bf16.mxu0 0
        %1059 = vmatpush1.bf16.msra.mxu0 0
        %1060 = vmatprep.subr.bf16.mxu0 0
        %1061 = vmatpush1.bf16.msra.mxu0 0
        %1062 = vmatprep.subr.bf16.mxu0 0
        %1063 = vmatpush1.bf16.msra.mxu0 0
        %1064 = vmatprep.subr.bf16.mxu0 0
        %1065 = vmatpush1.bf16.msra.mxu0 0
        %1066 = vmatprep.subr.bf16.mxu0 0
        %1067 = vmatpush1.bf16.msra.mxu0 0
        %1068 = vmatprep.subr.bf16.mxu0 0
        %1069 = vmatpush1.bf16.msra.mxu0 0
        %1070 = vmatprep.subr.bf16.mxu0 0
        %1071 = vmatpush1.bf16.msra.mxu0 0
        %1072 = vmatprep.subr.bf16.mxu0 0
        %1073 = vmatpush1.bf16.msra.mxu0 0
        %1074 = vmatprep.subr.bf16.mxu0 0
        %1075 = vmatpush1.bf16.msra.mxu0 0
        %1076 = vmatprep.subr.bf16.mxu0 0
        %1077 = vmatpush1.bf16.msra.mxu0 0
        %1078 = vmatprep.subr.bf16.mxu0 0
        %1079 = vmatpush1.bf16.msra.mxu0 0
        %1080 = vmatprep.subr.bf16.mxu0 0
        %1081 = vmatpush1.bf16.msra.mxu0 0
        %1082 = vmatprep.subr.bf16.mxu0 0
        %1083 = vmatpush1.bf16.msra.mxu0 0
        %1084 = vmatprep.mubr.bf16.mxu0 0
        %1085 = vmatmul.mubr.bf16.gmra.mrb[0].mxu0 %v1050
        %v1086 = vpop.f32.mrb[0].mxu0
        %v1087 = vadd.f32 0.0, %v1086
        %v1088 = vpop.f32.mrb[0].mxu0
        %v1089 = vadd.f32 0.0, %v1088
        %v1090 = vpop.f32.mrb[0].mxu0
        %v1091 = vadd.f32 0.0, %v1090
        %v1092 = vpop.f32.mrb[0].mxu0
        %v1093 = vadd.f32 0.0, %v1092
        %1094 = vdwg.mxu0
        %1095 = vmatprep.subr.bf16.mxu0 0
        %1096 = vmatpush1.bf16.msra.mxu0 %v1042
        %1097 = vmatprep.subr.bf16.mxu0 0
        %1098 = vmatpush1.bf16.msra.mxu0 0
        %1099 = vmatprep.subr.bf16.mxu0 0
        %1100 = vmatpush1.bf16.msra.mxu0 0
        %1101 = vmatprep.subr.bf16.mxu0 0
        %1102 = vmatpush1.bf16.msra.mxu0 0
        %1103 = vmatprep.subr.bf16.mxu0 0
        %1104 = vmatpush1.bf16.msra.mxu0 0
        %1105 = vmatprep.subr.bf16.mxu0 0
        %1106 = vmatpush1.bf16.msra.mxu0 0
        %1107 = vmatprep.subr.bf16.mxu0 0
        %1108 = vmatpush1.bf16.msra.mxu0 0
        %1109 = vmatprep.subr.bf16.mxu0 0
        %1110 = vmatpush1.bf16.msra.mxu0 0
        %1111 = vmatprep.subr.bf16.mxu0 0
        %1112 = vmatpush1.bf16.msra.mxu0 0
        %1113 = vmatprep.subr.bf16.mxu0 0
        %1114 = vmatpush1.bf16.msra.mxu0 0
        %1115 = vmatprep.subr.bf16.mxu0 0
        %1116 = vmatpush1.bf16.msra.mxu0 0
        %1117 = vmatprep.subr.bf16.mxu0 0
        %1118 = vmatpush1.bf16.msra.mxu0 0
        %1119 = vmatprep.subr.bf16.mxu0 0
        %1120 = vmatpush1.bf16.msra.mxu0 0
        %1121 = vmatprep.subr.bf16.mxu0 0
        %1122 = vmatpush1.bf16.msra.mxu0 0
        %1123 = vmatprep.subr.bf16.mxu0 0
        %1124 = vmatpush1.bf16.msra.mxu0 0
        %1125 = vmatprep.subr.bf16.mxu0 0
        %1126 = vmatpush1.bf16.msra.mxu0 0
        %1127 = vmatprep.mubr.bf16.mxu0 0
        %1128 = vmatmul.mubr.bf16.gmra.mrb[0].mxu0 %v1050
        %v1129 = vpop.f32.mrb[0].mxu0
        %v1130 = vadd.f32 0.0, %v1129
        %v1131 = vpop.f32.mrb[0].mxu0
        %v1132 = vpop.f32.mrb[0].mxu0
        %v1133 = vadd.f32 0.0, %v1132
        %v1134 = vpop.f32.mrb[0].mxu0
        %1135 = vdwg.mxu0
        %v1136 = vadd.f32 %v1023, %v1087
        %v1137 = vadd.f32 %v1024, %v1089
        %v1138 = vadd.f32 %v1025, %v1130
        %v1139 = vadd.f32 %v1026, %v1091
        %v1140 = vadd.f32 %v1027, %v1093
        %v1141 = vadd.f32 %v1028, %v1133
        %s1142 = scalar_lea.vmem [#allocation5], 56
        %v1143 = vld [vmem:[%s1142] sm:$0xf]
        %v1144 = vld [vmem:[%s1142 + $0x4] sm:$0xf]
        %v1147 = vunpack.c.l.b16 %v1143
        %v1148 = vunpack.c.l.b16 %v1144
        %v1149 = vpack.c.b16 %v1148, %v1147
        %1150 = vrot.lane.b32.xlu0 %v817, 110
        %v1151 = vpop.permute.xlu0 %1150
        %1152 = vrot.lane.b32.xlu0 %v818, 110
        %v1153 = vpop.permute.xlu0 %1152
        %1154 = vrot.lane.b32.xlu0 %v819, 110
        %v1155 = vpop.permute.xlu0 %1154
        %vm1156 = vcmask 900096
        %v1157 = vsel %vm1156, %v1151, %v1153
        %v1158 = vsel %vm1156, %v1153, %v1155
        %v1163 = vsel %vm368, %v1149, 0
        %1165 = vmatprep.subr.bf16.mxu0 %v1158
        %1166 = vmatpush1.bf16.msra.mxu0 %v1157
        %1167 = vmatprep.subr.bf16.mxu0 0
        %1168 = vmatpush1.bf16.msra.mxu0 0
        %1169 = vmatprep.subr.bf16.mxu0 0
        %1170 = vmatpush1.bf16.msra.mxu0 0
        %1171 = vmatprep.subr.bf16.mxu0 0
        %1172 = vmatpush1.bf16.msra.mxu0 0
        %1173 = vmatprep.subr.bf16.mxu0 0
        %1174 = vmatpush1.bf16.msra.mxu0 0
        %1175 = vmatprep.subr.bf16.mxu0 0
        %1176 = vmatpush1.bf16.msra.mxu0 0
        %1177 = vmatprep.subr.bf16.mxu0 0
        %1178 = vmatpush1.bf16.msra.mxu0 0
        %1179 = vmatprep.subr.bf16.mxu0 0
        %1180 = vmatpush1.bf16.msra.mxu0 0
        %1181 = vmatprep.subr.bf16.mxu0 0
        %1182 = vmatpush1.bf16.msra.mxu0 0
        %1183 = vmatprep.subr.bf16.mxu0 0
        %1184 = vmatpush1.bf16.msra.mxu0 0
        %1185 = vmatprep.subr.bf16.mxu0 0
        %1186 = vmatpush1.bf16.msra.mxu0 0
        %1187 = vmatprep.subr.bf16.mxu0 0
        %1188 = vmatpush1.bf16.msra.mxu0 0
        %1189 = vmatprep.subr.bf16.mxu0 0
        %1190 = vmatpush1.bf16.msra.mxu0 0
        %1191 = vmatprep.subr.bf16.mxu0 0
        %1192 = vmatpush1.bf16.msra.mxu0 0
        %1193 = vmatprep.subr.bf16.mxu0 0
        %1194 = vmatpush1.bf16.msra.mxu0 0
        %1195 = vmatprep.subr.bf16.mxu0 0
        %1196 = vmatpush1.bf16.msra.mxu0 0
        %1197 = vmatprep.mubr.bf16.mxu0 0
        %1198 = vmatmul.mubr.bf16.gmra.mrb[0].mxu0 %v1163
        %v1199 = vpop.f32.mrb[0].mxu0
        %v1200 = vadd.f32 0.0, %v1199
        %v1201 = vpop.f32.mrb[0].mxu0
        %v1202 = vadd.f32 0.0, %v1201
        %v1203 = vpop.f32.mrb[0].mxu0
        %v1204 = vadd.f32 0.0, %v1203
        %v1205 = vpop.f32.mrb[0].mxu0
        %v1206 = vadd.f32 0.0, %v1205
        %1207 = vdwg.mxu0
        %1208 = vmatprep.subr.bf16.mxu0 0
        %1209 = vmatpush1.bf16.msra.mxu0 %v1155
        %1210 = vmatprep.subr.bf16.mxu0 0
        %1211 = vmatpush1.bf16.msra.mxu0 0
        %1212 = vmatprep.subr.bf16.mxu0 0
        %1213 = vmatpush1.bf16.msra.mxu0 0
        %1214 = vmatprep.subr.bf16.mxu0 0
        %1215 = vmatpush1.bf16.msra.mxu0 0
        %1216 = vmatprep.subr.bf16.mxu0 0
        %1217 = vmatpush1.bf16.msra.mxu0 0
        %1218 = vmatprep.subr.bf16.mxu0 0
        %1219 = vmatpush1.bf16.msra.mxu0 0
        %1220 = vmatprep.subr.bf16.mxu0 0
        %1221 = vmatpush1.bf16.msra.mxu0 0
        %1222 = vmatprep.subr.bf16.mxu0 0
        %1223 = vmatpush1.bf16.msra.mxu0 0
        %1224 = vmatprep.subr.bf16.mxu0 0
        %1225 = vmatpush1.bf16.msra.mxu0 0
        %1226 = vmatprep.subr.bf16.mxu0 0
        %1227 = vmatpush1.bf16.msra.mxu0 0
        %1228 = vmatprep.subr.bf16.mxu0 0
        %1229 = vmatpush1.bf16.msra.mxu0 0
        %1230 = vmatprep.subr.bf16.mxu0 0
        %1231 = vmatpush1.bf16.msra.mxu0 0
        %1232 = vmatprep.subr.bf16.mxu0 0
        %1233 = vmatpush1.bf16.msra.mxu0 0
        %1234 = vmatprep.subr.bf16.mxu0 0
        %1235 = vmatpush1.bf16.msra.mxu0 0
        %1236 = vmatprep.subr.bf16.mxu0 0
        %1237 = vmatpush1.bf16.msra.mxu0 0
        %1238 = vmatprep.subr.bf16.mxu0 0
        %1239 = vmatpush1.bf16.msra.mxu0 0
        %1240 = vmatprep.mubr.bf16.mxu0 0
        %1241 = vmatmul.mubr.bf16.gmra.mrb[0].mxu0 %v1163
        %v1242 = vpop.f32.mrb[0].mxu0
        %v1243 = vadd.f32 0.0, %v1242
        %v1244 = vpop.f32.mrb[0].mxu0
        %v1245 = vpop.f32.mrb[0].mxu0
        %v1246 = vadd.f32 0.0, %v1245
        %v1247 = vpop.f32.mrb[0].mxu0
        %1248 = vdwg.mxu0
        %v1249 = vadd.f32 %v1136, %v1200
        %v1250 = vadd.f32 %v1137, %v1202
        %v1251 = vadd.f32 %v1138, %v1243
        %v1252 = vadd.f32 %v1139, %v1204
        %v1253 = vadd.f32 %v1140, %v1206
        %v1254 = vadd.f32 %v1141, %v1246
        %s1255 = scalar_lea.vmem [#allocation5], 64
        %v1256 = vld [vmem:[%s1255] sm:$0xf]
        %v1257 = vld [vmem:[%s1255 + $0x4] sm:$0xf]
        %v1260 = vunpack.c.l.b16 %v1256
        %v1261 = vunpack.c.l.b16 %v1257
        %v1262 = vpack.c.b16 %v1261, %v1260
        %1263 = vrot.lane.b32.xlu0 %v817, 109
        %v1264 = vpop.permute.xlu0 %1263
        %1265 = vrot.lane.b32.xlu0 %v818, 109
        %v1266 = vpop.permute.xlu0 %1265
        %1267 = vrot.lane.b32.xlu0 %v819, 109
        %v1268 = vpop.permute.xlu0 %1267
        %vm1269 = vcmask 891904
        %v1270 = vsel %vm1269, %v1264, %v1266
        %v1271 = vsel %vm1269, %v1266, %v1268
        %v1276 = vsel %vm368, %v1262, 0
        %1278 = vmatprep.subr.bf16.mxu0 %v1271
        %1279 = vmatpush1.bf16.msra.mxu0 %v1270
        %1280 = vmatprep.subr.bf16.mxu0 0
        %1281 = vmatpush1.bf16.msra.mxu0 0
        %1282 = vmatprep.subr.bf16.mxu0 0
        %1283 = vmatpush1.bf16.msra.mxu0 0
        %1284 = vmatprep.subr.bf16.mxu0 0
        %1285 = vmatpush1.bf16.msra.mxu0 0
        %1286 = vmatprep.subr.bf16.mxu0 0
        %1287 = vmatpush1.bf16.msra.mxu0 0
        %1288 = vmatprep.subr.bf16.mxu0 0
        %1289 = vmatpush1.bf16.msra.mxu0 0
        %1290 = vmatprep.subr.bf16.mxu0 0
        %1291 = vmatpush1.bf16.msra.mxu0 0
        %1292 = vmatprep.subr.bf16.mxu0 0
        %1293 = vmatpush1.bf16.msra.mxu0 0
        %1294 = vmatprep.subr.bf16.mxu0 0
        %1295 = vmatpush1.bf16.msra.mxu0 0
        %1296 = vmatprep.subr.bf16.mxu0 0
        %1297 = vmatpush1.bf16.msra.mxu0 0
        %1298 = vmatprep.subr.bf16.mxu0 0
        %1299 = vmatpush1.bf16.msra.mxu0 0
        %1300 = vmatprep.subr.bf16.mxu0 0
        %1301 = vmatpush1.bf16.msra.mxu0 0
        %1302 = vmatprep.subr.bf16.mxu0 0
        %1303 = vmatpush1.bf16.msra.mxu0 0
        %1304 = vmatprep.subr.bf16.mxu0 0
        %1305 = vmatpush1.bf16.msra.mxu0 0
        %1306 = vmatprep.subr.bf16.mxu0 0
        %1307 = vmatpush1.bf16.msra.mxu0 0
        %1308 = vmatprep.subr.bf16.mxu0 0
        %1309 = vmatpush1.bf16.msra.mxu0 0
        %1310 = vmatprep.mubr.bf16.mxu0 0
        %1311 = vmatmul.mubr.bf16.gmra.mrb[0].mxu0 %v1276
        %v1312 = vpop.f32.mrb[0].mxu0
        %v1313 = vadd.f32 0.0, %v1312
        %v1314 = vpop.f32.mrb[0].mxu0
        %v1315 = vadd.f32 0.0, %v1314
        %v1316 = vpop.f32.mrb[0].mxu0
        %v1317 = vadd.f32 0.0, %v1316
        %v1318 = vpop.f32.mrb[0].mxu0
        %v1319 = vadd.f32 0.0, %v1318
        %1320 = vdwg.mxu0
        %1321 = vmatprep.subr.bf16.mxu0 0
        %1322 = vmatpush1.bf16.msra.mxu0 %v1268
        %1323 = vmatprep.subr.bf16.mxu0 0
        %1324 = vmatpush1.bf16.msra.mxu0 0
        %1325 = vmatprep.subr.bf16.mxu0 0
        %1326 = vmatpush1.bf16.msra.mxu0 0
        %1327 = vmatprep.subr.bf16.mxu0 0
        %1328 = vmatpush1.bf16.msra.mxu0 0
        %1329 = vmatprep.subr.bf16.mxu0 0
        %1330 = vmatpush1.bf16.msra.mxu0 0
        %1331 = vmatprep.subr.bf16.mxu0 0
        %1332 = vmatpush1.bf16.msra.mxu0 0
        %1333 = vmatprep.subr.bf16.mxu0 0
        %1334 = vmatpush1.bf16.msra.mxu0 0
        %1335 = vmatprep.subr.bf16.mxu0 0
        %1336 = vmatpush1.bf16.msra.mxu0 0
        %1337 = vmatprep.subr.bf16.mxu0 0
        %1338 = vmatpush1.bf16.msra.mxu0 0
        %1339 = vmatprep.subr.bf16.mxu0 0
        %1340 = vmatpush1.bf16.msra.mxu0 0
        %1341 = vmatprep.subr.bf16.mxu0 0
        %1342 = vmatpush1.bf16.msra.mxu0 0
        %1343 = vmatprep.subr.bf16.mxu0 0
        %1344 = vmatpush1.bf16.msra.mxu0 0
        %1345 = vmatprep.subr.bf16.mxu0 0
        %1346 = vmatpush1.bf16.msra.mxu0 0
        %1347 = vmatprep.subr.bf16.mxu0 0
        %1348 = vmatpush1.bf16.msra.mxu0 0
        %1349 = vmatprep.subr.bf16.mxu0 0
        %1350 = vmatpush1.bf16.msra.mxu0 0
        %1351 = vmatprep.subr.bf16.mxu0 0
        %1352 = vmatpush1.bf16.msra.mxu0 0
        %1353 = vmatprep.mubr.bf16.mxu0 0
        %1354 = vmatmul.mubr.bf16.gmra.mrb[0].mxu0 %v1276
        %v1355 = vpop.f32.mrb[0].mxu0
        %v1356 = vadd.f32 0.0, %v1355
        %v1357 = vpop.f32.mrb[0].mxu0
        %v1358 = vpop.f32.mrb[0].mxu0
        %v1359 = vadd.f32 0.0, %v1358
        %v1360 = vpop.f32.mrb[0].mxu0
        %1361 = vdwg.mxu0
        %v1362 = vadd.f32 %v1249, %v1313
        %v1363 = vadd.f32 %v1250, %v1315
        %v1364 = vadd.f32 %v1251, %v1356
        %v1365 = vadd.f32 %v1252, %v1317
        %v1366 = vadd.f32 %v1253, %v1319
        %v1367 = vadd.f32 %v1254, %v1359
        %v1368 = vld [vmem:[#allocation7] sm:$0xff]
        %v1369 = vld [vmem:[#allocation7 + $0x8] sm:$0xff]
        %1371 = vset.pattern.permute.xlu0 0
        %1372 = vperm.xlu0 %1371, %v1368
        %v1373 = vpop.permute.xlu0 %1372
        %1376 = vset.pattern.permute.xlu0 0
        %1377 = vperm.xlu0 %1376, %v1369
        %v1378 = vpop.permute.xlu0 %1377
        %v1380 = vadd.f32 %v1362, %v1373
        %v1381 = vadd.f32 %v1363, %v1373
        %v1382 = vadd.f32 %v1364, %v1373
        %v1383 = vadd.f32 %v1365, %v1378
        %v1384 = vadd.f32 %v1366, %v1378
        %v1385 = vadd.f32 %v1367, %v1378
        %v1386 = vld [vmem:[%s290 + $0x4] sm:$0xff]
        %v1387 = vld [vmem:[%s290 + $0xc] sm:$0xf]
        %v1388 = vld [vmem:[%s290 + $0x18] sm:$0xff]
        %v1389 = vld [vmem:[%s290 + $0x20] sm:$0xf]
        %v1390 = vunpack.c.l.bf16 %v1386
        %v1391 = vunpack.c.h.bf16 %v1386
        %v1392 = vunpack.c.l.bf16 %v1387
        %v1393 = vunpack.c.l.bf16 %v1388
        %v1394 = vunpack.c.h.bf16 %v1388
        %v1395 = vunpack.c.l.bf16 %v1389
        %v1396 = vadd.f32 %v1380, %v1390
        %v1397 = vadd.f32 %v1381, %v1391
        %v1398 = vadd.f32 %v1382, %v1392
        %v1399 = vadd.f32 %v1383, %v1393
        %v1400 = vadd.f32 %v1384, %v1394
        %v1401 = vadd.f32 %v1385, %v1395
        %v1402 = vmax.f32 %v1396, 0.0
        %v1403 = vmax.f32 %v1397, 0.0
        %v1404 = vmax.f32 %v1398, 0.0
        %v1405 = vmax.f32 %v1399, 0.0
        %v1406 = vmax.f32 %v1400, 0.0
        %v1407 = vmax.f32 %v1401, 0.0
        %v1408 = vld [vmem:[#allocation8] sm:$0x7]
        %vm1409 = vcmp.gt.f32.partialorder %v1408, 0.0
        %v1410 = vsel %vm1409, 1, 0
        %v1411 = vlaneseq
        %v1412 = vshrl.u32 %v1411, 7
        %v1413 = vsub.s32 0, %v1412
        %v1414 = vrot.slane %v1410, %v1413
        %v1415 = vlaneseq
        %v1416 = vshrl.u32 %v1415, 7
        %v1417 = vsub.s32 1, %v1416
        %v1418 = vrot.slane %v1410, %v1417
        %v1419 = vlaneseq
        %v1420 = vshrl.u32 %v1419, 7
        %v1421 = vsub.s32 2, %v1420
        %v1422 = vrot.slane %v1410, %v1421
        %vm1423 = vcmp.eq.s32.totalorder %v1414, 1
        %vm1424 = vcmp.eq.s32.totalorder %v1418, 1
        %vm1425 = vcmp.eq.s32.totalorder %v1422, 1
        %v1426 = vsel %vm1423, %v1402, 0.0
        %v1427 = vsel %vm1424, %v1403, 0.0
        %v1428 = vsel %vm1425, %v1404, 0.0
        %v1429 = vsel %vm1423, %v1405, 0.0
        %v1430 = vsel %vm1424, %v1406, 0.0
        %v1431 = vsel %vm1425, %v1407, 0.0
        %v1432 = vpack.c.bf16 %v1429, %v1426
        %v1433 = vpack.c.bf16 %v1430, %v1427
        %v1434 = vpack.c.bf16 %v1431, %v1428
        %v1438 = vunpack.c.l.b16 %v1432
        %v1439 = vunpack.c.l.b16 %v1433
        %v1440 = vunpack.c.l.b16 %v1434
        %v1441 = vunpack.c.h.b16 %v1432
        %v1442 = vunpack.c.h.b16 %v1433
        %v1443 = vunpack.c.h.b16 %v1434
        %v1444 = vpack.c.b16 %v1439, %v1438
        %v1445 = vpack.c.b16 %v1440, %v1440
        %v1446 = vpack.c.b16 %v1442, %v1441
        %v1447 = vpack.c.b16 %v1443, %v1443
        %1452 = vst [vmem:[%s321 + $0x4] sm:$0xff] %v1444
        %vm1453 = vcmask 551936
        %1454 = vst.msk [vmem:[%s321 + $0xc] sm:$0xf] %vm1453, %v1445
        %1455 = vst [vmem:[%s321 + $0x18] sm:$0xff] %v1446
        %1456 = vst.msk [vmem:[%s321 + $0x20] sm:$0xf] %vm1453, %v1447
        %1457 = vst [vmem:[%s321] sm:$0xf] 0
        %1458 = vst [vmem:[%s321 + $0x14] sm:$0xf] 0
        %vm1459 = vcmask 1044000
        %vm1460 = vcmask 556036
        %vm1461 = vmor %vm1460, %vm1459
        %1462 = vst.msk [vmem:[%s321 + $0xc] sm:$0xff] %vm1461, 0
        %1463 = vst.msk [vmem:[%s321 + $0x20] sm:$0xff] %vm1461, 0
        %s1464 = sand.u32 %s147, 1
        %s1465 = scalar_lea.sflag [#allocation4], %s1464
        %s1466 = sand.u32 %s147, 1
        %s1467 = smul.addr %s1466, 40
        %s1468 = scalar_lea.vmem [#allocation11], %s1467
        // Predicated region
        $region61: #{_lambda_.12} parent=39 // pred_check
          %p1469 = pneg %p157
        $region62: #{_lambda_.12} parent=39 // pred_check_branch
          %1471 = sbr.rel (%p1469) target = $region64
        $region63: #{_lambda_.12} parent=39 // pred_region
          %s1473 = ssub.s32 640, 640
          %1474 = vsyncadd %s1465, %s1473
          %s1475 = smul.addr %s24, 10
          %s1476 = smul.addr %s1475, 64
          %s1477 = scalar_lea.hbm %s5, %s1476
          %s1478 = sshll.u32 %s1468, 4
          %s1479 = int_to_ptr.vmem [resolvable:$true] %s1478
          %1484 = dma.vmem_to_hbm [thread:$0]  %s1479, 640, %s1477, %s1465, 320, 320, 20
        $region64: #{_lambda_.12} parent=39 // pred_fallthru
          _
      $region40: #{_lambda_.12} parent=5 // pred_fallthru
        _
      %p1485 = scmp.le.s32.totalorder 2, %s19
      // Predicated region
      $region65: #{_lambda_.12} parent=5 // pred_check
        %p1486 = pneg %p1485
      $region66: #{_lambda_.12} parent=5 // pred_check_branch
        %1488 = sbr.rel (%p1486) target = $region68
      $region67: #{_lambda_.12} parent=5 // pred_region
        %s1489 = ssub.s32 %s19, 2
        // Predicated region
        $region69: #{_lambda_.12} parent=67 // pred_check
          %p1490 = pneg %p163
        $region70: #{_lambda_.12} parent=67 // pred_check_branch
          %1492 = sbr.rel (%p1490) target = $region72
        $region71: #{_lambda_.12} parent=67 // pred_region
          %s1493 = sand.u32 %s148, 1
          %s1494 = scalar_lea.sflag [#allocation4], %s1493
          %s1495 = sand.u32 %s148, 1
          %s1496 = smul.addr %s1495, 40
          %s1497 = scalar_lea.vmem [#allocation11], %s1496
          %1498 = dma.done %s1494, 640
        $region72: #{_lambda_.12} parent=67 // pred_fallthru
          _
      $region68: #{_lambda_.12} parent=5 // pred_fallthru
        _
    $region6: #{_lambda_.12} parent=1 // loop_footer
      %s23 = sadd.s32 1, %s19
    $region7: #{_lambda_.12} parent=1 // loop_footer_branch
      %18 = sbr.rel target = $region3
    $region8: #{_lambda_.12} parent=1 // loop_exit
      _
    %1499 = vsyncpa [#allocation3], 1
    %s1500 = scalar_lea.sflag [#allocation3], 1
    %1501 = vsyncpa %s1500, 1
    %1502 = vsyncpa [#allocation6], 1
    %1503 = vsyncpa [#allocation9], 1
    %1504 = vsyncpa [#allocation4], 1
    %s1505 = scalar_lea.sflag [#allocation4], 1
    %1506 = vsyncpa %s1505, 1

// kernel: _lambda_.10
$region0: #{_lambda_.10}
  #allocation0 [shape = 'u32[]', space=smem, size = 0x4, offset = 0x4, fixed_abs, tag = 'smem constant byte address 0x4 - core index']
  #allocation1 [shape = 'u32[144,128]{1,0:T(1,128)}', space=vmem, size = 0x12000, scoped, tag = 'internal scratch']
  %s0 = inlined_call_operand.hbm [shape: bf16[2,8,580], index: 0, kind: input, shape index: {}]
  %s1 = inlined_call_operand.hbm [shape: bf16[9,16,8], index: 1, kind: input, shape index: {}]
  %s2 = inlined_call_operand.hbm [shape: f32[16,1], index: 2, kind: input, shape index: {}]
  %s3 = inlined_call_operand.hbm [shape: f32[1,324], index: 3, kind: input, shape index: {}]
  %s4 = inlined_call_operand.hbm [shape: bf16[2,16,580], index: 4, kind: output, shape index: {}]
  %s5 = sld [smem:[#allocation0]]
  $region65: #{_lambda_.10} parent=0
    _
  %s7 = ssub.s32 1, %s5
  %s8 = scalar_select 0, %s7, %s5
  $region1: #{_lambda_.10} parent=0
    #allocation2 [shape = 'u8[20480]{0}', space=vmem, size = 0x5000, scoped, tag = 'input window, operand 0']
    #allocation3 [shape = 's32[2]{0}', space=sflag, size = 0x8, scoped, tag = 'scoped memory for _lambda_.10']
    #allocation4 [shape = 's32[2]{0}', space=sflag, size = 0x8, scoped, tag = 'scoped memory for _lambda_.10']
    #allocation5 [shape = 'u8[36864]{0}', space=vmem, size = 0x9000, scoped, tag = 'input window, operand 1, single buffered']
    #allocation6 [shape = 's32[1]{0}', space=sflag, size = 0x4, scoped, tag = 'scoped memory for _lambda_.10']
    #allocation7 [shape = 'u8[8192]{0}', space=vmem, size = 0x2000, scoped, tag = 'input window, operand 2, single buffered']
    #allocation8 [shape = 'u8[1536]{0}', space=vmem, size = 0x800, scoped, tag = 'input window, operand 3, single buffered']
    #allocation9 [shape = 's32[1]{0}', space=sflag, size = 0x4, scoped, tag = 'scoped memory for _lambda_.10']
    #allocation10 [shape = 'u8[40960]{0}', space=vmem, size = 0xa000, scoped, tag = 'output window, operand 0']
    %9 = vsyncpa [#allocation3], 0
    %s10 = scalar_lea.sflag [#allocation3], 1
    %11 = vsyncpa %s10, 0
    %12 = vsyncpa [#allocation6], 0
    %13 = vsyncpa [#allocation9], 0
    %14 = vsyncpa [#allocation4], 0
    %s15 = scalar_lea.sflag [#allocation4], 1
    %16 = vsyncpa %s15, 0
    loop: start=0, step=1, limit=4
    $region2: #{_lambda_.10} parent=1 // loop_pre_header
      _
    $region3: #{_lambda_.10} parent=1 // loop_header
      %s18 = sphi 0, %s22
      %p19 = scmp.ge.s32.totalorder %s18, 4
      %s28 = sphi 0, %s30
      %s31 = sphi 0, %s28
      %s32 = sphi 0, %s31
      %s48 = sphi 0, %s32
      %s52 = sphi 0, %s52
      %s54 = sphi 0, %s52
      %s55 = sphi 0, %s54
      %s69 = sphi 0, %s55
      %s73 = sphi 0, %s73
      %s75 = sphi 0, %s73
      %s76 = sphi 0, %s75
      %s90 = sphi 0, %s76
      %s94 = sphi 0, %s94
      %s96 = sphi 0, %s94
      %s97 = sphi 0, %s96
      %s111 = sphi 0, %s97
      %s117 = sphi 0, %s119
      %s120 = sphi 0, %s117
      %s121 = sphi 0, %s120
      %s137 = sphi 0, %s121
    $region4: #{_lambda_.10} parent=1 // loop_header_branch
      %21 = sbr.rel (%p19) target = $region8
    $region5: #{_lambda_.10} parent=1 // loop_body
      %s23 = ssub.s32 %s18, 1
      %s24 = ssub.s32 %s18, 2
      %s25 = sadd.s32 %s18, 1
      %s26 = ssub.s32 %s18, %s25
      %p27 = scmp.eq.s32.totalorder %s26, 0
      %s29 = sadd.s32 %s28, 1
      %s30 = scalar_select %p27, %s28, %s29
      %p33 = pneg %p27
      %p34 = scmp.eq.s32.totalorder %s18, 1
      %p35 = por %p33, %p34
      %p36 = scmp.ne.s32.totalorder %s28, %s31
      %p37 = scmp.eq.s32.totalorder %s18, 0
      %p38 = por %p36, %p37
      %p39 = scmp.ne.s32.totalorder %s28, %s31
      %p40 = scmp.eq.s32.totalorder %s23, 1
      %p41 = por %p39, %p40
      %p42 = scmp.ne.s32.totalorder %s31, %s32
      %p43 = scmp.eq.s32.totalorder %s23, 0
      %p44 = por %p42, %p43
      %p45 = scmp.ne.s32.totalorder %s31, %s32
      %p46 = scmp.eq.s32.totalorder %s24, 1
      %p47 = por %p45, %p46
      %p49 = scmp.ne.s32.totalorder %s32, %s48
      %p50 = scmp.eq.s32.totalorder %s24, 0
      %p51 = por %p49, %p50
      %s53 = sadd.s32 %s52, 1
      %p56 = scmp.eq.s32.totalorder %s18, 1
      %p57 = scmp.ne.s32.totalorder %s52, %s54
      %p58 = scmp.eq.s32.totalorder %s18, 0
      %p59 = por %p57, %p58
      %p60 = scmp.ne.s32.totalorder %s52, %s54
      %p61 = scmp.eq.s32.totalorder %s23, 1
      %p62 = por %p60, %p61
      %p63 = scmp.ne.s32.totalorder %s54, %s55
      %p64 = scmp.eq.s32.totalorder %s23, 0
      %p65 = por %p63, %p64
      %p66 = scmp.ne.s32.totalorder %s54, %s55
      %p67 = scmp.eq.s32.totalorder %s24, 1
      %p68 = por %p66, %p67
      %p70 = scmp.ne.s32.totalorder %s55, %s69
      %p71 = scmp.eq.s32.totalorder %s24, 0
      %p72 = por %p70, %p71
      %s74 = sadd.s32 %s73, 1
      %p77 = scmp.eq.s32.totalorder %s18, 1
      %p78 = scmp.ne.s32.totalorder %s73, %s75
      %p79 = scmp.eq.s32.totalorder %s18, 0
      %p80 = por %p78, %p79
      %p81 = scmp.ne.s32.totalorder %s73, %s75
      %p82 = scmp.eq.s32.totalorder %s23, 1
      %p83 = por %p81, %p82
      %p84 = scmp.ne.s32.totalorder %s75, %s76
      %p85 = scmp.eq.s32.totalorder %s23, 0
      %p86 = por %p84, %p85
      %p87 = scmp.ne.s32.totalorder %s75, %s76
      %p88 = scmp.eq.s32.totalorder %s24, 1
      %p89 = por %p87, %p88
      %p91 = scmp.ne.s32.totalorder %s76, %s90
      %p92 = scmp.eq.s32.totalorder %s24, 0
      %p93 = por %p91, %p92
      %s95 = sadd.s32 %s94, 1
      %p98 = scmp.eq.s32.totalorder %s18, 1
      %p99 = scmp.ne.s32.totalorder %s94, %s96
      %p100 = scmp.eq.s32.totalorder %s18, 0
      %p101 = por %p99, %p100
      %p102 = scmp.ne.s32.totalorder %s94, %s96
      %p103 = scmp.eq.s32.totalorder %s23, 1
      %p104 = por %p102, %p103
      %p105 = scmp.ne.s32.totalorder %s96, %s97
      %p106 = scmp.eq.s32.totalorder %s23, 0
      %p107 = por %p105, %p106
      %p108 = scmp.ne.s32.totalorder %s96, %s97
      %p109 = scmp.eq.s32.totalorder %s24, 1
      %p110 = por %p108, %p109
      %p112 = scmp.ne.s32.totalorder %s97, %s111
      %p113 = scmp.eq.s32.totalorder %s24, 0
      %p114 = por %p112, %p113
      %s115 = ssub.s32 %s18, %s25
      %p116 = scmp.eq.s32.totalorder %s115, 0
      %s118 = sadd.s32 %s117, 1
      %s119 = scalar_select %p116, %s117, %s118
      %p122 = pneg %p116
      %p123 = scmp.eq.s32.totalorder %s18, 1
      %p124 = por %p122, %p123
      %p125 = scmp.ne.s32.totalorder %s117, %s120
      %p126 = scmp.eq.s32.totalorder %s18, 0
      %p127 = por %p125, %p126
      %p128 = scmp.ne.s32.totalorder %s117, %s120
      %p129 = scmp.eq.s32.totalorder %s23, 1
      %p130 = por %p128, %p129
      %p131 = scmp.ne.s32.totalorder %s120, %s121
      %p132 = scmp.eq.s32.totalorder %s23, 0
      %p133 = por %p131, %p132
      %p134 = scmp.ne.s32.totalorder %s120, %s121
      %p135 = scmp.eq.s32.totalorder %s24, 1
      %p136 = por %p134, %p135
      %p138 = scmp.ne.s32.totalorder %s121, %s137
      %p139 = scmp.eq.s32.totalorder %s24, 0
      %p140 = por %p138, %p139
      %p141 = scmp.le.s32.totalorder 1, %s18
      %p142 = scmp.lt.s32.totalorder %s18, 3
      %p143 = pnand %p141, %p142
      %p144 = pneg %p143
      // Predicated region
      $region9: #{_lambda_.10} parent=5 // pred_check
        _
      $region10: #{_lambda_.10} parent=5 // pred_check_branch
        %146 = sbr.rel (%p143) target = $region12
      $region11: #{_lambda_.10} parent=5 // pred_region
        %s147 = ssub.s32 %s18, 1
        // Predicated region
        $region13: #{_lambda_.10} parent=11 // pred_check
          %p148 = pneg %p65
        $region14: #{_lambda_.10} parent=11 // pred_check_branch
          %150 = sbr.rel (%p148) target = $region16
        $region15: #{_lambda_.10} parent=11 // pred_region
          %s152 = ssub.s32 1152, 1152
          %153 = vsyncadd [#allocation6], %s152
          %s154 = sshll.u32 [#allocation5], 4
          %s155 = int_to_ptr.vmem [resolvable:$true] %s154
          %160 = dma.hbm_to_vmem [thread:$0]  %s1, 1152, %s155, [#allocation6], 64, 64, 4
        $region16: #{_lambda_.10} parent=11 // pred_fallthru
          _
        // Predicated region
        $region17: #{_lambda_.10} parent=11 // pred_check
          %p161 = pneg %p86
        $region18: #{_lambda_.10} parent=11 // pred_check_branch
          %163 = sbr.rel (%p161) target = $region20
        $region19: #{_lambda_.10} parent=11 // pred_region
          %s165 = ssub.s32 256, 256
          %166 = vsyncadd [#allocation6], %s165
          %s167 = sshll.u32 [#allocation7], 4
          %s168 = int_to_ptr.vmem [resolvable:$true] %s167
          %173 = dma.hbm_to_vmem [thread:$0]  %s2, 256, %s168, [#allocation6], 128, 128, 8
        $region20: #{_lambda_.10} parent=11 // pred_fallthru
          _
        // Predicated region
        $region21: #{_lambda_.10} parent=11 // pred_check
          %p174 = pneg %p107
        $region22: #{_lambda_.10} parent=11 // pred_check_branch
          %176 = sbr.rel (%p174) target = $region24
        $region23: #{_lambda_.10} parent=11 // pred_region
          %s178 = ssub.s32 48, 48
          %179 = vsyncadd [#allocation9], %s178
          %s181 = sshll.u32 [#allocation8], 4
          %s182 = int_to_ptr.vmem [resolvable:$true] %s181
          %184 = dma.hbm_to_vmem [thread:$0]  %s3, 48, %s182, [#allocation9]
        $region24: #{_lambda_.10} parent=11 // pred_fallthru
          _
      $region12: #{_lambda_.10} parent=5 // pred_fallthru
        _
      %p185 = scmp.lt.s32.totalorder %s18, 2
      // Predicated region
      $region25: #{_lambda_.10} parent=5 // pred_check
        %p186 = pneg %p185
      $region26: #{_lambda_.10} parent=5 // pred_check_branch
        %188 = sbr.rel (%p186) target = $region28
      $region27: #{_lambda_.10} parent=5 // pred_region
        // Predicated region
        $region29: #{_lambda_.10} parent=27 // pred_check
          %p189 = pneg %p38
        $region30: #{_lambda_.10} parent=27 // pred_check_branch
          %191 = sbr.rel (%p189) target = $region32
        $region31: #{_lambda_.10} parent=27 // pred_region
          %s192 = sand.u32 %s28, 1
          %s193 = scalar_lea.sflag [#allocation3], %s192
          %s194 = sand.u32 %s28, 1
          %s195 = smul.addr %s194, 20
          %s196 = scalar_lea.vmem [#allocation2], %s195
          %s198 = ssub.s32 320, 320
          %199 = vsyncadd %s193, %s198
          %s200 = smul.addr %s18, 5
          %s201 = smul.addr %s200, 64
          %s202 = scalar_lea.hbm %s0, %s201
          %s204 = sshll.u32 %s196, 4
          %s205 = int_to_ptr.vmem [resolvable:$true] %s204
          %207 = dma.hbm_to_vmem [thread:$0]  %s202, 320, %s205, %s193
        $region32: #{_lambda_.10} parent=27 // pred_fallthru
          _
      $region28: #{_lambda_.10} parent=5 // pred_fallthru
        _
      %p208 = scmp.le.s32.totalorder 1, %s18
      %p209 = scmp.lt.s32.totalorder %s18, 3
      %p210 = pnand %p208, %p209
      %p211 = pneg %p210
      // Predicated region
      $region33: #{_lambda_.10} parent=5 // pred_check
        _
      $region34: #{_lambda_.10} parent=5 // pred_check_branch
        %213 = sbr.rel (%p210) target = $region36
      $region35: #{_lambda_.10} parent=5 // pred_region
        %s214 = ssub.s32 %s18, 1
        %s215 = sand.u32 %s31, 1
        %s216 = scalar_lea.sflag [#allocation3], %s215
        %s217 = sand.u32 %s31, 1
        %s218 = smul.addr %s217, 20
        %s219 = scalar_lea.vmem [#allocation2], %s218
        // Predicated region
        $region37: #{_lambda_.10} parent=35 // pred_check
          %p220 = pneg %p44
        $region38: #{_lambda_.10} parent=35 // pred_check_branch
          %222 = sbr.rel (%p220) target = $region40
        $region39: #{_lambda_.10} parent=35 // pred_region
          %223 = dma.done %s216, 320
        $region40: #{_lambda_.10} parent=35 // pred_fallthru
          _
        // Predicated region
        $region41: #{_lambda_.10} parent=35 // pred_check
          %p224 = pneg %p65
        $region42: #{_lambda_.10} parent=35 // pred_check_branch
          %226 = sbr.rel (%p224) target = $region44
        $region43: #{_lambda_.10} parent=35 // pred_region
          %227 = dma.done [#allocation6], 1152
        $region44: #{_lambda_.10} parent=35 // pred_fallthru
          _
        // Predicated region
        $region45: #{_lambda_.10} parent=35 // pred_check
          %p228 = pneg %p86
        $region46: #{_lambda_.10} parent=35 // pred_check_branch
          %230 = sbr.rel (%p228) target = $region48
        $region47: #{_lambda_.10} parent=35 // pred_region
          %231 = dma.done [#allocation6], 256
        $region48: #{_lambda_.10} parent=35 // pred_fallthru
          _
        // Predicated region
        $region49: #{_lambda_.10} parent=35 // pred_check
          %p232 = pneg %p107
        $region50: #{_lambda_.10} parent=35 // pred_check_branch
          %234 = sbr.rel (%p232) target = $region52
        $region51: #{_lambda_.10} parent=35 // pred_region
          %235 = dma.done [#allocation9], 48
        $region52: #{_lambda_.10} parent=35 // pred_fallthru
          _
        %s236 = sand.u32 %s31, 1
        %s237 = scalar_lea.sflag [#allocation3], %s236
        %s238 = sand.u32 %s31, 1
        %s239 = smul.addr %s238, 20
        %s240 = scalar_lea.vmem [#allocation2], %s239
        %p241 = pneg %p44
        %p242 = pneg %p41
        %p243 = pneg %p65
        %p244 = pneg %p62
        %p245 = pneg %p86
        %p246 = pneg %p83
        %p247 = pneg %p107
        %p248 = pneg %p104
        %p249 = pneg %p133
        %p250 = pneg %p130
        %s251 = sand.u32 %s120, 1
        %s252 = scalar_lea.sflag [#allocation4], %s251
        %s253 = sand.u32 %s120, 1
        %s254 = smul.addr %s253, 40
        %s255 = scalar_lea.vmem [#allocation10], %s254
        %v257 = vld [vmem:[#allocation5] sm:$0xf]
        %v258 = vld [vmem:[#allocation5 + $0x4] sm:$0xf]
        %v259 = vld [vmem:[%s219] sm:$0xff]
        %v260 = vld [vmem:[%s219 + $0x8] sm:$0xff]
        %s261 = scalar_lea.vmem [#allocation5], 8
        %v262 = vld [vmem:[%s261] sm:$0xf]
        %v263 = vld [vmem:[%s261 + $0x4] sm:$0xf]
        %v266 = vunpack.c.l.b16 %v262
        %v267 = vunpack.c.l.b16 %v263
        %v268 = vpack.c.b16 %v267, %v266
        %v271 = vunpack.c.l.b16 %v259
        %v272 = vunpack.c.h.b16 %v259
        %v273 = vunpack.c.l.b16 %v260
        %v274 = vunpack.c.h.b16 %v260
        %v275 = vpack.c.b16 %v271, %v271
        %v276 = vpack.c.b16 %v272, %v272
        %v277 = vpack.c.b16 %v273, %v273
        %v278 = vpack.c.b16 %v274, %v274
        %279 = vrot.lane.b32.xlu0 %v275, 18
        %v280 = vpop.permute.xlu0 %279
        %281 = vrot.lane.b32.xlu0 %v276, 18
        %v282 = vpop.permute.xlu0 %281
        %283 = vrot.lane.b32.xlu0 %v277, 18
        %v284 = vpop.permute.xlu0 %283
        %285 = vrot.lane.b32.xlu0 %v278, 18
        %v286 = vpop.permute.xlu0 %285
        %vm287 = vcmask 146432
        %v288 = vsel %vm287, %v280, %v282
        %v289 = vsel %vm287, %v282, %v284
        %v290 = vsel %vm287, %v284, %v286
        %vm291 = vcmask 64512
        %v293 = vsel %vm291, %v268, 0
        %vm295 = vcmask 1043456
        %v297 = vsel %vm295, %v288, 0
        %v300 = vsel %vm295, %v289, 0
        %v303 = vsel %vm295, %v290, 0
        %305 = vmatprep.subr.bf16.mxu0 %v300
        %306 = vmatpush1.bf16.msra.mxu0 %v297
        %307 = vmatprep.subr.bf16.mxu0 0
        %308 = vmatpush1.bf16.msra.mxu0 0
        %309 = vmatprep.subr.bf16.mxu0 0
        %310 = vmatpush1.bf16.msra.mxu0 0
        %311 = vmatprep.subr.bf16.mxu0 0
        %312 = vmatpush1.bf16.msra.mxu0 0
        %313 = vmatprep.subr.bf16.mxu0 0
        %314 = vmatpush1.bf16.msra.mxu0 0
        %315 = vmatprep.subr.bf16.mxu0 0
        %316 = vmatpush1.bf16.msra.mxu0 0
        %317 = vmatprep.subr.bf16.mxu0 0
        %318 = vmatpush1.bf16.msra.mxu0 0
        %319 = vmatprep.subr.bf16.mxu0 0
        %320 = vmatpush1.bf16.msra.mxu0 0
        %321 = vmatprep.subr.bf16.mxu0 0
        %322 = vmatpush1.bf16.msra.mxu0 0
        %323 = vmatprep.subr.bf16.mxu0 0
        %324 = vmatpush1.bf16.msra.mxu0 0
        %325 = vmatprep.subr.bf16.mxu0 0
        %326 = vmatpush1.bf16.msra.mxu0 0
        %327 = vmatprep.subr.bf16.mxu0 0
        %328 = vmatpush1.bf16.msra.mxu0 0
        %329 = vmatprep.subr.bf16.mxu0 0
        %330 = vmatpush1.bf16.msra.mxu0 0
        %331 = vmatprep.subr.bf16.mxu0 0
        %332 = vmatpush1.bf16.msra.mxu0 0
        %333 = vmatprep.subr.bf16.mxu0 0
        %334 = vmatpush1.bf16.msra.mxu0 0
        %335 = vmatprep.subr.bf16.mxu0 0
        %336 = vmatpush1.bf16.msra.mxu0 0
        %337 = vmatprep.mubr.bf16.mxu0 0
        %338 = vmatmul.mubr.bf16.gmra.mrb[0].mxu0 %v293
        %v339 = vpop.f32.mrb[0].mxu0
        %v340 = vadd.f32 0.0, %v339
        %v341 = vpop.f32.mrb[0].mxu0
        %v342 = vadd.f32 0.0, %v341
        %v343 = vpop.f32.mrb[0].mxu0
        %v344 = vadd.f32 0.0, %v343
        %v345 = vpop.f32.mrb[0].mxu0
        %v346 = vadd.f32 0.0, %v345
        %347 = vdwg.mxu0
        %348 = vmatprep.subr.bf16.mxu0 0
        %349 = vmatpush1.bf16.msra.mxu0 %v303
        %350 = vmatprep.subr.bf16.mxu0 0
        %351 = vmatpush1.bf16.msra.mxu0 0
        %352 = vmatprep.subr.bf16.mxu0 0
        %353 = vmatpush1.bf16.msra.mxu0 0
        %354 = vmatprep.subr.bf16.mxu0 0
        %355 = vmatpush1.bf16.msra.mxu0 0
        %356 = vmatprep.subr.bf16.mxu0 0
        %357 = vmatpush1.bf16.msra.mxu0 0
        %358 = vmatprep.subr.bf16.mxu0 0
        %359 = vmatpush1.bf16.msra.mxu0 0
        %360 = vmatprep.subr.bf16.mxu0 0
        %361 = vmatpush1.bf16.msra.mxu0 0
        %362 = vmatprep.subr.bf16.mxu0 0
        %363 = vmatpush1.bf16.msra.mxu0 0
        %364 = vmatprep.subr.bf16.mxu0 0
        %365 = vmatpush1.bf16.msra.mxu0 0
        %366 = vmatprep.subr.bf16.mxu0 0
        %367 = vmatpush1.bf16.msra.mxu0 0
        %368 = vmatprep.subr.bf16.mxu0 0
        %369 = vmatpush1.bf16.msra.mxu0 0
        %370 = vmatprep.subr.bf16.mxu0 0
        %371 = vmatpush1.bf16.msra.mxu0 0
        %372 = vmatprep.subr.bf16.mxu0 0
        %373 = vmatpush1.bf16.msra.mxu0 0
        %374 = vmatprep.subr.bf16.mxu0 0
        %375 = vmatpush1.bf16.msra.mxu0 0
        %376 = vmatprep.subr.bf16.mxu0 0
        %377 = vmatpush1.bf16.msra.mxu0 0
        %378 = vmatprep.subr.bf16.mxu0 0
        %379 = vmatpush1.bf16.msra.mxu0 0
        %380 = vmatprep.mubr.bf16.mxu0 0
        %381 = vmatmul.mubr.bf16.gmra.mrb[0].mxu0 %v293
        %v382 = vpop.f32.mrb[0].mxu0
        %v383 = vadd.f32 0.0, %v382
        %v384 = vpop.f32.mrb[0].mxu0
        %v385 = vpop.f32.mrb[0].mxu0
        %v386 = vadd.f32 0.0, %v385
        %v387 = vpop.f32.mrb[0].mxu0
        %388 = vdwg.mxu0
        %v391 = vunpack.c.l.b16 %v257
        %v392 = vunpack.c.l.b16 %v258
        %v393 = vpack.c.b16 %v392, %v391
        %394 = vrot.lane.b32.xlu0 %v275, 19
        %v395 = vpop.permute.xlu0 %394
        %396 = vrot.lane.b32.xlu0 %v276, 19
        %v397 = vpop.permute.xlu0 %396
        %398 = vrot.lane.b32.xlu0 %v277, 19
        %v399 = vpop.permute.xlu0 %398
        %400 = vrot.lane.b32.xlu0 %v278, 19
        %v401 = vpop.permute.xlu0 %400
        %vm402 = vcmask 154624
        %v403 = vsel %vm402, %v395, %v397
        %v404 = vsel %vm402, %v397, %v399
        %v405 = vsel %vm402, %v399, %v401
        %v407 = vsel %vm291, %v393, 0
        %v410 = vsel %vm295, %v403, 0
        %v413 = vsel %vm295, %v404, 0
        %v416 = vsel %vm295, %v405, 0
        %418 = vmatprep.subr.bf16.mxu0 %v413
        %419 = vmatpush1.bf16.msra.mxu0 %v410
        %420 = vmatprep.subr.bf16.mxu0 0
        %421 = vmatpush1.bf16.msra.mxu0 0
        %422 = vmatprep.subr.bf16.mxu0 0
        %423 = vmatpush1.bf16.msra.mxu0 0
        %424 = vmatprep.subr.bf16.mxu0 0
        %425 = vmatpush1.bf16.msra.mxu0 0
        %426 = vmatprep.subr.bf16.mxu0 0
        %427 = vmatpush1.bf16.msra.mxu0 0
        %428 = vmatprep.subr.bf16.mxu0 0
        %429 = vmatpush1.bf16.msra.mxu0 0
        %430 = vmatprep.subr.bf16.mxu0 0
        %431 = vmatpush1.bf16.msra.mxu0 0
        %432 = vmatprep.subr.bf16.mxu0 0
        %433 = vmatpush1.bf16.msra.mxu0 0
        %434 = vmatprep.subr.bf16.mxu0 0
        %435 = vmatpush1.bf16.msra.mxu0 0
        %436 = vmatprep.subr.bf16.mxu0 0
        %437 = vmatpush1.bf16.msra.mxu0 0
        %438 = vmatprep.subr.bf16.mxu0 0
        %439 = vmatpush1.bf16.msra.mxu0 0
        %440 = vmatprep.subr.bf16.mxu0 0
        %441 = vmatpush1.bf16.msra.mxu0 0
        %442 = vmatprep.subr.bf16.mxu0 0
        %443 = vmatpush1.bf16.msra.mxu0 0
        %444 = vmatprep.subr.bf16.mxu0 0
        %445 = vmatpush1.bf16.msra.mxu0 0
        %446 = vmatprep.subr.bf16.mxu0 0
        %447 = vmatpush1.bf16.msra.mxu0 0
        %448 = vmatprep.subr.bf16.mxu0 0
        %449 = vmatpush1.bf16.msra.mxu0 0
        %450 = vmatprep.mubr.bf16.mxu0 0
        %451 = vmatmul.mubr.bf16.gmra.mrb[0].mxu0 %v407
        %v452 = vpop.f32.mrb[0].mxu0
        %v453 = vadd.f32 %v340, %v452
        %v454 = vpop.f32.mrb[0].mxu0
        %v455 = vadd.f32 %v342, %v454
        %v456 = vpop.f32.mrb[0].mxu0
        %v457 = vadd.f32 %v344, %v456
        %v458 = vpop.f32.mrb[0].mxu0
        %v459 = vadd.f32 %v346, %v458
        %460 = vdwg.mxu0
        %461 = vmatprep.subr.bf16.mxu0 0
        %462 = vmatpush1.bf16.msra.mxu0 %v416
        %463 = vmatprep.subr.bf16.mxu0 0
        %464 = vmatpush1.bf16.msra.mxu0 0
        %465 = vmatprep.subr.bf16.mxu0 0
        %466 = vmatpush1.bf16.msra.mxu0 0
        %467 = vmatprep.subr.bf16.mxu0 0
        %468 = vmatpush1.bf16.msra.mxu0 0
        %469 = vmatprep.subr.bf16.mxu0 0
        %470 = vmatpush1.bf16.msra.mxu0 0
        %471 = vmatprep.subr.bf16.mxu0 0
        %472 = vmatpush1.bf16.msra.mxu0 0
        %473 = vmatprep.subr.bf16.mxu0 0
        %474 = vmatpush1.bf16.msra.mxu0 0
        %475 = vmatprep.subr.bf16.mxu0 0
        %476 = vmatpush1.bf16.msra.mxu0 0
        %477 = vmatprep.subr.bf16.mxu0 0
        %478 = vmatpush1.bf16.msra.mxu0 0
        %479 = vmatprep.subr.bf16.mxu0 0
        %480 = vmatpush1.bf16.msra.mxu0 0
        %481 = vmatprep.subr.bf16.mxu0 0
        %482 = vmatpush1.bf16.msra.mxu0 0
        %483 = vmatprep.subr.bf16.mxu0 0
        %484 = vmatpush1.bf16.msra.mxu0 0
        %485 = vmatprep.subr.bf16.mxu0 0
        %486 = vmatpush1.bf16.msra.mxu0 0
        %487 = vmatprep.subr.bf16.mxu0 0
        %488 = vmatpush1.bf16.msra.mxu0 0
        %489 = vmatprep.subr.bf16.mxu0 0
        %490 = vmatpush1.bf16.msra.mxu0 0
        %491 = vmatprep.subr.bf16.mxu0 0
        %492 = vmatpush1.bf16.msra.mxu0 0
        %493 = vmatprep.mubr.bf16.mxu0 0
        %494 = vmatmul.mubr.bf16.gmra.mrb[0].mxu0 %v407
        %v495 = vpop.f32.mrb[0].mxu0
        %v496 = vadd.f32 %v383, %v495
        %v497 = vpop.f32.mrb[0].mxu0
        %v498 = vpop.f32.mrb[0].mxu0
        %v499 = vadd.f32 %v386, %v498
        %v500 = vpop.f32.mrb[0].mxu0
        %501 = vdwg.mxu0
        %s502 = scalar_lea.vmem [#allocation5], 16
        %v503 = vld [vmem:[%s502] sm:$0xf]
        %v504 = vld [vmem:[%s502 + $0x4] sm:$0xf]
        %v507 = vunpack.c.l.b16 %v503
        %v508 = vunpack.c.l.b16 %v504
        %v509 = vpack.c.b16 %v508, %v507
        %510 = vrot.lane.b32.xlu0 %v275, 17
        %v511 = vpop.permute.xlu0 %510
        %512 = vrot.lane.b32.xlu0 %v276, 17
        %v513 = vpop.permute.xlu0 %512
        %514 = vrot.lane.b32.xlu0 %v277, 17
        %v515 = vpop.permute.xlu0 %514
        %516 = vrot.lane.b32.xlu0 %v278, 17
        %v517 = vpop.permute.xlu0 %516
        %vm518 = vcmask 138240
        %v519 = vsel %vm518, %v511, %v513
        %v520 = vsel %vm518, %v513, %v515
        %v521 = vsel %vm518, %v515, %v517
        %v523 = vsel %vm291, %v509, 0
        %v526 = vsel %vm295, %v519, 0
        %v529 = vsel %vm295, %v520, 0
        %v532 = vsel %vm295, %v521, 0
        %534 = vmatprep.subr.bf16.mxu0 %v529
        %535 = vmatpush1.bf16.msra.mxu0 %v526
        %536 = vmatprep.subr.bf16.mxu0 0
        %537 = vmatpush1.bf16.msra.mxu0 0
        %538 = vmatprep.subr.bf16.mxu0 0
        %539 = vmatpush1.bf16.msra.mxu0 0
        %540 = vmatprep.subr.bf16.mxu0 0
        %541 = vmatpush1.bf16.msra.mxu0 0
        %542 = vmatprep.subr.bf16.mxu0 0
        %543 = vmatpush1.bf16.msra.mxu0 0
        %544 = vmatprep.subr.bf16.mxu0 0
        %545 = vmatpush1.bf16.msra.mxu0 0
        %546 = vmatprep.subr.bf16.mxu0 0
        %547 = vmatpush1.bf16.msra.mxu0 0
        %548 = vmatprep.subr.bf16.mxu0 0
        %549 = vmatpush1.bf16.msra.mxu0 0
        %550 = vmatprep.subr.bf16.mxu0 0
        %551 = vmatpush1.bf16.msra.mxu0 0
        %552 = vmatprep.subr.bf16.mxu0 0
        %553 = vmatpush1.bf16.msra.mxu0 0
        %554 = vmatprep.subr.bf16.mxu0 0
        %555 = vmatpush1.bf16.msra.mxu0 0
        %556 = vmatprep.subr.bf16.mxu0 0
        %557 = vmatpush1.bf16.msra.mxu0 0
        %558 = vmatprep.subr.bf16.mxu0 0
        %559 = vmatpush1.bf16.msra.mxu0 0
        %560 = vmatprep.subr.bf16.mxu0 0
        %561 = vmatpush1.bf16.msra.mxu0 0
        %562 = vmatprep.subr.bf16.mxu0 0
        %563 = vmatpush1.bf16.msra.mxu0 0
        %564 = vmatprep.subr.bf16.mxu0 0
        %565 = vmatpush1.bf16.msra.mxu0 0
        %566 = vmatprep.mubr.bf16.mxu0 0
        %567 = vmatmul.mubr.bf16.gmra.mrb[0].mxu0 %v523
        %v568 = vpop.f32.mrb[0].mxu0
        %v569 = vadd.f32 0.0, %v568
        %v570 = vpop.f32.mrb[0].mxu0
        %v571 = vadd.f32 0.0, %v570
        %v572 = vpop.f32.mrb[0].mxu0
        %v573 = vadd.f32 0.0, %v572
        %v574 = vpop.f32.mrb[0].mxu0
        %v575 = vadd.f32 0.0, %v574
        %576 = vdwg.mxu0
        %577 = vmatprep.subr.bf16.mxu0 0
        %578 = vmatpush1.bf16.msra.mxu0 %v532
        %579 = vmatprep.subr.bf16.mxu0 0
        %580 = vmatpush1.bf16.msra.mxu0 0
        %581 = vmatprep.subr.bf16.mxu0 0
        %582 = vmatpush1.bf16.msra.mxu0 0
        %583 = vmatprep.subr.bf16.mxu0 0
        %584 = vmatpush1.bf16.msra.mxu0 0
        %585 = vmatprep.subr.bf16.mxu0 0
        %586 = vmatpush1.bf16.msra.mxu0 0
        %587 = vmatprep.subr.bf16.mxu0 0
        %588 = vmatpush1.bf16.msra.mxu0 0
        %589 = vmatprep.subr.bf16.mxu0 0
        %590 = vmatpush1.bf16.msra.mxu0 0
        %591 = vmatprep.subr.bf16.mxu0 0
        %592 = vmatpush1.bf16.msra.mxu0 0
        %593 = vmatprep.subr.bf16.mxu0 0
        %594 = vmatpush1.bf16.msra.mxu0 0
        %595 = vmatprep.subr.bf16.mxu0 0
        %596 = vmatpush1.bf16.msra.mxu0 0
        %597 = vmatprep.subr.bf16.mxu0 0
        %598 = vmatpush1.bf16.msra.mxu0 0
        %599 = vmatprep.subr.bf16.mxu0 0
        %600 = vmatpush1.bf16.msra.mxu0 0
        %601 = vmatprep.subr.bf16.mxu0 0
        %602 = vmatpush1.bf16.msra.mxu0 0
        %603 = vmatprep.subr.bf16.mxu0 0
        %604 = vmatpush1.bf16.msra.mxu0 0
        %605 = vmatprep.subr.bf16.mxu0 0
        %606 = vmatpush1.bf16.msra.mxu0 0
        %607 = vmatprep.subr.bf16.mxu0 0
        %608 = vmatpush1.bf16.msra.mxu0 0
        %609 = vmatprep.mubr.bf16.mxu0 0
        %610 = vmatmul.mubr.bf16.gmra.mrb[0].mxu0 %v523
        %v611 = vpop.f32.mrb[0].mxu0
        %v612 = vadd.f32 0.0, %v611
        %v613 = vpop.f32.mrb[0].mxu0
        %v614 = vpop.f32.mrb[0].mxu0
        %v615 = vadd.f32 0.0, %v614
        %v616 = vpop.f32.mrb[0].mxu0
        %617 = vdwg.mxu0
        %v618 = vadd.f32 %v453, %v569
        %v619 = vadd.f32 %v455, %v571
        %v620 = vadd.f32 %v496, %v612
        %v621 = vadd.f32 %v457, %v573
        %v622 = vadd.f32 %v459, %v575
        %v623 = vadd.f32 %v499, %v615
        %s624 = scalar_lea.vmem [#allocation5], 24
        %v625 = vld [vmem:[%s624] sm:$0xf]
        %v626 = vld [vmem:[%s624 + $0x4] sm:$0xf]
        %v629 = vunpack.c.l.b16 %v625
        %v630 = vunpack.c.l.b16 %v626
        %v631 = vpack.c.b16 %v630, %v629
        %632 = vrot.lane.b32.xlu0 %v275, 1
        %v633 = vpop.permute.xlu0 %632
        %634 = vrot.lane.b32.xlu0 %v276, 1
        %v635 = vpop.permute.xlu0 %634
        %636 = vrot.lane.b32.xlu0 %v277, 1
        %v637 = vpop.permute.xlu0 %636
        %638 = vrot.lane.b32.xlu0 %v278, 1
        %v639 = vpop.permute.xlu0 %638
        %vm640 = vcmask 7168
        %v641 = vsel %vm640, %v633, %v635
        %v642 = vsel %vm640, %v635, %v637
        %v643 = vsel %vm640, %v637, %v639
        %v645 = vsel %vm291, %v631, 0
        %v648 = vsel %vm295, %v641, 0
        %v651 = vsel %vm295, %v642, 0
        %v654 = vsel %vm295, %v643, 0
        %656 = vmatprep.subr.bf16.mxu0 %v651
        %657 = vmatpush1.bf16.msra.mxu0 %v648
        %658 = vmatprep.subr.bf16.mxu0 0
        %659 = vmatpush1.bf16.msra.mxu0 0
        %660 = vmatprep.subr.bf16.mxu0 0
        %661 = vmatpush1.bf16.msra.mxu0 0
        %662 = vmatprep.subr.bf16.mxu0 0
        %663 = vmatpush1.bf16.msra.mxu0 0
        %664 = vmatprep.subr.bf16.mxu0 0
        %665 = vmatpush1.bf16.msra.mxu0 0
        %666 = vmatprep.subr.bf16.mxu0 0
        %667 = vmatpush1.bf16.msra.mxu0 0
        %668 = vmatprep.subr.bf16.mxu0 0
        %669 = vmatpush1.bf16.msra.mxu0 0
        %670 = vmatprep.subr.bf16.mxu0 0
        %671 = vmatpush1.bf16.msra.mxu0 0
        %672 = vmatprep.subr.bf16.mxu0 0
        %673 = vmatpush1.bf16.msra.mxu0 0
        %674 = vmatprep.subr.bf16.mxu0 0
        %675 = vmatpush1.bf16.msra.mxu0 0
        %676 = vmatprep.subr.bf16.mxu0 0
        %677 = vmatpush1.bf16.msra.mxu0 0
        %678 = vmatprep.subr.bf16.mxu0 0
        %679 = vmatpush1.bf16.msra.mxu0 0
        %680 = vmatprep.subr.bf16.mxu0 0
        %681 = vmatpush1.bf16.msra.mxu0 0
        %682 = vmatprep.subr.bf16.mxu0 0
        %683 = vmatpush1.bf16.msra.mxu0 0
        %684 = vmatprep.subr.bf16.mxu0 0
        %685 = vmatpush1.bf16.msra.mxu0 0
        %686 = vmatprep.subr.bf16.mxu0 0
        %687 = vmatpush1.bf16.msra.mxu0 0
        %688 = vmatprep.mubr.bf16.mxu0 0
        %689 = vmatmul.mubr.bf16.gmra.mrb[0].mxu0 %v645
        %v690 = vpop.f32.mrb[0].mxu0
        %v691 = vadd.f32 0.0, %v690
        %v692 = vpop.f32.mrb[0].mxu0
        %v693 = vadd.f32 0.0, %v692
        %v694 = vpop.f32.mrb[0].mxu0
        %v695 = vadd.f32 0.0, %v694
        %v696 = vpop.f32.mrb[0].mxu0
        %v697 = vadd.f32 0.0, %v696
        %698 = vdwg.mxu0
        %699 = vmatprep.subr.bf16.mxu0 0
        %700 = vmatpush1.bf16.msra.mxu0 %v654
        %701 = vmatprep.subr.bf16.mxu0 0
        %702 = vmatpush1.bf16.msra.mxu0 0
        %703 = vmatprep.subr.bf16.mxu0 0
        %704 = vmatpush1.bf16.msra.mxu0 0
        %705 = vmatprep.subr.bf16.mxu0 0
        %706 = vmatpush1.bf16.msra.mxu0 0
        %707 = vmatprep.subr.bf16.mxu0 0
        %708 = vmatpush1.bf16.msra.mxu0 0
        %709 = vmatprep.subr.bf16.mxu0 0
        %710 = vmatpush1.bf16.msra.mxu0 0
        %711 = vmatprep.subr.bf16.mxu0 0
        %712 = vmatpush1.bf16.msra.mxu0 0
        %713 = vmatprep.subr.bf16.mxu0 0
        %714 = vmatpush1.bf16.msra.mxu0 0
        %715 = vmatprep.subr.bf16.mxu0 0
        %716 = vmatpush1.bf16.msra.mxu0 0
        %717 = vmatprep.subr.bf16.mxu0 0
        %718 = vmatpush1.bf16.msra.mxu0 0
        %719 = vmatprep.subr.bf16.mxu0 0
        %720 = vmatpush1.bf16.msra.mxu0 0
        %721 = vmatprep.subr.bf16.mxu0 0
        %722 = vmatpush1.bf16.msra.mxu0 0
        %723 = vmatprep.subr.bf16.mxu0 0
        %724 = vmatpush1.bf16.msra.mxu0 0
        %725 = vmatprep.subr.bf16.mxu0 0
        %726 = vmatpush1.bf16.msra.mxu0 0
        %727 = vmatprep.subr.bf16.mxu0 0
        %728 = vmatpush1.bf16.msra.mxu0 0
        %729 = vmatprep.subr.bf16.mxu0 0
        %730 = vmatpush1.bf16.msra.mxu0 0
        %731 = vmatprep.mubr.bf16.mxu0 0
        %732 = vmatmul.mubr.bf16.gmra.mrb[0].mxu0 %v645
        %v733 = vpop.f32.mrb[0].mxu0
        %v734 = vadd.f32 0.0, %v733
        %v735 = vpop.f32.mrb[0].mxu0
        %v736 = vpop.f32.mrb[0].mxu0
        %v737 = vadd.f32 0.0, %v736
        %v738 = vpop.f32.mrb[0].mxu0
        %739 = vdwg.mxu0
        %v740 = vadd.f32 %v618, %v691
        %v741 = vadd.f32 %v619, %v693
        %v742 = vadd.f32 %v620, %v734
        %v743 = vadd.f32 %v621, %v695
        %v744 = vadd.f32 %v622, %v697
        %v745 = vadd.f32 %v623, %v737
        %s746 = scalar_lea.vmem [#allocation5], 32
        %v747 = vld [vmem:[%s746] sm:$0xf]
        %v748 = vld [vmem:[%s746 + $0x4] sm:$0xf]
        %v749 = vld [vmem:[%s219 + $0x4] sm:$0xff]
        %v750 = vld [vmem:[%s219 + $0xc] sm:$0xf]
        %v753 = vunpack.c.l.b16 %v747
        %v754 = vunpack.c.l.b16 %v748
        %v755 = vpack.c.b16 %v754, %v753
        %v758 = vunpack.c.l.b16 %v749
        %v759 = vunpack.c.h.b16 %v749
        %v760 = vunpack.c.l.b16 %v750
        %v761 = vpack.c.b16 %v758, %v758
        %v762 = vpack.c.b16 %v759, %v759
        %v763 = vpack.c.b16 %v760, %v760
        %v765 = vsel %vm291, %v755, 0
        %v768 = vsel %vm295, %v761, 0
        %v771 = vsel %vm295, %v762, 0
        %v774 = vsel %vm295, %v763, 0
        %776 = vmatprep.subr.bf16.mxu0 %v771
        %777 = vmatpush1.bf16.msra.mxu0 %v768
        %778 = vmatprep.subr.bf16.mxu0 0
        %779 = vmatpush1.bf16.msra.mxu0 0
        %780 = vmatprep.subr.bf16.mxu0 0
        %781 = vmatpush1.bf16.msra.mxu0 0
        %782 = vmatprep.subr.bf16.mxu0 0
        %783 = vmatpush1.bf16.msra.mxu0 0
        %784 = vmatprep.subr.bf16.mxu0 0
        %785 = vmatpush1.bf16.msra.mxu0 0
        %786 = vmatprep.subr.bf16.mxu0 0
        %787 = vmatpush1.bf16.msra.mxu0 0
        %788 = vmatprep.subr.bf16.mxu0 0
        %789 = vmatpush1.bf16.msra.mxu0 0
        %790 = vmatprep.subr.bf16.mxu0 0
        %791 = vmatpush1.bf16.msra.mxu0 0
        %792 = vmatprep.subr.bf16.mxu0 0
        %793 = vmatpush1.bf16.msra.mxu0 0
        %794 = vmatprep.subr.bf16.mxu0 0
        %795 = vmatpush1.bf16.msra.mxu0 0
        %796 = vmatprep.subr.bf16.mxu0 0
        %797 = vmatpush1.bf16.msra.mxu0 0
        %798 = vmatprep.subr.bf16.mxu0 0
        %799 = vmatpush1.bf16.msra.mxu0 0
        %800 = vmatprep.subr.bf16.mxu0 0
        %801 = vmatpush1.bf16.msra.mxu0 0
        %802 = vmatprep.subr.bf16.mxu0 0
        %803 = vmatpush1.bf16.msra.mxu0 0
        %804 = vmatprep.subr.bf16.mxu0 0
        %805 = vmatpush1.bf16.msra.mxu0 0
        %806 = vmatprep.subr.bf16.mxu0 0
        %807 = vmatpush1.bf16.msra.mxu0 0
        %808 = vmatprep.mubr.bf16.mxu0 0
        %809 = vmatmul.mubr.bf16.gmra.mrb[0].mxu0 %v765
        %v810 = vpop.f32.mrb[0].mxu0
        %v811 = vadd.f32 0.0, %v810
        %v812 = vpop.f32.mrb[0].mxu0
        %v813 = vadd.f32 0.0, %v812
        %v814 = vpop.f32.mrb[0].mxu0
        %v815 = vadd.f32 0.0, %v814
        %v816 = vpop.f32.mrb[0].mxu0
        %v817 = vadd.f32 0.0, %v816
        %818 = vdwg.mxu0
        %819 = vmatprep.subr.bf16.mxu0 0
        %820 = vmatpush1.bf16.msra.mxu0 %v774
        %821 = vmatprep.subr.bf16.mxu0 0
        %822 = vmatpush1.bf16.msra.mxu0 0
        %823 = vmatprep.subr.bf16.mxu0 0
        %824 = vmatpush1.bf16.msra.mxu0 0
        %825 = vmatprep.subr.bf16.mxu0 0
        %826 = vmatpush1.bf16.msra.mxu0 0
        %827 = vmatprep.subr.bf16.mxu0 0
        %828 = vmatpush1.bf16.msra.mxu0 0
        %829 = vmatprep.subr.bf16.mxu0 0
        %830 = vmatpush1.bf16.msra.mxu0 0
        %831 = vmatprep.subr.bf16.mxu0 0
        %832 = vmatpush1.bf16.msra.mxu0 0
        %833 = vmatprep.subr.bf16.mxu0 0
        %834 = vmatpush1.bf16.msra.mxu0 0
        %835 = vmatprep.subr.bf16.mxu0 0
        %836 = vmatpush1.bf16.msra.mxu0 0
        %837 = vmatprep.subr.bf16.mxu0 0
        %838 = vmatpush1.bf16.msra.mxu0 0
        %839 = vmatprep.subr.bf16.mxu0 0
        %840 = vmatpush1.bf16.msra.mxu0 0
        %841 = vmatprep.subr.bf16.mxu0 0
        %842 = vmatpush1.bf16.msra.mxu0 0
        %843 = vmatprep.subr.bf16.mxu0 0
        %844 = vmatpush1.bf16.msra.mxu0 0
        %845 = vmatprep.subr.bf16.mxu0 0
        %846 = vmatpush1.bf16.msra.mxu0 0
        %847 = vmatprep.subr.bf16.mxu0 0
        %848 = vmatpush1.bf16.msra.mxu0 0
        %849 = vmatprep.subr.bf16.mxu0 0
        %850 = vmatpush1.bf16.msra.mxu0 0
        %851 = vmatprep.mubr.bf16.mxu0 0
        %852 = vmatmul.mubr.bf16.gmra.mrb[0].mxu0 %v765
        %v853 = vpop.f32.mrb[0].mxu0
        %v854 = vadd.f32 0.0, %v853
        %v855 = vpop.f32.mrb[0].mxu0
        %v856 = vpop.f32.mrb[0].mxu0
        %v857 = vadd.f32 0.0, %v856
        %v858 = vpop.f32.mrb[0].mxu0
        %859 = vdwg.mxu0
        %v860 = vadd.f32 %v740, %v811
        %v861 = vadd.f32 %v741, %v813
        %v862 = vadd.f32 %v742, %v854
        %v863 = vadd.f32 %v743, %v815
        %v864 = vadd.f32 %v744, %v817
        %v865 = vadd.f32 %v745, %v857
        %s866 = scalar_lea.vmem [#allocation5], 40
        %v867 = vld [vmem:[%s866] sm:$0xf]
        %v868 = vld [vmem:[%s866 + $0x4] sm:$0xf]
        %v871 = vunpack.c.l.b16 %v867
        %v872 = vunpack.c.l.b16 %v868
        %v873 = vpack.c.b16 %v872, %v871
        %874 = vrot.lane.b32.xlu0 %v761, 127
        %v875 = vpop.permute.xlu0 %874
        %876 = vrot.lane.b32.xlu0 %v762, 127
        %v877 = vpop.permute.xlu0 %876
        %878 = vrot.lane.b32.xlu0 %v763, 127
        %v879 = vpop.permute.xlu0 %878
        %vm880 = vcmask 1039360
        %v881 = vsel %vm880, %v875, %v877
        %v882 = vsel %vm880, %v877, %v879
        %v884 = vsel %vm291, %v873, 0
        %v887 = vsel %vm295, %v881, 0
        %v890 = vsel %vm295, %v882, 0
        %v893 = vsel %vm295, %v879, 0
        %895 = vmatprep.subr.bf16.mxu0 %v890
        %896 = vmatpush1.bf16.msra.mxu0 %v887
        %897 = vmatprep.subr.bf16.mxu0 0
        %898 = vmatpush1.bf16.msra.mxu0 0
        %899 = vmatprep.subr.bf16.mxu0 0
        %900 = vmatpush1.bf16.msra.mxu0 0
        %901 = vmatprep.subr.bf16.mxu0 0
        %902 = vmatpush1.bf16.msra.mxu0 0
        %903 = vmatprep.subr.bf16.mxu0 0
        %904 = vmatpush1.bf16.msra.mxu0 0
        %905 = vmatprep.subr.bf16.mxu0 0
        %906 = vmatpush1.bf16.msra.mxu0 0
        %907 = vmatprep.subr.bf16.mxu0 0
        %908 = vmatpush1.bf16.msra.mxu0 0
        %909 = vmatprep.subr.bf16.mxu0 0
        %910 = vmatpush1.bf16.msra.mxu0 0
        %911 = vmatprep.subr.bf16.mxu0 0
        %912 = vmatpush1.bf16.msra.mxu0 0
        %913 = vmatprep.subr.bf16.mxu0 0
        %914 = vmatpush1.bf16.msra.mxu0 0
        %915 = vmatprep.subr.bf16.mxu0 0
        %916 = vmatpush1.bf16.msra.mxu0 0
        %917 = vmatprep.subr.bf16.mxu0 0
        %918 = vmatpush1.bf16.msra.mxu0 0
        %919 = vmatprep.subr.bf16.mxu0 0
        %920 = vmatpush1.bf16.msra.mxu0 0
        %921 = vmatprep.subr.bf16.mxu0 0
        %922 = vmatpush1.bf16.msra.mxu0 0
        %923 = vmatprep.subr.bf16.mxu0 0
        %924 = vmatpush1.bf16.msra.mxu0 0
        %925 = vmatprep.subr.bf16.mxu0 0
        %926 = vmatpush1.bf16.msra.mxu0 0
        %927 = vmatprep.mubr.bf16.mxu0 0
        %928 = vmatmul.mubr.bf16.gmra.mrb[0].mxu0 %v884
        %v929 = vpop.f32.mrb[0].mxu0
        %v930 = vadd.f32 0.0, %v929
        %v931 = vpop.f32.mrb[0].mxu0
        %v932 = vadd.f32 0.0, %v931
        %v933 = vpop.f32.mrb[0].mxu0
        %v934 = vadd.f32 0.0, %v933
        %v935 = vpop.f32.mrb[0].mxu0
        %v936 = vadd.f32 0.0, %v935
        %937 = vdwg.mxu0
        %938 = vmatprep.subr.bf16.mxu0 0
        %939 = vmatpush1.bf16.msra.mxu0 %v893
        %940 = vmatprep.subr.bf16.mxu0 0
        %941 = vmatpush1.bf16.msra.mxu0 0
        %942 = vmatprep.subr.bf16.mxu0 0
        %943 = vmatpush1.bf16.msra.mxu0 0
        %944 = vmatprep.subr.bf16.mxu0 0
        %945 = vmatpush1.bf16.msra.mxu0 0
        %946 = vmatprep.subr.bf16.mxu0 0
        %947 = vmatpush1.bf16.msra.mxu0 0
        %948 = vmatprep.subr.bf16.mxu0 0
        %949 = vmatpush1.bf16.msra.mxu0 0
        %950 = vmatprep.subr.bf16.mxu0 0
        %951 = vmatpush1.bf16.msra.mxu0 0
        %952 = vmatprep.subr.bf16.mxu0 0
        %953 = vmatpush1.bf16.msra.mxu0 0
        %954 = vmatprep.subr.bf16.mxu0 0
        %955 = vmatpush1.bf16.msra.mxu0 0
        %956 = vmatprep.subr.bf16.mxu0 0
        %957 = vmatpush1.bf16.msra.mxu0 0
        %958 = vmatprep.subr.bf16.mxu0 0
        %959 = vmatpush1.bf16.msra.mxu0 0
        %960 = vmatprep.subr.bf16.mxu0 0
        %961 = vmatpush1.bf16.msra.mxu0 0
        %962 = vmatprep.subr.bf16.mxu0 0
        %963 = vmatpush1.bf16.msra.mxu0 0
        %964 = vmatprep.subr.bf16.mxu0 0
        %965 = vmatpush1.bf16.msra.mxu0 0
        %966 = vmatprep.subr.bf16.mxu0 0
        %967 = vmatpush1.bf16.msra.mxu0 0
        %968 = vmatprep.subr.bf16.mxu0 0
        %969 = vmatpush1.bf16.msra.mxu0 0
        %970 = vmatprep.mubr.bf16.mxu0 0
        %971 = vmatmul.mubr.bf16.gmra.mrb[0].mxu0 %v884
        %v972 = vpop.f32.mrb[0].mxu0
        %v973 = vadd.f32 0.0, %v972
        %v974 = vpop.f32.mrb[0].mxu0
        %v975 = vpop.f32.mrb[0].mxu0
        %v976 = vadd.f32 0.0, %v975
        %v977 = vpop.f32.mrb[0].mxu0
        %978 = vdwg.mxu0
        %v979 = vadd.f32 %v860, %v930
        %v980 = vadd.f32 %v861, %v932
        %v981 = vadd.f32 %v862, %v973
        %v982 = vadd.f32 %v863, %v934
        %v983 = vadd.f32 %v864, %v936
        %v984 = vadd.f32 %v865, %v976
        %s985 = scalar_lea.vmem [#allocation5], 48
        %v986 = vld [vmem:[%s985] sm:$0xf]
        %v987 = vld [vmem:[%s985 + $0x4] sm:$0xf]
        %v990 = vunpack.c.l.b16 %v986
        %v991 = vunpack.c.l.b16 %v987
        %v992 = vpack.c.b16 %v991, %v990
        %993 = vrot.lane.b32.xlu0 %v761, 111
        %v994 = vpop.permute.xlu0 %993
        %995 = vrot.lane.b32.xlu0 %v762, 111
        %v996 = vpop.permute.xlu0 %995
        %997 = vrot.lane.b32.xlu0 %v763, 111
        %v998 = vpop.permute.xlu0 %997
        %vm999 = vcmask 908288
        %v1000 = vsel %vm999, %v994, %v996
        %v1001 = vsel %vm999, %v996, %v998
        %v1003 = vsel %vm291, %v992, 0
        %v1006 = vsel %vm295, %v1000, 0
        %v1009 = vsel %vm295, %v1001, 0
        %v1012 = vsel %vm295, %v998, 0
        %1014 = vmatprep.subr.bf16.mxu0 %v1009
        %1015 = vmatpush1.bf16.msra.mxu0 %v1006
        %1016 = vmatprep.subr.bf16.mxu0 0
        %1017 = vmatpush1.bf16.msra.mxu0 0
        %1018 = vmatprep.subr.bf16.mxu0 0
        %1019 = vmatpush1.bf16.msra.mxu0 0
        %1020 = vmatprep.subr.bf16.mxu0 0
        %1021 = vmatpush1.bf16.msra.mxu0 0
        %1022 = vmatprep.subr.bf16.mxu0 0
        %1023 = vmatpush1.bf16.msra.mxu0 0
        %1024 = vmatprep.subr.bf16.mxu0 0
        %1025 = vmatpush1.bf16.msra.mxu0 0
        %1026 = vmatprep.subr.bf16.mxu0 0
        %1027 = vmatpush1.bf16.msra.mxu0 0
        %1028 = vmatprep.subr.bf16.mxu0 0
        %1029 = vmatpush1.bf16.msra.mxu0 0
        %1030 = vmatprep.subr.bf16.mxu0 0
        %1031 = vmatpush1.bf16.msra.mxu0 0
        %1032 = vmatprep.subr.bf16.mxu0 0
        %1033 = vmatpush1.bf16.msra.mxu0 0
        %1034 = vmatprep.subr.bf16.mxu0 0
        %1035 = vmatpush1.bf16.msra.mxu0 0
        %1036 = vmatprep.subr.bf16.mxu0 0
        %1037 = vmatpush1.bf16.msra.mxu0 0
        %1038 = vmatprep.subr.bf16.mxu0 0
        %1039 = vmatpush1.bf16.msra.mxu0 0
        %1040 = vmatprep.subr.bf16.mxu0 0
        %1041 = vmatpush1.bf16.msra.mxu0 0
        %1042 = vmatprep.subr.bf16.mxu0 0
        %1043 = vmatpush1.bf16.msra.mxu0 0
        %1044 = vmatprep.subr.bf16.mxu0 0
        %1045 = vmatpush1.bf16.msra.mxu0 0
        %1046 = vmatprep.mubr.bf16.mxu0 0
        %1047 = vmatmul.mubr.bf16.gmra.mrb[0].mxu0 %v1003
        %v1048 = vpop.f32.mrb[0].mxu0
        %v1049 = vadd.f32 0.0, %v1048
        %v1050 = vpop.f32.mrb[0].mxu0
        %v1051 = vadd.f32 0.0, %v1050
        %v1052 = vpop.f32.mrb[0].mxu0
        %v1053 = vadd.f32 0.0, %v1052
        %v1054 = vpop.f32.mrb[0].mxu0
        %v1055 = vadd.f32 0.0, %v1054
        %1056 = vdwg.mxu0
        %1057 = vmatprep.subr.bf16.mxu0 0
        %1058 = vmatpush1.bf16.msra.mxu0 %v1012
        %1059 = vmatprep.subr.bf16.mxu0 0
        %1060 = vmatpush1.bf16.msra.mxu0 0
        %1061 = vmatprep.subr.bf16.mxu0 0
        %1062 = vmatpush1.bf16.msra.mxu0 0
        %1063 = vmatprep.subr.bf16.mxu0 0
        %1064 = vmatpush1.bf16.msra.mxu0 0
        %1065 = vmatprep.subr.bf16.mxu0 0
        %1066 = vmatpush1.bf16.msra.mxu0 0
        %1067 = vmatprep.subr.bf16.mxu0 0
        %1068 = vmatpush1.bf16.msra.mxu0 0
        %1069 = vmatprep.subr.bf16.mxu0 0
        %1070 = vmatpush1.bf16.msra.mxu0 0
        %1071 = vmatprep.subr.bf16.mxu0 0
        %1072 = vmatpush1.bf16.msra.mxu0 0
        %1073 = vmatprep.subr.bf16.mxu0 0
        %1074 = vmatpush1.bf16.msra.mxu0 0
        %1075 = vmatprep.subr.bf16.mxu0 0
        %1076 = vmatpush1.bf16.msra.mxu0 0
        %1077 = vmatprep.subr.bf16.mxu0 0
        %1078 = vmatpush1.bf16.msra.mxu0 0
        %1079 = vmatprep.subr.bf16.mxu0 0
        %1080 = vmatpush1.bf16.msra.mxu0 0
        %1081 = vmatprep.subr.bf16.mxu0 0
        %1082 = vmatpush1.bf16.msra.mxu0 0
        %1083 = vmatprep.subr.bf16.mxu0 0
        %1084 = vmatpush1.bf16.msra.mxu0 0
        %1085 = vmatprep.subr.bf16.mxu0 0
        %1086 = vmatpush1.bf16.msra.mxu0 0
        %1087 = vmatprep.subr.bf16.mxu0 0
        %1088 = vmatpush1.bf16.msra.mxu0 0
        %1089 = vmatprep.mubr.bf16.mxu0 0
        %1090 = vmatmul.mubr.bf16.gmra.mrb[0].mxu0 %v1003
        %v1091 = vpop.f32.mrb[0].mxu0
        %v1092 = vadd.f32 0.0, %v1091
        %v1093 = vpop.f32.mrb[0].mxu0
        %v1094 = vpop.f32.mrb[0].mxu0
        %v1095 = vadd.f32 0.0, %v1094
        %v1096 = vpop.f32.mrb[0].mxu0
        %1097 = vdwg.mxu0
        %v1098 = vadd.f32 %v979, %v1049
        %v1099 = vadd.f32 %v980, %v1051
        %v1100 = vadd.f32 %v981, %v1092
        %v1101 = vadd.f32 %v982, %v1053
        %v1102 = vadd.f32 %v983, %v1055
        %v1103 = vadd.f32 %v984, %v1095
        %s1104 = scalar_lea.vmem [#allocation5], 56
        %v1105 = vld [vmem:[%s1104] sm:$0xf]
        %v1106 = vld [vmem:[%s1104 + $0x4] sm:$0xf]
        %v1109 = vunpack.c.l.b16 %v1105
        %v1110 = vunpack.c.l.b16 %v1106
        %v1111 = vpack.c.b16 %v1110, %v1109
        %1112 = vrot.lane.b32.xlu0 %v761, 110
        %v1113 = vpop.permute.xlu0 %1112
        %1114 = vrot.lane.b32.xlu0 %v762, 110
        %v1115 = vpop.permute.xlu0 %1114
        %1116 = vrot.lane.b32.xlu0 %v763, 110
        %v1117 = vpop.permute.xlu0 %1116
        %vm1118 = vcmask 900096
        %v1119 = vsel %vm1118, %v1113, %v1115
        %v1120 = vsel %vm1118, %v1115, %v1117
        %v1122 = vsel %vm291, %v1111, 0
        %v1125 = vsel %vm295, %v1119, 0
        %v1128 = vsel %vm295, %v1120, 0
        %v1131 = vsel %vm295, %v1117, 0
        %1133 = vmatprep.subr.bf16.mxu0 %v1128
        %1134 = vmatpush1.bf16.msra.mxu0 %v1125
        %1135 = vmatprep.subr.bf16.mxu0 0
        %1136 = vmatpush1.bf16.msra.mxu0 0
        %1137 = vmatprep.subr.bf16.mxu0 0
        %1138 = vmatpush1.bf16.msra.mxu0 0
        %1139 = vmatprep.subr.bf16.mxu0 0
        %1140 = vmatpush1.bf16.msra.mxu0 0
        %1141 = vmatprep.subr.bf16.mxu0 0
        %1142 = vmatpush1.bf16.msra.mxu0 0
        %1143 = vmatprep.subr.bf16.mxu0 0
        %1144 = vmatpush1.bf16.msra.mxu0 0
        %1145 = vmatprep.subr.bf16.mxu0 0
        %1146 = vmatpush1.bf16.msra.mxu0 0
        %1147 = vmatprep.subr.bf16.mxu0 0
        %1148 = vmatpush1.bf16.msra.mxu0 0
        %1149 = vmatprep.subr.bf16.mxu0 0
        %1150 = vmatpush1.bf16.msra.mxu0 0
        %1151 = vmatprep.subr.bf16.mxu0 0
        %1152 = vmatpush1.bf16.msra.mxu0 0
        %1153 = vmatprep.subr.bf16.mxu0 0
        %1154 = vmatpush1.bf16.msra.mxu0 0
        %1155 = vmatprep.subr.bf16.mxu0 0
        %1156 = vmatpush1.bf16.msra.mxu0 0
        %1157 = vmatprep.subr.bf16.mxu0 0
        %1158 = vmatpush1.bf16.msra.mxu0 0
        %1159 = vmatprep.subr.bf16.mxu0 0
        %1160 = vmatpush1.bf16.msra.mxu0 0
        %1161 = vmatprep.subr.bf16.mxu0 0
        %1162 = vmatpush1.bf16.msra.mxu0 0
        %1163 = vmatprep.subr.bf16.mxu0 0
        %1164 = vmatpush1.bf16.msra.mxu0 0
        %1165 = vmatprep.mubr.bf16.mxu0 0
        %1166 = vmatmul.mubr.bf16.gmra.mrb[0].mxu0 %v1122
        %v1167 = vpop.f32.mrb[0].mxu0
        %v1168 = vadd.f32 0.0, %v1167
        %v1169 = vpop.f32.mrb[0].mxu0
        %v1170 = vadd.f32 0.0, %v1169
        %v1171 = vpop.f32.mrb[0].mxu0
        %v1172 = vadd.f32 0.0, %v1171
        %v1173 = vpop.f32.mrb[0].mxu0
        %v1174 = vadd.f32 0.0, %v1173
        %1175 = vdwg.mxu0
        %1176 = vmatprep.subr.bf16.mxu0 0
        %1177 = vmatpush1.bf16.msra.mxu0 %v1131
        %1178 = vmatprep.subr.bf16.mxu0 0
        %1179 = vmatpush1.bf16.msra.mxu0 0
        %1180 = vmatprep.subr.bf16.mxu0 0
        %1181 = vmatpush1.bf16.msra.mxu0 0
        %1182 = vmatprep.subr.bf16.mxu0 0
        %1183 = vmatpush1.bf16.msra.mxu0 0
        %1184 = vmatprep.subr.bf16.mxu0 0
        %1185 = vmatpush1.bf16.msra.mxu0 0
        %1186 = vmatprep.subr.bf16.mxu0 0
        %1187 = vmatpush1.bf16.msra.mxu0 0
        %1188 = vmatprep.subr.bf16.mxu0 0
        %1189 = vmatpush1.bf16.msra.mxu0 0
        %1190 = vmatprep.subr.bf16.mxu0 0
        %1191 = vmatpush1.bf16.msra.mxu0 0
        %1192 = vmatprep.subr.bf16.mxu0 0
        %1193 = vmatpush1.bf16.msra.mxu0 0
        %1194 = vmatprep.subr.bf16.mxu0 0
        %1195 = vmatpush1.bf16.msra.mxu0 0
        %1196 = vmatprep.subr.bf16.mxu0 0
        %1197 = vmatpush1.bf16.msra.mxu0 0
        %1198 = vmatprep.subr.bf16.mxu0 0
        %1199 = vmatpush1.bf16.msra.mxu0 0
        %1200 = vmatprep.subr.bf16.mxu0 0
        %1201 = vmatpush1.bf16.msra.mxu0 0
        %1202 = vmatprep.subr.bf16.mxu0 0
        %1203 = vmatpush1.bf16.msra.mxu0 0
        %1204 = vmatprep.subr.bf16.mxu0 0
        %1205 = vmatpush1.bf16.msra.mxu0 0
        %1206 = vmatprep.subr.bf16.mxu0 0
        %1207 = vmatpush1.bf16.msra.mxu0 0
        %1208 = vmatprep.mubr.bf16.mxu0 0
        %1209 = vmatmul.mubr.bf16.gmra.mrb[0].mxu0 %v1122
        %v1210 = vpop.f32.mrb[0].mxu0
        %v1211 = vadd.f32 0.0, %v1210
        %v1212 = vpop.f32.mrb[0].mxu0
        %v1213 = vpop.f32.mrb[0].mxu0
        %v1214 = vadd.f32 0.0, %v1213
        %v1215 = vpop.f32.mrb[0].mxu0
        %1216 = vdwg.mxu0
        %v1217 = vadd.f32 %v1098, %v1168
        %v1218 = vadd.f32 %v1099, %v1170
        %v1219 = vadd.f32 %v1100, %v1211
        %v1220 = vadd.f32 %v1101, %v1172
        %v1221 = vadd.f32 %v1102, %v1174
        %v1222 = vadd.f32 %v1103, %v1214
        %s1223 = scalar_lea.vmem [#allocation5], 64
        %v1224 = vld [vmem:[%s1223] sm:$0xf]
        %v1225 = vld [vmem:[%s1223 + $0x4] sm:$0xf]
        %v1228 = vunpack.c.l.b16 %v1224
        %v1229 = vunpack.c.l.b16 %v1225
        %v1230 = vpack.c.b16 %v1229, %v1228
        %1231 = vrot.lane.b32.xlu0 %v761, 109
        %v1232 = vpop.permute.xlu0 %1231
        %1233 = vrot.lane.b32.xlu0 %v762, 109
        %v1234 = vpop.permute.xlu0 %1233
        %1235 = vrot.lane.b32.xlu0 %v763, 109
        %v1236 = vpop.permute.xlu0 %1235
        %vm1237 = vcmask 891904
        %v1238 = vsel %vm1237, %v1232, %v1234
        %v1239 = vsel %vm1237, %v1234, %v1236
        %v1241 = vsel %vm291, %v1230, 0
        %v1244 = vsel %vm295, %v1238, 0
        %v1247 = vsel %vm295, %v1239, 0
        %v1250 = vsel %vm295, %v1236, 0
        %1252 = vmatprep.subr.bf16.mxu0 %v1247
        %1253 = vmatpush1.bf16.msra.mxu0 %v1244
        %1254 = vmatprep.subr.bf16.mxu0 0
        %1255 = vmatpush1.bf16.msra.mxu0 0
        %1256 = vmatprep.subr.bf16.mxu0 0
        %1257 = vmatpush1.bf16.msra.mxu0 0
        %1258 = vmatprep.subr.bf16.mxu0 0
        %1259 = vmatpush1.bf16.msra.mxu0 0
        %1260 = vmatprep.subr.bf16.mxu0 0
        %1261 = vmatpush1.bf16.msra.mxu0 0
        %1262 = vmatprep.subr.bf16.mxu0 0
        %1263 = vmatpush1.bf16.msra.mxu0 0
        %1264 = vmatprep.subr.bf16.mxu0 0
        %1265 = vmatpush1.bf16.msra.mxu0 0
        %1266 = vmatprep.subr.bf16.mxu0 0
        %1267 = vmatpush1.bf16.msra.mxu0 0
        %1268 = vmatprep.subr.bf16.mxu0 0
        %1269 = vmatpush1.bf16.msra.mxu0 0
        %1270 = vmatprep.subr.bf16.mxu0 0
        %1271 = vmatpush1.bf16.msra.mxu0 0
        %1272 = vmatprep.subr.bf16.mxu0 0
        %1273 = vmatpush1.bf16.msra.mxu0 0
        %1274 = vmatprep.subr.bf16.mxu0 0
        %1275 = vmatpush1.bf16.msra.mxu0 0
        %1276 = vmatprep.subr.bf16.mxu0 0
        %1277 = vmatpush1.bf16.msra.mxu0 0
        %1278 = vmatprep.subr.bf16.mxu0 0
        %1279 = vmatpush1.bf16.msra.mxu0 0
        %1280 = vmatprep.subr.bf16.mxu0 0
        %1281 = vmatpush1.bf16.msra.mxu0 0
        %1282 = vmatprep.subr.bf16.mxu0 0
        %1283 = vmatpush1.bf16.msra.mxu0 0
        %1284 = vmatprep.mubr.bf16.mxu0 0
        %1285 = vmatmul.mubr.bf16.gmra.mrb[0].mxu0 %v1241
        %v1286 = vpop.f32.mrb[0].mxu0
        %v1287 = vadd.f32 0.0, %v1286
        %v1288 = vpop.f32.mrb[0].mxu0
        %v1289 = vadd.f32 0.0, %v1288
        %v1290 = vpop.f32.mrb[0].mxu0
        %v1291 = vadd.f32 0.0, %v1290
        %v1292 = vpop.f32.mrb[0].mxu0
        %v1293 = vadd.f32 0.0, %v1292
        %1294 = vdwg.mxu0
        %1295 = vmatprep.subr.bf16.mxu0 0
        %1296 = vmatpush1.bf16.msra.mxu0 %v1250
        %1297 = vmatprep.subr.bf16.mxu0 0
        %1298 = vmatpush1.bf16.msra.mxu0 0
        %1299 = vmatprep.subr.bf16.mxu0 0
        %1300 = vmatpush1.bf16.msra.mxu0 0
        %1301 = vmatprep.subr.bf16.mxu0 0
        %1302 = vmatpush1.bf16.msra.mxu0 0
        %1303 = vmatprep.subr.bf16.mxu0 0
        %1304 = vmatpush1.bf16.msra.mxu0 0
        %1305 = vmatprep.subr.bf16.mxu0 0
        %1306 = vmatpush1.bf16.msra.mxu0 0
        %1307 = vmatprep.subr.bf16.mxu0 0
        %1308 = vmatpush1.bf16.msra.mxu0 0
        %1309 = vmatprep.subr.bf16.mxu0 0
        %1310 = vmatpush1.bf16.msra.mxu0 0
        %1311 = vmatprep.subr.bf16.mxu0 0
        %1312 = vmatpush1.bf16.msra.mxu0 0
        %1313 = vmatprep.subr.bf16.mxu0 0
        %1314 = vmatpush1.bf16.msra.mxu0 0
        %1315 = vmatprep.subr.bf16.mxu0 0
        %1316 = vmatpush1.bf16.msra.mxu0 0
        %1317 = vmatprep.subr.bf16.mxu0 0
        %1318 = vmatpush1.bf16.msra.mxu0 0
        %1319 = vmatprep.subr.bf16.mxu0 0
        %1320 = vmatpush1.bf16.msra.mxu0 0
        %1321 = vmatprep.subr.bf16.mxu0 0
        %1322 = vmatpush1.bf16.msra.mxu0 0
        %1323 = vmatprep.subr.bf16.mxu0 0
        %1324 = vmatpush1.bf16.msra.mxu0 0
        %1325 = vmatprep.subr.bf16.mxu0 0
        %1326 = vmatpush1.bf16.msra.mxu0 0
        %1327 = vmatprep.mubr.bf16.mxu0 0
        %1328 = vmatmul.mubr.bf16.gmra.mrb[0].mxu0 %v1241
        %v1329 = vpop.f32.mrb[0].mxu0
        %v1330 = vadd.f32 0.0, %v1329
        %v1331 = vpop.f32.mrb[0].mxu0
        %v1332 = vpop.f32.mrb[0].mxu0
        %v1333 = vadd.f32 0.0, %v1332
        %v1334 = vpop.f32.mrb[0].mxu0
        %1335 = vdwg.mxu0
        %v1336 = vadd.f32 %v1217, %v1287
        %v1337 = vadd.f32 %v1218, %v1289
        %v1338 = vadd.f32 %v1219, %v1330
        %v1339 = vadd.f32 %v1220, %v1291
        %v1340 = vadd.f32 %v1221, %v1293
        %v1341 = vadd.f32 %v1222, %v1333
        %v1342 = vld [vmem:[#allocation7] sm:$0xff]
        %v1343 = vld [vmem:[#allocation7 + $0x8] sm:$0xff]
        %1345 = vset.pattern.permute.xlu0 0
        %1346 = vperm.xlu0 %1345, %v1342
        %v1347 = vpop.permute.xlu0 %1346
        %1350 = vset.pattern.permute.xlu0 0
        %1351 = vperm.xlu0 %1350, %v1343
        %v1352 = vpop.permute.xlu0 %1351
        %v1354 = vadd.f32 %v1336, %v1347
        %v1355 = vadd.f32 %v1337, %v1347
        %v1356 = vadd.f32 %v1338, %v1347
        %v1357 = vadd.f32 %v1339, %v1352
        %v1358 = vadd.f32 %v1340, %v1352
        %v1359 = vadd.f32 %v1341, %v1352
        %v1360 = vmax.f32 %v1354, 0.0
        %v1361 = vmax.f32 %v1355, 0.0
        %v1362 = vmax.f32 %v1356, 0.0
        %v1363 = vmax.f32 %v1357, 0.0
        %v1364 = vmax.f32 %v1358, 0.0
        %v1365 = vmax.f32 %v1359, 0.0
        %v1366 = vld [vmem:[#allocation8] sm:$0x7]
        %vm1367 = vcmp.gt.f32.partialorder %v1366, 0.0
        %v1368 = vsel %vm1367, 1, 0
        %v1369 = vlaneseq
        %v1370 = vshrl.u32 %v1369, 7
        %v1371 = vsub.s32 0, %v1370
        %v1372 = vrot.slane %v1368, %v1371
        %v1373 = vlaneseq
        %v1374 = vshrl.u32 %v1373, 7
        %v1375 = vsub.s32 1, %v1374
        %v1376 = vrot.slane %v1368, %v1375
        %v1377 = vlaneseq
        %v1378 = vshrl.u32 %v1377, 7
        %v1379 = vsub.s32 2, %v1378
        %v1380 = vrot.slane %v1368, %v1379
        %vm1381 = vcmp.eq.s32.totalorder %v1372, 1
        %vm1382 = vcmp.eq.s32.totalorder %v1376, 1
        %vm1383 = vcmp.eq.s32.totalorder %v1380, 1
        %v1384 = vsel %vm1381, %v1360, 0.0
        %v1385 = vsel %vm1382, %v1361, 0.0
        %v1386 = vsel %vm1383, %v1362, 0.0
        %v1387 = vsel %vm1381, %v1363, 0.0
        %v1388 = vsel %vm1382, %v1364, 0.0
        %v1389 = vsel %vm1383, %v1365, 0.0
        %v1390 = vpack.c.bf16 %v1387, %v1384
        %v1391 = vpack.c.bf16 %v1388, %v1385
        %v1392 = vpack.c.bf16 %v1389, %v1386
        %v1396 = vunpack.c.l.b16 %v1390
        %v1397 = vunpack.c.l.b16 %v1391
        %v1398 = vunpack.c.l.b16 %v1392
        %v1399 = vunpack.c.h.b16 %v1390
        %v1400 = vunpack.c.h.b16 %v1391
        %v1401 = vunpack.c.h.b16 %v1392
        %v1402 = vpack.c.b16 %v1397, %v1396
        %v1403 = vpack.c.b16 %v1398, %v1398
        %v1404 = vpack.c.b16 %v1400, %v1399
        %v1405 = vpack.c.b16 %v1401, %v1401
        %1410 = vst [vmem:[%s255 + $0x4] sm:$0xff] %v1402
        %vm1411 = vcmask 551936
        %1412 = vst.msk [vmem:[%s255 + $0xc] sm:$0xf] %vm1411, %v1403
        %1413 = vst [vmem:[%s255 + $0x18] sm:$0xff] %v1404
        %1414 = vst.msk [vmem:[%s255 + $0x20] sm:$0xf] %vm1411, %v1405
        %1415 = vst [vmem:[%s255] sm:$0xf] 0
        %1416 = vst [vmem:[%s255 + $0x14] sm:$0xf] 0
        %vm1417 = vcmask 1044000
        %vm1418 = vcmask 556036
        %vm1419 = vmor %vm1418, %vm1417
        %1420 = vst.msk [vmem:[%s255 + $0xc] sm:$0xff] %vm1419, 0
        %1421 = vst.msk [vmem:[%s255 + $0x20] sm:$0xff] %vm1419, 0
        %s1422 = sand.u32 %s120, 1
        %s1423 = scalar_lea.sflag [#allocation4], %s1422
        %s1424 = sand.u32 %s120, 1
        %s1425 = smul.addr %s1424, 40
        %s1426 = scalar_lea.vmem [#allocation10], %s1425
        // Predicated region
        $region53: #{_lambda_.10} parent=35 // pred_check
          %p1427 = pneg %p130
        $region54: #{_lambda_.10} parent=35 // pred_check_branch
          %1429 = sbr.rel (%p1427) target = $region56
        $region55: #{_lambda_.10} parent=35 // pred_region
          %s1431 = ssub.s32 640, 640
          %1432 = vsyncadd %s1423, %s1431
          %s1433 = smul.addr %s23, 10
          %s1434 = smul.addr %s1433, 64
          %s1435 = scalar_lea.hbm %s4, %s1434
          %s1436 = sshll.u32 %s1426, 4
          %s1437 = int_to_ptr.vmem [resolvable:$true] %s1436
          %1442 = dma.vmem_to_hbm [thread:$0]  %s1437, 640, %s1435, %s1423, 320, 320, 20
        $region56: #{_lambda_.10} parent=35 // pred_fallthru
          _
      $region36: #{_lambda_.10} parent=5 // pred_fallthru
        _
      %p1443 = scmp.le.s32.totalorder 2, %s18
      // Predicated region
      $region57: #{_lambda_.10} parent=5 // pred_check
        %p1444 = pneg %p1443
      $region58: #{_lambda_.10} parent=5 // pred_check_branch
        %1446 = sbr.rel (%p1444) target = $region60
      $region59: #{_lambda_.10} parent=5 // pred_region
        %s1447 = ssub.s32 %s18, 2
        // Predicated region
        $region61: #{_lambda_.10} parent=59 // pred_check
          %p1448 = pneg %p136
        $region62: #{_lambda_.10} parent=59 // pred_check_branch
          %1450 = sbr.rel (%p1448) target = $region64
        $region63: #{_lambda_.10} parent=59 // pred_region
          %s1451 = sand.u32 %s121, 1
          %s1452 = scalar_lea.sflag [#allocation4], %s1451
          %s1453 = sand.u32 %s121, 1
          %s1454 = smul.addr %s1453, 40
          %s1455 = scalar_lea.vmem [#allocation10], %s1454
          %1456 = dma.done %s1452, 640
        $region64: #{_lambda_.10} parent=59 // pred_fallthru
          _
      $region60: #{_lambda_.10} parent=5 // pred_fallthru
        _
    $region6: #{_lambda_.10} parent=1 // loop_footer
      %s22 = sadd.s32 1, %s18
    $region7: #{_lambda_.10} parent=1 // loop_footer_branch
      %17 = sbr.rel target = $region3
    $region8: #{_lambda_.10} parent=1 // loop_exit
      _
    %1457 = vsyncpa [#allocation3], 1
    %s1458 = scalar_lea.sflag [#allocation3], 1
    %1459 = vsyncpa %s1458, 1
    %1460 = vsyncpa [#allocation6], 1
    %1461 = vsyncpa [#allocation9], 1
    %1462 = vsyncpa [#allocation4], 1
    %s1463 = scalar_lea.sflag [#allocation4], 1
    %1464 = vsyncpa %s1463, 1

// kernel: _lambda_.11
$region0: #{_lambda_.11}
  #allocation0 [shape = 'u32[]', space=smem, size = 0x4, offset = 0x4, fixed_abs, tag = 'smem constant byte address 0x4 - core index']
  #allocation1 [shape = 'u32[144,128]{1,0:T(1,128)}', space=vmem, size = 0x12000, scoped, tag = 'internal scratch']
  %s0 = inlined_call_operand.hbm [shape: bf16[2,16,580], index: 0, kind: input, shape index: {}]
  %s1 = inlined_call_operand.hbm [shape: bf16[9,16,16], index: 1, kind: input, shape index: {}]
  %s2 = inlined_call_operand.hbm [shape: f32[16,1], index: 2, kind: input, shape index: {}]
  %s3 = inlined_call_operand.hbm [shape: f32[1,324], index: 3, kind: input, shape index: {}]
  %s4 = inlined_call_operand.hbm [shape: bf16[2,16,580], index: 4, kind: output, shape index: {}]
  %s5 = sld [smem:[#allocation0]]
  $region65: #{_lambda_.11} parent=0
    _
  %s7 = ssub.s32 1, %s5
  %s8 = scalar_select 0, %s7, %s5
  $region1: #{_lambda_.11} parent=0
    #allocation2 [shape = 'u8[40960]{0}', space=vmem, size = 0xa000, scoped, tag = 'input window, operand 0']
    #allocation3 [shape = 's32[2]{0}', space=sflag, size = 0x8, scoped, tag = 'scoped memory for _lambda_.11']
    #allocation4 [shape = 's32[2]{0}', space=sflag, size = 0x8, scoped, tag = 'scoped memory for _lambda_.11']
    #allocation5 [shape = 'u8[36864]{0}', space=vmem, size = 0x9000, scoped, tag = 'input window, operand 1, single buffered']
    #allocation6 [shape = 's32[1]{0}', space=sflag, size = 0x4, scoped, tag = 'scoped memory for _lambda_.11']
    #allocation7 [shape = 'u8[8192]{0}', space=vmem, size = 0x2000, scoped, tag = 'input window, operand 2, single buffered']
    #allocation8 [shape = 'u8[1536]{0}', space=vmem, size = 0x800, scoped, tag = 'input window, operand 3, single buffered']
    #allocation9 [shape = 's32[1]{0}', space=sflag, size = 0x4, scoped, tag = 'scoped memory for _lambda_.11']
    #allocation10 [shape = 'u8[40960]{0}', space=vmem, size = 0xa000, scoped, tag = 'output window, operand 0']
    %9 = vsyncpa [#allocation3], 0
    %s10 = scalar_lea.sflag [#allocation3], 1
    %11 = vsyncpa %s10, 0
    %12 = vsyncpa [#allocation6], 0
    %13 = vsyncpa [#allocation9], 0
    %14 = vsyncpa [#allocation4], 0
    %s15 = scalar_lea.sflag [#allocation4], 1
    %16 = vsyncpa %s15, 0
    loop: start=0, step=1, limit=4
    $region2: #{_lambda_.11} parent=1 // loop_pre_header
      _
    $region3: #{_lambda_.11} parent=1 // loop_header
      %s18 = sphi 0, %s22
      %p19 = scmp.ge.s32.totalorder %s18, 4
      %s28 = sphi 0, %s30
      %s31 = sphi 0, %s28
      %s32 = sphi 0, %s31
      %s48 = sphi 0, %s32
      %s52 = sphi 0, %s52
      %s54 = sphi 0, %s52
      %s55 = sphi 0, %s54
      %s69 = sphi 0, %s55
      %s73 = sphi 0, %s73
      %s75 = sphi 0, %s73
      %s76 = sphi 0, %s75
      %s90 = sphi 0, %s76
      %s94 = sphi 0, %s94
      %s96 = sphi 0, %s94
      %s97 = sphi 0, %s96
      %s111 = sphi 0, %s97
      %s117 = sphi 0, %s119
      %s120 = sphi 0, %s117
      %s121 = sphi 0, %s120
      %s137 = sphi 0, %s121
    $region4: #{_lambda_.11} parent=1 // loop_header_branch
      %21 = sbr.rel (%p19) target = $region8
    $region5: #{_lambda_.11} parent=1 // loop_body
      %s23 = ssub.s32 %s18, 1
      %s24 = ssub.s32 %s18, 2
      %s25 = sadd.s32 %s18, 1
      %s26 = ssub.s32 %s18, %s25
      %p27 = scmp.eq.s32.totalorder %s26, 0
      %s29 = sadd.s32 %s28, 1
      %s30 = scalar_select %p27, %s28, %s29
      %p33 = pneg %p27
      %p34 = scmp.eq.s32.totalorder %s18, 1
      %p35 = por %p33, %p34
      %p36 = scmp.ne.s32.totalorder %s28, %s31
      %p37 = scmp.eq.s32.totalorder %s18, 0
      %p38 = por %p36, %p37
      %p39 = scmp.ne.s32.totalorder %s28, %s31
      %p40 = scmp.eq.s32.totalorder %s23, 1
      %p41 = por %p39, %p40
      %p42 = scmp.ne.s32.totalorder %s31, %s32
      %p43 = scmp.eq.s32.totalorder %s23, 0
      %p44 = por %p42, %p43
      %p45 = scmp.ne.s32.totalorder %s31, %s32
      %p46 = scmp.eq.s32.totalorder %s24, 1
      %p47 = por %p45, %p46
      %p49 = scmp.ne.s32.totalorder %s32, %s48
      %p50 = scmp.eq.s32.totalorder %s24, 0
      %p51 = por %p49, %p50
      %s53 = sadd.s32 %s52, 1
      %p56 = scmp.eq.s32.totalorder %s18, 1
      %p57 = scmp.ne.s32.totalorder %s52, %s54
      %p58 = scmp.eq.s32.totalorder %s18, 0
      %p59 = por %p57, %p58
      %p60 = scmp.ne.s32.totalorder %s52, %s54
      %p61 = scmp.eq.s32.totalorder %s23, 1
      %p62 = por %p60, %p61
      %p63 = scmp.ne.s32.totalorder %s54, %s55
      %p64 = scmp.eq.s32.totalorder %s23, 0
      %p65 = por %p63, %p64
      %p66 = scmp.ne.s32.totalorder %s54, %s55
      %p67 = scmp.eq.s32.totalorder %s24, 1
      %p68 = por %p66, %p67
      %p70 = scmp.ne.s32.totalorder %s55, %s69
      %p71 = scmp.eq.s32.totalorder %s24, 0
      %p72 = por %p70, %p71
      %s74 = sadd.s32 %s73, 1
      %p77 = scmp.eq.s32.totalorder %s18, 1
      %p78 = scmp.ne.s32.totalorder %s73, %s75
      %p79 = scmp.eq.s32.totalorder %s18, 0
      %p80 = por %p78, %p79
      %p81 = scmp.ne.s32.totalorder %s73, %s75
      %p82 = scmp.eq.s32.totalorder %s23, 1
      %p83 = por %p81, %p82
      %p84 = scmp.ne.s32.totalorder %s75, %s76
      %p85 = scmp.eq.s32.totalorder %s23, 0
      %p86 = por %p84, %p85
      %p87 = scmp.ne.s32.totalorder %s75, %s76
      %p88 = scmp.eq.s32.totalorder %s24, 1
      %p89 = por %p87, %p88
      %p91 = scmp.ne.s32.totalorder %s76, %s90
      %p92 = scmp.eq.s32.totalorder %s24, 0
      %p93 = por %p91, %p92
      %s95 = sadd.s32 %s94, 1
      %p98 = scmp.eq.s32.totalorder %s18, 1
      %p99 = scmp.ne.s32.totalorder %s94, %s96
      %p100 = scmp.eq.s32.totalorder %s18, 0
      %p101 = por %p99, %p100
      %p102 = scmp.ne.s32.totalorder %s94, %s96
      %p103 = scmp.eq.s32.totalorder %s23, 1
      %p104 = por %p102, %p103
      %p105 = scmp.ne.s32.totalorder %s96, %s97
      %p106 = scmp.eq.s32.totalorder %s23, 0
      %p107 = por %p105, %p106
      %p108 = scmp.ne.s32.totalorder %s96, %s97
      %p109 = scmp.eq.s32.totalorder %s24, 1
      %p110 = por %p108, %p109
      %p112 = scmp.ne.s32.totalorder %s97, %s111
      %p113 = scmp.eq.s32.totalorder %s24, 0
      %p114 = por %p112, %p113
      %s115 = ssub.s32 %s18, %s25
      %p116 = scmp.eq.s32.totalorder %s115, 0
      %s118 = sadd.s32 %s117, 1
      %s119 = scalar_select %p116, %s117, %s118
      %p122 = pneg %p116
      %p123 = scmp.eq.s32.totalorder %s18, 1
      %p124 = por %p122, %p123
      %p125 = scmp.ne.s32.totalorder %s117, %s120
      %p126 = scmp.eq.s32.totalorder %s18, 0
      %p127 = por %p125, %p126
      %p128 = scmp.ne.s32.totalorder %s117, %s120
      %p129 = scmp.eq.s32.totalorder %s23, 1
      %p130 = por %p128, %p129
      %p131 = scmp.ne.s32.totalorder %s120, %s121
      %p132 = scmp.eq.s32.totalorder %s23, 0
      %p133 = por %p131, %p132
      %p134 = scmp.ne.s32.totalorder %s120, %s121
      %p135 = scmp.eq.s32.totalorder %s24, 1
      %p136 = por %p134, %p135
      %p138 = scmp.ne.s32.totalorder %s121, %s137
      %p139 = scmp.eq.s32.totalorder %s24, 0
      %p140 = por %p138, %p139
      %p141 = scmp.le.s32.totalorder 1, %s18
      %p142 = scmp.lt.s32.totalorder %s18, 3
      %p143 = pnand %p141, %p142
      %p144 = pneg %p143
      // Predicated region
      $region9: #{_lambda_.11} parent=5 // pred_check
        _
      $region10: #{_lambda_.11} parent=5 // pred_check_branch
        %146 = sbr.rel (%p143) target = $region12
      $region11: #{_lambda_.11} parent=5 // pred_region
        %s147 = ssub.s32 %s18, 1
        // Predicated region
        $region13: #{_lambda_.11} parent=11 // pred_check
          %p148 = pneg %p65
        $region14: #{_lambda_.11} parent=11 // pred_check_branch
          %150 = sbr.rel (%p148) target = $region16
        $region15: #{_lambda_.11} parent=11 // pred_region
          %s152 = ssub.s32 1152, 1152
          %153 = vsyncadd [#allocation6], %s152
          %s154 = sshll.u32 [#allocation5], 4
          %s155 = int_to_ptr.vmem [resolvable:$true] %s154
          %160 = dma.hbm_to_vmem [thread:$0]  %s1, 1152, %s155, [#allocation6], 64, 64, 4
        $region16: #{_lambda_.11} parent=11 // pred_fallthru
          _
        // Predicated region
        $region17: #{_lambda_.11} parent=11 // pred_check
          %p161 = pneg %p86
        $region18: #{_lambda_.11} parent=11 // pred_check_branch
          %163 = sbr.rel (%p161) target = $region20
        $region19: #{_lambda_.11} parent=11 // pred_region
          %s165 = ssub.s32 256, 256
          %166 = vsyncadd [#allocation6], %s165
          %s167 = sshll.u32 [#allocation7], 4
          %s168 = int_to_ptr.vmem [resolvable:$true] %s167
          %173 = dma.hbm_to_vmem [thread:$0]  %s2, 256, %s168, [#allocation6], 128, 128, 8
        $region20: #{_lambda_.11} parent=11 // pred_fallthru
          _
        // Predicated region
        $region21: #{_lambda_.11} parent=11 // pred_check
          %p174 = pneg %p107
        $region22: #{_lambda_.11} parent=11 // pred_check_branch
          %176 = sbr.rel (%p174) target = $region24
        $region23: #{_lambda_.11} parent=11 // pred_region
          %s178 = ssub.s32 48, 48
          %179 = vsyncadd [#allocation9], %s178
          %s181 = sshll.u32 [#allocation8], 4
          %s182 = int_to_ptr.vmem [resolvable:$true] %s181
          %184 = dma.hbm_to_vmem [thread:$0]  %s3, 48, %s182, [#allocation9]
        $region24: #{_lambda_.11} parent=11 // pred_fallthru
          _
      $region12: #{_lambda_.11} parent=5 // pred_fallthru
        _
      %p185 = scmp.lt.s32.totalorder %s18, 2
      // Predicated region
      $region25: #{_lambda_.11} parent=5 // pred_check
        %p186 = pneg %p185
      $region26: #{_lambda_.11} parent=5 // pred_check_branch
        %188 = sbr.rel (%p186) target = $region28
      $region27: #{_lambda_.11} parent=5 // pred_region
        // Predicated region
        $region29: #{_lambda_.11} parent=27 // pred_check
          %p189 = pneg %p38
        $region30: #{_lambda_.11} parent=27 // pred_check_branch
          %191 = sbr.rel (%p189) target = $region32
        $region31: #{_lambda_.11} parent=27 // pred_region
          %s192 = sand.u32 %s28, 1
          %s193 = scalar_lea.sflag [#allocation3], %s192
          %s194 = sand.u32 %s28, 1
          %s195 = smul.addr %s194, 40
          %s196 = scalar_lea.vmem [#allocation2], %s195
          %s198 = ssub.s32 640, 640
          %199 = vsyncadd %s193, %s198
          %s200 = smul.addr %s18, 10
          %s201 = smul.addr %s200, 64
          %s202 = scalar_lea.hbm %s0, %s201
          %s203 = sshll.u32 %s196, 4
          %s204 = int_to_ptr.vmem [resolvable:$true] %s203
          %209 = dma.hbm_to_vmem [thread:$0]  %s202, 640, %s204, %s193, 320, 320, 20
        $region32: #{_lambda_.11} parent=27 // pred_fallthru
          _
      $region28: #{_lambda_.11} parent=5 // pred_fallthru
        _
      %p210 = scmp.le.s32.totalorder 1, %s18
      %p211 = scmp.lt.s32.totalorder %s18, 3
      %p212 = pnand %p210, %p211
      %p213 = pneg %p212
      // Predicated region
      $region33: #{_lambda_.11} parent=5 // pred_check
        _
      $region34: #{_lambda_.11} parent=5 // pred_check_branch
        %215 = sbr.rel (%p212) target = $region36
      $region35: #{_lambda_.11} parent=5 // pred_region
        %s216 = ssub.s32 %s18, 1
        %s217 = sand.u32 %s31, 1
        %s218 = scalar_lea.sflag [#allocation3], %s217
        %s219 = sand.u32 %s31, 1
        %s220 = smul.addr %s219, 40
        %s221 = scalar_lea.vmem [#allocation2], %s220
        // Predicated region
        $region37: #{_lambda_.11} parent=35 // pred_check
          %p222 = pneg %p44
        $region38: #{_lambda_.11} parent=35 // pred_check_branch
          %224 = sbr.rel (%p222) target = $region40
        $region39: #{_lambda_.11} parent=35 // pred_region
          %225 = dma.done %s218, 640
        $region40: #{_lambda_.11} parent=35 // pred_fallthru
          _
        // Predicated region
        $region41: #{_lambda_.11} parent=35 // pred_check
          %p226 = pneg %p65
        $region42: #{_lambda_.11} parent=35 // pred_check_branch
          %228 = sbr.rel (%p226) target = $region44
        $region43: #{_lambda_.11} parent=35 // pred_region
          %229 = dma.done [#allocation6], 1152
        $region44: #{_lambda_.11} parent=35 // pred_fallthru
          _
        // Predicated region
        $region45: #{_lambda_.11} parent=35 // pred_check
          %p230 = pneg %p86
        $region46: #{_lambda_.11} parent=35 // pred_check_branch
          %232 = sbr.rel (%p230) target = $region48
        $region47: #{_lambda_.11} parent=35 // pred_region
          %233 = dma.done [#allocation6], 256
        $region48: #{_lambda_.11} parent=35 // pred_fallthru
          _
        // Predicated region
        $region49: #{_lambda_.11} parent=35 // pred_check
          %p234 = pneg %p107
        $region50: #{_lambda_.11} parent=35 // pred_check_branch
          %236 = sbr.rel (%p234) target = $region52
        $region51: #{_lambda_.11} parent=35 // pred_region
          %237 = dma.done [#allocation9], 48
        $region52: #{_lambda_.11} parent=35 // pred_fallthru
          _
        %s238 = sand.u32 %s31, 1
        %s239 = scalar_lea.sflag [#allocation3], %s238
        %s240 = sand.u32 %s31, 1
        %s241 = smul.addr %s240, 40
        %s242 = scalar_lea.vmem [#allocation2], %s241
        %p243 = pneg %p44
        %p244 = pneg %p41
        %p245 = pneg %p65
        %p246 = pneg %p62
        %p247 = pneg %p86
        %p248 = pneg %p83
        %p249 = pneg %p107
        %p250 = pneg %p104
        %p251 = pneg %p133
        %p252 = pneg %p130
        %s253 = sand.u32 %s120, 1
        %s254 = scalar_lea.sflag [#allocation4], %s253
        %s255 = sand.u32 %s120, 1
        %s256 = smul.addr %s255, 40
        %s257 = scalar_lea.vmem [#allocation10], %s256
        %v259 = vld [vmem:[#allocation5] sm:$0xf]
        %v260 = vld [vmem:[#allocation5 + $0x4] sm:$0xf]
        %v261 = vld [vmem:[%s221] sm:$0xff]
        %v262 = vld [vmem:[%s221 + $0x8] sm:$0xff]
        %v263 = vld [vmem:[%s221 + $0x14] sm:$0xff]
        %v264 = vld [vmem:[%s221 + $0x1c] sm:$0xff]
        %s265 = scalar_lea.vmem [#allocation5], 8
        %v266 = vld [vmem:[%s265] sm:$0xf]
        %v267 = vld [vmem:[%s265 + $0x4] sm:$0xf]
        %v270 = vunpack.c.l.b16 %v266
        %v271 = vunpack.c.l.b16 %v267
        %v272 = vpack.c.b16 %v271, %v270
        %v277 = vunpack.c.l.b16 %v261
        %v278 = vunpack.c.h.b16 %v261
        %v279 = vunpack.c.l.b16 %v262
        %v280 = vunpack.c.h.b16 %v262
        %v281 = vunpack.c.l.b16 %v263
        %v282 = vunpack.c.h.b16 %v263
        %v283 = vunpack.c.l.b16 %v264
        %v284 = vunpack.c.h.b16 %v264
        %v285 = vpack.c.b16 %v281, %v277
        %v286 = vpack.c.b16 %v282, %v278
        %v287 = vpack.c.b16 %v283, %v279
        %v288 = vpack.c.b16 %v284, %v280
        %289 = vrot.lane.b32.xlu0 %v285, 18
        %v290 = vpop.permute.xlu0 %289
        %291 = vrot.lane.b32.xlu0 %v286, 18
        %v292 = vpop.permute.xlu0 %291
        %293 = vrot.lane.b32.xlu0 %v287, 18
        %v294 = vpop.permute.xlu0 %293
        %295 = vrot.lane.b32.xlu0 %v288, 18
        %v296 = vpop.permute.xlu0 %295
        %vm297 = vcmask 146432
        %v298 = vsel %vm297, %v290, %v292
        %v299 = vsel %vm297, %v292, %v294
        %v300 = vsel %vm297, %v294, %v296
        %vm304 = vcmask 130048
        %v306 = vsel %vm304, %v272, 0
        %308 = vmatprep.subr.bf16.mxu0 %v299
        %309 = vmatpush1.bf16.msra.mxu0 %v298
        %310 = vmatprep.subr.bf16.mxu0 0
        %311 = vmatpush1.bf16.msra.mxu0 0
        %312 = vmatprep.subr.bf16.mxu0 0
        %313 = vmatpush1.bf16.msra.mxu0 0
        %314 = vmatprep.subr.bf16.mxu0 0
        %315 = vmatpush1.bf16.msra.mxu0 0
        %316 = vmatprep.subr.bf16.mxu0 0
        %317 = vmatpush1.bf16.msra.mxu0 0
        %318 = vmatprep.subr.bf16.mxu0 0
        %319 = vmatpush1.bf16.msra.mxu0 0
        %320 = vmatprep.subr.bf16.mxu0 0
        %321 = vmatpush1.bf16.msra.mxu0 0
        %322 = vmatprep.subr.bf16.mxu0 0
        %323 = vmatpush1.bf16.msra.mxu0 0
        %324 = vmatprep.subr.bf16.mxu0 0
        %325 = vmatpush1.bf16.msra.mxu0 0
        %326 = vmatprep.subr.bf16.mxu0 0
        %327 = vmatpush1.bf16.msra.mxu0 0
        %328 = vmatprep.subr.bf16.mxu0 0
        %329 = vmatpush1.bf16.msra.mxu0 0
        %330 = vmatprep.subr.bf16.mxu0 0
        %331 = vmatpush1.bf16.msra.mxu0 0
        %332 = vmatprep.subr.bf16.mxu0 0
        %333 = vmatpush1.bf16.msra.mxu0 0
        %334 = vmatprep.subr.bf16.mxu0 0
        %335 = vmatpush1.bf16.msra.mxu0 0
        %336 = vmatprep.subr.bf16.mxu0 0
        %337 = vmatpush1.bf16.msra.mxu0 0
        %338 = vmatprep.subr.bf16.mxu0 0
        %339 = vmatpush1.bf16.msra.mxu0 0
        %340 = vmatprep.mubr.bf16.mxu0 0
        %341 = vmatmul.mubr.bf16.gmra.mrb[0].mxu0 %v306
        %v342 = vpop.f32.mrb[0].mxu0
        %v343 = vadd.f32 0.0, %v342
        %v344 = vpop.f32.mrb[0].mxu0
        %v345 = vadd.f32 0.0, %v344
        %v346 = vpop.f32.mrb[0].mxu0
        %v347 = vadd.f32 0.0, %v346
        %v348 = vpop.f32.mrb[0].mxu0
        %v349 = vadd.f32 0.0, %v348
        %350 = vdwg.mxu0
        %351 = vmatprep.subr.bf16.mxu0 0
        %352 = vmatpush1.bf16.msra.mxu0 %v300
        %353 = vmatprep.subr.bf16.mxu0 0
        %354 = vmatpush1.bf16.msra.mxu0 0
        %355 = vmatprep.subr.bf16.mxu0 0
        %356 = vmatpush1.bf16.msra.mxu0 0
        %357 = vmatprep.subr.bf16.mxu0 0
        %358 = vmatpush1.bf16.msra.mxu0 0
        %359 = vmatprep.subr.bf16.mxu0 0
        %360 = vmatpush1.bf16.msra.mxu0 0
        %361 = vmatprep.subr.bf16.mxu0 0
        %362 = vmatpush1.bf16.msra.mxu0 0
        %363 = vmatprep.subr.bf16.mxu0 0
        %364 = vmatpush1.bf16.msra.mxu0 0
        %365 = vmatprep.subr.bf16.mxu0 0
        %366 = vmatpush1.bf16.msra.mxu0 0
        %367 = vmatprep.subr.bf16.mxu0 0
        %368 = vmatpush1.bf16.msra.mxu0 0
        %369 = vmatprep.subr.bf16.mxu0 0
        %370 = vmatpush1.bf16.msra.mxu0 0
        %371 = vmatprep.subr.bf16.mxu0 0
        %372 = vmatpush1.bf16.msra.mxu0 0
        %373 = vmatprep.subr.bf16.mxu0 0
        %374 = vmatpush1.bf16.msra.mxu0 0
        %375 = vmatprep.subr.bf16.mxu0 0
        %376 = vmatpush1.bf16.msra.mxu0 0
        %377 = vmatprep.subr.bf16.mxu0 0
        %378 = vmatpush1.bf16.msra.mxu0 0
        %379 = vmatprep.subr.bf16.mxu0 0
        %380 = vmatpush1.bf16.msra.mxu0 0
        %381 = vmatprep.subr.bf16.mxu0 0
        %382 = vmatpush1.bf16.msra.mxu0 0
        %383 = vmatprep.mubr.bf16.mxu0 0
        %384 = vmatmul.mubr.bf16.gmra.mrb[0].mxu0 %v306
        %v385 = vpop.f32.mrb[0].mxu0
        %v386 = vadd.f32 0.0, %v385
        %v387 = vpop.f32.mrb[0].mxu0
        %v388 = vpop.f32.mrb[0].mxu0
        %v389 = vadd.f32 0.0, %v388
        %v390 = vpop.f32.mrb[0].mxu0
        %391 = vdwg.mxu0
        %v394 = vunpack.c.l.b16 %v259
        %v395 = vunpack.c.l.b16 %v260
        %v396 = vpack.c.b16 %v395, %v394
        %397 = vrot.lane.b32.xlu0 %v285, 19
        %v398 = vpop.permute.xlu0 %397
        %399 = vrot.lane.b32.xlu0 %v286, 19
        %v400 = vpop.permute.xlu0 %399
        %401 = vrot.lane.b32.xlu0 %v287, 19
        %v402 = vpop.permute.xlu0 %401
        %403 = vrot.lane.b32.xlu0 %v288, 19
        %v404 = vpop.permute.xlu0 %403
        %vm405 = vcmask 154624
        %v406 = vsel %vm405, %v398, %v400
        %v407 = vsel %vm405, %v400, %v402
        %v408 = vsel %vm405, %v402, %v404
        %v413 = vsel %vm304, %v396, 0
        %415 = vmatprep.subr.bf16.mxu0 %v407
        %416 = vmatpush1.bf16.msra.mxu0 %v406
        %417 = vmatprep.subr.bf16.mxu0 0
        %418 = vmatpush1.bf16.msra.mxu0 0
        %419 = vmatprep.subr.bf16.mxu0 0
        %420 = vmatpush1.bf16.msra.mxu0 0
        %421 = vmatprep.subr.bf16.mxu0 0
        %422 = vmatpush1.bf16.msra.mxu0 0
        %423 = vmatprep.subr.bf16.mxu0 0
        %424 = vmatpush1.bf16.msra.mxu0 0
        %425 = vmatprep.subr.bf16.mxu0 0
        %426 = vmatpush1.bf16.msra.mxu0 0
        %427 = vmatprep.subr.bf16.mxu0 0
        %428 = vmatpush1.bf16.msra.mxu0 0
        %429 = vmatprep.subr.bf16.mxu0 0
        %430 = vmatpush1.bf16.msra.mxu0 0
        %431 = vmatprep.subr.bf16.mxu0 0
        %432 = vmatpush1.bf16.msra.mxu0 0
        %433 = vmatprep.subr.bf16.mxu0 0
        %434 = vmatpush1.bf16.msra.mxu0 0
        %435 = vmatprep.subr.bf16.mxu0 0
        %436 = vmatpush1.bf16.msra.mxu0 0
        %437 = vmatprep.subr.bf16.mxu0 0
        %438 = vmatpush1.bf16.msra.mxu0 0
        %439 = vmatprep.subr.bf16.mxu0 0
        %440 = vmatpush1.bf16.msra.mxu0 0
        %441 = vmatprep.subr.bf16.mxu0 0
        %442 = vmatpush1.bf16.msra.mxu0 0
        %443 = vmatprep.subr.bf16.mxu0 0
        %444 = vmatpush1.bf16.msra.mxu0 0
        %445 = vmatprep.subr.bf16.mxu0 0
        %446 = vmatpush1.bf16.msra.mxu0 0
        %447 = vmatprep.mubr.bf16.mxu0 0
        %448 = vmatmul.mubr.bf16.gmra.mrb[0].mxu0 %v413
        %v449 = vpop.f32.mrb[0].mxu0
        %v450 = vadd.f32 %v343, %v449
        %v451 = vpop.f32.mrb[0].mxu0
        %v452 = vadd.f32 %v345, %v451
        %v453 = vpop.f32.mrb[0].mxu0
        %v454 = vadd.f32 %v347, %v453
        %v455 = vpop.f32.mrb[0].mxu0
        %v456 = vadd.f32 %v349, %v455
        %457 = vdwg.mxu0
        %458 = vmatprep.subr.bf16.mxu0 0
        %459 = vmatpush1.bf16.msra.mxu0 %v408
        %460 = vmatprep.subr.bf16.mxu0 0
        %461 = vmatpush1.bf16.msra.mxu0 0
        %462 = vmatprep.subr.bf16.mxu0 0
        %463 = vmatpush1.bf16.msra.mxu0 0
        %464 = vmatprep.subr.bf16.mxu0 0
        %465 = vmatpush1.bf16.msra.mxu0 0
        %466 = vmatprep.subr.bf16.mxu0 0
        %467 = vmatpush1.bf16.msra.mxu0 0
        %468 = vmatprep.subr.bf16.mxu0 0
        %469 = vmatpush1.bf16.msra.mxu0 0
        %470 = vmatprep.subr.bf16.mxu0 0
        %471 = vmatpush1.bf16.msra.mxu0 0
        %472 = vmatprep.subr.bf16.mxu0 0
        %473 = vmatpush1.bf16.msra.mxu0 0
        %474 = vmatprep.subr.bf16.mxu0 0
        %475 = vmatpush1.bf16.msra.mxu0 0
        %476 = vmatprep.subr.bf16.mxu0 0
        %477 = vmatpush1.bf16.msra.mxu0 0
        %478 = vmatprep.subr.bf16.mxu0 0
        %479 = vmatpush1.bf16.msra.mxu0 0
        %480 = vmatprep.subr.bf16.mxu0 0
        %481 = vmatpush1.bf16.msra.mxu0 0
        %482 = vmatprep.subr.bf16.mxu0 0
        %483 = vmatpush1.bf16.msra.mxu0 0
        %484 = vmatprep.subr.bf16.mxu0 0
        %485 = vmatpush1.bf16.msra.mxu0 0
        %486 = vmatprep.subr.bf16.mxu0 0
        %487 = vmatpush1.bf16.msra.mxu0 0
        %488 = vmatprep.subr.bf16.mxu0 0
        %489 = vmatpush1.bf16.msra.mxu0 0
        %490 = vmatprep.mubr.bf16.mxu0 0
        %491 = vmatmul.mubr.bf16.gmra.mrb[0].mxu0 %v413
        %v492 = vpop.f32.mrb[0].mxu0
        %v493 = vadd.f32 %v386, %v492
        %v494 = vpop.f32.mrb[0].mxu0
        %v495 = vpop.f32.mrb[0].mxu0
        %v496 = vadd.f32 %v389, %v495
        %v497 = vpop.f32.mrb[0].mxu0
        %498 = vdwg.mxu0
        %s499 = scalar_lea.vmem [#allocation5], 16
        %v500 = vld [vmem:[%s499] sm:$0xf]
        %v501 = vld [vmem:[%s499 + $0x4] sm:$0xf]
        %v504 = vunpack.c.l.b16 %v500
        %v505 = vunpack.c.l.b16 %v501
        %v506 = vpack.c.b16 %v505, %v504
        %507 = vrot.lane.b32.xlu0 %v285, 17
        %v508 = vpop.permute.xlu0 %507
        %509 = vrot.lane.b32.xlu0 %v286, 17
        %v510 = vpop.permute.xlu0 %509
        %511 = vrot.lane.b32.xlu0 %v287, 17
        %v512 = vpop.permute.xlu0 %511
        %513 = vrot.lane.b32.xlu0 %v288, 17
        %v514 = vpop.permute.xlu0 %513
        %vm515 = vcmask 138240
        %v516 = vsel %vm515, %v508, %v510
        %v517 = vsel %vm515, %v510, %v512
        %v518 = vsel %vm515, %v512, %v514
        %v523 = vsel %vm304, %v506, 0
        %525 = vmatprep.subr.bf16.mxu0 %v517
        %526 = vmatpush1.bf16.msra.mxu0 %v516
        %527 = vmatprep.subr.bf16.mxu0 0
        %528 = vmatpush1.bf16.msra.mxu0 0
        %529 = vmatprep.subr.bf16.mxu0 0
        %530 = vmatpush1.bf16.msra.mxu0 0
        %531 = vmatprep.subr.bf16.mxu0 0
        %532 = vmatpush1.bf16.msra.mxu0 0
        %533 = vmatprep.subr.bf16.mxu0 0
        %534 = vmatpush1.bf16.msra.mxu0 0
        %535 = vmatprep.subr.bf16.mxu0 0
        %536 = vmatpush1.bf16.msra.mxu0 0
        %537 = vmatprep.subr.bf16.mxu0 0
        %538 = vmatpush1.bf16.msra.mxu0 0
        %539 = vmatprep.subr.bf16.mxu0 0
        %540 = vmatpush1.bf16.msra.mxu0 0
        %541 = vmatprep.subr.bf16.mxu0 0
        %542 = vmatpush1.bf16.msra.mxu0 0
        %543 = vmatprep.subr.bf16.mxu0 0
        %544 = vmatpush1.bf16.msra.mxu0 0
        %545 = vmatprep.subr.bf16.mxu0 0
        %546 = vmatpush1.bf16.msra.mxu0 0
        %547 = vmatprep.subr.bf16.mxu0 0
        %548 = vmatpush1.bf16.msra.mxu0 0
        %549 = vmatprep.subr.bf16.mxu0 0
        %550 = vmatpush1.bf16.msra.mxu0 0
        %551 = vmatprep.subr.bf16.mxu0 0
        %552 = vmatpush1.bf16.msra.mxu0 0
        %553 = vmatprep.subr.bf16.mxu0 0
        %554 = vmatpush1.bf16.msra.mxu0 0
        %555 = vmatprep.subr.bf16.mxu0 0
        %556 = vmatpush1.bf16.msra.mxu0 0
        %557 = vmatprep.mubr.bf16.mxu0 0
        %558 = vmatmul.mubr.bf16.gmra.mrb[0].mxu0 %v523
        %v559 = vpop.f32.mrb[0].mxu0
        %v560 = vadd.f32 0.0, %v559
        %v561 = vpop.f32.mrb[0].mxu0
        %v562 = vadd.f32 0.0, %v561
        %v563 = vpop.f32.mrb[0].mxu0
        %v564 = vadd.f32 0.0, %v563
        %v565 = vpop.f32.mrb[0].mxu0
        %v566 = vadd.f32 0.0, %v565
        %567 = vdwg.mxu0
        %568 = vmatprep.subr.bf16.mxu0 0
        %569 = vmatpush1.bf16.msra.mxu0 %v518
        %570 = vmatprep.subr.bf16.mxu0 0
        %571 = vmatpush1.bf16.msra.mxu0 0
        %572 = vmatprep.subr.bf16.mxu0 0
        %573 = vmatpush1.bf16.msra.mxu0 0
        %574 = vmatprep.subr.bf16.mxu0 0
        %575 = vmatpush1.bf16.msra.mxu0 0
        %576 = vmatprep.subr.bf16.mxu0 0
        %577 = vmatpush1.bf16.msra.mxu0 0
        %578 = vmatprep.subr.bf16.mxu0 0
        %579 = vmatpush1.bf16.msra.mxu0 0
        %580 = vmatprep.subr.bf16.mxu0 0
        %581 = vmatpush1.bf16.msra.mxu0 0
        %582 = vmatprep.subr.bf16.mxu0 0
        %583 = vmatpush1.bf16.msra.mxu0 0
        %584 = vmatprep.subr.bf16.mxu0 0
        %585 = vmatpush1.bf16.msra.mxu0 0
        %586 = vmatprep.subr.bf16.mxu0 0
        %587 = vmatpush1.bf16.msra.mxu0 0
        %588 = vmatprep.subr.bf16.mxu0 0
        %589 = vmatpush1.bf16.msra.mxu0 0
        %590 = vmatprep.subr.bf16.mxu0 0
        %591 = vmatpush1.bf16.msra.mxu0 0
        %592 = vmatprep.subr.bf16.mxu0 0
        %593 = vmatpush1.bf16.msra.mxu0 0
        %594 = vmatprep.subr.bf16.mxu0 0
        %595 = vmatpush1.bf16.msra.mxu0 0
        %596 = vmatprep.subr.bf16.mxu0 0
        %597 = vmatpush1.bf16.msra.mxu0 0
        %598 = vmatprep.subr.bf16.mxu0 0
        %599 = vmatpush1.bf16.msra.mxu0 0
        %600 = vmatprep.mubr.bf16.mxu0 0
        %601 = vmatmul.mubr.bf16.gmra.mrb[0].mxu0 %v523
        %v602 = vpop.f32.mrb[0].mxu0
        %v603 = vadd.f32 0.0, %v602
        %v604 = vpop.f32.mrb[0].mxu0
        %v605 = vpop.f32.mrb[0].mxu0
        %v606 = vadd.f32 0.0, %v605
        %v607 = vpop.f32.mrb[0].mxu0
        %608 = vdwg.mxu0
        %v609 = vadd.f32 %v450, %v560
        %v610 = vadd.f32 %v452, %v562
        %v611 = vadd.f32 %v493, %v603
        %v612 = vadd.f32 %v454, %v564
        %v613 = vadd.f32 %v456, %v566
        %v614 = vadd.f32 %v496, %v606
        %s615 = scalar_lea.vmem [#allocation5], 24
        %v616 = vld [vmem:[%s615] sm:$0xf]
        %v617 = vld [vmem:[%s615 + $0x4] sm:$0xf]
        %v620 = vunpack.c.l.b16 %v616
        %v621 = vunpack.c.l.b16 %v617
        %v622 = vpack.c.b16 %v621, %v620
        %623 = vrot.lane.b32.xlu0 %v285, 1
        %v624 = vpop.permute.xlu0 %623
        %625 = vrot.lane.b32.xlu0 %v286, 1
        %v626 = vpop.permute.xlu0 %625
        %627 = vrot.lane.b32.xlu0 %v287, 1
        %v628 = vpop.permute.xlu0 %627
        %629 = vrot.lane.b32.xlu0 %v288, 1
        %v630 = vpop.permute.xlu0 %629
        %vm631 = vcmask 7168
        %v632 = vsel %vm631, %v624, %v626
        %v633 = vsel %vm631, %v626, %v628
        %v634 = vsel %vm631, %v628, %v630
        %v639 = vsel %vm304, %v622, 0
        %641 = vmatprep.subr.bf16.mxu0 %v633
        %642 = vmatpush1.bf16.msra.mxu0 %v632
        %643 = vmatprep.subr.bf16.mxu0 0
        %644 = vmatpush1.bf16.msra.mxu0 0
        %645 = vmatprep.subr.bf16.mxu0 0
        %646 = vmatpush1.bf16.msra.mxu0 0
        %647 = vmatprep.subr.bf16.mxu0 0
        %648 = vmatpush1.bf16.msra.mxu0 0
        %649 = vmatprep.subr.bf16.mxu0 0
        %650 = vmatpush1.bf16.msra.mxu0 0
        %651 = vmatprep.subr.bf16.mxu0 0
        %652 = vmatpush1.bf16.msra.mxu0 0
        %653 = vmatprep.subr.bf16.mxu0 0
        %654 = vmatpush1.bf16.msra.mxu0 0
        %655 = vmatprep.subr.bf16.mxu0 0
        %656 = vmatpush1.bf16.msra.mxu0 0
        %657 = vmatprep.subr.bf16.mxu0 0
        %658 = vmatpush1.bf16.msra.mxu0 0
        %659 = vmatprep.subr.bf16.mxu0 0
        %660 = vmatpush1.bf16.msra.mxu0 0
        %661 = vmatprep.subr.bf16.mxu0 0
        %662 = vmatpush1.bf16.msra.mxu0 0
        %663 = vmatprep.subr.bf16.mxu0 0
        %664 = vmatpush1.bf16.msra.mxu0 0
        %665 = vmatprep.subr.bf16.mxu0 0
        %666 = vmatpush1.bf16.msra.mxu0 0
        %667 = vmatprep.subr.bf16.mxu0 0
        %668 = vmatpush1.bf16.msra.mxu0 0
        %669 = vmatprep.subr.bf16.mxu0 0
        %670 = vmatpush1.bf16.msra.mxu0 0
        %671 = vmatprep.subr.bf16.mxu0 0
        %672 = vmatpush1.bf16.msra.mxu0 0
        %673 = vmatprep.mubr.bf16.mxu0 0
        %674 = vmatmul.mubr.bf16.gmra.mrb[0].mxu0 %v639
        %v675 = vpop.f32.mrb[0].mxu0
        %v676 = vadd.f32 0.0, %v675
        %v677 = vpop.f32.mrb[0].mxu0
        %v678 = vadd.f32 0.0, %v677
        %v679 = vpop.f32.mrb[0].mxu0
        %v680 = vadd.f32 0.0, %v679
        %v681 = vpop.f32.mrb[0].mxu0
        %v682 = vadd.f32 0.0, %v681
        %683 = vdwg.mxu0
        %684 = vmatprep.subr.bf16.mxu0 0
        %685 = vmatpush1.bf16.msra.mxu0 %v634
        %686 = vmatprep.subr.bf16.mxu0 0
        %687 = vmatpush1.bf16.msra.mxu0 0
        %688 = vmatprep.subr.bf16.mxu0 0
        %689 = vmatpush1.bf16.msra.mxu0 0
        %690 = vmatprep.subr.bf16.mxu0 0
        %691 = vmatpush1.bf16.msra.mxu0 0
        %692 = vmatprep.subr.bf16.mxu0 0
        %693 = vmatpush1.bf16.msra.mxu0 0
        %694 = vmatprep.subr.bf16.mxu0 0
        %695 = vmatpush1.bf16.msra.mxu0 0
        %696 = vmatprep.subr.bf16.mxu0 0
        %697 = vmatpush1.bf16.msra.mxu0 0
        %698 = vmatprep.subr.bf16.mxu0 0
        %699 = vmatpush1.bf16.msra.mxu0 0
        %700 = vmatprep.subr.bf16.mxu0 0
        %701 = vmatpush1.bf16.msra.mxu0 0
        %702 = vmatprep.subr.bf16.mxu0 0
        %703 = vmatpush1.bf16.msra.mxu0 0
        %704 = vmatprep.subr.bf16.mxu0 0
        %705 = vmatpush1.bf16.msra.mxu0 0
        %706 = vmatprep.subr.bf16.mxu0 0
        %707 = vmatpush1.bf16.msra.mxu0 0
        %708 = vmatprep.subr.bf16.mxu0 0
        %709 = vmatpush1.bf16.msra.mxu0 0
        %710 = vmatprep.subr.bf16.mxu0 0
        %711 = vmatpush1.bf16.msra.mxu0 0
        %712 = vmatprep.subr.bf16.mxu0 0
        %713 = vmatpush1.bf16.msra.mxu0 0
        %714 = vmatprep.subr.bf16.mxu0 0
        %715 = vmatpush1.bf16.msra.mxu0 0
        %716 = vmatprep.mubr.bf16.mxu0 0
        %717 = vmatmul.mubr.bf16.gmra.mrb[0].mxu0 %v639
        %v718 = vpop.f32.mrb[0].mxu0
        %v719 = vadd.f32 0.0, %v718
        %v720 = vpop.f32.mrb[0].mxu0
        %v721 = vpop.f32.mrb[0].mxu0
        %v722 = vadd.f32 0.0, %v721
        %v723 = vpop.f32.mrb[0].mxu0
        %724 = vdwg.mxu0
        %v725 = vadd.f32 %v609, %v676
        %v726 = vadd.f32 %v610, %v678
        %v727 = vadd.f32 %v611, %v719
        %v728 = vadd.f32 %v612, %v680
        %v729 = vadd.f32 %v613, %v682
        %v730 = vadd.f32 %v614, %v722
        %s731 = scalar_lea.vmem [#allocation5], 32
        %v732 = vld [vmem:[%s731] sm:$0xf]
        %v733 = vld [vmem:[%s731 + $0x4] sm:$0xf]
        %v734 = vld [vmem:[%s221 + $0x4] sm:$0xff]
        %v735 = vld [vmem:[%s221 + $0xc] sm:$0xf]
        %v736 = vld [vmem:[%s221 + $0x18] sm:$0xff]
        %v737 = vld [vmem:[%s221 + $0x20] sm:$0xf]
        %v740 = vunpack.c.l.b16 %v732
        %v741 = vunpack.c.l.b16 %v733
        %v742 = vpack.c.b16 %v741, %v740
        %v747 = vunpack.c.l.b16 %v734
        %v748 = vunpack.c.h.b16 %v734
        %v749 = vunpack.c.l.b16 %v735
        %v750 = vunpack.c.l.b16 %v736
        %v751 = vunpack.c.h.b16 %v736
        %v752 = vunpack.c.l.b16 %v737
        %v753 = vpack.c.b16 %v750, %v747
        %v754 = vpack.c.b16 %v751, %v748
        %v755 = vpack.c.b16 %v752, %v749
        %v760 = vsel %vm304, %v742, 0
        %762 = vmatprep.subr.bf16.mxu0 %v754
        %763 = vmatpush1.bf16.msra.mxu0 %v753
        %764 = vmatprep.subr.bf16.mxu0 0
        %765 = vmatpush1.bf16.msra.mxu0 0
        %766 = vmatprep.subr.bf16.mxu0 0
        %767 = vmatpush1.bf16.msra.mxu0 0
        %768 = vmatprep.subr.bf16.mxu0 0
        %769 = vmatpush1.bf16.msra.mxu0 0
        %770 = vmatprep.subr.bf16.mxu0 0
        %771 = vmatpush1.bf16.msra.mxu0 0
        %772 = vmatprep.subr.bf16.mxu0 0
        %773 = vmatpush1.bf16.msra.mxu0 0
        %774 = vmatprep.subr.bf16.mxu0 0
        %775 = vmatpush1.bf16.msra.mxu0 0
        %776 = vmatprep.subr.bf16.mxu0 0
        %777 = vmatpush1.bf16.msra.mxu0 0
        %778 = vmatprep.subr.bf16.mxu0 0
        %779 = vmatpush1.bf16.msra.mxu0 0
        %780 = vmatprep.subr.bf16.mxu0 0
        %781 = vmatpush1.bf16.msra.mxu0 0
        %782 = vmatprep.subr.bf16.mxu0 0
        %783 = vmatpush1.bf16.msra.mxu0 0
        %784 = vmatprep.subr.bf16.mxu0 0
        %785 = vmatpush1.bf16.msra.mxu0 0
        %786 = vmatprep.subr.bf16.mxu0 0
        %787 = vmatpush1.bf16.msra.mxu0 0
        %788 = vmatprep.subr.bf16.mxu0 0
        %789 = vmatpush1.bf16.msra.mxu0 0
        %790 = vmatprep.subr.bf16.mxu0 0
        %791 = vmatpush1.bf16.msra.mxu0 0
        %792 = vmatprep.subr.bf16.mxu0 0
        %793 = vmatpush1.bf16.msra.mxu0 0
        %794 = vmatprep.mubr.bf16.mxu0 0
        %795 = vmatmul.mubr.bf16.gmra.mrb[0].mxu0 %v760
        %v796 = vpop.f32.mrb[0].mxu0
        %v797 = vadd.f32 0.0, %v796
        %v798 = vpop.f32.mrb[0].mxu0
        %v799 = vadd.f32 0.0, %v798
        %v800 = vpop.f32.mrb[0].mxu0
        %v801 = vadd.f32 0.0, %v800
        %v802 = vpop.f32.mrb[0].mxu0
        %v803 = vadd.f32 0.0, %v802
        %804 = vdwg.mxu0
        %805 = vmatprep.subr.bf16.mxu0 0
        %806 = vmatpush1.bf16.msra.mxu0 %v755
        %807 = vmatprep.subr.bf16.mxu0 0
        %808 = vmatpush1.bf16.msra.mxu0 0
        %809 = vmatprep.subr.bf16.mxu0 0
        %810 = vmatpush1.bf16.msra.mxu0 0
        %811 = vmatprep.subr.bf16.mxu0 0
        %812 = vmatpush1.bf16.msra.mxu0 0
        %813 = vmatprep.subr.bf16.mxu0 0
        %814 = vmatpush1.bf16.msra.mxu0 0
        %815 = vmatprep.subr.bf16.mxu0 0
        %816 = vmatpush1.bf16.msra.mxu0 0
        %817 = vmatprep.subr.bf16.mxu0 0
        %818 = vmatpush1.bf16.msra.mxu0 0
        %819 = vmatprep.subr.bf16.mxu0 0
        %820 = vmatpush1.bf16.msra.mxu0 0
        %821 = vmatprep.subr.bf16.mxu0 0
        %822 = vmatpush1.bf16.msra.mxu0 0
        %823 = vmatprep.subr.bf16.mxu0 0
        %824 = vmatpush1.bf16.msra.mxu0 0
        %825 = vmatprep.subr.bf16.mxu0 0
        %826 = vmatpush1.bf16.msra.mxu0 0
        %827 = vmatprep.subr.bf16.mxu0 0
        %828 = vmatpush1.bf16.msra.mxu0 0
        %829 = vmatprep.subr.bf16.mxu0 0
        %830 = vmatpush1.bf16.msra.mxu0 0
        %831 = vmatprep.subr.bf16.mxu0 0
        %832 = vmatpush1.bf16.msra.mxu0 0
        %833 = vmatprep.subr.bf16.mxu0 0
        %834 = vmatpush1.bf16.msra.mxu0 0
        %835 = vmatprep.subr.bf16.mxu0 0
        %836 = vmatpush1.bf16.msra.mxu0 0
        %837 = vmatprep.mubr.bf16.mxu0 0
        %838 = vmatmul.mubr.bf16.gmra.mrb[0].mxu0 %v760
        %v839 = vpop.f32.mrb[0].mxu0
        %v840 = vadd.f32 0.0, %v839
        %v841 = vpop.f32.mrb[0].mxu0
        %v842 = vpop.f32.mrb[0].mxu0
        %v843 = vadd.f32 0.0, %v842
        %v844 = vpop.f32.mrb[0].mxu0
        %845 = vdwg.mxu0
        %v846 = vadd.f32 %v725, %v797
        %v847 = vadd.f32 %v726, %v799
        %v848 = vadd.f32 %v727, %v840
        %v849 = vadd.f32 %v728, %v801
        %v850 = vadd.f32 %v729, %v803
        %v851 = vadd.f32 %v730, %v843
        %s852 = scalar_lea.vmem [#allocation5], 40
        %v853 = vld [vmem:[%s852] sm:$0xf]
        %v854 = vld [vmem:[%s852 + $0x4] sm:$0xf]
        %v857 = vunpack.c.l.b16 %v853
        %v858 = vunpack.c.l.b16 %v854
        %v859 = vpack.c.b16 %v858, %v857
        %860 = vrot.lane.b32.xlu0 %v753, 127
        %v861 = vpop.permute.xlu0 %860
        %862 = vrot.lane.b32.xlu0 %v754, 127
        %v863 = vpop.permute.xlu0 %862
        %864 = vrot.lane.b32.xlu0 %v755, 127
        %v865 = vpop.permute.xlu0 %864
        %vm866 = vcmask 1039360
        %v867 = vsel %vm866, %v861, %v863
        %v868 = vsel %vm866, %v863, %v865
        %v873 = vsel %vm304, %v859, 0
        %875 = vmatprep.subr.bf16.mxu0 %v868
        %876 = vmatpush1.bf16.msra.mxu0 %v867
        %877 = vmatprep.subr.bf16.mxu0 0
        %878 = vmatpush1.bf16.msra.mxu0 0
        %879 = vmatprep.subr.bf16.mxu0 0
        %880 = vmatpush1.bf16.msra.mxu0 0
        %881 = vmatprep.subr.bf16.mxu0 0
        %882 = vmatpush1.bf16.msra.mxu0 0
        %883 = vmatprep.subr.bf16.mxu0 0
        %884 = vmatpush1.bf16.msra.mxu0 0
        %885 = vmatprep.subr.bf16.mxu0 0
        %886 = vmatpush1.bf16.msra.mxu0 0
        %887 = vmatprep.subr.bf16.mxu0 0
        %888 = vmatpush1.bf16.msra.mxu0 0
        %889 = vmatprep.subr.bf16.mxu0 0
        %890 = vmatpush1.bf16.msra.mxu0 0
        %891 = vmatprep.subr.bf16.mxu0 0
        %892 = vmatpush1.bf16.msra.mxu0 0
        %893 = vmatprep.subr.bf16.mxu0 0
        %894 = vmatpush1.bf16.msra.mxu0 0
        %895 = vmatprep.subr.bf16.mxu0 0
        %896 = vmatpush1.bf16.msra.mxu0 0
        %897 = vmatprep.subr.bf16.mxu0 0
        %898 = vmatpush1.bf16.msra.mxu0 0
        %899 = vmatprep.subr.bf16.mxu0 0
        %900 = vmatpush1.bf16.msra.mxu0 0
        %901 = vmatprep.subr.bf16.mxu0 0
        %902 = vmatpush1.bf16.msra.mxu0 0
        %903 = vmatprep.subr.bf16.mxu0 0
        %904 = vmatpush1.bf16.msra.mxu0 0
        %905 = vmatprep.subr.bf16.mxu0 0
        %906 = vmatpush1.bf16.msra.mxu0 0
        %907 = vmatprep.mubr.bf16.mxu0 0
        %908 = vmatmul.mubr.bf16.gmra.mrb[0].mxu0 %v873
        %v909 = vpop.f32.mrb[0].mxu0
        %v910 = vadd.f32 0.0, %v909
        %v911 = vpop.f32.mrb[0].mxu0
        %v912 = vadd.f32 0.0, %v911
        %v913 = vpop.f32.mrb[0].mxu0
        %v914 = vadd.f32 0.0, %v913
        %v915 = vpop.f32.mrb[0].mxu0
        %v916 = vadd.f32 0.0, %v915
        %917 = vdwg.mxu0
        %918 = vmatprep.subr.bf16.mxu0 0
        %919 = vmatpush1.bf16.msra.mxu0 %v865
        %920 = vmatprep.subr.bf16.mxu0 0
        %921 = vmatpush1.bf16.msra.mxu0 0
        %922 = vmatprep.subr.bf16.mxu0 0
        %923 = vmatpush1.bf16.msra.mxu0 0
        %924 = vmatprep.subr.bf16.mxu0 0
        %925 = vmatpush1.bf16.msra.mxu0 0
        %926 = vmatprep.subr.bf16.mxu0 0
        %927 = vmatpush1.bf16.msra.mxu0 0
        %928 = vmatprep.subr.bf16.mxu0 0
        %929 = vmatpush1.bf16.msra.mxu0 0
        %930 = vmatprep.subr.bf16.mxu0 0
        %931 = vmatpush1.bf16.msra.mxu0 0
        %932 = vmatprep.subr.bf16.mxu0 0
        %933 = vmatpush1.bf16.msra.mxu0 0
        %934 = vmatprep.subr.bf16.mxu0 0
        %935 = vmatpush1.bf16.msra.mxu0 0
        %936 = vmatprep.subr.bf16.mxu0 0
        %937 = vmatpush1.bf16.msra.mxu0 0
        %938 = vmatprep.subr.bf16.mxu0 0
        %939 = vmatpush1.bf16.msra.mxu0 0
        %940 = vmatprep.subr.bf16.mxu0 0
        %941 = vmatpush1.bf16.msra.mxu0 0
        %942 = vmatprep.subr.bf16.mxu0 0
        %943 = vmatpush1.bf16.msra.mxu0 0
        %944 = vmatprep.subr.bf16.mxu0 0
        %945 = vmatpush1.bf16.msra.mxu0 0
        %946 = vmatprep.subr.bf16.mxu0 0
        %947 = vmatpush1.bf16.msra.mxu0 0
        %948 = vmatprep.subr.bf16.mxu0 0
        %949 = vmatpush1.bf16.msra.mxu0 0
        %950 = vmatprep.mubr.bf16.mxu0 0
        %951 = vmatmul.mubr.bf16.gmra.mrb[0].mxu0 %v873
        %v952 = vpop.f32.mrb[0].mxu0
        %v953 = vadd.f32 0.0, %v952
        %v954 = vpop.f32.mrb[0].mxu0
        %v955 = vpop.f32.mrb[0].mxu0
        %v956 = vadd.f32 0.0, %v955
        %v957 = vpop.f32.mrb[0].mxu0
        %958 = vdwg.mxu0
        %v959 = vadd.f32 %v846, %v910
        %v960 = vadd.f32 %v847, %v912
        %v961 = vadd.f32 %v848, %v953
        %v962 = vadd.f32 %v849, %v914
        %v963 = vadd.f32 %v850, %v916
        %v964 = vadd.f32 %v851, %v956
        %s965 = scalar_lea.vmem [#allocation5], 48
        %v966 = vld [vmem:[%s965] sm:$0xf]
        %v967 = vld [vmem:[%s965 + $0x4] sm:$0xf]
        %v970 = vunpack.c.l.b16 %v966
        %v971 = vunpack.c.l.b16 %v967
        %v972 = vpack.c.b16 %v971, %v970
        %973 = vrot.lane.b32.xlu0 %v753, 111
        %v974 = vpop.permute.xlu0 %973
        %975 = vrot.lane.b32.xlu0 %v754, 111
        %v976 = vpop.permute.xlu0 %975
        %977 = vrot.lane.b32.xlu0 %v755, 111
        %v978 = vpop.permute.xlu0 %977
        %vm979 = vcmask 908288
        %v980 = vsel %vm979, %v974, %v976
        %v981 = vsel %vm979, %v976, %v978
        %v986 = vsel %vm304, %v972, 0
        %988 = vmatprep.subr.bf16.mxu0 %v981
        %989 = vmatpush1.bf16.msra.mxu0 %v980
        %990 = vmatprep.subr.bf16.mxu0 0
        %991 = vmatpush1.bf16.msra.mxu0 0
        %992 = vmatprep.subr.bf16.mxu0 0
        %993 = vmatpush1.bf16.msra.mxu0 0
        %994 = vmatprep.subr.bf16.mxu0 0
        %995 = vmatpush1.bf16.msra.mxu0 0
        %996 = vmatprep.subr.bf16.mxu0 0
        %997 = vmatpush1.bf16.msra.mxu0 0
        %998 = vmatprep.subr.bf16.mxu0 0
        %999 = vmatpush1.bf16.msra.mxu0 0
        %1000 = vmatprep.subr.bf16.mxu0 0
        %1001 = vmatpush1.bf16.msra.mxu0 0
        %1002 = vmatprep.subr.bf16.mxu0 0
        %1003 = vmatpush1.bf16.msra.mxu0 0
        %1004 = vmatprep.subr.bf16.mxu0 0
        %1005 = vmatpush1.bf16.msra.mxu0 0
        %1006 = vmatprep.subr.bf16.mxu0 0
        %1007 = vmatpush1.bf16.msra.mxu0 0
        %1008 = vmatprep.subr.bf16.mxu0 0
        %1009 = vmatpush1.bf16.msra.mxu0 0
        %1010 = vmatprep.subr.bf16.mxu0 0
        %1011 = vmatpush1.bf16.msra.mxu0 0
        %1012 = vmatprep.subr.bf16.mxu0 0
        %1013 = vmatpush1.bf16.msra.mxu0 0
        %1014 = vmatprep.subr.bf16.mxu0 0
        %1015 = vmatpush1.bf16.msra.mxu0 0
        %1016 = vmatprep.subr.bf16.mxu0 0
        %1017 = vmatpush1.bf16.msra.mxu0 0
        %1018 = vmatprep.subr.bf16.mxu0 0
        %1019 = vmatpush1.bf16.msra.mxu0 0
        %1020 = vmatprep.mubr.bf16.mxu0 0
        %1021 = vmatmul.mubr.bf16.gmra.mrb[0].mxu0 %v986
        %v1022 = vpop.f32.mrb[0].mxu0
        %v1023 = vadd.f32 0.0, %v1022
        %v1024 = vpop.f32.mrb[0].mxu0
        %v1025 = vadd.f32 0.0, %v1024
        %v1026 = vpop.f32.mrb[0].mxu0
        %v1027 = vadd.f32 0.0, %v1026
        %v1028 = vpop.f32.mrb[0].mxu0
        %v1029 = vadd.f32 0.0, %v1028
        %1030 = vdwg.mxu0
        %1031 = vmatprep.subr.bf16.mxu0 0
        %1032 = vmatpush1.bf16.msra.mxu0 %v978
        %1033 = vmatprep.subr.bf16.mxu0 0
        %1034 = vmatpush1.bf16.msra.mxu0 0
        %1035 = vmatprep.subr.bf16.mxu0 0
        %1036 = vmatpush1.bf16.msra.mxu0 0
        %1037 = vmatprep.subr.bf16.mxu0 0
        %1038 = vmatpush1.bf16.msra.mxu0 0
        %1039 = vmatprep.subr.bf16.mxu0 0
        %1040 = vmatpush1.bf16.msra.mxu0 0
        %1041 = vmatprep.subr.bf16.mxu0 0
        %1042 = vmatpush1.bf16.msra.mxu0 0
        %1043 = vmatprep.subr.bf16.mxu0 0
        %1044 = vmatpush1.bf16.msra.mxu0 0
        %1045 = vmatprep.subr.bf16.mxu0 0
        %1046 = vmatpush1.bf16.msra.mxu0 0
        %1047 = vmatprep.subr.bf16.mxu0 0
        %1048 = vmatpush1.bf16.msra.mxu0 0
        %1049 = vmatprep.subr.bf16.mxu0 0
        %1050 = vmatpush1.bf16.msra.mxu0 0
        %1051 = vmatprep.subr.bf16.mxu0 0
        %1052 = vmatpush1.bf16.msra.mxu0 0
        %1053 = vmatprep.subr.bf16.mxu0 0
        %1054 = vmatpush1.bf16.msra.mxu0 0
        %1055 = vmatprep.subr.bf16.mxu0 0
        %1056 = vmatpush1.bf16.msra.mxu0 0
        %1057 = vmatprep.subr.bf16.mxu0 0
        %1058 = vmatpush1.bf16.msra.mxu0 0
        %1059 = vmatprep.subr.bf16.mxu0 0
        %1060 = vmatpush1.bf16.msra.mxu0 0
        %1061 = vmatprep.subr.bf16.mxu0 0
        %1062 = vmatpush1.bf16.msra.mxu0 0
        %1063 = vmatprep.mubr.bf16.mxu0 0
        %1064 = vmatmul.mubr.bf16.gmra.mrb[0].mxu0 %v986
        %v1065 = vpop.f32.mrb[0].mxu0
        %v1066 = vadd.f32 0.0, %v1065
        %v1067 = vpop.f32.mrb[0].mxu0
        %v1068 = vpop.f32.mrb[0].mxu0
        %v1069 = vadd.f32 0.0, %v1068
        %v1070 = vpop.f32.mrb[0].mxu0
        %1071 = vdwg.mxu0
        %v1072 = vadd.f32 %v959, %v1023
        %v1073 = vadd.f32 %v960, %v1025
        %v1074 = vadd.f32 %v961, %v1066
        %v1075 = vadd.f32 %v962, %v1027
        %v1076 = vadd.f32 %v963, %v1029
        %v1077 = vadd.f32 %v964, %v1069
        %s1078 = scalar_lea.vmem [#allocation5], 56
        %v1079 = vld [vmem:[%s1078] sm:$0xf]
        %v1080 = vld [vmem:[%s1078 + $0x4] sm:$0xf]
        %v1083 = vunpack.c.l.b16 %v1079
        %v1084 = vunpack.c.l.b16 %v1080
        %v1085 = vpack.c.b16 %v1084, %v1083
        %1086 = vrot.lane.b32.xlu0 %v753, 110
        %v1087 = vpop.permute.xlu0 %1086
        %1088 = vrot.lane.b32.xlu0 %v754, 110
        %v1089 = vpop.permute.xlu0 %1088
        %1090 = vrot.lane.b32.xlu0 %v755, 110
        %v1091 = vpop.permute.xlu0 %1090
        %vm1092 = vcmask 900096
        %v1093 = vsel %vm1092, %v1087, %v1089
        %v1094 = vsel %vm1092, %v1089, %v1091
        %v1099 = vsel %vm304, %v1085, 0
        %1101 = vmatprep.subr.bf16.mxu0 %v1094
        %1102 = vmatpush1.bf16.msra.mxu0 %v1093
        %1103 = vmatprep.subr.bf16.mxu0 0
        %1104 = vmatpush1.bf16.msra.mxu0 0
        %1105 = vmatprep.subr.bf16.mxu0 0
        %1106 = vmatpush1.bf16.msra.mxu0 0
        %1107 = vmatprep.subr.bf16.mxu0 0
        %1108 = vmatpush1.bf16.msra.mxu0 0
        %1109 = vmatprep.subr.bf16.mxu0 0
        %1110 = vmatpush1.bf16.msra.mxu0 0
        %1111 = vmatprep.subr.bf16.mxu0 0
        %1112 = vmatpush1.bf16.msra.mxu0 0
        %1113 = vmatprep.subr.bf16.mxu0 0
        %1114 = vmatpush1.bf16.msra.mxu0 0
        %1115 = vmatprep.subr.bf16.mxu0 0
        %1116 = vmatpush1.bf16.msra.mxu0 0
        %1117 = vmatprep.subr.bf16.mxu0 0
        %1118 = vmatpush1.bf16.msra.mxu0 0
        %1119 = vmatprep.subr.bf16.mxu0 0
        %1120 = vmatpush1.bf16.msra.mxu0 0
        %1121 = vmatprep.subr.bf16.mxu0 0
        %1122 = vmatpush1.bf16.msra.mxu0 0
        %1123 = vmatprep.subr.bf16.mxu0 0
        %1124 = vmatpush1.bf16.msra.mxu0 0
        %1125 = vmatprep.subr.bf16.mxu0 0
        %1126 = vmatpush1.bf16.msra.mxu0 0
        %1127 = vmatprep.subr.bf16.mxu0 0
        %1128 = vmatpush1.bf16.msra.mxu0 0
        %1129 = vmatprep.subr.bf16.mxu0 0
        %1130 = vmatpush1.bf16.msra.mxu0 0
        %1131 = vmatprep.subr.bf16.mxu0 0
        %1132 = vmatpush1.bf16.msra.mxu0 0
        %1133 = vmatprep.mubr.bf16.mxu0 0
        %1134 = vmatmul.mubr.bf16.gmra.mrb[0].mxu0 %v1099
        %v1135 = vpop.f32.mrb[0].mxu0
        %v1136 = vadd.f32 0.0, %v1135
        %v1137 = vpop.f32.mrb[0].mxu0
        %v1138 = vadd.f32 0.0, %v1137
        %v1139 = vpop.f32.mrb[0].mxu0
        %v1140 = vadd.f32 0.0, %v1139
        %v1141 = vpop.f32.mrb[0].mxu0
        %v1142 = vadd.f32 0.0, %v1141
        %1143 = vdwg.mxu0
        %1144 = vmatprep.subr.bf16.mxu0 0
        %1145 = vmatpush1.bf16.msra.mxu0 %v1091
        %1146 = vmatprep.subr.bf16.mxu0 0
        %1147 = vmatpush1.bf16.msra.mxu0 0
        %1148 = vmatprep.subr.bf16.mxu0 0
        %1149 = vmatpush1.bf16.msra.mxu0 0
        %1150 = vmatprep.subr.bf16.mxu0 0
        %1151 = vmatpush1.bf16.msra.mxu0 0
        %1152 = vmatprep.subr.bf16.mxu0 0
        %1153 = vmatpush1.bf16.msra.mxu0 0
        %1154 = vmatprep.subr.bf16.mxu0 0
        %1155 = vmatpush1.bf16.msra.mxu0 0
        %1156 = vmatprep.subr.bf16.mxu0 0
        %1157 = vmatpush1.bf16.msra.mxu0 0
        %1158 = vmatprep.subr.bf16.mxu0 0
        %1159 = vmatpush1.bf16.msra.mxu0 0
        %1160 = vmatprep.subr.bf16.mxu0 0
        %1161 = vmatpush1.bf16.msra.mxu0 0
        %1162 = vmatprep.subr.bf16.mxu0 0
        %1163 = vmatpush1.bf16.msra.mxu0 0
        %1164 = vmatprep.subr.bf16.mxu0 0
        %1165 = vmatpush1.bf16.msra.mxu0 0
        %1166 = vmatprep.subr.bf16.mxu0 0
        %1167 = vmatpush1.bf16.msra.mxu0 0
        %1168 = vmatprep.subr.bf16.mxu0 0
        %1169 = vmatpush1.bf16.msra.mxu0 0
        %1170 = vmatprep.subr.bf16.mxu0 0
        %1171 = vmatpush1.bf16.msra.mxu0 0
        %1172 = vmatprep.subr.bf16.mxu0 0
        %1173 = vmatpush1.bf16.msra.mxu0 0
        %1174 = vmatprep.subr.bf16.mxu0 0
        %1175 = vmatpush1.bf16.msra.mxu0 0
        %1176 = vmatprep.mubr.bf16.mxu0 0
        %1177 = vmatmul.mubr.bf16.gmra.mrb[0].mxu0 %v1099
        %v1178 = vpop.f32.mrb[0].mxu0
        %v1179 = vadd.f32 0.0, %v1178
        %v1180 = vpop.f32.mrb[0].mxu0
        %v1181 = vpop.f32.mrb[0].mxu0
        %v1182 = vadd.f32 0.0, %v1181
        %v1183 = vpop.f32.mrb[0].mxu0
        %1184 = vdwg.mxu0
        %v1185 = vadd.f32 %v1072, %v1136
        %v1186 = vadd.f32 %v1073, %v1138
        %v1187 = vadd.f32 %v1074, %v1179
        %v1188 = vadd.f32 %v1075, %v1140
        %v1189 = vadd.f32 %v1076, %v1142
        %v1190 = vadd.f32 %v1077, %v1182
        %s1191 = scalar_lea.vmem [#allocation5], 64
        %v1192 = vld [vmem:[%s1191] sm:$0xf]
        %v1193 = vld [vmem:[%s1191 + $0x4] sm:$0xf]
        %v1196 = vunpack.c.l.b16 %v1192
        %v1197 = vunpack.c.l.b16 %v1193
        %v1198 = vpack.c.b16 %v1197, %v1196
        %1199 = vrot.lane.b32.xlu0 %v753, 109
        %v1200 = vpop.permute.xlu0 %1199
        %1201 = vrot.lane.b32.xlu0 %v754, 109
        %v1202 = vpop.permute.xlu0 %1201
        %1203 = vrot.lane.b32.xlu0 %v755, 109
        %v1204 = vpop.permute.xlu0 %1203
        %vm1205 = vcmask 891904
        %v1206 = vsel %vm1205, %v1200, %v1202
        %v1207 = vsel %vm1205, %v1202, %v1204
        %v1212 = vsel %vm304, %v1198, 0
        %1214 = vmatprep.subr.bf16.mxu0 %v1207
        %1215 = vmatpush1.bf16.msra.mxu0 %v1206
        %1216 = vmatprep.subr.bf16.mxu0 0
        %1217 = vmatpush1.bf16.msra.mxu0 0
        %1218 = vmatprep.subr.bf16.mxu0 0
        %1219 = vmatpush1.bf16.msra.mxu0 0
        %1220 = vmatprep.subr.bf16.mxu0 0
        %1221 = vmatpush1.bf16.msra.mxu0 0
        %1222 = vmatprep.subr.bf16.mxu0 0
        %1223 = vmatpush1.bf16.msra.mxu0 0
        %1224 = vmatprep.subr.bf16.mxu0 0
        %1225 = vmatpush1.bf16.msra.mxu0 0
        %1226 = vmatprep.subr.bf16.mxu0 0
        %1227 = vmatpush1.bf16.msra.mxu0 0
        %1228 = vmatprep.subr.bf16.mxu0 0
        %1229 = vmatpush1.bf16.msra.mxu0 0
        %1230 = vmatprep.subr.bf16.mxu0 0
        %1231 = vmatpush1.bf16.msra.mxu0 0
        %1232 = vmatprep.subr.bf16.mxu0 0
        %1233 = vmatpush1.bf16.msra.mxu0 0
        %1234 = vmatprep.subr.bf16.mxu0 0
        %1235 = vmatpush1.bf16.msra.mxu0 0
        %1236 = vmatprep.subr.bf16.mxu0 0
        %1237 = vmatpush1.bf16.msra.mxu0 0
        %1238 = vmatprep.subr.bf16.mxu0 0
        %1239 = vmatpush1.bf16.msra.mxu0 0
        %1240 = vmatprep.subr.bf16.mxu0 0
        %1241 = vmatpush1.bf16.msra.mxu0 0
        %1242 = vmatprep.subr.bf16.mxu0 0
        %1243 = vmatpush1.bf16.msra.mxu0 0
        %1244 = vmatprep.subr.bf16.mxu0 0
        %1245 = vmatpush1.bf16.msra.mxu0 0
        %1246 = vmatprep.mubr.bf16.mxu0 0
        %1247 = vmatmul.mubr.bf16.gmra.mrb[0].mxu0 %v1212
        %v1248 = vpop.f32.mrb[0].mxu0
        %v1249 = vadd.f32 0.0, %v1248
        %v1250 = vpop.f32.mrb[0].mxu0
        %v1251 = vadd.f32 0.0, %v1250
        %v1252 = vpop.f32.mrb[0].mxu0
        %v1253 = vadd.f32 0.0, %v1252
        %v1254 = vpop.f32.mrb[0].mxu0
        %v1255 = vadd.f32 0.0, %v1254
        %1256 = vdwg.mxu0
        %1257 = vmatprep.subr.bf16.mxu0 0
        %1258 = vmatpush1.bf16.msra.mxu0 %v1204
        %1259 = vmatprep.subr.bf16.mxu0 0
        %1260 = vmatpush1.bf16.msra.mxu0 0
        %1261 = vmatprep.subr.bf16.mxu0 0
        %1262 = vmatpush1.bf16.msra.mxu0 0
        %1263 = vmatprep.subr.bf16.mxu0 0
        %1264 = vmatpush1.bf16.msra.mxu0 0
        %1265 = vmatprep.subr.bf16.mxu0 0
        %1266 = vmatpush1.bf16.msra.mxu0 0
        %1267 = vmatprep.subr.bf16.mxu0 0
        %1268 = vmatpush1.bf16.msra.mxu0 0
        %1269 = vmatprep.subr.bf16.mxu0 0
        %1270 = vmatpush1.bf16.msra.mxu0 0
        %1271 = vmatprep.subr.bf16.mxu0 0
        %1272 = vmatpush1.bf16.msra.mxu0 0
        %1273 = vmatprep.subr.bf16.mxu0 0
        %1274 = vmatpush1.bf16.msra.mxu0 0
        %1275 = vmatprep.subr.bf16.mxu0 0
        %1276 = vmatpush1.bf16.msra.mxu0 0
        %1277 = vmatprep.subr.bf16.mxu0 0
        %1278 = vmatpush1.bf16.msra.mxu0 0
        %1279 = vmatprep.subr.bf16.mxu0 0
        %1280 = vmatpush1.bf16.msra.mxu0 0
        %1281 = vmatprep.subr.bf16.mxu0 0
        %1282 = vmatpush1.bf16.msra.mxu0 0
        %1283 = vmatprep.subr.bf16.mxu0 0
        %1284 = vmatpush1.bf16.msra.mxu0 0
        %1285 = vmatprep.subr.bf16.mxu0 0
        %1286 = vmatpush1.bf16.msra.mxu0 0
        %1287 = vmatprep.subr.bf16.mxu0 0
        %1288 = vmatpush1.bf16.msra.mxu0 0
        %1289 = vmatprep.mubr.bf16.mxu0 0
        %1290 = vmatmul.mubr.bf16.gmra.mrb[0].mxu0 %v1212
        %v1291 = vpop.f32.mrb[0].mxu0
        %v1292 = vadd.f32 0.0, %v1291
        %v1293 = vpop.f32.mrb[0].mxu0
        %v1294 = vpop.f32.mrb[0].mxu0
        %v1295 = vadd.f32 0.0, %v1294
        %v1296 = vpop.f32.mrb[0].mxu0
        %1297 = vdwg.mxu0
        %v1298 = vadd.f32 %v1185, %v1249
        %v1299 = vadd.f32 %v1186, %v1251
        %v1300 = vadd.f32 %v1187, %v1292
        %v1301 = vadd.f32 %v1188, %v1253
        %v1302 = vadd.f32 %v1189, %v1255
        %v1303 = vadd.f32 %v1190, %v1295
        %v1304 = vld [vmem:[#allocation7] sm:$0xff]
        %v1305 = vld [vmem:[#allocation7 + $0x8] sm:$0xff]
        %1307 = vset.pattern.permute.xlu0 0
        %1308 = vperm.xlu0 %1307, %v1304
        %v1309 = vpop.permute.xlu0 %1308
        %1312 = vset.pattern.permute.xlu0 0
        %1313 = vperm.xlu0 %1312, %v1305
        %v1314 = vpop.permute.xlu0 %1313
        %v1316 = vadd.f32 %v1298, %v1309
        %v1317 = vadd.f32 %v1299, %v1309
        %v1318 = vadd.f32 %v1300, %v1309
        %v1319 = vadd.f32 %v1301, %v1314
        %v1320 = vadd.f32 %v1302, %v1314
        %v1321 = vadd.f32 %v1303, %v1314
        %v1322 = vmax.f32 %v1316, 0.0
        %v1323 = vmax.f32 %v1317, 0.0
        %v1324 = vmax.f32 %v1318, 0.0
        %v1325 = vmax.f32 %v1319, 0.0
        %v1326 = vmax.f32 %v1320, 0.0
        %v1327 = vmax.f32 %v1321, 0.0
        %v1328 = vld [vmem:[#allocation8] sm:$0x7]
        %vm1329 = vcmp.gt.f32.partialorder %v1328, 0.0
        %v1330 = vsel %vm1329, 1, 0
        %v1331 = vlaneseq
        %v1332 = vshrl.u32 %v1331, 7
        %v1333 = vsub.s32 0, %v1332
        %v1334 = vrot.slane %v1330, %v1333
        %v1335 = vlaneseq
        %v1336 = vshrl.u32 %v1335, 7
        %v1337 = vsub.s32 1, %v1336
        %v1338 = vrot.slane %v1330, %v1337
        %v1339 = vlaneseq
        %v1340 = vshrl.u32 %v1339, 7
        %v1341 = vsub.s32 2, %v1340
        %v1342 = vrot.slane %v1330, %v1341
        %vm1343 = vcmp.eq.s32.totalorder %v1334, 1
        %vm1344 = vcmp.eq.s32.totalorder %v1338, 1
        %vm1345 = vcmp.eq.s32.totalorder %v1342, 1
        %v1346 = vsel %vm1343, %v1322, 0.0
        %v1347 = vsel %vm1344, %v1323, 0.0
        %v1348 = vsel %vm1345, %v1324, 0.0
        %v1349 = vsel %vm1343, %v1325, 0.0
        %v1350 = vsel %vm1344, %v1326, 0.0
        %v1351 = vsel %vm1345, %v1327, 0.0
        %v1352 = vpack.c.bf16 %v1349, %v1346
        %v1353 = vpack.c.bf16 %v1350, %v1347
        %v1354 = vpack.c.bf16 %v1351, %v1348
        %v1358 = vunpack.c.l.b16 %v1352
        %v1359 = vunpack.c.l.b16 %v1353
        %v1360 = vunpack.c.l.b16 %v1354
        %v1361 = vunpack.c.h.b16 %v1352
        %v1362 = vunpack.c.h.b16 %v1353
        %v1363 = vunpack.c.h.b16 %v1354
        %v1364 = vpack.c.b16 %v1359, %v1358
        %v1365 = vpack.c.b16 %v1360, %v1360
        %v1366 = vpack.c.b16 %v1362, %v1361
        %v1367 = vpack.c.b16 %v1363, %v1363
        %1372 = vst [vmem:[%s257 + $0x4] sm:$0xff] %v1364
        %vm1373 = vcmask 551936
        %1374 = vst.msk [vmem:[%s257 + $0xc] sm:$0xf] %vm1373, %v1365
        %1375 = vst [vmem:[%s257 + $0x18] sm:$0xff] %v1366
        %1376 = vst.msk [vmem:[%s257 + $0x20] sm:$0xf] %vm1373, %v1367
        %1377 = vst [vmem:[%s257] sm:$0xf] 0
        %1378 = vst [vmem:[%s257 + $0x14] sm:$0xf] 0
        %vm1379 = vcmask 1044000
        %vm1380 = vcmask 556036
        %vm1381 = vmor %vm1380, %vm1379
        %1382 = vst.msk [vmem:[%s257 + $0xc] sm:$0xff] %vm1381, 0
        %1383 = vst.msk [vmem:[%s257 + $0x20] sm:$0xff] %vm1381, 0
        %s1384 = sand.u32 %s120, 1
        %s1385 = scalar_lea.sflag [#allocation4], %s1384
        %s1386 = sand.u32 %s120, 1
        %s1387 = smul.addr %s1386, 40
        %s1388 = scalar_lea.vmem [#allocation10], %s1387
        // Predicated region
        $region53: #{_lambda_.11} parent=35 // pred_check
          %p1389 = pneg %p130
        $region54: #{_lambda_.11} parent=35 // pred_check_branch
          %1391 = sbr.rel (%p1389) target = $region56
        $region55: #{_lambda_.11} parent=35 // pred_region
          %s1393 = ssub.s32 640, 640
          %1394 = vsyncadd %s1385, %s1393
          %s1395 = smul.addr %s23, 10
          %s1396 = smul.addr %s1395, 64
          %s1397 = scalar_lea.hbm %s4, %s1396
          %s1398 = sshll.u32 %s1388, 4
          %s1399 = int_to_ptr.vmem [resolvable:$true] %s1398
          %1404 = dma.vmem_to_hbm [thread:$0]  %s1399, 640, %s1397, %s1385, 320, 320, 20
        $region56: #{_lambda_.11} parent=35 // pred_fallthru
          _
      $region36: #{_lambda_.11} parent=5 // pred_fallthru
        _
      %p1405 = scmp.le.s32.totalorder 2, %s18
      // Predicated region
      $region57: #{_lambda_.11} parent=5 // pred_check
        %p1406 = pneg %p1405
      $region58: #{_lambda_.11} parent=5 // pred_check_branch
        %1408 = sbr.rel (%p1406) target = $region60
      $region59: #{_lambda_.11} parent=5 // pred_region
        %s1409 = ssub.s32 %s18, 2
        // Predicated region
        $region61: #{_lambda_.11} parent=59 // pred_check
          %p1410 = pneg %p136
        $region62: #{_lambda_.11} parent=59 // pred_check_branch
          %1412 = sbr.rel (%p1410) target = $region64
        $region63: #{_lambda_.11} parent=59 // pred_region
          %s1413 = sand.u32 %s121, 1
          %s1414 = scalar_lea.sflag [#allocation4], %s1413
          %s1415 = sand.u32 %s121, 1
          %s1416 = smul.addr %s1415, 40
          %s1417 = scalar_lea.vmem [#allocation10], %s1416
          %1418 = dma.done %s1414, 640
        $region64: #{_lambda_.11} parent=59 // pred_fallthru
          _
      $region60: #{_lambda_.11} parent=5 // pred_fallthru
        _
    $region6: #{_lambda_.11} parent=1 // loop_footer
      %s22 = sadd.s32 1, %s18
    $region7: #{_lambda_.11} parent=1 // loop_footer_branch
      %17 = sbr.rel target = $region3
    $region8: #{_lambda_.11} parent=1 // loop_exit
      _
    %1419 = vsyncpa [#allocation3], 1
    %s1420 = scalar_lea.sflag [#allocation3], 1
    %1421 = vsyncpa %s1420, 1
    %1422 = vsyncpa [#allocation6], 1
    %1423 = vsyncpa [#allocation9], 1
    %1424 = vsyncpa [#allocation4], 1
    %s1425 = scalar_lea.sflag [#allocation4], 1
    %1426 = vsyncpa %s1425, 1

// kernel: _lambda_.13
$region0: #{_lambda_.13}
  #allocation0 [shape = 'u32[]', space=smem, size = 0x4, offset = 0x4, fixed_abs, tag = 'smem constant byte address 0x4 - core index']
  #allocation1 [shape = 'u32[144,128]{1,0:T(1,128)}', space=vmem, size = 0x12000, scoped, tag = 'internal scratch']
  %s0 = inlined_call_operand.hbm [shape: bf16[32,144], index: 0, kind: input, shape index: {}]
  %s1 = inlined_call_operand.hbm [shape: bf16[144,128], index: 1, kind: input, shape index: {}]
  %s2 = inlined_call_operand.hbm [shape: f32[32,1], index: 2, kind: input, shape index: {}]
  %s3 = inlined_call_operand.hbm [shape: bf16[32,128], index: 3, kind: output, shape index: {}]
  %s4 = sld [smem:[#allocation0]]
  $region34: #{_lambda_.13} parent=0
    _
  %s6 = ssub.s32 1, %s4
  %s7 = scalar_select 0, %s6, %s4
  $region1: #{_lambda_.13} parent=0
    #allocation2 [shape = 'u8[16384]{0}', space=vmem, size = 0x4000, scoped, tag = 'input window, operand 0, single buffered']
    #allocation3 [shape = 's32[1]{0}', space=sflag, size = 0x4, scoped, tag = 'scoped memory for _lambda_.13']
    #allocation4 [shape = 's32[1]{0}', space=sflag, size = 0x4, scoped, tag = 'scoped memory for _lambda_.13']
    #allocation5 [shape = 'u8[36864]{0}', space=vmem, size = 0x9000, scoped, tag = 'input window, operand 1, single buffered']
    #allocation6 [shape = 's32[1]{0}', space=sflag, size = 0x4, scoped, tag = 'scoped memory for _lambda_.13']
    #allocation7 [shape = 'u8[16384]{0}', space=vmem, size = 0x4000, scoped, tag = 'input window, operand 2, single buffered']
    #allocation8 [shape = 'u8[8192]{0}', space=vmem, size = 0x2000, scoped, tag = 'output window, operand 0, single buffered']
    %8 = vsyncpa [#allocation3], 0
    %9 = vsyncpa [#allocation6], 0
    %10 = vsyncpa [#allocation4], 0
    // Predicated region
    $region2: #{_lambda_.13} parent=1 // pred_check
      _
    $region3: #{_lambda_.13} parent=1 // pred_check_branch
      %12 = sbr.rel (0) target = $region5
    $region4: #{_lambda_.13} parent=1 // pred_region
      %s14 = ssub.s32 512, 512
      %15 = vsyncadd [#allocation3], %s14
      %s16 = sshll.u32 [#allocation2], 4
      %s17 = int_to_ptr.vmem [resolvable:$true] %s16
      %22 = dma.hbm_to_vmem [thread:$0]  %s0, 512, %s17, [#allocation3], 128, 128, 8
    $region5: #{_lambda_.13} parent=1 // pred_fallthru
      _
    // Predicated region
    $region6: #{_lambda_.13} parent=1 // pred_check
      _
    $region7: #{_lambda_.13} parent=1 // pred_check_branch
      %24 = sbr.rel (0) target = $region9
    $region8: #{_lambda_.13} parent=1 // pred_region
      %s26 = ssub.s32 1152, 1152
      %27 = vsyncadd [#allocation6], %s26
      %s28 = sshll.u32 [#allocation5], 4
      %s29 = int_to_ptr.vmem [resolvable:$true] %s28
      %34 = dma.hbm_to_vmem [thread:$0]  %s1, 1152, %s29, [#allocation6], 64, 64, 4
    $region9: #{_lambda_.13} parent=1 // pred_fallthru
      _
    // Predicated region
    $region10: #{_lambda_.13} parent=1 // pred_check
      _
    $region11: #{_lambda_.13} parent=1 // pred_check_branch
      %36 = sbr.rel (0) target = $region13
    $region12: #{_lambda_.13} parent=1 // pred_region
      %s38 = ssub.s32 512, 512
      %39 = vsyncadd [#allocation6], %s38
      %s40 = sshll.u32 [#allocation7], 4
      %s41 = int_to_ptr.vmem [resolvable:$true] %s40
      %46 = dma.hbm_to_vmem [thread:$0]  %s2, 512, %s41, [#allocation6], 128, 128, 8
    $region13: #{_lambda_.13} parent=1 // pred_fallthru
      _
    // Predicated region
    $region14: #{_lambda_.13} parent=1 // pred_check
      _
    $region15: #{_lambda_.13} parent=1 // pred_check_branch
      %48 = sbr.rel (0) target = $region17
    $region16: #{_lambda_.13} parent=1 // pred_region
      %49 = dma.done [#allocation3], 512
    $region17: #{_lambda_.13} parent=1 // pred_fallthru
      _
    // Predicated region
    $region18: #{_lambda_.13} parent=1 // pred_check
      _
    $region19: #{_lambda_.13} parent=1 // pred_check_branch
      %51 = sbr.rel (0) target = $region21
    $region20: #{_lambda_.13} parent=1 // pred_region
      %52 = dma.done [#allocation6], 1152
    $region21: #{_lambda_.13} parent=1 // pred_fallthru
      _
    // Predicated region
    $region22: #{_lambda_.13} parent=1 // pred_check
      _
    $region23: #{_lambda_.13} parent=1 // pred_check_branch
      %54 = sbr.rel (0) target = $region25
    $region24: #{_lambda_.13} parent=1 // pred_region
      %55 = dma.done [#allocation6], 512
    $region25: #{_lambda_.13} parent=1 // pred_fallthru
      _
    %v57 = vld [vmem:[#allocation2] sm:$0xff]
    %v58 = vld [vmem:[#allocation2 + $0x8] sm:$0xff]
    %v59 = vld [vmem:[#allocation2 + $0x10] sm:$0xff]
    %v60 = vld [vmem:[#allocation2 + $0x18] sm:$0xff]
    %v61 = vld [vmem:[#allocation5] sm:$0xf]
    %v62 = vld [vmem:[#allocation5 + $0x4] sm:$0xf]
    %v63 = vld [vmem:[#allocation5 + $0x8] sm:$0xf]
    %v64 = vld [vmem:[#allocation5 + $0xc] sm:$0xf]
    %v65 = vld [vmem:[#allocation5 + $0x10] sm:$0xf]
    %v66 = vld [vmem:[#allocation5 + $0x14] sm:$0xf]
    %v67 = vld [vmem:[#allocation5 + $0x18] sm:$0xf]
    %v68 = vld [vmem:[#allocation5 + $0x1c] sm:$0xf]
    %v69 = vld [vmem:[#allocation5 + $0x20] sm:$0xf]
    %v70 = vld [vmem:[#allocation5 + $0x24] sm:$0xf]
    %v71 = vld [vmem:[#allocation5 + $0x28] sm:$0xf]
    %v72 = vld [vmem:[#allocation5 + $0x2c] sm:$0xf]
    %v73 = vld [vmem:[#allocation5 + $0x30] sm:$0xf]
    %v74 = vld [vmem:[#allocation5 + $0x34] sm:$0xf]
    %v75 = vld [vmem:[#allocation5 + $0x38] sm:$0xf]
    %v76 = vld [vmem:[#allocation5 + $0x3c] sm:$0xf]
    %v77 = vld [vmem:[#allocation5 + $0x40] sm:$0xf]
    %v78 = vld [vmem:[#allocation5 + $0x44] sm:$0xf]
    %v79 = vld [vmem:[#allocation7] sm:$0xff]
    %v80 = vld [vmem:[#allocation7 + $0x8] sm:$0xff]
    %v81 = vld [vmem:[#allocation7 + $0x10] sm:$0xff]
    %v82 = vld [vmem:[#allocation7 + $0x18] sm:$0xff]
    %84 = vset.pattern.permute.xlu0 0
    %85 = vperm.xlu0 %84, %v79
    %v86 = vpop.permute.xlu0 %85
    %89 = vset.pattern.permute.xlu0 0
    %90 = vperm.xlu0 %89, %v80
    %v91 = vpop.permute.xlu0 %90
    %94 = vset.pattern.permute.xlu0 0
    %95 = vperm.xlu0 %94, %v81
    %v96 = vpop.permute.xlu0 %95
    %99 = vset.pattern.permute.xlu0 0
    %100 = vperm.xlu0 %99, %v82
    %v101 = vpop.permute.xlu0 %100
    %v107 = vunpack.c.l.b16 %v57
    %v108 = vunpack.c.h.b16 %v57
    %v109 = vunpack.c.l.b16 %v58
    %v110 = vunpack.c.h.b16 %v58
    %v111 = vunpack.c.l.b16 %v59
    %v112 = vunpack.c.h.b16 %v59
    %v113 = vunpack.c.l.b16 %v60
    %v114 = vunpack.c.h.b16 %v60
    %v115 = vpack.c.b16 %v109, %v107
    %v116 = vpack.c.b16 %v110, %v108
    %v117 = vpack.c.b16 %v113, %v111
    %v118 = vpack.c.b16 %v114, %v112
    %v139 = vunpack.c.l.b16 %v61
    %v140 = vunpack.c.l.b16 %v62
    %v141 = vunpack.c.l.b16 %v63
    %v142 = vunpack.c.l.b16 %v64
    %v143 = vunpack.c.l.b16 %v65
    %v144 = vunpack.c.l.b16 %v66
    %v145 = vunpack.c.l.b16 %v67
    %v146 = vunpack.c.l.b16 %v68
    %v147 = vunpack.c.l.b16 %v69
    %v148 = vunpack.c.l.b16 %v70
    %v149 = vunpack.c.l.b16 %v71
    %v150 = vunpack.c.l.b16 %v72
    %v151 = vunpack.c.l.b16 %v73
    %v152 = vunpack.c.l.b16 %v74
    %v153 = vunpack.c.l.b16 %v75
    %v154 = vunpack.c.l.b16 %v76
    %v155 = vunpack.c.l.b16 %v77
    %v156 = vunpack.c.l.b16 %v78
    %v157 = vpack.c.b16 %v140, %v139
    %v158 = vpack.c.b16 %v142, %v141
    %v159 = vpack.c.b16 %v144, %v143
    %v160 = vpack.c.b16 %v146, %v145
    %v161 = vpack.c.b16 %v148, %v147
    %v162 = vpack.c.b16 %v150, %v149
    %v163 = vpack.c.b16 %v152, %v151
    %v164 = vpack.c.b16 %v154, %v153
    %v165 = vpack.c.b16 %v156, %v155
    %vm175 = vcmask 130048
    %v177 = vsel %vm175, %v116, 0
    %v180 = vsel %vm175, %v118, 0
    %182 = vmatprep.subr.bf16.mxu0 0
    %183 = vmatpush1.bf16.msra.mxu0 %v157
    %184 = vmatprep.subr.bf16.mxu0 0
    %185 = vmatpush1.bf16.msra.mxu0 %v158
    %186 = vmatprep.subr.bf16.mxu0 0
    %187 = vmatpush1.bf16.msra.mxu0 %v159
    %188 = vmatprep.subr.bf16.mxu0 0
    %189 = vmatpush1.bf16.msra.mxu0 %v160
    %190 = vmatprep.subr.bf16.mxu0 0
    %191 = vmatpush1.bf16.msra.mxu0 %v161
    %192 = vmatprep.subr.bf16.mxu0 0
    %193 = vmatpush1.bf16.msra.mxu0 %v162
    %194 = vmatprep.subr.bf16.mxu0 0
    %195 = vmatpush1.bf16.msra.mxu0 %v163
    %196 = vmatprep.subr.bf16.mxu0 0
    %197 = vmatpush1.bf16.msra.mxu0 %v164
    %198 = vmatprep.subr.bf16.mxu0 0
    %199 = vmatpush1.bf16.msra.mxu0 %v165
    %200 = vmatprep.subr.bf16.mxu0 0
    %201 = vmatpush1.bf16.msra.mxu0 0
    %202 = vmatprep.subr.bf16.mxu0 0
    %203 = vmatpush1.bf16.msra.mxu0 0
    %204 = vmatprep.subr.bf16.mxu0 0
    %205 = vmatpush1.bf16.msra.mxu0 0
    %206 = vmatprep.subr.bf16.mxu0 0
    %207 = vmatpush1.bf16.msra.mxu0 0
    %208 = vmatprep.subr.bf16.mxu0 0
    %209 = vmatpush1.bf16.msra.mxu0 0
    %210 = vmatprep.subr.bf16.mxu0 0
    %211 = vmatpush1.bf16.msra.mxu0 0
    %212 = vmatprep.subr.bf16.mxu0 0
    %213 = vmatpush1.bf16.msra.mxu0 0
    %214 = vmatprep.mubr.bf16.mxu0 %v177
    %215 = vmatmul.mubr.bf16.gmra.mrb[0].mxu0 %v115
    %v216 = vpop.f32.mrb[0].mxu0
    %v217 = vadd.f32 %v86, %v216
    %v218 = vpop.f32.mrb[0].mxu0
    %v219 = vpop.f32.mrb[0].mxu0
    %v220 = vadd.f32 %v91, %v219
    %v221 = vpop.f32.mrb[0].mxu0
    %222 = vmatprep.mubr.bf16.mxu0 %v180
    %223 = vmatmul.mubr.bf16.gmra.mrb[0].mxu0 %v117
    %v224 = vpop.f32.mrb[0].mxu0
    %v225 = vadd.f32 %v96, %v224
    %v226 = vpop.f32.mrb[0].mxu0
    %v227 = vpop.f32.mrb[0].mxu0
    %v228 = vadd.f32 %v101, %v227
    %v229 = vpop.f32.mrb[0].mxu0
    %230 = vdwg.mxu0
    %v231 = vmax.f32 %v217, 0.0
    %v232 = vmax.f32 %v220, 0.0
    %v233 = vmax.f32 %v225, 0.0
    %v234 = vmax.f32 %v228, 0.0
    %v235 = vpack.c.bf16 %v232, %v231
    %v236 = vpack.c.bf16 %v234, %v233
    %v239 = vunpack.c.l.b16 %v235
    %v240 = vunpack.c.h.b16 %v235
    %v241 = vunpack.c.l.b16 %v236
    %v242 = vunpack.c.h.b16 %v236
    %v243 = vpack.c.b16 %v239, %v239
    %v244 = vpack.c.b16 %v240, %v240
    %v245 = vpack.c.b16 %v241, %v241
    %v246 = vpack.c.b16 %v242, %v242
    %251 = vst [vmem:[#allocation8] sm:$0xf] %v243
    %252 = vst [vmem:[#allocation8 + $0x4] sm:$0xf] %v244
    %253 = vst [vmem:[#allocation8 + $0x8] sm:$0xf] %v245
    %254 = vst [vmem:[#allocation8 + $0xc] sm:$0xf] %v246
    // Predicated region
    $region26: #{_lambda_.13} parent=1 // pred_check
      _
    $region27: #{_lambda_.13} parent=1 // pred_check_branch
      %256 = sbr.rel (0) target = $region29
    $region28: #{_lambda_.13} parent=1 // pred_region
      %s258 = ssub.s32 256, 256
      %259 = vsyncadd [#allocation4], %s258
      %s260 = sshll.u32 [#allocation8], 4
      %s261 = int_to_ptr.vmem [resolvable:$true] %s260
      %266 = dma.vmem_to_hbm [thread:$0]  %s261, 256, %s3, [#allocation4], 64, 64, 4
    $region29: #{_lambda_.13} parent=1 // pred_fallthru
      _
    // Predicated region
    $region30: #{_lambda_.13} parent=1 // pred_check
      _
    $region31: #{_lambda_.13} parent=1 // pred_check_branch
      %268 = sbr.rel (0) target = $region33
    $region32: #{_lambda_.13} parent=1 // pred_region
      %269 = dma.done [#allocation4], 256
    $region33: #{_lambda_.13} parent=1 // pred_fallthru
      _
    %270 = vsyncpa [#allocation3], 1
    %271 = vsyncpa [#allocation6], 1
    %272 = vsyncpa [#allocation4], 1

// kernel: _lambda_.14
$region0: #{_lambda_.14}
  #allocation0 [shape = 'u32[]', space=smem, size = 0x4, offset = 0x4, fixed_abs, tag = 'smem constant byte address 0x4 - core index']
  #allocation1 [shape = 'u32[144,128]{1,0:T(1,128)}', space=vmem, size = 0x12000, scoped, tag = 'internal scratch']
  %s0 = inlined_call_operand.hbm [shape: bf16[32,16], index: 0, kind: input, shape index: {}]
  %s1 = inlined_call_operand.hbm [shape: bf16[16,128], index: 1, kind: input, shape index: {}]
  %s2 = inlined_call_operand.hbm [shape: f32[32,1], index: 2, kind: input, shape index: {}]
  %s3 = inlined_call_operand.hbm [shape: bf16[32,128], index: 3, kind: output, shape index: {}]
  %s4 = sld [smem:[#allocation0]]
  $region34: #{_lambda_.14} parent=0
    _
  %s6 = ssub.s32 1, %s4
  %s7 = scalar_select 0, %s6, %s4
  $region1: #{_lambda_.14} parent=0
    #allocation2 [shape = 'u8[8192]{0}', space=vmem, size = 0x2000, scoped, tag = 'input window, operand 0, single buffered']
    #allocation3 [shape = 's32[1]{0}', space=sflag, size = 0x4, scoped, tag = 'scoped memory for _lambda_.14']
    #allocation4 [shape = 's32[1]{0}', space=sflag, size = 0x4, scoped, tag = 'scoped memory for _lambda_.14']
    #allocation5 [shape = 'u8[4096]{0}', space=vmem, size = 0x1000, scoped, tag = 'input window, operand 1, single buffered']
    #allocation6 [shape = 's32[1]{0}', space=sflag, size = 0x4, scoped, tag = 'scoped memory for _lambda_.14']
    #allocation7 [shape = 'u8[16384]{0}', space=vmem, size = 0x4000, scoped, tag = 'input window, operand 2, single buffered']
    #allocation8 [shape = 'u8[8192]{0}', space=vmem, size = 0x2000, scoped, tag = 'output window, operand 0, single buffered']
    %8 = vsyncpa [#allocation3], 0
    %9 = vsyncpa [#allocation6], 0
    %10 = vsyncpa [#allocation4], 0
    // Predicated region
    $region2: #{_lambda_.14} parent=1 // pred_check
      _
    $region3: #{_lambda_.14} parent=1 // pred_check_branch
      %12 = sbr.rel (0) target = $region5
    $region4: #{_lambda_.14} parent=1 // pred_region
      %s14 = ssub.s32 256, 256
      %15 = vsyncadd [#allocation3], %s14
      %s16 = sshll.u32 [#allocation2], 4
      %s17 = int_to_ptr.vmem [resolvable:$true] %s16
      %22 = dma.hbm_to_vmem [thread:$0]  %s0, 256, %s17, [#allocation3], 64, 64, 4
    $region5: #{_lambda_.14} parent=1 // pred_fallthru
      _
    // Predicated region
    $region6: #{_lambda_.14} parent=1 // pred_check
      _
    $region7: #{_lambda_.14} parent=1 // pred_check_branch
      %24 = sbr.rel (0) target = $region9
    $region8: #{_lambda_.14} parent=1 // pred_region
      %s26 = ssub.s32 128, 128
      %27 = vsyncadd [#allocation6], %s26
      %s28 = sshll.u32 [#allocation5], 4
      %s29 = int_to_ptr.vmem [resolvable:$true] %s28
      %34 = dma.hbm_to_vmem [thread:$0]  %s1, 128, %s29, [#allocation6], 64, 64, 4
    $region9: #{_lambda_.14} parent=1 // pred_fallthru
      _
    // Predicated region
    $region10: #{_lambda_.14} parent=1 // pred_check
      _
    $region11: #{_lambda_.14} parent=1 // pred_check_branch
      %36 = sbr.rel (0) target = $region13
    $region12: #{_lambda_.14} parent=1 // pred_region
      %s38 = ssub.s32 512, 512
      %39 = vsyncadd [#allocation6], %s38
      %s40 = sshll.u32 [#allocation7], 4
      %s41 = int_to_ptr.vmem [resolvable:$true] %s40
      %46 = dma.hbm_to_vmem [thread:$0]  %s2, 512, %s41, [#allocation6], 128, 128, 8
    $region13: #{_lambda_.14} parent=1 // pred_fallthru
      _
    // Predicated region
    $region14: #{_lambda_.14} parent=1 // pred_check
      _
    $region15: #{_lambda_.14} parent=1 // pred_check_branch
      %48 = sbr.rel (0) target = $region17
    $region16: #{_lambda_.14} parent=1 // pred_region
      %49 = dma.done [#allocation3], 256
    $region17: #{_lambda_.14} parent=1 // pred_fallthru
      _
    // Predicated region
    $region18: #{_lambda_.14} parent=1 // pred_check
      _
    $region19: #{_lambda_.14} parent=1 // pred_check_branch
      %51 = sbr.rel (0) target = $region21
    $region20: #{_lambda_.14} parent=1 // pred_region
      %52 = dma.done [#allocation6], 128
    $region21: #{_lambda_.14} parent=1 // pred_fallthru
      _
    // Predicated region
    $region22: #{_lambda_.14} parent=1 // pred_check
      _
    $region23: #{_lambda_.14} parent=1 // pred_check_branch
      %54 = sbr.rel (0) target = $region25
    $region24: #{_lambda_.14} parent=1 // pred_region
      %55 = dma.done [#allocation6], 512
    $region25: #{_lambda_.14} parent=1 // pred_fallthru
      _
    %v57 = vld [vmem:[#allocation2] sm:$0xf]
    %v58 = vld [vmem:[#allocation2 + $0x4] sm:$0xf]
    %v59 = vld [vmem:[#allocation2 + $0x8] sm:$0xf]
    %v60 = vld [vmem:[#allocation2 + $0xc] sm:$0xf]
    %v61 = vld [vmem:[#allocation5] sm:$0xf]
    %v62 = vld [vmem:[#allocation5 + $0x4] sm:$0xf]
    %v63 = vld [vmem:[#allocation7] sm:$0xff]
    %v64 = vld [vmem:[#allocation7 + $0x8] sm:$0xff]
    %v65 = vld [vmem:[#allocation7 + $0x10] sm:$0xff]
    %v66 = vld [vmem:[#allocation7 + $0x18] sm:$0xff]
    %68 = vset.pattern.permute.xlu0 0
    %69 = vperm.xlu0 %68, %v63
    %v70 = vpop.permute.xlu0 %69
    %73 = vset.pattern.permute.xlu0 0
    %74 = vperm.xlu0 %73, %v64
    %v75 = vpop.permute.xlu0 %74
    %78 = vset.pattern.permute.xlu0 0
    %79 = vperm.xlu0 %78, %v65
    %v80 = vpop.permute.xlu0 %79
    %83 = vset.pattern.permute.xlu0 0
    %84 = vperm.xlu0 %83, %v66
    %v85 = vpop.permute.xlu0 %84
    %v91 = vunpack.c.l.b16 %v57
    %v92 = vunpack.c.l.b16 %v58
    %v93 = vunpack.c.l.b16 %v59
    %v94 = vunpack.c.l.b16 %v60
    %v95 = vpack.c.b16 %v92, %v91
    %v96 = vpack.c.b16 %v94, %v93
    %v99 = vunpack.c.l.b16 %v61
    %v100 = vunpack.c.l.b16 %v62
    %v101 = vpack.c.b16 %v100, %v99
    %vm103 = vcmask 130048
    %v105 = vsel %vm103, %v95, 0
    %v108 = vsel %vm103, %v96, 0
    %110 = vmatprep.subr.bf16.mxu0 0
    %111 = vmatpush1.bf16.msra.mxu0 %v101
    %112 = vmatprep.subr.bf16.mxu0 0
    %113 = vmatpush1.bf16.msra.mxu0 0
    %114 = vmatprep.subr.bf16.mxu0 0
    %115 = vmatpush1.bf16.msra.mxu0 0
    %116 = vmatprep.subr.bf16.mxu0 0
    %117 = vmatpush1.bf16.msra.mxu0 0
    %118 = vmatprep.subr.bf16.mxu0 0
    %119 = vmatpush1.bf16.msra.mxu0 0
    %120 = vmatprep.subr.bf16.mxu0 0
    %121 = vmatpush1.bf16.msra.mxu0 0
    %122 = vmatprep.subr.bf16.mxu0 0
    %123 = vmatpush1.bf16.msra.mxu0 0
    %124 = vmatprep.subr.bf16.mxu0 0
    %125 = vmatpush1.bf16.msra.mxu0 0
    %126 = vmatprep.subr.bf16.mxu0 0
    %127 = vmatpush1.bf16.msra.mxu0 0
    %128 = vmatprep.subr.bf16.mxu0 0
    %129 = vmatpush1.bf16.msra.mxu0 0
    %130 = vmatprep.subr.bf16.mxu0 0
    %131 = vmatpush1.bf16.msra.mxu0 0
    %132 = vmatprep.subr.bf16.mxu0 0
    %133 = vmatpush1.bf16.msra.mxu0 0
    %134 = vmatprep.subr.bf16.mxu0 0
    %135 = vmatpush1.bf16.msra.mxu0 0
    %136 = vmatprep.subr.bf16.mxu0 0
    %137 = vmatpush1.bf16.msra.mxu0 0
    %138 = vmatprep.subr.bf16.mxu0 0
    %139 = vmatpush1.bf16.msra.mxu0 0
    %140 = vmatprep.subr.bf16.mxu0 0
    %141 = vmatpush1.bf16.msra.mxu0 0
    %142 = vmatprep.mubr.bf16.mxu0 0
    %143 = vmatmul.mubr.bf16.gmra.mrb[0].mxu0 %v105
    %v144 = vpop.f32.mrb[0].mxu0
    %v145 = vadd.f32 %v70, %v144
    %v146 = vpop.f32.mrb[0].mxu0
    %v147 = vpop.f32.mrb[0].mxu0
    %v148 = vadd.f32 %v75, %v147
    %v149 = vpop.f32.mrb[0].mxu0
    %150 = vmatprep.mubr.bf16.mxu0 0
    %151 = vmatmul.mubr.bf16.gmra.mrb[0].mxu0 %v108
    %v152 = vpop.f32.mrb[0].mxu0
    %v153 = vadd.f32 %v80, %v152
    %v154 = vpop.f32.mrb[0].mxu0
    %v155 = vpop.f32.mrb[0].mxu0
    %v156 = vadd.f32 %v85, %v155
    %v157 = vpop.f32.mrb[0].mxu0
    %158 = vdwg.mxu0
    %v159 = vpack.c.bf16 %v148, %v145
    %v160 = vpack.c.bf16 %v156, %v153
    %v163 = vunpack.c.l.b16 %v159
    %v164 = vunpack.c.h.b16 %v159
    %v165 = vunpack.c.l.b16 %v160
    %v166 = vunpack.c.h.b16 %v160
    %v167 = vpack.c.b16 %v163, %v163
    %v168 = vpack.c.b16 %v164, %v164
    %v169 = vpack.c.b16 %v165, %v165
    %v170 = vpack.c.b16 %v166, %v166
    %175 = vst [vmem:[#allocation8] sm:$0xf] %v167
    %176 = vst [vmem:[#allocation8 + $0x4] sm:$0xf] %v168
    %177 = vst [vmem:[#allocation8 + $0x8] sm:$0xf] %v169
    %178 = vst [vmem:[#allocation8 + $0xc] sm:$0xf] %v170
    // Predicated region
    $region26: #{_lambda_.14} parent=1 // pred_check
      _
    $region27: #{_lambda_.14} parent=1 // pred_check_branch
      %180 = sbr.rel (0) target = $region29
    $region28: #{_lambda_.14} parent=1 // pred_region
      %s182 = ssub.s32 256, 256
      %183 = vsyncadd [#allocation4], %s182
      %s184 = sshll.u32 [#allocation8], 4
      %s185 = int_to_ptr.vmem [resolvable:$true] %s184
      %190 = dma.vmem_to_hbm [thread:$0]  %s185, 256, %s3, [#allocation4], 64, 64, 4
    $region29: #{_lambda_.14} parent=1 // pred_fallthru
      _
    // Predicated region
    $region30: #{_lambda_.14} parent=1 // pred_check
      _
    $region31: #{_lambda_.14} parent=1 // pred_check_branch
      %192 = sbr.rel (0) target = $region33
    $region32: #{_lambda_.14} parent=1 // pred_region
      %193 = dma.done [#allocation4], 256
    $region33: #{_lambda_.14} parent=1 // pred_fallthru
      _
    %194 = vsyncpa [#allocation3], 1
    %195 = vsyncpa [#allocation6], 1
    %196 = vsyncpa [#allocation4], 1

// kernel: _lambda_.15
$region0: #{_lambda_.15}
  #allocation0 [shape = 'u32[]', space=smem, size = 0x4, offset = 0x4, fixed_abs, tag = 'smem constant byte address 0x4 - core index']
  #allocation1 [shape = 'u32[144,128]{1,0:T(1,128)}', space=vmem, size = 0x12000, scoped, tag = 'internal scratch']
  %s0 = inlined_call_operand.hbm [shape: bf16[2,32,356], index: 0, kind: input, shape index: {}]
  %s1 = inlined_call_operand.hbm [shape: bf16[9,32,32], index: 1, kind: input, shape index: {}]
  %s2 = inlined_call_operand.hbm [shape: f32[32,1], index: 2, kind: input, shape index: {}]
  %s3 = inlined_call_operand.hbm [shape: f32[1,100], index: 3, kind: input, shape index: {}]
  %s4 = inlined_call_operand.hbm [shape: bf16[2,32,356], index: 4, kind: input, shape index: {}]
  %s5 = inlined_call_operand.hbm [shape: bf16[2,32,356], index: 5, kind: output, shape index: {}]
  %s6 = sld [smem:[#allocation0]]
  $region73: #{_lambda_.15} parent=0
    _
  %s8 = ssub.s32 1, %s6
  %s9 = scalar_select 0, %s8, %s6
  $region1: #{_lambda_.15} parent=0
    #allocation2 [shape = 'u8[49152]{0}', space=vmem, size = 0xc000, scoped, tag = 'input window, operand 0']
    #allocation3 [shape = 's32[2]{0}', space=sflag, size = 0x8, scoped, tag = 'scoped memory for _lambda_.15']
    #allocation4 [shape = 's32[2]{0}', space=sflag, size = 0x8, scoped, tag = 'scoped memory for _lambda_.15']
    #allocation5 [shape = 'u8[73728]{0}', space=vmem, size = 0x12000, scoped, tag = 'input window, operand 1, single buffered']
    #allocation6 [shape = 's32[1]{0}', space=sflag, size = 0x4, scoped, tag = 'scoped memory for _lambda_.15']
    #allocation7 [shape = 'u8[16384]{0}', space=vmem, size = 0x4000, scoped, tag = 'input window, operand 2, single buffered']
    #allocation8 [shape = 'u8[512]{0}', space=vmem, size = 0x400, scoped, tag = 'input window, operand 3, single buffered']
    #allocation9 [shape = 's32[1]{0}', space=sflag, size = 0x4, scoped, tag = 'scoped memory for _lambda_.15']
    #allocation10 [shape = 'u8[49152]{0}', space=vmem, size = 0xc000, scoped, tag = 'input window, operand 4']
    #allocation11 [shape = 'u8[49152]{0}', space=vmem, size = 0xc000, scoped, tag = 'output window, operand 0']
    %10 = vsyncpa [#allocation3], 0
    %s11 = scalar_lea.sflag [#allocation3], 1
    %12 = vsyncpa %s11, 0
    %13 = vsyncpa [#allocation6], 0
    %14 = vsyncpa [#allocation9], 0
    %15 = vsyncpa [#allocation4], 0
    %s16 = scalar_lea.sflag [#allocation4], 1
    %17 = vsyncpa %s16, 0
    loop: start=0, step=1, limit=4
    $region2: #{_lambda_.15} parent=1 // loop_pre_header
      _
    $region3: #{_lambda_.15} parent=1 // loop_header
      %s19 = sphi 0, %s23
      %p20 = scmp.ge.s32.totalorder %s19, 4
      %s29 = sphi 0, %s31
      %s32 = sphi 0, %s29
      %s33 = sphi 0, %s32
      %s49 = sphi 0, %s33
      %s53 = sphi 0, %s53
      %s55 = sphi 0, %s53
      %s56 = sphi 0, %s55
      %s70 = sphi 0, %s56
      %s74 = sphi 0, %s74
      %s76 = sphi 0, %s74
      %s77 = sphi 0, %s76
      %s91 = sphi 0, %s77
      %s95 = sphi 0, %s95
      %s97 = sphi 0, %s95
      %s98 = sphi 0, %s97
      %s112 = sphi 0, %s98
      %s118 = sphi 0, %s120
      %s121 = sphi 0, %s118
      %s122 = sphi 0, %s121
      %s138 = sphi 0, %s122
      %s144 = sphi 0, %s146
      %s147 = sphi 0, %s144
      %s148 = sphi 0, %s147
      %s164 = sphi 0, %s148
    $region4: #{_lambda_.15} parent=1 // loop_header_branch
      %22 = sbr.rel (%p20) target = $region8
    $region5: #{_lambda_.15} parent=1 // loop_body
      %s24 = ssub.s32 %s19, 1
      %s25 = ssub.s32 %s19, 2
      %s26 = sadd.s32 %s19, 1
      %s27 = ssub.s32 %s19, %s26
      %p28 = scmp.eq.s32.totalorder %s27, 0
      %s30 = sadd.s32 %s29, 1
      %s31 = scalar_select %p28, %s29, %s30
      %p34 = pneg %p28
      %p35 = scmp.eq.s32.totalorder %s19, 1
      %p36 = por %p34, %p35
      %p37 = scmp.ne.s32.totalorder %s29, %s32
      %p38 = scmp.eq.s32.totalorder %s19, 0
      %p39 = por %p37, %p38
      %p40 = scmp.ne.s32.totalorder %s29, %s32
      %p41 = scmp.eq.s32.totalorder %s24, 1
      %p42 = por %p40, %p41
      %p43 = scmp.ne.s32.totalorder %s32, %s33
      %p44 = scmp.eq.s32.totalorder %s24, 0
      %p45 = por %p43, %p44
      %p46 = scmp.ne.s32.totalorder %s32, %s33
      %p47 = scmp.eq.s32.totalorder %s25, 1
      %p48 = por %p46, %p47
      %p50 = scmp.ne.s32.totalorder %s33, %s49
      %p51 = scmp.eq.s32.totalorder %s25, 0
      %p52 = por %p50, %p51
      %s54 = sadd.s32 %s53, 1
      %p57 = scmp.eq.s32.totalorder %s19, 1
      %p58 = scmp.ne.s32.totalorder %s53, %s55
      %p59 = scmp.eq.s32.totalorder %s19, 0
      %p60 = por %p58, %p59
      %p61 = scmp.ne.s32.totalorder %s53, %s55
      %p62 = scmp.eq.s32.totalorder %s24, 1
      %p63 = por %p61, %p62
      %p64 = scmp.ne.s32.totalorder %s55, %s56
      %p65 = scmp.eq.s32.totalorder %s24, 0
      %p66 = por %p64, %p65
      %p67 = scmp.ne.s32.totalorder %s55, %s56
      %p68 = scmp.eq.s32.totalorder %s25, 1
      %p69 = por %p67, %p68
      %p71 = scmp.ne.s32.totalorder %s56, %s70
      %p72 = scmp.eq.s32.totalorder %s25, 0
      %p73 = por %p71, %p72
      %s75 = sadd.s32 %s74, 1
      %p78 = scmp.eq.s32.totalorder %s19, 1
      %p79 = scmp.ne.s32.totalorder %s74, %s76
      %p80 = scmp.eq.s32.totalorder %s19, 0
      %p81 = por %p79, %p80
      %p82 = scmp.ne.s32.totalorder %s74, %s76
      %p83 = scmp.eq.s32.totalorder %s24, 1
      %p84 = por %p82, %p83
      %p85 = scmp.ne.s32.totalorder %s76, %s77
      %p86 = scmp.eq.s32.totalorder %s24, 0
      %p87 = por %p85, %p86
      %p88 = scmp.ne.s32.totalorder %s76, %s77
      %p89 = scmp.eq.s32.totalorder %s25, 1
      %p90 = por %p88, %p89
      %p92 = scmp.ne.s32.totalorder %s77, %s91
      %p93 = scmp.eq.s32.totalorder %s25, 0
      %p94 = por %p92, %p93
      %s96 = sadd.s32 %s95, 1
      %p99 = scmp.eq.s32.totalorder %s19, 1
      %p100 = scmp.ne.s32.totalorder %s95, %s97
      %p101 = scmp.eq.s32.totalorder %s19, 0
      %p102 = por %p100, %p101
      %p103 = scmp.ne.s32.totalorder %s95, %s97
      %p104 = scmp.eq.s32.totalorder %s24, 1
      %p105 = por %p103, %p104
      %p106 = scmp.ne.s32.totalorder %s97, %s98
      %p107 = scmp.eq.s32.totalorder %s24, 0
      %p108 = por %p106, %p107
      %p109 = scmp.ne.s32.totalorder %s97, %s98
      %p110 = scmp.eq.s32.totalorder %s25, 1
      %p111 = por %p109, %p110
      %p113 = scmp.ne.s32.totalorder %s98, %s112
      %p114 = scmp.eq.s32.totalorder %s25, 0
      %p115 = por %p113, %p114
      %s116 = ssub.s32 %s19, %s26
      %p117 = scmp.eq.s32.totalorder %s116, 0
      %s119 = sadd.s32 %s118, 1
      %s120 = scalar_select %p117, %s118, %s119
      %p123 = pneg %p117
      %p124 = scmp.eq.s32.totalorder %s19, 1
      %p125 = por %p123, %p124
      %p126 = scmp.ne.s32.totalorder %s118, %s121
      %p127 = scmp.eq.s32.totalorder %s19, 0
      %p128 = por %p126, %p127
      %p129 = scmp.ne.s32.totalorder %s118, %s121
      %p130 = scmp.eq.s32.totalorder %s24, 1
      %p131 = por %p129, %p130
      %p132 = scmp.ne.s32.totalorder %s121, %s122
      %p133 = scmp.eq.s32.totalorder %s24, 0
      %p134 = por %p132, %p133
      %p135 = scmp.ne.s32.totalorder %s121, %s122
      %p136 = scmp.eq.s32.totalorder %s25, 1
      %p137 = por %p135, %p136
      %p139 = scmp.ne.s32.totalorder %s122, %s138
      %p140 = scmp.eq.s32.totalorder %s25, 0
      %p141 = por %p139, %p140
      %s142 = ssub.s32 %s19, %s26
      %p143 = scmp.eq.s32.totalorder %s142, 0
      %s145 = sadd.s32 %s144, 1
      %s146 = scalar_select %p143, %s144, %s145
      %p149 = pneg %p143
      %p150 = scmp.eq.s32.totalorder %s19, 1
      %p151 = por %p149, %p150
      %p152 = scmp.ne.s32.totalorder %s144, %s147
      %p153 = scmp.eq.s32.totalorder %s19, 0
      %p154 = por %p152, %p153
      %p155 = scmp.ne.s32.totalorder %s144, %s147
      %p156 = scmp.eq.s32.totalorder %s24, 1
      %p157 = por %p155, %p156
      %p158 = scmp.ne.s32.totalorder %s147, %s148
      %p159 = scmp.eq.s32.totalorder %s24, 0
      %p160 = por %p158, %p159
      %p161 = scmp.ne.s32.totalorder %s147, %s148
      %p162 = scmp.eq.s32.totalorder %s25, 1
      %p163 = por %p161, %p162
      %p165 = scmp.ne.s32.totalorder %s148, %s164
      %p166 = scmp.eq.s32.totalorder %s25, 0
      %p167 = por %p165, %p166
      %p168 = scmp.le.s32.totalorder 1, %s19
      %p169 = scmp.lt.s32.totalorder %s19, 3
      %p170 = pnand %p168, %p169
      %p171 = pneg %p170
      // Predicated region
      $region9: #{_lambda_.15} parent=5 // pred_check
        _
      $region10: #{_lambda_.15} parent=5 // pred_check_branch
        %173 = sbr.rel (%p170) target = $region12
      $region11: #{_lambda_.15} parent=5 // pred_region
        %s174 = ssub.s32 %s19, 1
        // Predicated region
        $region13: #{_lambda_.15} parent=11 // pred_check
          %p175 = pneg %p66
        $region14: #{_lambda_.15} parent=11 // pred_check_branch
          %177 = sbr.rel (%p175) target = $region16
        $region15: #{_lambda_.15} parent=11 // pred_region
          %s179 = ssub.s32 2304, 2304
          %180 = vsyncadd [#allocation6], %s179
          %s181 = sshll.u32 [#allocation5], 4
          %s182 = int_to_ptr.vmem [resolvable:$true] %s181
          %187 = dma.hbm_to_vmem [thread:$0]  %s1, 2304, %s182, [#allocation6], 64, 64, 4
        $region16: #{_lambda_.15} parent=11 // pred_fallthru
          _
        // Predicated region
        $region17: #{_lambda_.15} parent=11 // pred_check
          %p188 = pneg %p87
        $region18: #{_lambda_.15} parent=11 // pred_check_branch
          %190 = sbr.rel (%p188) target = $region20
        $region19: #{_lambda_.15} parent=11 // pred_region
          %s192 = ssub.s32 512, 512
          %193 = vsyncadd [#allocation6], %s192
          %s194 = sshll.u32 [#allocation7], 4
          %s195 = int_to_ptr.vmem [resolvable:$true] %s194
          %200 = dma.hbm_to_vmem [thread:$0]  %s2, 512, %s195, [#allocation6], 128, 128, 8
        $region20: #{_lambda_.15} parent=11 // pred_fallthru
          _
        // Predicated region
        $region21: #{_lambda_.15} parent=11 // pred_check
          %p201 = pneg %p108
        $region22: #{_lambda_.15} parent=11 // pred_check_branch
          %203 = sbr.rel (%p201) target = $region24
        $region23: #{_lambda_.15} parent=11 // pred_region
          %s205 = ssub.s32 16, 16
          %206 = vsyncadd [#allocation9], %s205
          %s208 = sshll.u32 [#allocation8], 4
          %s209 = int_to_ptr.vmem [resolvable:$true] %s208
          %211 = dma.hbm_to_vmem [thread:$0]  %s3, 16, %s209, [#allocation9]
        $region24: #{_lambda_.15} parent=11 // pred_fallthru
          _
      $region12: #{_lambda_.15} parent=5 // pred_fallthru
        _
      %p212 = scmp.lt.s32.totalorder %s19, 2
      // Predicated region
      $region25: #{_lambda_.15} parent=5 // pred_check
        %p213 = pneg %p212
      $region26: #{_lambda_.15} parent=5 // pred_check_branch
        %215 = sbr.rel (%p213) target = $region28
      $region27: #{_lambda_.15} parent=5 // pred_region
        // Predicated region
        $region29: #{_lambda_.15} parent=27 // pred_check
          %p216 = pneg %p39
        $region30: #{_lambda_.15} parent=27 // pred_check_branch
          %218 = sbr.rel (%p216) target = $region32
        $region31: #{_lambda_.15} parent=27 // pred_region
          %s219 = sand.u32 %s19, 1
          %s220 = scalar_lea.sflag [#allocation3], %s219
          %s221 = sand.u32 %s29, 1
          %s222 = smul.addr %s221, 48
          %s223 = scalar_lea.vmem [#allocation2], %s222
          %s225 = ssub.s32 768, 768
          %226 = vsyncadd %s220, %s225
          %s227 = smul.addr %s19, 12
          %s228 = smul.addr %s227, 64
          %s229 = scalar_lea.hbm %s0, %s228
          %s230 = sshll.u32 %s223, 4
          %s231 = int_to_ptr.vmem [resolvable:$true] %s230
          %236 = dma.hbm_to_vmem [thread:$0]  %s229, 768, %s231, %s220, 192, 192, 12
        $region32: #{_lambda_.15} parent=27 // pred_fallthru
          _
        // Predicated region
        $region33: #{_lambda_.15} parent=27 // pred_check
          %p237 = pneg %p128
        $region34: #{_lambda_.15} parent=27 // pred_check_branch
          %239 = sbr.rel (%p237) target = $region36
        $region35: #{_lambda_.15} parent=27 // pred_region
          %s240 = sand.u32 %s19, 1
          %s241 = scalar_lea.sflag [#allocation3], %s240
          %s242 = sand.u32 %s118, 1
          %s243 = smul.addr %s242, 48
          %s244 = scalar_lea.vmem [#allocation10], %s243
          %s246 = ssub.s32 768, 768
          %247 = vsyncadd %s241, %s246
          %s248 = smul.addr %s19, 12
          %s249 = smul.addr %s248, 64
          %s250 = scalar_lea.hbm %s4, %s249
          %s251 = sshll.u32 %s244, 4
          %s252 = int_to_ptr.vmem [resolvable:$true] %s251
          %257 = dma.hbm_to_vmem [thread:$0]  %s250, 768, %s252, %s241, 192, 192, 12
        $region36: #{_lambda_.15} parent=27 // pred_fallthru
          _
      $region28: #{_lambda_.15} parent=5 // pred_fallthru
        _
      %p258 = scmp.le.s32.totalorder 1, %s19
      %p259 = scmp.lt.s32.totalorder %s19, 3
      %p260 = pnand %p258, %p259
      %p261 = pneg %p260
      // Predicated region
      $region37: #{_lambda_.15} parent=5 // pred_check
        _
      $region38: #{_lambda_.15} parent=5 // pred_check_branch
        %263 = sbr.rel (%p260) target = $region40
      $region39: #{_lambda_.15} parent=5 // pred_region
        %s264 = ssub.s32 %s19, 1
        %s265 = sand.u32 %s24, 1
        %s266 = scalar_lea.sflag [#allocation3], %s265
        %s267 = sand.u32 %s32, 1
        %s268 = smul.addr %s267, 48
        %s269 = scalar_lea.vmem [#allocation2], %s268
        // Predicated region
        $region41: #{_lambda_.15} parent=39 // pred_check
          %p270 = pneg %p45
        $region42: #{_lambda_.15} parent=39 // pred_check_branch
          %272 = sbr.rel (%p270) target = $region44
        $region43: #{_lambda_.15} parent=39 // pred_region
          %273 = dma.done %s266, 768
        $region44: #{_lambda_.15} parent=39 // pred_fallthru
          _
        // Predicated region
        $region45: #{_lambda_.15} parent=39 // pred_check
          %p274 = pneg %p66
        $region46: #{_lambda_.15} parent=39 // pred_check_branch
          %276 = sbr.rel (%p274) target = $region48
        $region47: #{_lambda_.15} parent=39 // pred_region
          %277 = dma.done [#allocation6], 2304
        $region48: #{_lambda_.15} parent=39 // pred_fallthru
          _
        // Predicated region
        $region49: #{_lambda_.15} parent=39 // pred_check
          %p278 = pneg %p87
        $region50: #{_lambda_.15} parent=39 // pred_check_branch
          %280 = sbr.rel (%p278) target = $region52
        $region51: #{_lambda_.15} parent=39 // pred_region
          %281 = dma.done [#allocation6], 512
        $region52: #{_lambda_.15} parent=39 // pred_fallthru
          _
        // Predicated region
        $region53: #{_lambda_.15} parent=39 // pred_check
          %p282 = pneg %p108
        $region54: #{_lambda_.15} parent=39 // pred_check_branch
          %284 = sbr.rel (%p282) target = $region56
        $region55: #{_lambda_.15} parent=39 // pred_region
          %285 = dma.done [#allocation9], 16
        $region56: #{_lambda_.15} parent=39 // pred_fallthru
          _
        %s286 = sand.u32 %s24, 1
        %s287 = scalar_lea.sflag [#allocation3], %s286
        %s288 = sand.u32 %s121, 1
        %s289 = smul.addr %s288, 48
        %s290 = scalar_lea.vmem [#allocation10], %s289
        // Predicated region
        $region57: #{_lambda_.15} parent=39 // pred_check
          %p291 = pneg %p134
        $region58: #{_lambda_.15} parent=39 // pred_check_branch
          %293 = sbr.rel (%p291) target = $region60
        $region59: #{_lambda_.15} parent=39 // pred_region
          %294 = dma.done %s287, 768
        $region60: #{_lambda_.15} parent=39 // pred_fallthru
          _
        %s295 = sand.u32 %s24, 1
        %s296 = scalar_lea.sflag [#allocation3], %s295
        %s297 = sand.u32 %s32, 1
        %s298 = smul.addr %s297, 48
        %s299 = scalar_lea.vmem [#allocation2], %s298
        %p300 = pneg %p45
        %p301 = pneg %p42
        %p302 = pneg %p66
        %p303 = pneg %p63
        %p304 = pneg %p87
        %p305 = pneg %p84
        %p306 = pneg %p108
        %p307 = pneg %p105
        %s308 = sand.u32 %s24, 1
        %s309 = scalar_lea.sflag [#allocation3], %s308
        %s310 = sand.u32 %s121, 1
        %s311 = smul.addr %s310, 48
        %s312 = scalar_lea.vmem [#allocation10], %s311
        %p313 = pneg %p134
        %p314 = pneg %p131
        %p315 = pneg %p160
        %p316 = pneg %p157
        %s317 = sand.u32 %s147, 1
        %s318 = scalar_lea.sflag [#allocation4], %s317
        %s319 = sand.u32 %s147, 1
        %s320 = smul.addr %s319, 48
        %s321 = scalar_lea.vmem [#allocation11], %s320
        %v323 = vld [vmem:[#allocation5] sm:$0xf]
        %v324 = vld [vmem:[#allocation5 + $0x4] sm:$0xf]
        %v325 = vld [vmem:[#allocation5 + $0x8] sm:$0xf]
        %v326 = vld [vmem:[#allocation5 + $0xc] sm:$0xf]
        %v327 = vld [vmem:[%s269] sm:$0xff]
        %v328 = vld [vmem:[%s269 + $0xc] sm:$0xff]
        %v329 = vld [vmem:[%s269 + $0x18] sm:$0xff]
        %v330 = vld [vmem:[%s269 + $0x24] sm:$0xff]
        %s331 = scalar_lea.vmem [#allocation5], 16
        %v332 = vld [vmem:[%s331] sm:$0xf]
        %v333 = vld [vmem:[%s331 + $0x4] sm:$0xf]
        %v334 = vld [vmem:[%s331 + $0x8] sm:$0xf]
        %v335 = vld [vmem:[%s331 + $0xc] sm:$0xf]
        %v340 = vunpack.c.l.b16 %v332
        %v341 = vunpack.c.l.b16 %v333
        %v342 = vunpack.c.l.b16 %v334
        %v343 = vunpack.c.l.b16 %v335
        %v344 = vpack.c.b16 %v341, %v340
        %v345 = vpack.c.b16 %v343, %v342
        %v350 = vunpack.c.l.b16 %v327
        %v351 = vunpack.c.h.b16 %v327
        %v352 = vunpack.c.l.b16 %v328
        %v353 = vunpack.c.h.b16 %v328
        %v354 = vunpack.c.l.b16 %v329
        %v355 = vunpack.c.h.b16 %v329
        %v356 = vunpack.c.l.b16 %v330
        %v357 = vunpack.c.h.b16 %v330
        %v358 = vpack.c.b16 %v352, %v350
        %v359 = vpack.c.b16 %v353, %v351
        %v360 = vpack.c.b16 %v356, %v354
        %v361 = vpack.c.b16 %v357, %v355
        %362 = vrot.lane.b32.xlu0 %v358, 10
        %v363 = vpop.permute.xlu0 %362
        %364 = vrot.lane.b32.xlu0 %v359, 10
        %v365 = vpop.permute.xlu0 %364
        %366 = vrot.lane.b32.xlu0 %v360, 10
        %v367 = vpop.permute.xlu0 %366
        %368 = vrot.lane.b32.xlu0 %v361, 10
        %v369 = vpop.permute.xlu0 %368
        %vm370 = vcmask 80896
        %v371 = vsel %vm370, %v363, %v365
        %v372 = vsel %vm370, %v367, %v369
        %vm375 = vcmask 261120
        %v377 = vsel %vm375, %v344, 0
        %v380 = vsel %vm375, %v345, 0
        %382 = vmatprep.subr.bf16.mxu0 0
        %383 = vmatpush1.bf16.msra.mxu0 %v371
        %384 = vmatprep.subr.bf16.mxu0 0
        %385 = vmatpush1.bf16.msra.mxu0 %v372
        %386 = vmatprep.subr.bf16.mxu0 0
        %387 = vmatpush1.bf16.msra.mxu0 0
        %388 = vmatprep.subr.bf16.mxu0 0
        %389 = vmatpush1.bf16.msra.mxu0 0
        %390 = vmatprep.subr.bf16.mxu0 0
        %391 = vmatpush1.bf16.msra.mxu0 0
        %392 = vmatprep.subr.bf16.mxu0 0
        %393 = vmatpush1.bf16.msra.mxu0 0
        %394 = vmatprep.subr.bf16.mxu0 0
        %395 = vmatpush1.bf16.msra.mxu0 0
        %396 = vmatprep.subr.bf16.mxu0 0
        %397 = vmatpush1.bf16.msra.mxu0 0
        %398 = vmatprep.subr.bf16.mxu0 0
        %399 = vmatpush1.bf16.msra.mxu0 0
        %400 = vmatprep.subr.bf16.mxu0 0
        %401 = vmatpush1.bf16.msra.mxu0 0
        %402 = vmatprep.subr.bf16.mxu0 0
        %403 = vmatpush1.bf16.msra.mxu0 0
        %404 = vmatprep.subr.bf16.mxu0 0
        %405 = vmatpush1.bf16.msra.mxu0 0
        %406 = vmatprep.subr.bf16.mxu0 0
        %407 = vmatpush1.bf16.msra.mxu0 0
        %408 = vmatprep.subr.bf16.mxu0 0
        %409 = vmatpush1.bf16.msra.mxu0 0
        %410 = vmatprep.subr.bf16.mxu0 0
        %411 = vmatpush1.bf16.msra.mxu0 0
        %412 = vmatprep.subr.bf16.mxu0 0
        %413 = vmatpush1.bf16.msra.mxu0 0
        %414 = vmatprep.mubr.bf16.mxu0 0
        %415 = vmatmul.mubr.bf16.gmra.mrb[0].mxu0 %v377
        %v416 = vpop.f32.mrb[0].mxu0
        %v417 = vadd.f32 0.0, %v416
        %v418 = vpop.f32.mrb[0].mxu0
        %v419 = vpop.f32.mrb[0].mxu0
        %v420 = vadd.f32 0.0, %v419
        %v421 = vpop.f32.mrb[0].mxu0
        %422 = vmatprep.mubr.bf16.mxu0 0
        %423 = vmatmul.mubr.bf16.gmra.mrb[0].mxu0 %v380
        %v424 = vpop.f32.mrb[0].mxu0
        %v425 = vadd.f32 0.0, %v424
        %v426 = vpop.f32.mrb[0].mxu0
        %v427 = vpop.f32.mrb[0].mxu0
        %v428 = vadd.f32 0.0, %v427
        %v429 = vpop.f32.mrb[0].mxu0
        %430 = vdwg.mxu0
        %v435 = vunpack.c.l.b16 %v323
        %v436 = vunpack.c.l.b16 %v324
        %v437 = vunpack.c.l.b16 %v325
        %v438 = vunpack.c.l.b16 %v326
        %v439 = vpack.c.b16 %v436, %v435
        %v440 = vpack.c.b16 %v438, %v437
        %441 = vrot.lane.b32.xlu0 %v358, 11
        %v442 = vpop.permute.xlu0 %441
        %443 = vrot.lane.b32.xlu0 %v359, 11
        %v444 = vpop.permute.xlu0 %443
        %445 = vrot.lane.b32.xlu0 %v360, 11
        %v446 = vpop.permute.xlu0 %445
        %447 = vrot.lane.b32.xlu0 %v361, 11
        %v448 = vpop.permute.xlu0 %447
        %vm449 = vcmask 89088
        %v450 = vsel %vm449, %v442, %v444
        %v451 = vsel %vm449, %v446, %v448
        %v455 = vsel %vm375, %v439, 0
        %v458 = vsel %vm375, %v440, 0
        %460 = vmatprep.subr.bf16.mxu0 0
        %461 = vmatpush1.bf16.msra.mxu0 %v450
        %462 = vmatprep.subr.bf16.mxu0 0
        %463 = vmatpush1.bf16.msra.mxu0 %v451
        %464 = vmatprep.subr.bf16.mxu0 0
        %465 = vmatpush1.bf16.msra.mxu0 0
        %466 = vmatprep.subr.bf16.mxu0 0
        %467 = vmatpush1.bf16.msra.mxu0 0
        %468 = vmatprep.subr.bf16.mxu0 0
        %469 = vmatpush1.bf16.msra.mxu0 0
        %470 = vmatprep.subr.bf16.mxu0 0
        %471 = vmatpush1.bf16.msra.mxu0 0
        %472 = vmatprep.subr.bf16.mxu0 0
        %473 = vmatpush1.bf16.msra.mxu0 0
        %474 = vmatprep.subr.bf16.mxu0 0
        %475 = vmatpush1.bf16.msra.mxu0 0
        %476 = vmatprep.subr.bf16.mxu0 0
        %477 = vmatpush1.bf16.msra.mxu0 0
        %478 = vmatprep.subr.bf16.mxu0 0
        %479 = vmatpush1.bf16.msra.mxu0 0
        %480 = vmatprep.subr.bf16.mxu0 0
        %481 = vmatpush1.bf16.msra.mxu0 0
        %482 = vmatprep.subr.bf16.mxu0 0
        %483 = vmatpush1.bf16.msra.mxu0 0
        %484 = vmatprep.subr.bf16.mxu0 0
        %485 = vmatpush1.bf16.msra.mxu0 0
        %486 = vmatprep.subr.bf16.mxu0 0
        %487 = vmatpush1.bf16.msra.mxu0 0
        %488 = vmatprep.subr.bf16.mxu0 0
        %489 = vmatpush1.bf16.msra.mxu0 0
        %490 = vmatprep.subr.bf16.mxu0 0
        %491 = vmatpush1.bf16.msra.mxu0 0
        %492 = vmatprep.mubr.bf16.mxu0 0
        %493 = vmatmul.mubr.bf16.gmra.mrb[0].mxu0 %v455
        %v494 = vpop.f32.mrb[0].mxu0
        %v495 = vadd.f32 %v417, %v494
        %v496 = vpop.f32.mrb[0].mxu0
        %v497 = vpop.f32.mrb[0].mxu0
        %v498 = vadd.f32 %v420, %v497
        %v499 = vpop.f32.mrb[0].mxu0
        %500 = vmatprep.mubr.bf16.mxu0 0
        %501 = vmatmul.mubr.bf16.gmra.mrb[0].mxu0 %v458
        %v502 = vpop.f32.mrb[0].mxu0
        %v503 = vadd.f32 %v425, %v502
        %v504 = vpop.f32.mrb[0].mxu0
        %v505 = vpop.f32.mrb[0].mxu0
        %v506 = vadd.f32 %v428, %v505
        %v507 = vpop.f32.mrb[0].mxu0
        %508 = vdwg.mxu0
        %s509 = scalar_lea.vmem [#allocation5], 32
        %v510 = vld [vmem:[%s509] sm:$0xf]
        %v511 = vld [vmem:[%s509 + $0x4] sm:$0xf]
        %v512 = vld [vmem:[%s509 + $0x8] sm:$0xf]
        %v513 = vld [vmem:[%s509 + $0xc] sm:$0xf]
        %v518 = vunpack.c.l.b16 %v510
        %v519 = vunpack.c.l.b16 %v511
        %v520 = vunpack.c.l.b16 %v512
        %v521 = vunpack.c.l.b16 %v513
        %v522 = vpack.c.b16 %v519, %v518
        %v523 = vpack.c.b16 %v521, %v520
        %524 = vrot.lane.b32.xlu0 %v358, 9
        %v525 = vpop.permute.xlu0 %524
        %526 = vrot.lane.b32.xlu0 %v359, 9
        %v527 = vpop.permute.xlu0 %526
        %528 = vrot.lane.b32.xlu0 %v360, 9
        %v529 = vpop.permute.xlu0 %528
        %530 = vrot.lane.b32.xlu0 %v361, 9
        %v531 = vpop.permute.xlu0 %530
        %vm532 = vcmask 72704
        %v533 = vsel %vm532, %v525, %v527
        %v534 = vsel %vm532, %v529, %v531
        %v538 = vsel %vm375, %v522, 0
        %v541 = vsel %vm375, %v523, 0
        %543 = vmatprep.subr.bf16.mxu0 0
        %544 = vmatpush1.bf16.msra.mxu0 %v533
        %545 = vmatprep.subr.bf16.mxu0 0
        %546 = vmatpush1.bf16.msra.mxu0 %v534
        %547 = vmatprep.subr.bf16.mxu0 0
        %548 = vmatpush1.bf16.msra.mxu0 0
        %549 = vmatprep.subr.bf16.mxu0 0
        %550 = vmatpush1.bf16.msra.mxu0 0
        %551 = vmatprep.subr.bf16.mxu0 0
        %552 = vmatpush1.bf16.msra.mxu0 0
        %553 = vmatprep.subr.bf16.mxu0 0
        %554 = vmatpush1.bf16.msra.mxu0 0
        %555 = vmatprep.subr.bf16.mxu0 0
        %556 = vmatpush1.bf16.msra.mxu0 0
        %557 = vmatprep.subr.bf16.mxu0 0
        %558 = vmatpush1.bf16.msra.mxu0 0
        %559 = vmatprep.subr.bf16.mxu0 0
        %560 = vmatpush1.bf16.msra.mxu0 0
        %561 = vmatprep.subr.bf16.mxu0 0
        %562 = vmatpush1.bf16.msra.mxu0 0
        %563 = vmatprep.subr.bf16.mxu0 0
        %564 = vmatpush1.bf16.msra.mxu0 0
        %565 = vmatprep.subr.bf16.mxu0 0
        %566 = vmatpush1.bf16.msra.mxu0 0
        %567 = vmatprep.subr.bf16.mxu0 0
        %568 = vmatpush1.bf16.msra.mxu0 0
        %569 = vmatprep.subr.bf16.mxu0 0
        %570 = vmatpush1.bf16.msra.mxu0 0
        %571 = vmatprep.subr.bf16.mxu0 0
        %572 = vmatpush1.bf16.msra.mxu0 0
        %573 = vmatprep.subr.bf16.mxu0 0
        %574 = vmatpush1.bf16.msra.mxu0 0
        %575 = vmatprep.mubr.bf16.mxu0 0
        %576 = vmatmul.mubr.bf16.gmra.mrb[0].mxu0 %v538
        %v577 = vpop.f32.mrb[0].mxu0
        %v578 = vadd.f32 0.0, %v577
        %v579 = vpop.f32.mrb[0].mxu0
        %v580 = vpop.f32.mrb[0].mxu0
        %v581 = vadd.f32 0.0, %v580
        %v582 = vpop.f32.mrb[0].mxu0
        %583 = vmatprep.mubr.bf16.mxu0 0
        %584 = vmatmul.mubr.bf16.gmra.mrb[0].mxu0 %v541
        %v585 = vpop.f32.mrb[0].mxu0
        %v586 = vadd.f32 0.0, %v585
        %v587 = vpop.f32.mrb[0].mxu0
        %v588 = vpop.f32.mrb[0].mxu0
        %v589 = vadd.f32 0.0, %v588
        %v590 = vpop.f32.mrb[0].mxu0
        %591 = vdwg.mxu0
        %v592 = vadd.f32 %v495, %v578
        %v593 = vadd.f32 %v498, %v581
        %v594 = vadd.f32 %v503, %v586
        %v595 = vadd.f32 %v506, %v589
        %s596 = scalar_lea.vmem [#allocation5], 48
        %v597 = vld [vmem:[%s596] sm:$0xf]
        %v598 = vld [vmem:[%s596 + $0x4] sm:$0xf]
        %v599 = vld [vmem:[%s596 + $0x8] sm:$0xf]
        %v600 = vld [vmem:[%s596 + $0xc] sm:$0xf]
        %v605 = vunpack.c.l.b16 %v597
        %v606 = vunpack.c.l.b16 %v598
        %v607 = vunpack.c.l.b16 %v599
        %v608 = vunpack.c.l.b16 %v600
        %v609 = vpack.c.b16 %v606, %v605
        %v610 = vpack.c.b16 %v608, %v607
        %611 = vrot.lane.b32.xlu0 %v358, 1
        %v612 = vpop.permute.xlu0 %611
        %613 = vrot.lane.b32.xlu0 %v359, 1
        %v614 = vpop.permute.xlu0 %613
        %615 = vrot.lane.b32.xlu0 %v360, 1
        %v616 = vpop.permute.xlu0 %615
        %617 = vrot.lane.b32.xlu0 %v361, 1
        %v618 = vpop.permute.xlu0 %617
        %vm619 = vcmask 7168
        %v620 = vsel %vm619, %v612, %v614
        %v621 = vsel %vm619, %v616, %v618
        %v625 = vsel %vm375, %v609, 0
        %v628 = vsel %vm375, %v610, 0
        %630 = vmatprep.subr.bf16.mxu0 0
        %631 = vmatpush1.bf16.msra.mxu0 %v620
        %632 = vmatprep.subr.bf16.mxu0 0
        %633 = vmatpush1.bf16.msra.mxu0 %v621
        %634 = vmatprep.subr.bf16.mxu0 0
        %635 = vmatpush1.bf16.msra.mxu0 0
        %636 = vmatprep.subr.bf16.mxu0 0
        %637 = vmatpush1.bf16.msra.mxu0 0
        %638 = vmatprep.subr.bf16.mxu0 0
        %639 = vmatpush1.bf16.msra.mxu0 0
        %640 = vmatprep.subr.bf16.mxu0 0
        %641 = vmatpush1.bf16.msra.mxu0 0
        %642 = vmatprep.subr.bf16.mxu0 0
        %643 = vmatpush1.bf16.msra.mxu0 0
        %644 = vmatprep.subr.bf16.mxu0 0
        %645 = vmatpush1.bf16.msra.mxu0 0
        %646 = vmatprep.subr.bf16.mxu0 0
        %647 = vmatpush1.bf16.msra.mxu0 0
        %648 = vmatprep.subr.bf16.mxu0 0
        %649 = vmatpush1.bf16.msra.mxu0 0
        %650 = vmatprep.subr.bf16.mxu0 0
        %651 = vmatpush1.bf16.msra.mxu0 0
        %652 = vmatprep.subr.bf16.mxu0 0
        %653 = vmatpush1.bf16.msra.mxu0 0
        %654 = vmatprep.subr.bf16.mxu0 0
        %655 = vmatpush1.bf16.msra.mxu0 0
        %656 = vmatprep.subr.bf16.mxu0 0
        %657 = vmatpush1.bf16.msra.mxu0 0
        %658 = vmatprep.subr.bf16.mxu0 0
        %659 = vmatpush1.bf16.msra.mxu0 0
        %660 = vmatprep.subr.bf16.mxu0 0
        %661 = vmatpush1.bf16.msra.mxu0 0
        %662 = vmatprep.mubr.bf16.mxu0 0
        %663 = vmatmul.mubr.bf16.gmra.mrb[0].mxu0 %v625
        %v664 = vpop.f32.mrb[0].mxu0
        %v665 = vadd.f32 0.0, %v664
        %v666 = vpop.f32.mrb[0].mxu0
        %v667 = vpop.f32.mrb[0].mxu0
        %v668 = vadd.f32 0.0, %v667
        %v669 = vpop.f32.mrb[0].mxu0
        %670 = vmatprep.mubr.bf16.mxu0 0
        %671 = vmatmul.mubr.bf16.gmra.mrb[0].mxu0 %v628
        %v672 = vpop.f32.mrb[0].mxu0
        %v673 = vadd.f32 0.0, %v672
        %v674 = vpop.f32.mrb[0].mxu0
        %v675 = vpop.f32.mrb[0].mxu0
        %v676 = vadd.f32 0.0, %v675
        %v677 = vpop.f32.mrb[0].mxu0
        %678 = vdwg.mxu0
        %v679 = vadd.f32 %v592, %v665
        %v680 = vadd.f32 %v593, %v668
        %v681 = vadd.f32 %v594, %v673
        %v682 = vadd.f32 %v595, %v676
        %s683 = scalar_lea.vmem [#allocation5], 64
        %v684 = vld [vmem:[%s683] sm:$0xf]
        %v685 = vld [vmem:[%s683 + $0x4] sm:$0xf]
        %v686 = vld [vmem:[%s683 + $0x8] sm:$0xf]
        %v687 = vld [vmem:[%s683 + $0xc] sm:$0xf]
        %v688 = vld [vmem:[%s269 + $0x4] sm:$0xf]
        %v689 = vld [vmem:[%s269 + $0x10] sm:$0xf]
        %v690 = vld [vmem:[%s269 + $0x1c] sm:$0xf]
        %v691 = vld [vmem:[%s269 + $0x28] sm:$0xf]
        %v696 = vunpack.c.l.b16 %v684
        %v697 = vunpack.c.l.b16 %v685
        %v698 = vunpack.c.l.b16 %v686
        %v699 = vunpack.c.l.b16 %v687
        %v700 = vpack.c.b16 %v697, %v696
        %v701 = vpack.c.b16 %v699, %v698
        %v706 = vunpack.c.l.b16 %v688
        %v707 = vunpack.c.l.b16 %v689
        %v708 = vunpack.c.l.b16 %v690
        %v709 = vunpack.c.l.b16 %v691
        %v710 = vpack.c.b16 %v707, %v706
        %v711 = vpack.c.b16 %v709, %v708
        %v715 = vsel %vm375, %v700, 0
        %v718 = vsel %vm375, %v701, 0
        %720 = vmatprep.subr.bf16.mxu0 0
        %721 = vmatpush1.bf16.msra.mxu0 %v710
        %722 = vmatprep.subr.bf16.mxu0 0
        %723 = vmatpush1.bf16.msra.mxu0 %v711
        %724 = vmatprep.subr.bf16.mxu0 0
        %725 = vmatpush1.bf16.msra.mxu0 0
        %726 = vmatprep.subr.bf16.mxu0 0
        %727 = vmatpush1.bf16.msra.mxu0 0
        %728 = vmatprep.subr.bf16.mxu0 0
        %729 = vmatpush1.bf16.msra.mxu0 0
        %730 = vmatprep.subr.bf16.mxu0 0
        %731 = vmatpush1.bf16.msra.mxu0 0
        %732 = vmatprep.subr.bf16.mxu0 0
        %733 = vmatpush1.bf16.msra.mxu0 0
        %734 = vmatprep.subr.bf16.mxu0 0
        %735 = vmatpush1.bf16.msra.mxu0 0
        %736 = vmatprep.subr.bf16.mxu0 0
        %737 = vmatpush1.bf16.msra.mxu0 0
        %738 = vmatprep.subr.bf16.mxu0 0
        %739 = vmatpush1.bf16.msra.mxu0 0
        %740 = vmatprep.subr.bf16.mxu0 0
        %741 = vmatpush1.bf16.msra.mxu0 0
        %742 = vmatprep.subr.bf16.mxu0 0
        %743 = vmatpush1.bf16.msra.mxu0 0
        %744 = vmatprep.subr.bf16.mxu0 0
        %745 = vmatpush1.bf16.msra.mxu0 0
        %746 = vmatprep.subr.bf16.mxu0 0
        %747 = vmatpush1.bf16.msra.mxu0 0
        %748 = vmatprep.subr.bf16.mxu0 0
        %749 = vmatpush1.bf16.msra.mxu0 0
        %750 = vmatprep.subr.bf16.mxu0 0
        %751 = vmatpush1.bf16.msra.mxu0 0
        %752 = vmatprep.mubr.bf16.mxu0 0
        %753 = vmatmul.mubr.bf16.gmra.mrb[0].mxu0 %v715
        %v754 = vpop.f32.mrb[0].mxu0
        %v755 = vadd.f32 0.0, %v754
        %v756 = vpop.f32.mrb[0].mxu0
        %v757 = vpop.f32.mrb[0].mxu0
        %v758 = vadd.f32 0.0, %v757
        %v759 = vpop.f32.mrb[0].mxu0
        %760 = vmatprep.mubr.bf16.mxu0 0
        %761 = vmatmul.mubr.bf16.gmra.mrb[0].mxu0 %v718
        %v762 = vpop.f32.mrb[0].mxu0
        %v763 = vadd.f32 0.0, %v762
        %v764 = vpop.f32.mrb[0].mxu0
        %v765 = vpop.f32.mrb[0].mxu0
        %v766 = vadd.f32 0.0, %v765
        %v767 = vpop.f32.mrb[0].mxu0
        %768 = vdwg.mxu0
        %v769 = vadd.f32 %v679, %v755
        %v770 = vadd.f32 %v680, %v758
        %v771 = vadd.f32 %v681, %v763
        %v772 = vadd.f32 %v682, %v766
        %s773 = scalar_lea.vmem [#allocation5], 80
        %v774 = vld [vmem:[%s773] sm:$0xf]
        %v775 = vld [vmem:[%s773 + $0x4] sm:$0xf]
        %v776 = vld [vmem:[%s773 + $0x8] sm:$0xf]
        %v777 = vld [vmem:[%s773 + $0xc] sm:$0xf]
        %v782 = vunpack.c.l.b16 %v774
        %v783 = vunpack.c.l.b16 %v775
        %v784 = vunpack.c.l.b16 %v776
        %v785 = vunpack.c.l.b16 %v777
        %v786 = vpack.c.b16 %v783, %v782
        %v787 = vpack.c.b16 %v785, %v784
        %788 = vrot.lane.b32.xlu0 %v710, 127
        %v789 = vpop.permute.xlu0 %788
        %790 = vrot.lane.b32.xlu0 %v711, 127
        %v791 = vpop.permute.xlu0 %790
        %v795 = vsel %vm375, %v786, 0
        %v798 = vsel %vm375, %v787, 0
        %800 = vmatprep.subr.bf16.mxu0 0
        %801 = vmatpush1.bf16.msra.mxu0 %v789
        %802 = vmatprep.subr.bf16.mxu0 0
        %803 = vmatpush1.bf16.msra.mxu0 %v791
        %804 = vmatprep.subr.bf16.mxu0 0
        %805 = vmatpush1.bf16.msra.mxu0 0
        %806 = vmatprep.subr.bf16.mxu0 0
        %807 = vmatpush1.bf16.msra.mxu0 0
        %808 = vmatprep.subr.bf16.mxu0 0
        %809 = vmatpush1.bf16.msra.mxu0 0
        %810 = vmatprep.subr.bf16.mxu0 0
        %811 = vmatpush1.bf16.msra.mxu0 0
        %812 = vmatprep.subr.bf16.mxu0 0
        %813 = vmatpush1.bf16.msra.mxu0 0
        %814 = vmatprep.subr.bf16.mxu0 0
        %815 = vmatpush1.bf16.msra.mxu0 0
        %816 = vmatprep.subr.bf16.mxu0 0
        %817 = vmatpush1.bf16.msra.mxu0 0
        %818 = vmatprep.subr.bf16.mxu0 0
        %819 = vmatpush1.bf16.msra.mxu0 0
        %820 = vmatprep.subr.bf16.mxu0 0
        %821 = vmatpush1.bf16.msra.mxu0 0
        %822 = vmatprep.subr.bf16.mxu0 0
        %823 = vmatpush1.bf16.msra.mxu0 0
        %824 = vmatprep.subr.bf16.mxu0 0
        %825 = vmatpush1.bf16.msra.mxu0 0
        %826 = vmatprep.subr.bf16.mxu0 0
        %827 = vmatpush1.bf16.msra.mxu0 0
        %828 = vmatprep.subr.bf16.mxu0 0
        %829 = vmatpush1.bf16.msra.mxu0 0
        %830 = vmatprep.subr.bf16.mxu0 0
        %831 = vmatpush1.bf16.msra.mxu0 0
        %832 = vmatprep.mubr.bf16.mxu0 0
        %833 = vmatmul.mubr.bf16.gmra.mrb[0].mxu0 %v795
        %v834 = vpop.f32.mrb[0].mxu0
        %v835 = vadd.f32 0.0, %v834
        %v836 = vpop.f32.mrb[0].mxu0
        %v837 = vpop.f32.mrb[0].mxu0
        %v838 = vadd.f32 0.0, %v837
        %v839 = vpop.f32.mrb[0].mxu0
        %840 = vmatprep.mubr.bf16.mxu0 0
        %841 = vmatmul.mubr.bf16.gmra.mrb[0].mxu0 %v798
        %v842 = vpop.f32.mrb[0].mxu0
        %v843 = vadd.f32 0.0, %v842
        %v844 = vpop.f32.mrb[0].mxu0
        %v845 = vpop.f32.mrb[0].mxu0
        %v846 = vadd.f32 0.0, %v845
        %v847 = vpop.f32.mrb[0].mxu0
        %848 = vdwg.mxu0
        %v849 = vadd.f32 %v769, %v835
        %v850 = vadd.f32 %v770, %v838
        %v851 = vadd.f32 %v771, %v843
        %v852 = vadd.f32 %v772, %v846
        %s853 = scalar_lea.vmem [#allocation5], 96
        %v854 = vld [vmem:[%s853] sm:$0xf]
        %v855 = vld [vmem:[%s853 + $0x4] sm:$0xf]
        %v856 = vld [vmem:[%s853 + $0x8] sm:$0xf]
        %v857 = vld [vmem:[%s853 + $0xc] sm:$0xf]
        %v862 = vunpack.c.l.b16 %v854
        %v863 = vunpack.c.l.b16 %v855
        %v864 = vunpack.c.l.b16 %v856
        %v865 = vunpack.c.l.b16 %v857
        %v866 = vpack.c.b16 %v863, %v862
        %v867 = vpack.c.b16 %v865, %v864
        %868 = vrot.lane.b32.xlu0 %v710, 119
        %v869 = vpop.permute.xlu0 %868
        %870 = vrot.lane.b32.xlu0 %v711, 119
        %v871 = vpop.permute.xlu0 %870
        %v875 = vsel %vm375, %v866, 0
        %v878 = vsel %vm375, %v867, 0
        %880 = vmatprep.subr.bf16.mxu0 0
        %881 = vmatpush1.bf16.msra.mxu0 %v869
        %882 = vmatprep.subr.bf16.mxu0 0
        %883 = vmatpush1.bf16.msra.mxu0 %v871
        %884 = vmatprep.subr.bf16.mxu0 0
        %885 = vmatpush1.bf16.msra.mxu0 0
        %886 = vmatprep.subr.bf16.mxu0 0
        %887 = vmatpush1.bf16.msra.mxu0 0
        %888 = vmatprep.subr.bf16.mxu0 0
        %889 = vmatpush1.bf16.msra.mxu0 0
        %890 = vmatprep.subr.bf16.mxu0 0
        %891 = vmatpush1.bf16.msra.mxu0 0
        %892 = vmatprep.subr.bf16.mxu0 0
        %893 = vmatpush1.bf16.msra.mxu0 0
        %894 = vmatprep.subr.bf16.mxu0 0
        %895 = vmatpush1.bf16.msra.mxu0 0
        %896 = vmatprep.subr.bf16.mxu0 0
        %897 = vmatpush1.bf16.msra.mxu0 0
        %898 = vmatprep.subr.bf16.mxu0 0
        %899 = vmatpush1.bf16.msra.mxu0 0
        %900 = vmatprep.subr.bf16.mxu0 0
        %901 = vmatpush1.bf16.msra.mxu0 0
        %902 = vmatprep.subr.bf16.mxu0 0
        %903 = vmatpush1.bf16.msra.mxu0 0
        %904 = vmatprep.subr.bf16.mxu0 0
        %905 = vmatpush1.bf16.msra.mxu0 0
        %906 = vmatprep.subr.bf16.mxu0 0
        %907 = vmatpush1.bf16.msra.mxu0 0
        %908 = vmatprep.subr.bf16.mxu0 0
        %909 = vmatpush1.bf16.msra.mxu0 0
        %910 = vmatprep.subr.bf16.mxu0 0
        %911 = vmatpush1.bf16.msra.mxu0 0
        %912 = vmatprep.mubr.bf16.mxu0 0
        %913 = vmatmul.mubr.bf16.gmra.mrb[0].mxu0 %v875
        %v914 = vpop.f32.mrb[0].mxu0
        %v915 = vadd.f32 0.0, %v914
        %v916 = vpop.f32.mrb[0].mxu0
        %v917 = vpop.f32.mrb[0].mxu0
        %v918 = vadd.f32 0.0, %v917
        %v919 = vpop.f32.mrb[0].mxu0
        %920 = vmatprep.mubr.bf16.mxu0 0
        %921 = vmatmul.mubr.bf16.gmra.mrb[0].mxu0 %v878
        %v922 = vpop.f32.mrb[0].mxu0
        %v923 = vadd.f32 0.0, %v922
        %v924 = vpop.f32.mrb[0].mxu0
        %v925 = vpop.f32.mrb[0].mxu0
        %v926 = vadd.f32 0.0, %v925
        %v927 = vpop.f32.mrb[0].mxu0
        %928 = vdwg.mxu0
        %v929 = vadd.f32 %v849, %v915
        %v930 = vadd.f32 %v850, %v918
        %v931 = vadd.f32 %v851, %v923
        %v932 = vadd.f32 %v852, %v926
        %s933 = scalar_lea.vmem [#allocation5], 112
        %v934 = vld [vmem:[%s933] sm:$0xf]
        %v935 = vld [vmem:[%s933 + $0x4] sm:$0xf]
        %v936 = vld [vmem:[%s933 + $0x8] sm:$0xf]
        %v937 = vld [vmem:[%s933 + $0xc] sm:$0xf]
        %v942 = vunpack.c.l.b16 %v934
        %v943 = vunpack.c.l.b16 %v935
        %v944 = vunpack.c.l.b16 %v936
        %v945 = vunpack.c.l.b16 %v937
        %v946 = vpack.c.b16 %v943, %v942
        %v947 = vpack.c.b16 %v945, %v944
        %948 = vrot.lane.b32.xlu0 %v710, 118
        %v949 = vpop.permute.xlu0 %948
        %950 = vrot.lane.b32.xlu0 %v711, 118
        %v951 = vpop.permute.xlu0 %950
        %v955 = vsel %vm375, %v946, 0
        %v958 = vsel %vm375, %v947, 0
        %960 = vmatprep.subr.bf16.mxu0 0
        %961 = vmatpush1.bf16.msra.mxu0 %v949
        %962 = vmatprep.subr.bf16.mxu0 0
        %963 = vmatpush1.bf16.msra.mxu0 %v951
        %964 = vmatprep.subr.bf16.mxu0 0
        %965 = vmatpush1.bf16.msra.mxu0 0
        %966 = vmatprep.subr.bf16.mxu0 0
        %967 = vmatpush1.bf16.msra.mxu0 0
        %968 = vmatprep.subr.bf16.mxu0 0
        %969 = vmatpush1.bf16.msra.mxu0 0
        %970 = vmatprep.subr.bf16.mxu0 0
        %971 = vmatpush1.bf16.msra.mxu0 0
        %972 = vmatprep.subr.bf16.mxu0 0
        %973 = vmatpush1.bf16.msra.mxu0 0
        %974 = vmatprep.subr.bf16.mxu0 0
        %975 = vmatpush1.bf16.msra.mxu0 0
        %976 = vmatprep.subr.bf16.mxu0 0
        %977 = vmatpush1.bf16.msra.mxu0 0
        %978 = vmatprep.subr.bf16.mxu0 0
        %979 = vmatpush1.bf16.msra.mxu0 0
        %980 = vmatprep.subr.bf16.mxu0 0
        %981 = vmatpush1.bf16.msra.mxu0 0
        %982 = vmatprep.subr.bf16.mxu0 0
        %983 = vmatpush1.bf16.msra.mxu0 0
        %984 = vmatprep.subr.bf16.mxu0 0
        %985 = vmatpush1.bf16.msra.mxu0 0
        %986 = vmatprep.subr.bf16.mxu0 0
        %987 = vmatpush1.bf16.msra.mxu0 0
        %988 = vmatprep.subr.bf16.mxu0 0
        %989 = vmatpush1.bf16.msra.mxu0 0
        %990 = vmatprep.subr.bf16.mxu0 0
        %991 = vmatpush1.bf16.msra.mxu0 0
        %992 = vmatprep.mubr.bf16.mxu0 0
        %993 = vmatmul.mubr.bf16.gmra.mrb[0].mxu0 %v955
        %v994 = vpop.f32.mrb[0].mxu0
        %v995 = vadd.f32 0.0, %v994
        %v996 = vpop.f32.mrb[0].mxu0
        %v997 = vpop.f32.mrb[0].mxu0
        %v998 = vadd.f32 0.0, %v997
        %v999 = vpop.f32.mrb[0].mxu0
        %1000 = vmatprep.mubr.bf16.mxu0 0
        %1001 = vmatmul.mubr.bf16.gmra.mrb[0].mxu0 %v958
        %v1002 = vpop.f32.mrb[0].mxu0
        %v1003 = vadd.f32 0.0, %v1002
        %v1004 = vpop.f32.mrb[0].mxu0
        %v1005 = vpop.f32.mrb[0].mxu0
        %v1006 = vadd.f32 0.0, %v1005
        %v1007 = vpop.f32.mrb[0].mxu0
        %1008 = vdwg.mxu0
        %v1009 = vadd.f32 %v929, %v995
        %v1010 = vadd.f32 %v930, %v998
        %v1011 = vadd.f32 %v931, %v1003
        %v1012 = vadd.f32 %v932, %v1006
        %s1013 = scalar_lea.vmem [#allocation5], 128
        %v1014 = vld [vmem:[%s1013] sm:$0xf]
        %v1015 = vld [vmem:[%s1013 + $0x4] sm:$0xf]
        %v1016 = vld [vmem:[%s1013 + $0x8] sm:$0xf]
        %v1017 = vld [vmem:[%s1013 + $0xc] sm:$0xf]
        %v1022 = vunpack.c.l.b16 %v1014
        %v1023 = vunpack.c.l.b16 %v1015
        %v1024 = vunpack.c.l.b16 %v1016
        %v1025 = vunpack.c.l.b16 %v1017
        %v1026 = vpack.c.b16 %v1023, %v1022
        %v1027 = vpack.c.b16 %v1025, %v1024
        %1028 = vrot.lane.b32.xlu0 %v710, 117
        %v1029 = vpop.permute.xlu0 %1028
        %1030 = vrot.lane.b32.xlu0 %v711, 117
        %v1031 = vpop.permute.xlu0 %1030
        %v1035 = vsel %vm375, %v1026, 0
        %v1038 = vsel %vm375, %v1027, 0
        %1040 = vmatprep.subr.bf16.mxu0 0
        %1041 = vmatpush1.bf16.msra.mxu0 %v1029
        %1042 = vmatprep.subr.bf16.mxu0 0
        %1043 = vmatpush1.bf16.msra.mxu0 %v1031
        %1044 = vmatprep.subr.bf16.mxu0 0
        %1045 = vmatpush1.bf16.msra.mxu0 0
        %1046 = vmatprep.subr.bf16.mxu0 0
        %1047 = vmatpush1.bf16.msra.mxu0 0
        %1048 = vmatprep.subr.bf16.mxu0 0
        %1049 = vmatpush1.bf16.msra.mxu0 0
        %1050 = vmatprep.subr.bf16.mxu0 0
        %1051 = vmatpush1.bf16.msra.mxu0 0
        %1052 = vmatprep.subr.bf16.mxu0 0
        %1053 = vmatpush1.bf16.msra.mxu0 0
        %1054 = vmatprep.subr.bf16.mxu0 0
        %1055 = vmatpush1.bf16.msra.mxu0 0
        %1056 = vmatprep.subr.bf16.mxu0 0
        %1057 = vmatpush1.bf16.msra.mxu0 0
        %1058 = vmatprep.subr.bf16.mxu0 0
        %1059 = vmatpush1.bf16.msra.mxu0 0
        %1060 = vmatprep.subr.bf16.mxu0 0
        %1061 = vmatpush1.bf16.msra.mxu0 0
        %1062 = vmatprep.subr.bf16.mxu0 0
        %1063 = vmatpush1.bf16.msra.mxu0 0
        %1064 = vmatprep.subr.bf16.mxu0 0
        %1065 = vmatpush1.bf16.msra.mxu0 0
        %1066 = vmatprep.subr.bf16.mxu0 0
        %1067 = vmatpush1.bf16.msra.mxu0 0
        %1068 = vmatprep.subr.bf16.mxu0 0
        %1069 = vmatpush1.bf16.msra.mxu0 0
        %1070 = vmatprep.subr.bf16.mxu0 0
        %1071 = vmatpush1.bf16.msra.mxu0 0
        %1072 = vmatprep.mubr.bf16.mxu0 0
        %1073 = vmatmul.mubr.bf16.gmra.mrb[0].mxu0 %v1035
        %v1074 = vpop.f32.mrb[0].mxu0
        %v1075 = vadd.f32 0.0, %v1074
        %v1076 = vpop.f32.mrb[0].mxu0
        %v1077 = vpop.f32.mrb[0].mxu0
        %v1078 = vadd.f32 0.0, %v1077
        %v1079 = vpop.f32.mrb[0].mxu0
        %1080 = vmatprep.mubr.bf16.mxu0 0
        %1081 = vmatmul.mubr.bf16.gmra.mrb[0].mxu0 %v1038
        %v1082 = vpop.f32.mrb[0].mxu0
        %v1083 = vadd.f32 0.0, %v1082
        %v1084 = vpop.f32.mrb[0].mxu0
        %v1085 = vpop.f32.mrb[0].mxu0
        %v1086 = vadd.f32 0.0, %v1085
        %v1087 = vpop.f32.mrb[0].mxu0
        %1088 = vdwg.mxu0
        %v1089 = vadd.f32 %v1009, %v1075
        %v1090 = vadd.f32 %v1010, %v1078
        %v1091 = vadd.f32 %v1011, %v1083
        %v1092 = vadd.f32 %v1012, %v1086
        %v1093 = vld [vmem:[#allocation7] sm:$0xff]
        %v1094 = vld [vmem:[#allocation7 + $0x8] sm:$0xff]
        %v1095 = vld [vmem:[#allocation7 + $0x10] sm:$0xff]
        %v1096 = vld [vmem:[#allocation7 + $0x18] sm:$0xff]
        %1098 = vset.pattern.permute.xlu0 0
        %1099 = vperm.xlu0 %1098, %v1093
        %v1100 = vpop.permute.xlu0 %1099
        %1103 = vset.pattern.permute.xlu0 0
        %1104 = vperm.xlu0 %1103, %v1094
        %v1105 = vpop.permute.xlu0 %1104
        %1108 = vset.pattern.permute.xlu0 0
        %1109 = vperm.xlu0 %1108, %v1095
        %v1110 = vpop.permute.xlu0 %1109
        %1113 = vset.pattern.permute.xlu0 0
        %1114 = vperm.xlu0 %1113, %v1096
        %v1115 = vpop.permute.xlu0 %1114
        %v1117 = vadd.f32 %v1089, %v1100
        %v1118 = vadd.f32 %v1090, %v1105
        %v1119 = vadd.f32 %v1091, %v1110
        %v1120 = vadd.f32 %v1092, %v1115
        %v1121 = vld [vmem:[%s290 + $0x4] sm:$0xf]
        %v1122 = vld [vmem:[%s290 + $0x10] sm:$0xf]
        %v1123 = vld [vmem:[%s290 + $0x1c] sm:$0xf]
        %v1124 = vld [vmem:[%s290 + $0x28] sm:$0xf]
        %v1125 = vunpack.c.l.bf16 %v1121
        %v1126 = vunpack.c.l.bf16 %v1122
        %v1127 = vunpack.c.l.bf16 %v1123
        %v1128 = vunpack.c.l.bf16 %v1124
        %v1129 = vadd.f32 %v1117, %v1125
        %v1130 = vadd.f32 %v1118, %v1126
        %v1131 = vadd.f32 %v1119, %v1127
        %v1132 = vadd.f32 %v1120, %v1128
        %v1133 = vmax.f32 %v1129, 0.0
        %v1134 = vmax.f32 %v1130, 0.0
        %v1135 = vmax.f32 %v1131, 0.0
        %v1136 = vmax.f32 %v1132, 0.0
        %v1137 = vld [vmem:[#allocation8] sm:$0x1]
        %vm1138 = vcmp.gt.f32.partialorder %v1137, 0.0
        %v1139 = vsel %vm1138, 1, 0
        %v1140 = vlaneseq
        %v1141 = vshrl.u32 %v1140, 7
        %v1142 = vsub.s32 0, %v1141
        %v1143 = vrot.slane %v1139, %v1142
        %vm1144 = vcmp.eq.s32.totalorder %v1143, 1
        %v1145 = vsel %vm1144, %v1133, 0.0
        %v1146 = vsel %vm1144, %v1134, 0.0
        %v1147 = vsel %vm1144, %v1135, 0.0
        %v1148 = vsel %vm1144, %v1136, 0.0
        %v1149 = vpack.c.bf16 %v1146, %v1145
        %v1150 = vpack.c.bf16 %v1148, %v1147
        %v1153 = vunpack.c.l.b16 %v1149
        %v1154 = vunpack.c.h.b16 %v1149
        %v1155 = vunpack.c.l.b16 %v1150
        %v1156 = vunpack.c.h.b16 %v1150
        %v1157 = vpack.c.b16 %v1153, %v1153
        %v1158 = vpack.c.b16 %v1154, %v1154
        %v1159 = vpack.c.b16 %v1155, %v1155
        %v1160 = vpack.c.b16 %v1156, %v1156
        %vm1165 = vcmask 814080
        %1166 = vst.msk [vmem:[%s321 + $0x4] sm:$0xf] %vm1165, %v1157
        %1167 = vst.msk [vmem:[%s321 + $0x10] sm:$0xf] %vm1165, %v1158
        %1168 = vst.msk [vmem:[%s321 + $0x1c] sm:$0xf] %vm1165, %v1159
        %1169 = vst.msk [vmem:[%s321 + $0x28] sm:$0xf] %vm1165, %v1160
        %1170 = vst [vmem:[%s321] sm:$0xf] 0
        %1171 = vst [vmem:[%s321 + $0xc] sm:$0xf] 0
        %1172 = vst [vmem:[%s321 + $0x18] sm:$0xf] 0
        %1173 = vst [vmem:[%s321 + $0x24] sm:$0xf] 0
        %vm1174 = vcmask 1044256
        %vm1175 = vcmask 818180
        %vm1176 = vmor %vm1175, %vm1174
        %1177 = vst.msk [vmem:[%s321 + $0x4] sm:$0xff] %vm1176, 0
        %1178 = vst.msk [vmem:[%s321 + $0x10] sm:$0xff] %vm1176, 0
        %1179 = vst.msk [vmem:[%s321 + $0x1c] sm:$0xff] %vm1176, 0
        %1180 = vst.msk [vmem:[%s321 + $0x28] sm:$0xff] %vm1176, 0
        %s1181 = sand.u32 %s147, 1
        %s1182 = scalar_lea.sflag [#allocation4], %s1181
        %s1183 = sand.u32 %s147, 1
        %s1184 = smul.addr %s1183, 48
        %s1185 = scalar_lea.vmem [#allocation11], %s1184
        // Predicated region
        $region61: #{_lambda_.15} parent=39 // pred_check
          %p1186 = pneg %p157
        $region62: #{_lambda_.15} parent=39 // pred_check_branch
          %1188 = sbr.rel (%p1186) target = $region64
        $region63: #{_lambda_.15} parent=39 // pred_region
          %s1190 = ssub.s32 768, 768
          %1191 = vsyncadd %s1182, %s1190
          %s1192 = smul.addr %s24, 12
          %s1193 = smul.addr %s1192, 64
          %s1194 = scalar_lea.hbm %s5, %s1193
          %s1195 = sshll.u32 %s1185, 4
          %s1196 = int_to_ptr.vmem [resolvable:$true] %s1195
          %1201 = dma.vmem_to_hbm [thread:$0]  %s1196, 768, %s1194, %s1182, 192, 192, 12
        $region64: #{_lambda_.15} parent=39 // pred_fallthru
          _
      $region40: #{_lambda_.15} parent=5 // pred_fallthru
        _
      %p1202 = scmp.le.s32.totalorder 2, %s19
      // Predicated region
      $region65: #{_lambda_.15} parent=5 // pred_check
        %p1203 = pneg %p1202
      $region66: #{_lambda_.15} parent=5 // pred_check_branch
        %1205 = sbr.rel (%p1203) target = $region68
      $region67: #{_lambda_.15} parent=5 // pred_region
        %s1206 = ssub.s32 %s19, 2
        // Predicated region
        $region69: #{_lambda_.15} parent=67 // pred_check
          %p1207 = pneg %p163
        $region70: #{_lambda_.15} parent=67 // pred_check_branch
          %1209 = sbr.rel (%p1207) target = $region72
        $region71: #{_lambda_.15} parent=67 // pred_region
          %s1210 = sand.u32 %s148, 1
          %s1211 = scalar_lea.sflag [#allocation4], %s1210
          %s1212 = sand.u32 %s148, 1
          %s1213 = smul.addr %s1212, 48
          %s1214 = scalar_lea.vmem [#allocation11], %s1213
          %1215 = dma.done %s1211, 768
        $region72: #{_lambda_.15} parent=67 // pred_fallthru
          _
      $region68: #{_lambda_.15} parent=5 // pred_fallthru
        _
    $region6: #{_lambda_.15} parent=1 // loop_footer
      %s23 = sadd.s32 1, %s19
    $region7: #{_lambda_.15} parent=1 // loop_footer_branch
      %18 = sbr.rel target = $region3
    $region8: #{_lambda_.15} parent=1 // loop_exit
      _
    %1216 = vsyncpa [#allocation3], 1
    %s1217 = scalar_lea.sflag [#allocation3], 1
    %1218 = vsyncpa %s1217, 1
    %1219 = vsyncpa [#allocation6], 1
    %1220 = vsyncpa [#allocation9], 1
    %1221 = vsyncpa [#allocation4], 1
    %s1222 = scalar_lea.sflag [#allocation4], 1
    %1223 = vsyncpa %s1222, 1

// kernel: _lambda_.16
$region0: #{_lambda_.16}
  #allocation0 [shape = 'u32[]', space=smem, size = 0x4, offset = 0x4, fixed_abs, tag = 'smem constant byte address 0x4 - core index']
  #allocation1 [shape = 'u32[144,128]{1,0:T(1,128)}', space=vmem, size = 0x12000, scoped, tag = 'internal scratch']
  %s0 = inlined_call_operand.hbm [shape: bf16[64,288], index: 0, kind: input, shape index: {}]
  %s1 = inlined_call_operand.hbm [shape: bf16[288,128], index: 1, kind: input, shape index: {}]
  %s2 = inlined_call_operand.hbm [shape: f32[64,1], index: 2, kind: input, shape index: {}]
  %s3 = inlined_call_operand.hbm [shape: bf16[64,128], index: 3, kind: output, shape index: {}]
  %s4 = sld [smem:[#allocation0]]
  $region34: #{_lambda_.16} parent=0
    _
  %s6 = ssub.s32 1, %s4
  %s7 = scalar_select 0, %s6, %s4
  $region1: #{_lambda_.16} parent=0
    #allocation2 [shape = 'u8[49152]{0}', space=vmem, size = 0xc000, scoped, tag = 'input window, operand 0, single buffered']
    #allocation3 [shape = 's32[1]{0}', space=sflag, size = 0x4, scoped, tag = 'scoped memory for _lambda_.16']
    #allocation4 [shape = 's32[1]{0}', space=sflag, size = 0x4, scoped, tag = 'scoped memory for _lambda_.16']
    #allocation5 [shape = 'u8[73728]{0}', space=vmem, size = 0x12000, scoped, tag = 'input window, operand 1, single buffered']
    #allocation6 [shape = 's32[1]{0}', space=sflag, size = 0x4, scoped, tag = 'scoped memory for _lambda_.16']
    #allocation7 [shape = 'u8[32768]{0}', space=vmem, size = 0x8000, scoped, tag = 'input window, operand 2, single buffered']
    #allocation8 [shape = 'u8[16384]{0}', space=vmem, size = 0x4000, scoped, tag = 'output window, operand 0, single buffered']
    %8 = vsyncpa [#allocation3], 0
    %9 = vsyncpa [#allocation6], 0
    %10 = vsyncpa [#allocation4], 0
    // Predicated region
    $region2: #{_lambda_.16} parent=1 // pred_check
      _
    $region3: #{_lambda_.16} parent=1 // pred_check_branch
      %12 = sbr.rel (0) target = $region5
    $region4: #{_lambda_.16} parent=1 // pred_region
      %s14 = ssub.s32 1536, 1536
      %15 = vsyncadd [#allocation3], %s14
      %s16 = sshll.u32 [#allocation2], 4
      %s17 = int_to_ptr.vmem [resolvable:$true] %s16
      %22 = dma.hbm_to_vmem [thread:$0]  %s0, 1536, %s17, [#allocation3], 192, 192, 12
    $region5: #{_lambda_.16} parent=1 // pred_fallthru
      _
    // Predicated region
    $region6: #{_lambda_.16} parent=1 // pred_check
      _
    $region7: #{_lambda_.16} parent=1 // pred_check_branch
      %24 = sbr.rel (0) target = $region9
    $region8: #{_lambda_.16} parent=1 // pred_region
      %s26 = ssub.s32 2304, 2304
      %27 = vsyncadd [#allocation6], %s26
      %s28 = sshll.u32 [#allocation5], 4
      %s29 = int_to_ptr.vmem [resolvable:$true] %s28
      %34 = dma.hbm_to_vmem [thread:$0]  %s1, 2304, %s29, [#allocation6], 64, 64, 4
    $region9: #{_lambda_.16} parent=1 // pred_fallthru
      _
    // Predicated region
    $region10: #{_lambda_.16} parent=1 // pred_check
      _
    $region11: #{_lambda_.16} parent=1 // pred_check_branch
      %36 = sbr.rel (0) target = $region13
    $region12: #{_lambda_.16} parent=1 // pred_region
      %s38 = ssub.s32 1024, 1024
      %39 = vsyncadd [#allocation6], %s38
      %s40 = sshll.u32 [#allocation7], 4
      %s41 = int_to_ptr.vmem [resolvable:$true] %s40
      %46 = dma.hbm_to_vmem [thread:$0]  %s2, 1024, %s41, [#allocation6], 128, 128, 8
    $region13: #{_lambda_.16} parent=1 // pred_fallthru
      _
    // Predicated region
    $region14: #{_lambda_.16} parent=1 // pred_check
      _
    $region15: #{_lambda_.16} parent=1 // pred_check_branch
      %48 = sbr.rel (0) target = $region17
    $region16: #{_lambda_.16} parent=1 // pred_region
      %49 = dma.done [#allocation3], 1536
    $region17: #{_lambda_.16} parent=1 // pred_fallthru
      _
    // Predicated region
    $region18: #{_lambda_.16} parent=1 // pred_check
      _
    $region19: #{_lambda_.16} parent=1 // pred_check_branch
      %51 = sbr.rel (0) target = $region21
    $region20: #{_lambda_.16} parent=1 // pred_region
      %52 = dma.done [#allocation6], 2304
    $region21: #{_lambda_.16} parent=1 // pred_fallthru
      _
    // Predicated region
    $region22: #{_lambda_.16} parent=1 // pred_check
      _
    $region23: #{_lambda_.16} parent=1 // pred_check_branch
      %54 = sbr.rel (0) target = $region25
    $region24: #{_lambda_.16} parent=1 // pred_region
      %55 = dma.done [#allocation6], 1024
    $region25: #{_lambda_.16} parent=1 // pred_fallthru
      _
    %v57 = vld [vmem:[#allocation2] sm:$0xff]
    %v58 = vld [vmem:[#allocation2 + $0x8] sm:$0xf]
    %v59 = vld [vmem:[#allocation2 + $0xc] sm:$0xff]
    %v60 = vld [vmem:[#allocation2 + $0x14] sm:$0xf]
    %v61 = vld [vmem:[#allocation2 + $0x18] sm:$0xff]
    %v62 = vld [vmem:[#allocation2 + $0x20] sm:$0xf]
    %v63 = vld [vmem:[#allocation2 + $0x24] sm:$0xff]
    %v64 = vld [vmem:[#allocation2 + $0x2c] sm:$0xf]
    %v65 = vld [vmem:[#allocation2 + $0x30] sm:$0xff]
    %v66 = vld [vmem:[#allocation2 + $0x38] sm:$0xf]
    %v67 = vld [vmem:[#allocation2 + $0x3c] sm:$0xff]
    %v68 = vld [vmem:[#allocation2 + $0x44] sm:$0xf]
    %v69 = vld [vmem:[#allocation2 + $0x48] sm:$0xff]
    %v70 = vld [vmem:[#allocation2 + $0x50] sm:$0xf]
    %v71 = vld [vmem:[#allocation2 + $0x54] sm:$0xff]
    %v72 = vld [vmem:[#allocation2 + $0x5c] sm:$0xf]
    %v73 = vld [vmem:[#allocation5] sm:$0xf]
    %v74 = vld [vmem:[#allocation5 + $0x4] sm:$0xf]
    %v75 = vld [vmem:[#allocation5 + $0x8] sm:$0xf]
    %v76 = vld [vmem:[#allocation5 + $0xc] sm:$0xf]
    %v77 = vld [vmem:[#allocation5 + $0x10] sm:$0xf]
    %v78 = vld [vmem:[#allocation5 + $0x14] sm:$0xf]
    %v79 = vld [vmem:[#allocation5 + $0x18] sm:$0xf]
    %v80 = vld [vmem:[#allocation5 + $0x1c] sm:$0xf]
    %v81 = vld [vmem:[#allocation5 + $0x20] sm:$0xf]
    %v82 = vld [vmem:[#allocation5 + $0x24] sm:$0xf]
    %v83 = vld [vmem:[#allocation5 + $0x28] sm:$0xf]
    %v84 = vld [vmem:[#allocation5 + $0x2c] sm:$0xf]
    %v85 = vld [vmem:[#allocation5 + $0x30] sm:$0xf]
    %v86 = vld [vmem:[#allocation5 + $0x34] sm:$0xf]
    %v87 = vld [vmem:[#allocation5 + $0x38] sm:$0xf]
    %v88 = vld [vmem:[#allocation5 + $0x3c] sm:$0xf]
    %v89 = vld [vmem:[#allocation5 + $0x40] sm:$0xf]
    %v90 = vld [vmem:[#allocation5 + $0x44] sm:$0xf]
    %v91 = vld [vmem:[#allocation5 + $0x48] sm:$0xf]
    %v92 = vld [vmem:[#allocation5 + $0x4c] sm:$0xf]
    %v93 = vld [vmem:[#allocation5 + $0x50] sm:$0xf]
    %v94 = vld [vmem:[#allocation5 + $0x54] sm:$0xf]
    %v95 = vld [vmem:[#allocation5 + $0x58] sm:$0xf]
    %v96 = vld [vmem:[#allocation5 + $0x5c] sm:$0xf]
    %v97 = vld [vmem:[#allocation5 + $0x60] sm:$0xf]
    %v98 = vld [vmem:[#allocation5 + $0x64] sm:$0xf]
    %v99 = vld [vmem:[#allocation5 + $0x68] sm:$0xf]
    %v100 = vld [vmem:[#allocation5 + $0x6c] sm:$0xf]
    %v101 = vld [vmem:[#allocation5 + $0x70] sm:$0xf]
    %v102 = vld [vmem:[#allocation5 + $0x74] sm:$0xf]
    %v103 = vld [vmem:[#allocation5 + $0x78] sm:$0xf]
    %v104 = vld [vmem:[#allocation5 + $0x7c] sm:$0xf]
    %v105 = vld [vmem:[#allocation5 + $0x80] sm:$0xf]
    %v106 = vld [vmem:[#allocation5 + $0x84] sm:$0xf]
    %v107 = vld [vmem:[#allocation5 + $0x88] sm:$0xf]
    %v108 = vld [vmem:[#allocation5 + $0x8c] sm:$0xf]
    %v109 = vld [vmem:[#allocation7] sm:$0xff]
    %v110 = vld [vmem:[#allocation7 + $0x8] sm:$0xff]
    %v111 = vld [vmem:[#allocation7 + $0x10] sm:$0xff]
    %v112 = vld [vmem:[#allocation7 + $0x18] sm:$0xff]
    %v113 = vld [vmem:[#allocation7 + $0x20] sm:$0xff]
    %v114 = vld [vmem:[#allocation7 + $0x28] sm:$0xff]
    %v115 = vld [vmem:[#allocation7 + $0x30] sm:$0xff]
    %v116 = vld [vmem:[#allocation7 + $0x38] sm:$0xff]
    %118 = vset.pattern.permute.xlu0 0
    %119 = vperm.xlu0 %118, %v109
    %v120 = vpop.permute.xlu0 %119
    %123 = vset.pattern.permute.xlu0 0
    %124 = vperm.xlu0 %123, %v110
    %v125 = vpop.permute.xlu0 %124
    %128 = vset.pattern.permute.xlu0 0
    %129 = vperm.xlu0 %128, %v111
    %v130 = vpop.permute.xlu0 %129
    %133 = vset.pattern.permute.xlu0 0
    %134 = vperm.xlu0 %133, %v112
    %v135 = vpop.permute.xlu0 %134
    %138 = vset.pattern.permute.xlu0 0
    %139 = vperm.xlu0 %138, %v113
    %v140 = vpop.permute.xlu0 %139
    %143 = vset.pattern.permute.xlu0 0
    %144 = vperm.xlu0 %143, %v114
    %v145 = vpop.permute.xlu0 %144
    %148 = vset.pattern.permute.xlu0 0
    %149 = vperm.xlu0 %148, %v115
    %v150 = vpop.permute.xlu0 %149
    %153 = vset.pattern.permute.xlu0 0
    %154 = vperm.xlu0 %153, %v116
    %v155 = vpop.permute.xlu0 %154
    %v173 = vunpack.c.l.b16 %v57
    %v174 = vunpack.c.h.b16 %v57
    %v175 = vunpack.c.l.b16 %v58
    %v176 = vunpack.c.l.b16 %v59
    %v177 = vunpack.c.h.b16 %v59
    %v178 = vunpack.c.l.b16 %v60
    %v179 = vunpack.c.l.b16 %v61
    %v180 = vunpack.c.h.b16 %v61
    %v181 = vunpack.c.l.b16 %v62
    %v182 = vunpack.c.l.b16 %v63
    %v183 = vunpack.c.h.b16 %v63
    %v184 = vunpack.c.l.b16 %v64
    %v185 = vunpack.c.l.b16 %v65
    %v186 = vunpack.c.h.b16 %v65
    %v187 = vunpack.c.l.b16 %v66
    %v188 = vunpack.c.l.b16 %v67
    %v189 = vunpack.c.h.b16 %v67
    %v190 = vunpack.c.l.b16 %v68
    %v191 = vunpack.c.l.b16 %v69
    %v192 = vunpack.c.h.b16 %v69
    %v193 = vunpack.c.l.b16 %v70
    %v194 = vunpack.c.l.b16 %v71
    %v195 = vunpack.c.h.b16 %v71
    %v196 = vunpack.c.l.b16 %v72
    %v197 = vpack.c.b16 %v176, %v173
    %v198 = vpack.c.b16 %v177, %v174
    %v199 = vpack.c.b16 %v178, %v175
    %v200 = vpack.c.b16 %v182, %v179
    %v201 = vpack.c.b16 %v183, %v180
    %v202 = vpack.c.b16 %v184, %v181
    %v203 = vpack.c.b16 %v188, %v185
    %v204 = vpack.c.b16 %v189, %v186
    %v205 = vpack.c.b16 %v190, %v187
    %v206 = vpack.c.b16 %v194, %v191
    %v207 = vpack.c.b16 %v195, %v192
    %v208 = vpack.c.b16 %v196, %v193
    %v253 = vunpack.c.l.b16 %v73
    %v254 = vunpack.c.l.b16 %v74
    %v255 = vunpack.c.l.b16 %v75
    %v256 = vunpack.c.l.b16 %v76
    %v257 = vunpack.c.l.b16 %v77
    %v258 = vunpack.c.l.b16 %v78
    %v259 = vunpack.c.l.b16 %v79
    %v260 = vunpack.c.l.b16 %v80
    %v261 = vunpack.c.l.b16 %v81
    %v262 = vunpack.c.l.b16 %v82
    %v263 = vunpack.c.l.b16 %v83
    %v264 = vunpack.c.l.b16 %v84
    %v265 = vunpack.c.l.b16 %v85
    %v266 = vunpack.c.l.b16 %v86
    %v267 = vunpack.c.l.b16 %v87
    %v268 = vunpack.c.l.b16 %v88
    %v269 = vunpack.c.l.b16 %v89
    %v270 = vunpack.c.l.b16 %v90
    %v271 = vunpack.c.l.b16 %v91
    %v272 = vunpack.c.l.b16 %v92
    %v273 = vunpack.c.l.b16 %v93
    %v274 = vunpack.c.l.b16 %v94
    %v275 = vunpack.c.l.b16 %v95
    %v276 = vunpack.c.l.b16 %v96
    %v277 = vunpack.c.l.b16 %v97
    %v278 = vunpack.c.l.b16 %v98
    %v279 = vunpack.c.l.b16 %v99
    %v280 = vunpack.c.l.b16 %v100
    %v281 = vunpack.c.l.b16 %v101
    %v282 = vunpack.c.l.b16 %v102
    %v283 = vunpack.c.l.b16 %v103
    %v284 = vunpack.c.l.b16 %v104
    %v285 = vunpack.c.l.b16 %v105
    %v286 = vunpack.c.l.b16 %v106
    %v287 = vunpack.c.l.b16 %v107
    %v288 = vunpack.c.l.b16 %v108
    %v289 = vpack.c.b16 %v254, %v253
    %v290 = vpack.c.b16 %v256, %v255
    %v291 = vpack.c.b16 %v258, %v257
    %v292 = vpack.c.b16 %v260, %v259
    %v293 = vpack.c.b16 %v262, %v261
    %v294 = vpack.c.b16 %v264, %v263
    %v295 = vpack.c.b16 %v266, %v265
    %v296 = vpack.c.b16 %v268, %v267
    %v297 = vpack.c.b16 %v270, %v269
    %v298 = vpack.c.b16 %v272, %v271
    %v299 = vpack.c.b16 %v274, %v273
    %v300 = vpack.c.b16 %v276, %v275
    %v301 = vpack.c.b16 %v278, %v277
    %v302 = vpack.c.b16 %v280, %v279
    %v303 = vpack.c.b16 %v282, %v281
    %v304 = vpack.c.b16 %v284, %v283
    %v305 = vpack.c.b16 %v286, %v285
    %v306 = vpack.c.b16 %v288, %v287
    %vm325 = vcmask 261120
    %v327 = vsel %vm325, %v199, 0
    %v330 = vsel %vm325, %v202, 0
    %v333 = vsel %vm325, %v205, 0
    %v336 = vsel %vm325, %v208, 0
    %338 = vmatprep.subr.bf16.mxu0 0
    %339 = vmatpush1.bf16.msra.mxu0 %v289
    %340 = vmatprep.subr.bf16.mxu0 0
    %341 = vmatpush1.bf16.msra.mxu0 %v290
    %342 = vmatprep.subr.bf16.mxu0 0
    %343 = vmatpush1.bf16.msra.mxu0 %v291
    %344 = vmatprep.subr.bf16.mxu0 0
    %345 = vmatpush1.bf16.msra.mxu0 %v292
    %346 = vmatprep.subr.bf16.mxu0 0
    %347 = vmatpush1.bf16.msra.mxu0 %v293
    %348 = vmatprep.subr.bf16.mxu0 0
    %349 = vmatpush1.bf16.msra.mxu0 %v294
    %350 = vmatprep.subr.bf16.mxu0 0
    %351 = vmatpush1.bf16.msra.mxu0 %v295
    %352 = vmatprep.subr.bf16.mxu0 0
    %353 = vmatpush1.bf16.msra.mxu0 %v296
    %354 = vmatprep.subr.bf16.mxu0 0
    %355 = vmatpush1.bf16.msra.mxu0 %v297
    %356 = vmatprep.subr.bf16.mxu0 0
    %357 = vmatpush1.bf16.msra.mxu0 %v298
    %358 = vmatprep.subr.bf16.mxu0 0
    %359 = vmatpush1.bf16.msra.mxu0 %v299
    %360 = vmatprep.subr.bf16.mxu0 0
    %361 = vmatpush1.bf16.msra.mxu0 %v300
    %362 = vmatprep.subr.bf16.mxu0 0
    %363 = vmatpush1.bf16.msra.mxu0 %v301
    %364 = vmatprep.subr.bf16.mxu0 0
    %365 = vmatpush1.bf16.msra.mxu0 %v302
    %366 = vmatprep.subr.bf16.mxu0 0
    %367 = vmatpush1.bf16.msra.mxu0 %v303
    %368 = vmatprep.subr.bf16.mxu0 0
    %369 = vmatpush1.bf16.msra.mxu0 %v304
    %370 = vmatprep.mubr.bf16.mxu0 %v198
    %371 = vmatmul.mubr.bf16.gmra.mrb[0].mxu0 %v197
    %v372 = vpop.f32.mrb[0].mxu0
    %v373 = vadd.f32 %v120, %v372
    %v374 = vpop.f32.mrb[0].mxu0
    %v375 = vpop.f32.mrb[0].mxu0
    %v376 = vadd.f32 %v125, %v375
    %v377 = vpop.f32.mrb[0].mxu0
    %378 = vmatprep.mubr.bf16.mxu0 %v201
    %379 = vmatmul.mubr.bf16.gmra.mrb[0].mxu0 %v200
    %v380 = vpop.f32.mrb[0].mxu0
    %v381 = vadd.f32 %v130, %v380
    %v382 = vpop.f32.mrb[0].mxu0
    %v383 = vpop.f32.mrb[0].mxu0
    %v384 = vadd.f32 %v135, %v383
    %v385 = vpop.f32.mrb[0].mxu0
    %386 = vmatprep.mubr.bf16.mxu0 %v204
    %387 = vmatmul.mubr.bf16.gmra.mrb[0].mxu0 %v203
    %v388 = vpop.f32.mrb[0].mxu0
    %v389 = vadd.f32 %v140, %v388
    %v390 = vpop.f32.mrb[0].mxu0
    %v391 = vpop.f32.mrb[0].mxu0
    %v392 = vadd.f32 %v145, %v391
    %v393 = vpop.f32.mrb[0].mxu0
    %394 = vmatprep.mubr.bf16.mxu0 %v207
    %395 = vmatmul.mubr.bf16.gmra.mrb[0].mxu0 %v206
    %v396 = vpop.f32.mrb[0].mxu0
    %v397 = vadd.f32 %v150, %v396
    %v398 = vpop.f32.mrb[0].mxu0
    %v399 = vpop.f32.mrb[0].mxu0
    %v400 = vadd.f32 %v155, %v399
    %v401 = vpop.f32.mrb[0].mxu0
    %402 = vdwg.mxu0
    %403 = vmatprep.subr.bf16.mxu0 0
    %404 = vmatpush1.bf16.msra.mxu0 %v305
    %405 = vmatprep.subr.bf16.mxu0 0
    %406 = vmatpush1.bf16.msra.mxu0 %v306
    %407 = vmatprep.subr.bf16.mxu0 0
    %408 = vmatpush1.bf16.msra.mxu0 0
    %409 = vmatprep.subr.bf16.mxu0 0
    %410 = vmatpush1.bf16.msra.mxu0 0
    %411 = vmatprep.subr.bf16.mxu0 0
    %412 = vmatpush1.bf16.msra.mxu0 0
    %413 = vmatprep.subr.bf16.mxu0 0
    %414 = vmatpush1.bf16.msra.mxu0 0
    %415 = vmatprep.subr.bf16.mxu0 0
    %416 = vmatpush1.bf16.msra.mxu0 0
    %417 = vmatprep.subr.bf16.mxu0 0
    %418 = vmatpush1.bf16.msra.mxu0 0
    %419 = vmatprep.subr.bf16.mxu0 0
    %420 = vmatpush1.bf16.msra.mxu0 0
    %421 = vmatprep.subr.bf16.mxu0 0
    %422 = vmatpush1.bf16.msra.mxu0 0
    %423 = vmatprep.subr.bf16.mxu0 0
    %424 = vmatpush1.bf16.msra.mxu0 0
    %425 = vmatprep.subr.bf16.mxu0 0
    %426 = vmatpush1.bf16.msra.mxu0 0
    %427 = vmatprep.subr.bf16.mxu0 0
    %428 = vmatpush1.bf16.msra.mxu0 0
    %429 = vmatprep.subr.bf16.mxu0 0
    %430 = vmatpush1.bf16.msra.mxu0 0
    %431 = vmatprep.subr.bf16.mxu0 0
    %432 = vmatpush1.bf16.msra.mxu0 0
    %433 = vmatprep.subr.bf16.mxu0 0
    %434 = vmatpush1.bf16.msra.mxu0 0
    %435 = vmatprep.mubr.bf16.mxu0 0
    %436 = vmatmul.mubr.bf16.gmra.mrb[0].mxu0 %v327
    %v437 = vpop.f32.mrb[0].mxu0
    %v438 = vadd.f32 %v373, %v437
    %v439 = vpop.f32.mrb[0].mxu0
    %v440 = vpop.f32.mrb[0].mxu0
    %v441 = vadd.f32 %v376, %v440
    %v442 = vpop.f32.mrb[0].mxu0
    %443 = vmatprep.mubr.bf16.mxu0 0
    %444 = vmatmul.mubr.bf16.gmra.mrb[0].mxu0 %v330
    %v445 = vpop.f32.mrb[0].mxu0
    %v446 = vadd.f32 %v381, %v445
    %v447 = vpop.f32.mrb[0].mxu0
    %v448 = vpop.f32.mrb[0].mxu0
    %v449 = vadd.f32 %v384, %v448
    %v450 = vpop.f32.mrb[0].mxu0
    %451 = vmatprep.mubr.bf16.mxu0 0
    %452 = vmatmul.mubr.bf16.gmra.mrb[0].mxu0 %v333
    %v453 = vpop.f32.mrb[0].mxu0
    %v454 = vadd.f32 %v389, %v453
    %v455 = vpop.f32.mrb[0].mxu0
    %v456 = vpop.f32.mrb[0].mxu0
    %v457 = vadd.f32 %v392, %v456
    %v458 = vpop.f32.mrb[0].mxu0
    %459 = vmatprep.mubr.bf16.mxu0 0
    %460 = vmatmul.mubr.bf16.gmra.mrb[0].mxu0 %v336
    %v461 = vpop.f32.mrb[0].mxu0
    %v462 = vadd.f32 %v397, %v461
    %v463 = vpop.f32.mrb[0].mxu0
    %v464 = vpop.f32.mrb[0].mxu0
    %v465 = vadd.f32 %v400, %v464
    %v466 = vpop.f32.mrb[0].mxu0
    %467 = vdwg.mxu0
    %v468 = vmax.f32 %v438, 0.0
    %v469 = vmax.f32 %v441, 0.0
    %v470 = vmax.f32 %v446, 0.0
    %v471 = vmax.f32 %v449, 0.0
    %v472 = vmax.f32 %v454, 0.0
    %v473 = vmax.f32 %v457, 0.0
    %v474 = vmax.f32 %v462, 0.0
    %v475 = vmax.f32 %v465, 0.0
    %v476 = vpack.c.bf16 %v469, %v468
    %v477 = vpack.c.bf16 %v471, %v470
    %v478 = vpack.c.bf16 %v473, %v472
    %v479 = vpack.c.bf16 %v475, %v474
    %v484 = vunpack.c.l.b16 %v476
    %v485 = vunpack.c.h.b16 %v476
    %v486 = vunpack.c.l.b16 %v477
    %v487 = vunpack.c.h.b16 %v477
    %v488 = vunpack.c.l.b16 %v478
    %v489 = vunpack.c.h.b16 %v478
    %v490 = vunpack.c.l.b16 %v479
    %v491 = vunpack.c.h.b16 %v479
    %v492 = vpack.c.b16 %v484, %v484
    %v493 = vpack.c.b16 %v485, %v485
    %v494 = vpack.c.b16 %v486, %v486
    %v495 = vpack.c.b16 %v487, %v487
    %v496 = vpack.c.b16 %v488, %v488
    %v497 = vpack.c.b16 %v489, %v489
    %v498 = vpack.c.b16 %v490, %v490
    %v499 = vpack.c.b16 %v491, %v491
    %508 = vst [vmem:[#allocation8] sm:$0xf] %v492
    %509 = vst [vmem:[#allocation8 + $0x4] sm:$0xf] %v493
    %510 = vst [vmem:[#allocation8 + $0x8] sm:$0xf] %v494
    %511 = vst [vmem:[#allocation8 + $0xc] sm:$0xf] %v495
    %512 = vst [vmem:[#allocation8 + $0x10] sm:$0xf] %v496
    %513 = vst [vmem:[#allocation8 + $0x14] sm:$0xf] %v497
    %514 = vst [vmem:[#allocation8 + $0x18] sm:$0xf] %v498
    %515 = vst [vmem:[#allocation8 + $0x1c] sm:$0xf] %v499
    // Predicated region
    $region26: #{_lambda_.16} parent=1 // pred_check
      _
    $region27: #{_lambda_.16} parent=1 // pred_check_branch
      %517 = sbr.rel (0) target = $region29
    $region28: #{_lambda_.16} parent=1 // pred_region
      %s519 = ssub.s32 512, 512
      %520 = vsyncadd [#allocation4], %s519
      %s521 = sshll.u32 [#allocation8], 4
      %s522 = int_to_ptr.vmem [resolvable:$true] %s521
      %527 = dma.vmem_to_hbm [thread:$0]  %s522, 512, %s3, [#allocation4], 64, 64, 4
    $region29: #{_lambda_.16} parent=1 // pred_fallthru
      _
    // Predicated region
    $region30: #{_lambda_.16} parent=1 // pred_check
      _
    $region31: #{_lambda_.16} parent=1 // pred_check_branch
      %529 = sbr.rel (0) target = $region33
    $region32: #{_lambda_.16} parent=1 // pred_region
      %530 = dma.done [#allocation4], 512
    $region33: #{_lambda_.16} parent=1 // pred_fallthru
      _
    %531 = vsyncpa [#allocation3], 1
    %532 = vsyncpa [#allocation6], 1
    %533 = vsyncpa [#allocation4], 1

// kernel: _lambda_.19
$region0: #{_lambda_.19}
  #allocation0 [shape = 'u32[]', space=smem, size = 0x4, offset = 0x4, fixed_abs, tag = 'smem constant byte address 0x4 - core index']
  #allocation1 [shape = 'u32[144,128]{1,0:T(1,128)}', space=vmem, size = 0x12000, scoped, tag = 'internal scratch']
  %s0 = inlined_call_operand.vmem [shape: bf16[64,2,36], index: 0, kind: input, shape index: {}]
  %s1 = inlined_call_operand.vmem [shape: f32[10,64], index: 1, kind: input, shape index: {}]
  %s2 = inlined_call_operand.vmem [shape: f32[10,1], index: 2, kind: input, shape index: {}]
  %s3 = inlined_call_operand.vmem [shape: f32[10,2], index: 3, kind: output, shape index: {}]
  %s4 = sld [smem:[#allocation0]]
  $region22: #{_lambda_.19} parent=0
    _
  %s6 = ssub.s32 1, %s4
  %s7 = scalar_select 0, %s6, %s4
  // Predicated region
  $region2: #{_lambda_.19} parent=0 // pred_check
    _
  $region3: #{_lambda_.19} parent=0 // pred_check_branch
    %9 = sbr.rel (0) target = $region5
  $region4: #{_lambda_.19} parent=0 // pred_region
    _
  $region5: #{_lambda_.19} parent=0 // pred_fallthru
    _
  // Predicated region
  $region6: #{_lambda_.19} parent=0 // pred_check
    _
  $region7: #{_lambda_.19} parent=0 // pred_check_branch
    %11 = sbr.rel (0) target = $region9
  $region8: #{_lambda_.19} parent=0 // pred_region
    _
  $region9: #{_lambda_.19} parent=0 // pred_fallthru
    _
  // Predicated region
  $region10: #{_lambda_.19} parent=0 // pred_check
    _
  $region11: #{_lambda_.19} parent=0 // pred_check_branch
    %13 = sbr.rel (0) target = $region13
  $region12: #{_lambda_.19} parent=0 // pred_region
    _
  $region13: #{_lambda_.19} parent=0 // pred_fallthru
    _
  %v14 = vld [vmem:[%s0] sm:$0x1]
  %v15 = vld [vmem:[%s0 + $0x1] sm:$0x1]
  %v16 = vld [vmem:[%s0 + $0x2] sm:$0x1]
  %v17 = vld [vmem:[%s0 + $0x3] sm:$0x1]
  %v18 = vld [vmem:[%s0 + $0x4] sm:$0x1]
  %v19 = vld [vmem:[%s0 + $0x5] sm:$0x1]
  %v20 = vld [vmem:[%s0 + $0x6] sm:$0x1]
  %v21 = vld [vmem:[%s0 + $0x7] sm:$0x1]
  %v22 = vld [vmem:[%s0 + $0x8] sm:$0x1]
  %v23 = vld [vmem:[%s0 + $0x9] sm:$0x1]
  %v24 = vld [vmem:[%s0 + $0xa] sm:$0x1]
  %v25 = vld [vmem:[%s0 + $0xb] sm:$0x1]
  %v26 = vld [vmem:[%s0 + $0xc] sm:$0x1]
  %v27 = vld [vmem:[%s0 + $0xd] sm:$0x1]
  %v28 = vld [vmem:[%s0 + $0xe] sm:$0x1]
  %v29 = vld [vmem:[%s0 + $0xf] sm:$0x1]
  %v30 = vld [vmem:[%s0 + $0x10] sm:$0x1]
  %v31 = vld [vmem:[%s0 + $0x11] sm:$0x1]
  %v32 = vld [vmem:[%s0 + $0x12] sm:$0x1]
  %v33 = vld [vmem:[%s0 + $0x13] sm:$0x1]
  %v34 = vld [vmem:[%s0 + $0x14] sm:$0x1]
  %v35 = vld [vmem:[%s0 + $0x15] sm:$0x1]
  %v36 = vld [vmem:[%s0 + $0x16] sm:$0x1]
  %v37 = vld [vmem:[%s0 + $0x17] sm:$0x1]
  %v38 = vld [vmem:[%s0 + $0x18] sm:$0x1]
  %v39 = vld [vmem:[%s0 + $0x19] sm:$0x1]
  %v40 = vld [vmem:[%s0 + $0x1a] sm:$0x1]
  %v41 = vld [vmem:[%s0 + $0x1b] sm:$0x1]
  %v42 = vld [vmem:[%s0 + $0x1c] sm:$0x1]
  %v43 = vld [vmem:[%s0 + $0x1d] sm:$0x1]
  %v44 = vld [vmem:[%s0 + $0x1e] sm:$0x1]
  %v45 = vld [vmem:[%s0 + $0x1f] sm:$0x1]
  %v46 = vld [vmem:[%s0 + $0x20] sm:$0x1]
  %v47 = vld [vmem:[%s0 + $0x21] sm:$0x1]
  %v48 = vld [vmem:[%s0 + $0x22] sm:$0x1]
  %v49 = vld [vmem:[%s0 + $0x23] sm:$0x1]
  %v50 = vld [vmem:[%s0 + $0x24] sm:$0x1]
  %v51 = vld [vmem:[%s0 + $0x25] sm:$0x1]
  %v52 = vld [vmem:[%s0 + $0x26] sm:$0x1]
  %v53 = vld [vmem:[%s0 + $0x27] sm:$0x1]
  %v54 = vld [vmem:[%s0 + $0x28] sm:$0x1]
  %v55 = vld [vmem:[%s0 + $0x29] sm:$0x1]
  %v56 = vld [vmem:[%s0 + $0x2a] sm:$0x1]
  %v57 = vld [vmem:[%s0 + $0x2b] sm:$0x1]
  %v58 = vld [vmem:[%s0 + $0x2c] sm:$0x1]
  %v59 = vld [vmem:[%s0 + $0x2d] sm:$0x1]
  %v60 = vld [vmem:[%s0 + $0x2e] sm:$0x1]
  %v61 = vld [vmem:[%s0 + $0x2f] sm:$0x1]
  %v62 = vld [vmem:[%s0 + $0x30] sm:$0x1]
  %v63 = vld [vmem:[%s0 + $0x31] sm:$0x1]
  %v64 = vld [vmem:[%s0 + $0x32] sm:$0x1]
  %v65 = vld [vmem:[%s0 + $0x33] sm:$0x1]
  %v66 = vld [vmem:[%s0 + $0x34] sm:$0x1]
  %v67 = vld [vmem:[%s0 + $0x35] sm:$0x1]
  %v68 = vld [vmem:[%s0 + $0x36] sm:$0x1]
  %v69 = vld [vmem:[%s0 + $0x37] sm:$0x1]
  %v70 = vld [vmem:[%s0 + $0x38] sm:$0x1]
  %v71 = vld [vmem:[%s0 + $0x39] sm:$0x1]
  %v72 = vld [vmem:[%s0 + $0x3a] sm:$0x1]
  %v73 = vld [vmem:[%s0 + $0x3b] sm:$0x1]
  %v74 = vld [vmem:[%s0 + $0x3c] sm:$0x1]
  %v75 = vld [vmem:[%s0 + $0x3d] sm:$0x1]
  %v76 = vld [vmem:[%s0 + $0x3e] sm:$0x1]
  %v77 = vld [vmem:[%s0 + $0x3f] sm:$0x1]
  %v78 = vunpack.c.l.bf16 %v14
  %v79 = vunpack.c.l.bf16 %v15
  %v80 = vunpack.c.l.bf16 %v16
  %v81 = vunpack.c.l.bf16 %v17
  %v82 = vunpack.c.l.bf16 %v18
  %v83 = vunpack.c.l.bf16 %v19
  %v84 = vunpack.c.l.bf16 %v20
  %v85 = vunpack.c.l.bf16 %v21
  %v86 = vunpack.c.l.bf16 %v22
  %v87 = vunpack.c.l.bf16 %v23
  %v88 = vunpack.c.l.bf16 %v24
  %v89 = vunpack.c.l.bf16 %v25
  %v90 = vunpack.c.l.bf16 %v26
  %v91 = vunpack.c.l.bf16 %v27
  %v92 = vunpack.c.l.bf16 %v28
  %v93 = vunpack.c.l.bf16 %v29
  %v94 = vunpack.c.l.bf16 %v30
  %v95 = vunpack.c.l.bf16 %v31
  %v96 = vunpack.c.l.bf16 %v32
  %v97 = vunpack.c.l.bf16 %v33
  %v98 = vunpack.c.l.bf16 %v34
  %v99 = vunpack.c.l.bf16 %v35
  %v100 = vunpack.c.l.bf16 %v36
  %v101 = vunpack.c.l.bf16 %v37
  %v102 = vunpack.c.l.bf16 %v38
  %v103 = vunpack.c.l.bf16 %v39
  %v104 = vunpack.c.l.bf16 %v40
  %v105 = vunpack.c.l.bf16 %v41
  %v106 = vunpack.c.l.bf16 %v42
  %v107 = vunpack.c.l.bf16 %v43
  %v108 = vunpack.c.l.bf16 %v44
  %v109 = vunpack.c.l.bf16 %v45
  %v110 = vunpack.c.l.bf16 %v46
  %v111 = vunpack.c.l.bf16 %v47
  %v112 = vunpack.c.l.bf16 %v48
  %v113 = vunpack.c.l.bf16 %v49
  %v114 = vunpack.c.l.bf16 %v50
  %v115 = vunpack.c.l.bf16 %v51
  %v116 = vunpack.c.l.bf16 %v52
  %v117 = vunpack.c.l.bf16 %v53
  %v118 = vunpack.c.l.bf16 %v54
  %v119 = vunpack.c.l.bf16 %v55
  %v120 = vunpack.c.l.bf16 %v56
  %v121 = vunpack.c.l.bf16 %v57
  %v122 = vunpack.c.l.bf16 %v58
  %v123 = vunpack.c.l.bf16 %v59
  %v124 = vunpack.c.l.bf16 %v60
  %v125 = vunpack.c.l.bf16 %v61
  %v126 = vunpack.c.l.bf16 %v62
  %v127 = vunpack.c.l.bf16 %v63
  %v128 = vunpack.c.l.bf16 %v64
  %v129 = vunpack.c.l.bf16 %v65
  %v130 = vunpack.c.l.bf16 %v66
  %v131 = vunpack.c.l.bf16 %v67
  %v132 = vunpack.c.l.bf16 %v68
  %v133 = vunpack.c.l.bf16 %v69
  %v134 = vunpack.c.l.bf16 %v70
  %v135 = vunpack.c.l.bf16 %v71
  %v136 = vunpack.c.l.bf16 %v72
  %v137 = vunpack.c.l.bf16 %v73
  %v138 = vunpack.c.l.bf16 %v74
  %v139 = vunpack.c.l.bf16 %v75
  %v140 = vunpack.c.l.bf16 %v76
  %v141 = vunpack.c.l.bf16 %v77
  %vm142 = vcmask 287744
  %v143 = vsel %vm142, %v78, 0.0
  %144 = vadd.xlane.f32.xlu0 %v143
  %v145 = vpop.xlane.xlu0 %144
  %v146 = vsel %vm142, %v79, 0.0
  %147 = vadd.xlane.f32.xlu0 %v146
  %v148 = vpop.xlane.xlu0 %147
  %v149 = vsel %vm142, %v80, 0.0
  %150 = vadd.xlane.f32.xlu0 %v149
  %v151 = vpop.xlane.xlu0 %150
  %v152 = vsel %vm142, %v81, 0.0
  %153 = vadd.xlane.f32.xlu0 %v152
  %v154 = vpop.xlane.xlu0 %153
  %v155 = vsel %vm142, %v82, 0.0
  %156 = vadd.xlane.f32.xlu0 %v155
  %v157 = vpop.xlane.xlu0 %156
  %v158 = vsel %vm142, %v83, 0.0
  %159 = vadd.xlane.f32.xlu0 %v158
  %v160 = vpop.xlane.xlu0 %159
  %v161 = vsel %vm142, %v84, 0.0
  %162 = vadd.xlane.f32.xlu0 %v161
  %v163 = vpop.xlane.xlu0 %162
  %v164 = vsel %vm142, %v85, 0.0
  %165 = vadd.xlane.f32.xlu0 %v164
  %v166 = vpop.xlane.xlu0 %165
  %v167 = vsel %vm142, %v86, 0.0
  %168 = vadd.xlane.f32.xlu0 %v167
  %v169 = vpop.xlane.xlu0 %168
  %v170 = vsel %vm142, %v87, 0.0
  %171 = vadd.xlane.f32.xlu0 %v170
  %v172 = vpop.xlane.xlu0 %171
  %v173 = vsel %vm142, %v88, 0.0
  %174 = vadd.xlane.f32.xlu0 %v173
  %v175 = vpop.xlane.xlu0 %174
  %v176 = vsel %vm142, %v89, 0.0
  %177 = vadd.xlane.f32.xlu0 %v176
  %v178 = vpop.xlane.xlu0 %177
  %v179 = vsel %vm142, %v90, 0.0
  %180 = vadd.xlane.f32.xlu0 %v179
  %v181 = vpop.xlane.xlu0 %180
  %v182 = vsel %vm142, %v91, 0.0
  %183 = vadd.xlane.f32.xlu0 %v182
  %v184 = vpop.xlane.xlu0 %183
  %v185 = vsel %vm142, %v92, 0.0
  %186 = vadd.xlane.f32.xlu0 %v185
  %v187 = vpop.xlane.xlu0 %186
  %v188 = vsel %vm142, %v93, 0.0
  %189 = vadd.xlane.f32.xlu0 %v188
  %v190 = vpop.xlane.xlu0 %189
  %v191 = vsel %vm142, %v94, 0.0
  %192 = vadd.xlane.f32.xlu0 %v191
  %v193 = vpop.xlane.xlu0 %192
  %v194 = vsel %vm142, %v95, 0.0
  %195 = vadd.xlane.f32.xlu0 %v194
  %v196 = vpop.xlane.xlu0 %195
  %v197 = vsel %vm142, %v96, 0.0
  %198 = vadd.xlane.f32.xlu0 %v197
  %v199 = vpop.xlane.xlu0 %198
  %v200 = vsel %vm142, %v97, 0.0
  %201 = vadd.xlane.f32.xlu0 %v200
  %v202 = vpop.xlane.xlu0 %201
  %v203 = vsel %vm142, %v98, 0.0
  %204 = vadd.xlane.f32.xlu0 %v203
  %v205 = vpop.xlane.xlu0 %204
  %v206 = vsel %vm142, %v99, 0.0
  %207 = vadd.xlane.f32.xlu0 %v206
  %v208 = vpop.xlane.xlu0 %207
  %v209 = vsel %vm142, %v100, 0.0
  %210 = vadd.xlane.f32.xlu0 %v209
  %v211 = vpop.xlane.xlu0 %210
  %v212 = vsel %vm142, %v101, 0.0
  %213 = vadd.xlane.f32.xlu0 %v212
  %v214 = vpop.xlane.xlu0 %213
  %v215 = vsel %vm142, %v102, 0.0
  %216 = vadd.xlane.f32.xlu0 %v215
  %v217 = vpop.xlane.xlu0 %216
  %v218 = vsel %vm142, %v103, 0.0
  %219 = vadd.xlane.f32.xlu0 %v218
  %v220 = vpop.xlane.xlu0 %219
  %v221 = vsel %vm142, %v104, 0.0
  %222 = vadd.xlane.f32.xlu0 %v221
  %v223 = vpop.xlane.xlu0 %222
  %v224 = vsel %vm142, %v105, 0.0
  %225 = vadd.xlane.f32.xlu0 %v224
  %v226 = vpop.xlane.xlu0 %225
  %v227 = vsel %vm142, %v106, 0.0
  %228 = vadd.xlane.f32.xlu0 %v227
  %v229 = vpop.xlane.xlu0 %228
  %v230 = vsel %vm142, %v107, 0.0
  %231 = vadd.xlane.f32.xlu0 %v230
  %v232 = vpop.xlane.xlu0 %231
  %v233 = vsel %vm142, %v108, 0.0
  %234 = vadd.xlane.f32.xlu0 %v233
  %v235 = vpop.xlane.xlu0 %234
  %v236 = vsel %vm142, %v109, 0.0
  %237 = vadd.xlane.f32.xlu0 %v236
  %v238 = vpop.xlane.xlu0 %237
  %v239 = vsel %vm142, %v110, 0.0
  %240 = vadd.xlane.f32.xlu0 %v239
  %v241 = vpop.xlane.xlu0 %240
  %v242 = vsel %vm142, %v111, 0.0
  %243 = vadd.xlane.f32.xlu0 %v242
  %v244 = vpop.xlane.xlu0 %243
  %v245 = vsel %vm142, %v112, 0.0
  %246 = vadd.xlane.f32.xlu0 %v245
  %v247 = vpop.xlane.xlu0 %246
  %v248 = vsel %vm142, %v113, 0.0
  %249 = vadd.xlane.f32.xlu0 %v248
  %v250 = vpop.xlane.xlu0 %249
  %v251 = vsel %vm142, %v114, 0.0
  %252 = vadd.xlane.f32.xlu0 %v251
  %v253 = vpop.xlane.xlu0 %252
  %v254 = vsel %vm142, %v115, 0.0
  %255 = vadd.xlane.f32.xlu0 %v254
  %v256 = vpop.xlane.xlu0 %255
  %v257 = vsel %vm142, %v116, 0.0
  %258 = vadd.xlane.f32.xlu0 %v257
  %v259 = vpop.xlane.xlu0 %258
  %v260 = vsel %vm142, %v117, 0.0
  %261 = vadd.xlane.f32.xlu0 %v260
  %v262 = vpop.xlane.xlu0 %261
  %v263 = vsel %vm142, %v118, 0.0
  %264 = vadd.xlane.f32.xlu0 %v263
  %v265 = vpop.xlane.xlu0 %264
  %v266 = vsel %vm142, %v119, 0.0
  %267 = vadd.xlane.f32.xlu0 %v266
  %v268 = vpop.xlane.xlu0 %267
  %v269 = vsel %vm142, %v120, 0.0
  %270 = vadd.xlane.f32.xlu0 %v269
  %v271 = vpop.xlane.xlu0 %270
  %v272 = vsel %vm142, %v121, 0.0
  %273 = vadd.xlane.f32.xlu0 %v272
  %v274 = vpop.xlane.xlu0 %273
  %v275 = vsel %vm142, %v122, 0.0
  %276 = vadd.xlane.f32.xlu0 %v275
  %v277 = vpop.xlane.xlu0 %276
  %v278 = vsel %vm142, %v123, 0.0
  %279 = vadd.xlane.f32.xlu0 %v278
  %v280 = vpop.xlane.xlu0 %279
  %v281 = vsel %vm142, %v124, 0.0
  %282 = vadd.xlane.f32.xlu0 %v281
  %v283 = vpop.xlane.xlu0 %282
  %v284 = vsel %vm142, %v125, 0.0
  %285 = vadd.xlane.f32.xlu0 %v284
  %v286 = vpop.xlane.xlu0 %285
  %v287 = vsel %vm142, %v126, 0.0
  %288 = vadd.xlane.f32.xlu0 %v287
  %v289 = vpop.xlane.xlu0 %288
  %v290 = vsel %vm142, %v127, 0.0
  %291 = vadd.xlane.f32.xlu0 %v290
  %v292 = vpop.xlane.xlu0 %291
  %v293 = vsel %vm142, %v128, 0.0
  %294 = vadd.xlane.f32.xlu0 %v293
  %v295 = vpop.xlane.xlu0 %294
  %v296 = vsel %vm142, %v129, 0.0
  %297 = vadd.xlane.f32.xlu0 %v296
  %v298 = vpop.xlane.xlu0 %297
  %v299 = vsel %vm142, %v130, 0.0
  %300 = vadd.xlane.f32.xlu0 %v299
  %v301 = vpop.xlane.xlu0 %300
  %v302 = vsel %vm142, %v131, 0.0
  %303 = vadd.xlane.f32.xlu0 %v302
  %v304 = vpop.xlane.xlu0 %303
  %v305 = vsel %vm142, %v132, 0.0
  %306 = vadd.xlane.f32.xlu0 %v305
  %v307 = vpop.xlane.xlu0 %306
  %v308 = vsel %vm142, %v133, 0.0
  %309 = vadd.xlane.f32.xlu0 %v308
  %v310 = vpop.xlane.xlu0 %309
  %v311 = vsel %vm142, %v134, 0.0
  %312 = vadd.xlane.f32.xlu0 %v311
  %v313 = vpop.xlane.xlu0 %312
  %v314 = vsel %vm142, %v135, 0.0
  %315 = vadd.xlane.f32.xlu0 %v314
  %v316 = vpop.xlane.xlu0 %315
  %v317 = vsel %vm142, %v136, 0.0
  %318 = vadd.xlane.f32.xlu0 %v317
  %v319 = vpop.xlane.xlu0 %318
  %v320 = vsel %vm142, %v137, 0.0
  %321 = vadd.xlane.f32.xlu0 %v320
  %v322 = vpop.xlane.xlu0 %321
  %v323 = vsel %vm142, %v138, 0.0
  %324 = vadd.xlane.f32.xlu0 %v323
  %v325 = vpop.xlane.xlu0 %324
  %v326 = vsel %vm142, %v139, 0.0
  %327 = vadd.xlane.f32.xlu0 %v326
  %v328 = vpop.xlane.xlu0 %327
  %v329 = vsel %vm142, %v140, 0.0
  %330 = vadd.xlane.f32.xlu0 %v329
  %v331 = vpop.xlane.xlu0 %330
  %v332 = vsel %vm142, %v141, 0.0
  %333 = vadd.xlane.f32.xlu0 %v332
  %v334 = vpop.xlane.xlu0 %333
  %v335 = vmul.f32 %v145, 0.0625
  %v336 = vmul.f32 %v148, 0.0625
  %v337 = vmul.f32 %v151, 0.0625
  %v338 = vmul.f32 %v154, 0.0625
  %v339 = vmul.f32 %v157, 0.0625
  %v340 = vmul.f32 %v160, 0.0625
  %v341 = vmul.f32 %v163, 0.0625
  %v342 = vmul.f32 %v166, 0.0625
  %v343 = vmul.f32 %v169, 0.0625
  %v344 = vmul.f32 %v172, 0.0625
  %v345 = vmul.f32 %v175, 0.0625
  %v346 = vmul.f32 %v178, 0.0625
  %v347 = vmul.f32 %v181, 0.0625
  %v348 = vmul.f32 %v184, 0.0625
  %v349 = vmul.f32 %v187, 0.0625
  %v350 = vmul.f32 %v190, 0.0625
  %v351 = vmul.f32 %v193, 0.0625
  %v352 = vmul.f32 %v196, 0.0625
  %v353 = vmul.f32 %v199, 0.0625
  %v354 = vmul.f32 %v202, 0.0625
  %v355 = vmul.f32 %v205, 0.0625
  %v356 = vmul.f32 %v208, 0.0625
  %v357 = vmul.f32 %v211, 0.0625
  %v358 = vmul.f32 %v214, 0.0625
  %v359 = vmul.f32 %v217, 0.0625
  %v360 = vmul.f32 %v220, 0.0625
  %v361 = vmul.f32 %v223, 0.0625
  %v362 = vmul.f32 %v226, 0.0625
  %v363 = vmul.f32 %v229, 0.0625
  %v364 = vmul.f32 %v232, 0.0625
  %v365 = vmul.f32 %v235, 0.0625
  %v366 = vmul.f32 %v238, 0.0625
  %v367 = vmul.f32 %v241, 0.0625
  %v368 = vmul.f32 %v244, 0.0625
  %v369 = vmul.f32 %v247, 0.0625
  %v370 = vmul.f32 %v250, 0.0625
  %v371 = vmul.f32 %v253, 0.0625
  %v372 = vmul.f32 %v256, 0.0625
  %v373 = vmul.f32 %v259, 0.0625
  %v374 = vmul.f32 %v262, 0.0625
  %v375 = vmul.f32 %v265, 0.0625
  %v376 = vmul.f32 %v268, 0.0625
  %v377 = vmul.f32 %v271, 0.0625
  %v378 = vmul.f32 %v274, 0.0625
  %v379 = vmul.f32 %v277, 0.0625
  %v380 = vmul.f32 %v280, 0.0625
  %v381 = vmul.f32 %v283, 0.0625
  %v382 = vmul.f32 %v286, 0.0625
  %v383 = vmul.f32 %v289, 0.0625
  %v384 = vmul.f32 %v292, 0.0625
  %v385 = vmul.f32 %v295, 0.0625
  %v386 = vmul.f32 %v298, 0.0625
  %v387 = vmul.f32 %v301, 0.0625
  %v388 = vmul.f32 %v304, 0.0625
  %v389 = vmul.f32 %v307, 0.0625
  %v390 = vmul.f32 %v310, 0.0625
  %v391 = vmul.f32 %v313, 0.0625
  %v392 = vmul.f32 %v316, 0.0625
  %v393 = vmul.f32 %v319, 0.0625
  %v394 = vmul.f32 %v322, 0.0625
  %v395 = vmul.f32 %v325, 0.0625
  %v396 = vmul.f32 %v328, 0.0625
  %v397 = vmul.f32 %v331, 0.0625
  %v398 = vmul.f32 %v334, 0.0625
  %v399 = vld [vmem:[%s1] sm:$0xff]
  %v400 = vld [vmem:[%s1 + $0x8] sm:$0x3]
  %v401 = vld [vmem:[%s2] sm:$0xff]
  %v402 = vld [vmem:[%s2 + $0x8] sm:$0x3]
  %404 = vset.pattern.permute.xlu0 0
  %405 = vperm.xlu0 %404, %v401
  %v406 = vpop.permute.xlu0 %405
  %409 = vset.pattern.permute.xlu0 0
  %410 = vperm.xlu0 %409, %v402
  %v411 = vpop.permute.xlu0 %410
  %v477 = vlaneseq
  %v478 = vand.u32 %v477, 127
  %v479 = vlaneseq
  %v480 = vshrl.u32 %v479, 7
  %v481 = vsub.s32 %v478, %v480
  %v482 = vrot.slane %v335, %v481
  %v483 = vlaneseq
  %v484 = vshrl.u32 %v483, 7
  %v485 = vsub.s32 %v478, %v484
  %v486 = vrot.slane %v336, %v485
  %v487 = vlaneseq
  %v488 = vshrl.u32 %v487, 7
  %v489 = vsub.s32 %v478, %v488
  %v490 = vrot.slane %v337, %v489
  %v491 = vlaneseq
  %v492 = vshrl.u32 %v491, 7
  %v493 = vsub.s32 %v478, %v492
  %v494 = vrot.slane %v338, %v493
  %v495 = vlaneseq
  %v496 = vshrl.u32 %v495, 7
  %v497 = vsub.s32 %v478, %v496
  %v498 = vrot.slane %v339, %v497
  %v499 = vlaneseq
  %v500 = vshrl.u32 %v499, 7
  %v501 = vsub.s32 %v478, %v500
  %v502 = vrot.slane %v340, %v501
  %v503 = vlaneseq
  %v504 = vshrl.u32 %v503, 7
  %v505 = vsub.s32 %v478, %v504
  %v506 = vrot.slane %v341, %v505
  %v507 = vlaneseq
  %v508 = vshrl.u32 %v507, 7
  %v509 = vsub.s32 %v478, %v508
  %v510 = vrot.slane %v342, %v509
  %v511 = vlaneseq
  %v512 = vshrl.u32 %v511, 7
  %v513 = vsub.s32 %v478, %v512
  %v514 = vrot.slane %v343, %v513
  %v515 = vlaneseq
  %v516 = vshrl.u32 %v515, 7
  %v517 = vsub.s32 %v478, %v516
  %v518 = vrot.slane %v344, %v517
  %v519 = vlaneseq
  %v520 = vshrl.u32 %v519, 7
  %v521 = vsub.s32 %v478, %v520
  %v522 = vrot.slane %v345, %v521
  %v523 = vlaneseq
  %v524 = vshrl.u32 %v523, 7
  %v525 = vsub.s32 %v478, %v524
  %v526 = vrot.slane %v346, %v525
  %v527 = vlaneseq
  %v528 = vshrl.u32 %v527, 7
  %v529 = vsub.s32 %v478, %v528
  %v530 = vrot.slane %v347, %v529
  %v531 = vlaneseq
  %v532 = vshrl.u32 %v531, 7
  %v533 = vsub.s32 %v478, %v532
  %v534 = vrot.slane %v348, %v533
  %v535 = vlaneseq
  %v536 = vshrl.u32 %v535, 7
  %v537 = vsub.s32 %v478, %v536
  %v538 = vrot.slane %v349, %v537
  %v539 = vlaneseq
  %v540 = vshrl.u32 %v539, 7
  %v541 = vsub.s32 %v478, %v540
  %v542 = vrot.slane %v350, %v541
  %v543 = vlaneseq
  %v544 = vshrl.u32 %v543, 7
  %v545 = vsub.s32 %v478, %v544
  %v546 = vrot.slane %v351, %v545
  %v547 = vlaneseq
  %v548 = vshrl.u32 %v547, 7
  %v549 = vsub.s32 %v478, %v548
  %v550 = vrot.slane %v352, %v549
  %v551 = vlaneseq
  %v552 = vshrl.u32 %v551, 7
  %v553 = vsub.s32 %v478, %v552
  %v554 = vrot.slane %v353, %v553
  %v555 = vlaneseq
  %v556 = vshrl.u32 %v555, 7
  %v557 = vsub.s32 %v478, %v556
  %v558 = vrot.slane %v354, %v557
  %v559 = vlaneseq
  %v560 = vshrl.u32 %v559, 7
  %v561 = vsub.s32 %v478, %v560
  %v562 = vrot.slane %v355, %v561
  %v563 = vlaneseq
  %v564 = vshrl.u32 %v563, 7
  %v565 = vsub.s32 %v478, %v564
  %v566 = vrot.slane %v356, %v565
  %v567 = vlaneseq
  %v568 = vshrl.u32 %v567, 7
  %v569 = vsub.s32 %v478, %v568
  %v570 = vrot.slane %v357, %v569
  %v571 = vlaneseq
  %v572 = vshrl.u32 %v571, 7
  %v573 = vsub.s32 %v478, %v572
  %v574 = vrot.slane %v358, %v573
  %v575 = vlaneseq
  %v576 = vshrl.u32 %v575, 7
  %v577 = vsub.s32 %v478, %v576
  %v578 = vrot.slane %v359, %v577
  %v579 = vlaneseq
  %v580 = vshrl.u32 %v579, 7
  %v581 = vsub.s32 %v478, %v580
  %v582 = vrot.slane %v360, %v581
  %v583 = vlaneseq
  %v584 = vshrl.u32 %v583, 7
  %v585 = vsub.s32 %v478, %v584
  %v586 = vrot.slane %v361, %v585
  %v587 = vlaneseq
  %v588 = vshrl.u32 %v587, 7
  %v589 = vsub.s32 %v478, %v588
  %v590 = vrot.slane %v362, %v589
  %v591 = vlaneseq
  %v592 = vshrl.u32 %v591, 7
  %v593 = vsub.s32 %v478, %v592
  %v594 = vrot.slane %v363, %v593
  %v595 = vlaneseq
  %v596 = vshrl.u32 %v595, 7
  %v597 = vsub.s32 %v478, %v596
  %v598 = vrot.slane %v364, %v597
  %v599 = vlaneseq
  %v600 = vshrl.u32 %v599, 7
  %v601 = vsub.s32 %v478, %v600
  %v602 = vrot.slane %v365, %v601
  %v603 = vlaneseq
  %v604 = vshrl.u32 %v603, 7
  %v605 = vsub.s32 %v478, %v604
  %v606 = vrot.slane %v366, %v605
  %v607 = vlaneseq
  %v608 = vshrl.u32 %v607, 7
  %v609 = vsub.s32 %v478, %v608
  %v610 = vrot.slane %v367, %v609
  %v611 = vlaneseq
  %v612 = vshrl.u32 %v611, 7
  %v613 = vsub.s32 %v478, %v612
  %v614 = vrot.slane %v368, %v613
  %v615 = vlaneseq
  %v616 = vshrl.u32 %v615, 7
  %v617 = vsub.s32 %v478, %v616
  %v618 = vrot.slane %v369, %v617
  %v619 = vlaneseq
  %v620 = vshrl.u32 %v619, 7
  %v621 = vsub.s32 %v478, %v620
  %v622 = vrot.slane %v370, %v621
  %v623 = vlaneseq
  %v624 = vshrl.u32 %v623, 7
  %v625 = vsub.s32 %v478, %v624
  %v626 = vrot.slane %v371, %v625
  %v627 = vlaneseq
  %v628 = vshrl.u32 %v627, 7
  %v629 = vsub.s32 %v478, %v628
  %v630 = vrot.slane %v372, %v629
  %v631 = vlaneseq
  %v632 = vshrl.u32 %v631, 7
  %v633 = vsub.s32 %v478, %v632
  %v634 = vrot.slane %v373, %v633
  %v635 = vlaneseq
  %v636 = vshrl.u32 %v635, 7
  %v637 = vsub.s32 %v478, %v636
  %v638 = vrot.slane %v374, %v637
  %v639 = vlaneseq
  %v640 = vshrl.u32 %v639, 7
  %v641 = vsub.s32 %v478, %v640
  %v642 = vrot.slane %v375, %v641
  %v643 = vlaneseq
  %v644 = vshrl.u32 %v643, 7
  %v645 = vsub.s32 %v478, %v644
  %v646 = vrot.slane %v376, %v645
  %v647 = vlaneseq
  %v648 = vshrl.u32 %v647, 7
  %v649 = vsub.s32 %v478, %v648
  %v650 = vrot.slane %v377, %v649
  %v651 = vlaneseq
  %v652 = vshrl.u32 %v651, 7
  %v653 = vsub.s32 %v478, %v652
  %v654 = vrot.slane %v378, %v653
  %v655 = vlaneseq
  %v656 = vshrl.u32 %v655, 7
  %v657 = vsub.s32 %v478, %v656
  %v658 = vrot.slane %v379, %v657
  %v659 = vlaneseq
  %v660 = vshrl.u32 %v659, 7
  %v661 = vsub.s32 %v478, %v660
  %v662 = vrot.slane %v380, %v661
  %v663 = vlaneseq
  %v664 = vshrl.u32 %v663, 7
  %v665 = vsub.s32 %v478, %v664
  %v666 = vrot.slane %v381, %v665
  %v667 = vlaneseq
  %v668 = vshrl.u32 %v667, 7
  %v669 = vsub.s32 %v478, %v668
  %v670 = vrot.slane %v382, %v669
  %v671 = vlaneseq
  %v672 = vshrl.u32 %v671, 7
  %v673 = vsub.s32 %v478, %v672
  %v674 = vrot.slane %v383, %v673
  %v675 = vlaneseq
  %v676 = vshrl.u32 %v675, 7
  %v677 = vsub.s32 %v478, %v676
  %v678 = vrot.slane %v384, %v677
  %v679 = vlaneseq
  %v680 = vshrl.u32 %v679, 7
  %v681 = vsub.s32 %v478, %v680
  %v682 = vrot.slane %v385, %v681
  %v683 = vlaneseq
  %v684 = vshrl.u32 %v683, 7
  %v685 = vsub.s32 %v478, %v684
  %v686 = vrot.slane %v386, %v685
  %v687 = vlaneseq
  %v688 = vshrl.u32 %v687, 7
  %v689 = vsub.s32 %v478, %v688
  %v690 = vrot.slane %v387, %v689
  %v691 = vlaneseq
  %v692 = vshrl.u32 %v691, 7
  %v693 = vsub.s32 %v478, %v692
  %v694 = vrot.slane %v388, %v693
  %v695 = vlaneseq
  %v696 = vshrl.u32 %v695, 7
  %v697 = vsub.s32 %v478, %v696
  %v698 = vrot.slane %v389, %v697
  %v699 = vlaneseq
  %v700 = vshrl.u32 %v699, 7
  %v701 = vsub.s32 %v478, %v700
  %v702 = vrot.slane %v390, %v701
  %v703 = vlaneseq
  %v704 = vshrl.u32 %v703, 7
  %v705 = vsub.s32 %v478, %v704
  %v706 = vrot.slane %v391, %v705
  %v707 = vlaneseq
  %v708 = vshrl.u32 %v707, 7
  %v709 = vsub.s32 %v478, %v708
  %v710 = vrot.slane %v392, %v709
  %v711 = vlaneseq
  %v712 = vshrl.u32 %v711, 7
  %v713 = vsub.s32 %v478, %v712
  %v714 = vrot.slane %v393, %v713
  %v715 = vlaneseq
  %v716 = vshrl.u32 %v715, 7
  %v717 = vsub.s32 %v478, %v716
  %v718 = vrot.slane %v394, %v717
  %v719 = vlaneseq
  %v720 = vshrl.u32 %v719, 7
  %v721 = vsub.s32 %v478, %v720
  %v722 = vrot.slane %v395, %v721
  %v723 = vlaneseq
  %v724 = vshrl.u32 %v723, 7
  %v725 = vsub.s32 %v478, %v724
  %v726 = vrot.slane %v396, %v725
  %v727 = vlaneseq
  %v728 = vshrl.u32 %v727, 7
  %v729 = vsub.s32 %v478, %v728
  %v730 = vrot.slane %v397, %v729
  %v731 = vlaneseq
  %v732 = vshrl.u32 %v731, 7
  %v733 = vsub.s32 %v478, %v732
  %v734 = vrot.slane %v398, %v733
  %vm735 = vcmask 1041409
  %v736 = vsel %vm735, %v486, %v482
  %vm737 = vcmask 1042434
  %v738 = vsel %vm737, %v490, %v736
  %vm739 = vcmask 1043459
  %v740 = vsel %vm739, %v494, %v738
  %vm741 = vcmask 1044484
  %v742 = vsel %vm741, %v498, %v740
  %vm743 = vcmask 1045509
  %v744 = vsel %vm743, %v502, %v742
  %vm745 = vcmask 1046534
  %v746 = vsel %vm745, %v506, %v744
  %vm747 = vcmask 1047559
  %v748 = vsel %vm747, %v510, %v746
  %v749 = vsel %vm735, %v518, %v514
  %v750 = vsel %vm737, %v522, %v749
  %v751 = vsel %vm739, %v526, %v750
  %v752 = vsel %vm741, %v530, %v751
  %v753 = vsel %vm743, %v534, %v752
  %v754 = vsel %vm745, %v538, %v753
  %v755 = vsel %vm747, %v542, %v754
  %v756 = vsel %vm735, %v550, %v546
  %v757 = vsel %vm737, %v554, %v756
  %v758 = vsel %vm739, %v558, %v757
  %v759 = vsel %vm741, %v562, %v758
  %v760 = vsel %vm743, %v566, %v759
  %v761 = vsel %vm745, %v570, %v760
  %v762 = vsel %vm747, %v574, %v761
  %v763 = vsel %vm735, %v582, %v578
  %v764 = vsel %vm737, %v586, %v763
  %v765 = vsel %vm739, %v590, %v764
  %v766 = vsel %vm741, %v594, %v765
  %v767 = vsel %vm743, %v598, %v766
  %v768 = vsel %vm745, %v602, %v767
  %v769 = vsel %vm747, %v606, %v768
  %v770 = vsel %vm735, %v614, %v610
  %v771 = vsel %vm737, %v618, %v770
  %v772 = vsel %vm739, %v622, %v771
  %v773 = vsel %vm741, %v626, %v772
  %v774 = vsel %vm743, %v630, %v773
  %v775 = vsel %vm745, %v634, %v774
  %v776 = vsel %vm747, %v638, %v775
  %v777 = vsel %vm735, %v646, %v642
  %v778 = vsel %vm737, %v650, %v777
  %v779 = vsel %vm739, %v654, %v778
  %v780 = vsel %vm741, %v658, %v779
  %v781 = vsel %vm743, %v662, %v780
  %v782 = vsel %vm745, %v666, %v781
  %v783 = vsel %vm747, %v670, %v782
  %v784 = vsel %vm735, %v678, %v674
  %v785 = vsel %vm737, %v682, %v784
  %v786 = vsel %vm739, %v686, %v785
  %v787 = vsel %vm741, %v690, %v786
  %v788 = vsel %vm743, %v694, %v787
  %v789 = vsel %vm745, %v698, %v788
  %v790 = vsel %vm747, %v702, %v789
  %v791 = vsel %vm735, %v710, %v706
  %v792 = vsel %vm737, %v714, %v791
  %v793 = vsel %vm739, %v718, %v792
  %v794 = vsel %vm741, %v722, %v793
  %v795 = vsel %vm743, %v726, %v794
  %v796 = vsel %vm745, %v730, %v795
  %v797 = vsel %vm747, %v734, %v796
  %vm806 = vcmask 523264
  %v808 = vsel %vm806, %v399, 0
  %v811 = vsel %vm806, %v400, 0
  %813 = vmatprep.subr.mxu0 0.0
  %814 = vmatpush1.msra.mxu0 %v748
  %815 = vmatprep.subr.mxu0 0.0
  %816 = vmatpush1.msra.mxu0 %v755
  %817 = vmatprep.subr.mxu0 0.0
  %818 = vmatpush1.msra.mxu0 %v762
  %819 = vmatprep.subr.mxu0 0.0
  %820 = vmatpush1.msra.mxu0 %v769
  %821 = vmatprep.subr.mxu0 0.0
  %822 = vmatpush1.msra.mxu0 %v776
  %823 = vmatprep.subr.mxu0 0.0
  %824 = vmatpush1.msra.mxu0 %v783
  %825 = vmatprep.subr.mxu0 0.0
  %826 = vmatpush1.msra.mxu0 %v790
  %827 = vmatprep.subr.mxu0 0.0
  %828 = vmatpush1.msra.mxu0 %v797
  %829 = vmatprep.subr.mxu0 0.0
  %830 = vmatpush1.msra.mxu0 0.0
  %831 = vmatprep.subr.mxu0 0.0
  %832 = vmatpush1.msra.mxu0 0.0
  %833 = vmatprep.subr.mxu0 0.0
  %834 = vmatpush1.msra.mxu0 0.0
  %835 = vmatprep.subr.mxu0 0.0
  %836 = vmatpush1.msra.mxu0 0.0
  %837 = vmatprep.subr.mxu0 0.0
  %838 = vmatpush1.msra.mxu0 0.0
  %839 = vmatprep.subr.mxu0 0.0
  %840 = vmatpush1.msra.mxu0 0.0
  %841 = vmatprep.subr.mxu0 0.0
  %842 = vmatpush1.msra.mxu0 0.0
  %843 = vmatprep.subr.mxu0 0.0
  %844 = vmatpush1.msra.mxu0 0.0
  %845 = vmatprep.subr.mxu0 0.0
  %846 = vmatpush1.msra.mxu0 0.0
  %847 = vmatprep.subr.mxu0 0.0
  %848 = vmatpush1.msra.mxu0 0.0
  %849 = vmatprep.subr.mxu0 0.0
  %850 = vmatpush1.msra.mxu0 0.0
  %851 = vmatprep.subr.mxu0 0.0
  %852 = vmatpush1.msra.mxu0 0.0
  %853 = vmatprep.subr.mxu0 0.0
  %854 = vmatpush1.msra.mxu0 0.0
  %855 = vmatprep.subr.mxu0 0.0
  %856 = vmatpush1.msra.mxu0 0.0
  %857 = vmatprep.subr.mxu0 0.0
  %858 = vmatpush1.msra.mxu0 0.0
  %859 = vmatprep.subr.mxu0 0.0
  %860 = vmatpush1.msra.mxu0 0.0
  %861 = vmatprep.subr.mxu0 0.0
  %862 = vmatpush1.msra.mxu0 0.0
  %863 = vmatprep.subr.mxu0 0.0
  %864 = vmatpush1.msra.mxu0 0.0
  %865 = vmatprep.subr.mxu0 0.0
  %866 = vmatpush1.msra.mxu0 0.0
  %867 = vmatprep.subr.mxu0 0.0
  %868 = vmatpush1.msra.mxu0 0.0
  %869 = vmatprep.subr.mxu0 0.0
  %870 = vmatpush1.msra.mxu0 0.0
  %871 = vmatprep.subr.mxu0 0.0
  %872 = vmatpush1.msra.mxu0 0.0
  %873 = vmatprep.subr.mxu0 0.0
  %874 = vmatpush1.msra.mxu0 0.0
  %875 = vmatprep.subr.mxu0 0.0
  %876 = vmatpush1.msra.mxu0 0.0
  %877 = vmatprep.mubr.f32.mxu0 0.0
  %878 = vmatmul.mubr.f32.gmra.mrb[0].mxu0 %v808
  %v879 = vpop.f32.mrb[0].mxu0
  %v880 = vadd.f32 %v406, %v879
  %v881 = vpop.f32.mrb[0].mxu0
  %882 = vmatprep.mubr.f32.mxu0 0.0
  %883 = vmatmul.mubr.f32.gmra.mrb[0].mxu0 %v811
  %v884 = vpop.f32.mrb[0].mxu0
  %v885 = vadd.f32 %v411, %v884
  %v886 = vpop.f32.mrb[0].mxu0
  %887 = vdwg.mxu0
  %vm888 = vcmask 15360
  %889 = vst.msk [vmem:[%s3] sm:$0xff] %vm888, %v880
  %vm890 = vcmask 9216
  %891 = vst.msk [vmem:[%s3 + $0x8] sm:$0x3] %vm890, %v885
  // Predicated region
  $region14: #{_lambda_.19} parent=0 // pred_check
    _
  $region15: #{_lambda_.19} parent=0 // pred_check_branch
    %893 = sbr.rel (0) target = $region17
  $region16: #{_lambda_.19} parent=0 // pred_region
    _
  $region17: #{_lambda_.19} parent=0 // pred_fallthru
    _
  // Predicated region
  $region18: #{_lambda_.19} parent=0 // pred_check
    _
  $region19: #{_lambda_.19} parent=0 // pred_check_branch
    %895 = sbr.rel (0) target = $region21
  $region20: #{_lambda_.19} parent=0 // pred_region
    _
  $region21: #{_lambda_.19} parent=0 // pred_fallthru
    _

// kernel: _lambda_.17
$region0: #{_lambda_.17}
  #allocation0 [shape = 'u32[]', space=smem, size = 0x4, offset = 0x4, fixed_abs, tag = 'smem constant byte address 0x4 - core index']
  #allocation1 [shape = 'u32[144,128]{1,0:T(1,128)}', space=vmem, size = 0x12000, scoped, tag = 'internal scratch']
  %s0 = inlined_call_operand.hbm [shape: bf16[64,32], index: 0, kind: input, shape index: {}]
  %s1 = inlined_call_operand.hbm [shape: bf16[32,128], index: 1, kind: input, shape index: {}]
  %s2 = inlined_call_operand.hbm [shape: f32[64,1], index: 2, kind: input, shape index: {}]
  %s3 = inlined_call_operand.hbm [shape: bf16[64,128], index: 3, kind: output, shape index: {}]
  %s4 = sld [smem:[#allocation0]]
  $region34: #{_lambda_.17} parent=0
    _
  %s6 = ssub.s32 1, %s4
  %s7 = scalar_select 0, %s6, %s4
  $region1: #{_lambda_.17} parent=0
    #allocation2 [shape = 'u8[16384]{0}', space=vmem, size = 0x4000, scoped, tag = 'input window, operand 0, single buffered']
    #allocation3 [shape = 's32[1]{0}', space=sflag, size = 0x4, scoped, tag = 'scoped memory for _lambda_.17']
    #allocation4 [shape = 's32[1]{0}', space=sflag, size = 0x4, scoped, tag = 'scoped memory for _lambda_.17']
    #allocation5 [shape = 'u8[8192]{0}', space=vmem, size = 0x2000, scoped, tag = 'input window, operand 1, single buffered']
    #allocation6 [shape = 's32[1]{0}', space=sflag, size = 0x4, scoped, tag = 'scoped memory for _lambda_.17']
    #allocation7 [shape = 'u8[32768]{0}', space=vmem, size = 0x8000, scoped, tag = 'input window, operand 2, single buffered']
    #allocation8 [shape = 'u8[16384]{0}', space=vmem, size = 0x4000, scoped, tag = 'output window, operand 0, single buffered']
    %8 = vsyncpa [#allocation3], 0
    %9 = vsyncpa [#allocation6], 0
    %10 = vsyncpa [#allocation4], 0
    // Predicated region
    $region2: #{_lambda_.17} parent=1 // pred_check
      _
    $region3: #{_lambda_.17} parent=1 // pred_check_branch
      %12 = sbr.rel (0) target = $region5
    $region4: #{_lambda_.17} parent=1 // pred_region
      %s14 = ssub.s32 512, 512
      %15 = vsyncadd [#allocation3], %s14
      %s16 = sshll.u32 [#allocation2], 4
      %s17 = int_to_ptr.vmem [resolvable:$true] %s16
      %22 = dma.hbm_to_vmem [thread:$0]  %s0, 512, %s17, [#allocation3], 64, 64, 4
    $region5: #{_lambda_.17} parent=1 // pred_fallthru
      _
    // Predicated region
    $region6: #{_lambda_.17} parent=1 // pred_check
      _
    $region7: #{_lambda_.17} parent=1 // pred_check_branch
      %24 = sbr.rel (0) target = $region9
    $region8: #{_lambda_.17} parent=1 // pred_region
      %s26 = ssub.s32 256, 256
      %27 = vsyncadd [#allocation6], %s26
      %s28 = sshll.u32 [#allocation5], 4
      %s29 = int_to_ptr.vmem [resolvable:$true] %s28
      %34 = dma.hbm_to_vmem [thread:$0]  %s1, 256, %s29, [#allocation6], 64, 64, 4
    $region9: #{_lambda_.17} parent=1 // pred_fallthru
      _
    // Predicated region
    $region10: #{_lambda_.17} parent=1 // pred_check
      _
    $region11: #{_lambda_.17} parent=1 // pred_check_branch
      %36 = sbr.rel (0) target = $region13
    $region12: #{_lambda_.17} parent=1 // pred_region
      %s38 = ssub.s32 1024, 1024
      %39 = vsyncadd [#allocation6], %s38
      %s40 = sshll.u32 [#allocation7], 4
      %s41 = int_to_ptr.vmem [resolvable:$true] %s40
      %46 = dma.hbm_to_vmem [thread:$0]  %s2, 1024, %s41, [#allocation6], 128, 128, 8
    $region13: #{_lambda_.17} parent=1 // pred_fallthru
      _
    // Predicated region
    $region14: #{_lambda_.17} parent=1 // pred_check
      _
    $region15: #{_lambda_.17} parent=1 // pred_check_branch
      %48 = sbr.rel (0) target = $region17
    $region16: #{_lambda_.17} parent=1 // pred_region
      %49 = dma.done [#allocation3], 512
    $region17: #{_lambda_.17} parent=1 // pred_fallthru
      _
    // Predicated region
    $region18: #{_lambda_.17} parent=1 // pred_check
      _
    $region19: #{_lambda_.17} parent=1 // pred_check_branch
      %51 = sbr.rel (0) target = $region21
    $region20: #{_lambda_.17} parent=1 // pred_region
      %52 = dma.done [#allocation6], 256
    $region21: #{_lambda_.17} parent=1 // pred_fallthru
      _
    // Predicated region
    $region22: #{_lambda_.17} parent=1 // pred_check
      _
    $region23: #{_lambda_.17} parent=1 // pred_check_branch
      %54 = sbr.rel (0) target = $region25
    $region24: #{_lambda_.17} parent=1 // pred_region
      %55 = dma.done [#allocation6], 1024
    $region25: #{_lambda_.17} parent=1 // pred_fallthru
      _
    %v57 = vld [vmem:[#allocation2] sm:$0xf]
    %v58 = vld [vmem:[#allocation2 + $0x4] sm:$0xf]
    %v59 = vld [vmem:[#allocation2 + $0x8] sm:$0xf]
    %v60 = vld [vmem:[#allocation2 + $0xc] sm:$0xf]
    %v61 = vld [vmem:[#allocation2 + $0x10] sm:$0xf]
    %v62 = vld [vmem:[#allocation2 + $0x14] sm:$0xf]
    %v63 = vld [vmem:[#allocation2 + $0x18] sm:$0xf]
    %v64 = vld [vmem:[#allocation2 + $0x1c] sm:$0xf]
    %v65 = vld [vmem:[#allocation5] sm:$0xf]
    %v66 = vld [vmem:[#allocation5 + $0x4] sm:$0xf]
    %v67 = vld [vmem:[#allocation5 + $0x8] sm:$0xf]
    %v68 = vld [vmem:[#allocation5 + $0xc] sm:$0xf]
    %v69 = vld [vmem:[#allocation7] sm:$0xff]
    %v70 = vld [vmem:[#allocation7 + $0x8] sm:$0xff]
    %v71 = vld [vmem:[#allocation7 + $0x10] sm:$0xff]
    %v72 = vld [vmem:[#allocation7 + $0x18] sm:$0xff]
    %v73 = vld [vmem:[#allocation7 + $0x20] sm:$0xff]
    %v74 = vld [vmem:[#allocation7 + $0x28] sm:$0xff]
    %v75 = vld [vmem:[#allocation7 + $0x30] sm:$0xff]
    %v76 = vld [vmem:[#allocation7 + $0x38] sm:$0xff]
    %78 = vset.pattern.permute.xlu0 0
    %79 = vperm.xlu0 %78, %v69
    %v80 = vpop.permute.xlu0 %79
    %83 = vset.pattern.permute.xlu0 0
    %84 = vperm.xlu0 %83, %v70
    %v85 = vpop.permute.xlu0 %84
    %88 = vset.pattern.permute.xlu0 0
    %89 = vperm.xlu0 %88, %v71
    %v90 = vpop.permute.xlu0 %89
    %93 = vset.pattern.permute.xlu0 0
    %94 = vperm.xlu0 %93, %v72
    %v95 = vpop.permute.xlu0 %94
    %98 = vset.pattern.permute.xlu0 0
    %99 = vperm.xlu0 %98, %v73
    %v100 = vpop.permute.xlu0 %99
    %103 = vset.pattern.permute.xlu0 0
    %104 = vperm.xlu0 %103, %v74
    %v105 = vpop.permute.xlu0 %104
    %108 = vset.pattern.permute.xlu0 0
    %109 = vperm.xlu0 %108, %v75
    %v110 = vpop.permute.xlu0 %109
    %113 = vset.pattern.permute.xlu0 0
    %114 = vperm.xlu0 %113, %v76
    %v115 = vpop.permute.xlu0 %114
    %v125 = vunpack.c.l.b16 %v57
    %v126 = vunpack.c.l.b16 %v58
    %v127 = vunpack.c.l.b16 %v59
    %v128 = vunpack.c.l.b16 %v60
    %v129 = vunpack.c.l.b16 %v61
    %v130 = vunpack.c.l.b16 %v62
    %v131 = vunpack.c.l.b16 %v63
    %v132 = vunpack.c.l.b16 %v64
    %v133 = vpack.c.b16 %v126, %v125
    %v134 = vpack.c.b16 %v128, %v127
    %v135 = vpack.c.b16 %v130, %v129
    %v136 = vpack.c.b16 %v132, %v131
    %v141 = vunpack.c.l.b16 %v65
    %v142 = vunpack.c.l.b16 %v66
    %v143 = vunpack.c.l.b16 %v67
    %v144 = vunpack.c.l.b16 %v68
    %v145 = vpack.c.b16 %v142, %v141
    %v146 = vpack.c.b16 %v144, %v143
    %vm149 = vcmask 261120
    %v151 = vsel %vm149, %v133, 0
    %v154 = vsel %vm149, %v134, 0
    %v157 = vsel %vm149, %v135, 0
    %v160 = vsel %vm149, %v136, 0
    %162 = vmatprep.subr.bf16.mxu0 0
    %163 = vmatpush1.bf16.msra.mxu0 %v145
    %164 = vmatprep.subr.bf16.mxu0 0
    %165 = vmatpush1.bf16.msra.mxu0 %v146
    %166 = vmatprep.subr.bf16.mxu0 0
    %167 = vmatpush1.bf16.msra.mxu0 0
    %168 = vmatprep.subr.bf16.mxu0 0
    %169 = vmatpush1.bf16.msra.mxu0 0
    %170 = vmatprep.subr.bf16.mxu0 0
    %171 = vmatpush1.bf16.msra.mxu0 0
    %172 = vmatprep.subr.bf16.mxu0 0
    %173 = vmatpush1.bf16.msra.mxu0 0
    %174 = vmatprep.subr.bf16.mxu0 0
    %175 = vmatpush1.bf16.msra.mxu0 0
    %176 = vmatprep.subr.bf16.mxu0 0
    %177 = vmatpush1.bf16.msra.mxu0 0
    %178 = vmatprep.subr.bf16.mxu0 0
    %179 = vmatpush1.bf16.msra.mxu0 0
    %180 = vmatprep.subr.bf16.mxu0 0
    %181 = vmatpush1.bf16.msra.mxu0 0
    %182 = vmatprep.subr.bf16.mxu0 0
    %183 = vmatpush1.bf16.msra.mxu0 0
    %184 = vmatprep.subr.bf16.mxu0 0
    %185 = vmatpush1.bf16.msra.mxu0 0
    %186 = vmatprep.subr.bf16.mxu0 0
    %187 = vmatpush1.bf16.msra.mxu0 0
    %188 = vmatprep.subr.bf16.mxu0 0
    %189 = vmatpush1.bf16.msra.mxu0 0
    %190 = vmatprep.subr.bf16.mxu0 0
    %191 = vmatpush1.bf16.msra.mxu0 0
    %192 = vmatprep.subr.bf16.mxu0 0
    %193 = vmatpush1.bf16.msra.mxu0 0
    %194 = vmatprep.mubr.bf16.mxu0 0
    %195 = vmatmul.mubr.bf16.gmra.mrb[0].mxu0 %v151
    %v196 = vpop.f32.mrb[0].mxu0
    %v197 = vadd.f32 %v80, %v196
    %v198 = vpop.f32.mrb[0].mxu0
    %v199 = vpop.f32.mrb[0].mxu0
    %v200 = vadd.f32 %v85, %v199
    %v201 = vpop.f32.mrb[0].mxu0
    %202 = vmatprep.mubr.bf16.mxu0 0
    %203 = vmatmul.mubr.bf16.gmra.mrb[0].mxu0 %v154
    %v204 = vpop.f32.mrb[0].mxu0
    %v205 = vadd.f32 %v90, %v204
    %v206 = vpop.f32.mrb[0].mxu0
    %v207 = vpop.f32.mrb[0].mxu0
    %v208 = vadd.f32 %v95, %v207
    %v209 = vpop.f32.mrb[0].mxu0
    %210 = vmatprep.mubr.bf16.mxu0 0
    %211 = vmatmul.mubr.bf16.gmra.mrb[0].mxu0 %v157
    %v212 = vpop.f32.mrb[0].mxu0
    %v213 = vadd.f32 %v100, %v212
    %v214 = vpop.f32.mrb[0].mxu0
    %v215 = vpop.f32.mrb[0].mxu0
    %v216 = vadd.f32 %v105, %v215
    %v217 = vpop.f32.mrb[0].mxu0
    %218 = vmatprep.mubr.bf16.mxu0 0
    %219 = vmatmul.mubr.bf16.gmra.mrb[0].mxu0 %v160
    %v220 = vpop.f32.mrb[0].mxu0
    %v221 = vadd.f32 %v110, %v220
    %v222 = vpop.f32.mrb[0].mxu0
    %v223 = vpop.f32.mrb[0].mxu0
    %v224 = vadd.f32 %v115, %v223
    %v225 = vpop.f32.mrb[0].mxu0
    %226 = vdwg.mxu0
    %v227 = vpack.c.bf16 %v200, %v197
    %v228 = vpack.c.bf16 %v208, %v205
    %v229 = vpack.c.bf16 %v216, %v213
    %v230 = vpack.c.bf16 %v224, %v221
    %v235 = vunpack.c.l.b16 %v227
    %v236 = vunpack.c.h.b16 %v227
    %v237 = vunpack.c.l.b16 %v228
    %v238 = vunpack.c.h.b16 %v228
    %v239 = vunpack.c.l.b16 %v229
    %v240 = vunpack.c.h.b16 %v229
    %v241 = vunpack.c.l.b16 %v230
    %v242 = vunpack.c.h.b16 %v230
    %v243 = vpack.c.b16 %v235, %v235
    %v244 = vpack.c.b16 %v236, %v236
    %v245 = vpack.c.b16 %v237, %v237
    %v246 = vpack.c.b16 %v238, %v238
    %v247 = vpack.c.b16 %v239, %v239
    %v248 = vpack.c.b16 %v240, %v240
    %v249 = vpack.c.b16 %v241, %v241
    %v250 = vpack.c.b16 %v242, %v242
    %259 = vst [vmem:[#allocation8] sm:$0xf] %v243
    %260 = vst [vmem:[#allocation8 + $0x4] sm:$0xf] %v244
    %261 = vst [vmem:[#allocation8 + $0x8] sm:$0xf] %v245
    %262 = vst [vmem:[#allocation8 + $0xc] sm:$0xf] %v246
    %263 = vst [vmem:[#allocation8 + $0x10] sm:$0xf] %v247
    %264 = vst [vmem:[#allocation8 + $0x14] sm:$0xf] %v248
    %265 = vst [vmem:[#allocation8 + $0x18] sm:$0xf] %v249
    %266 = vst [vmem:[#allocation8 + $0x1c] sm:$0xf] %v250
    // Predicated region
    $region26: #{_lambda_.17} parent=1 // pred_check
      _
    $region27: #{_lambda_.17} parent=1 // pred_check_branch
      %268 = sbr.rel (0) target = $region29
    $region28: #{_lambda_.17} parent=1 // pred_region
      %s270 = ssub.s32 512, 512
      %271 = vsyncadd [#allocation4], %s270
      %s272 = sshll.u32 [#allocation8], 4
      %s273 = int_to_ptr.vmem [resolvable:$true] %s272
      %278 = dma.vmem_to_hbm [thread:$0]  %s273, 512, %s3, [#allocation4], 64, 64, 4
    $region29: #{_lambda_.17} parent=1 // pred_fallthru
      _
    // Predicated region
    $region30: #{_lambda_.17} parent=1 // pred_check
      _
    $region31: #{_lambda_.17} parent=1 // pred_check_branch
      %280 = sbr.rel (0) target = $region33
    $region32: #{_lambda_.17} parent=1 // pred_region
      %281 = dma.done [#allocation4], 512
    $region33: #{_lambda_.17} parent=1 // pred_fallthru
      _
    %282 = vsyncpa [#allocation3], 1
    %283 = vsyncpa [#allocation6], 1
    %284 = vsyncpa [#allocation4], 1

// kernel: _lambda_.18
$region0: #{_lambda_.18}
  #allocation0 [shape = 'u32[]', space=smem, size = 0x4, offset = 0x4, fixed_abs, tag = 'smem constant byte address 0x4 - core index']
  #allocation1 [shape = 'u32[144,128]{1,0:T(1,128)}', space=vmem, size = 0x12000, scoped, tag = 'internal scratch']
  %s0 = inlined_call_operand.hbm [shape: bf16[2,64,292], index: 0, kind: input, shape index: {}]
  %s1 = inlined_call_operand.hbm [shape: bf16[9,64,64], index: 1, kind: input, shape index: {}]
  %s2 = inlined_call_operand.hbm [shape: f32[64,1], index: 2, kind: input, shape index: {}]
  %s3 = inlined_call_operand.hbm [shape: f32[1,36], index: 3, kind: input, shape index: {}]
  %s4 = inlined_call_operand.hbm [shape: bf16[2,64,292], index: 4, kind: input, shape index: {}]
  %s5 = inlined_call_operand.hbm [shape: bf16[2,64,292], index: 5, kind: output, shape index: {}]
  %s6 = sld [smem:[#allocation0]]
  $region73: #{_lambda_.18} parent=0
    _
  %s8 = ssub.s32 1, %s6
  %s9 = scalar_select 0, %s8, %s6
  $region1: #{_lambda_.18} parent=0
    #allocation2 [shape = 'u8[98304]{0}', space=vmem, size = 0x18000, scoped, tag = 'input window, operand 0']
    #allocation3 [shape = 's32[2]{0}', space=sflag, size = 0x8, scoped, tag = 'scoped memory for _lambda_.18']
    #allocation4 [shape = 's32[2]{0}', space=sflag, size = 0x8, scoped, tag = 'scoped memory for _lambda_.18']
    #allocation5 [shape = 'u8[147456]{0}', space=vmem, size = 0x24000, scoped, tag = 'input window, operand 1, single buffered']
    #allocation6 [shape = 's32[1]{0}', space=sflag, size = 0x4, scoped, tag = 'scoped memory for _lambda_.18']
    #allocation7 [shape = 'u8[32768]{0}', space=vmem, size = 0x8000, scoped, tag = 'input window, operand 2, single buffered']
    #allocation8 [shape = 'u8[512]{0}', space=vmem, size = 0x400, scoped, tag = 'input window, operand 3, single buffered']
    #allocation9 [shape = 's32[1]{0}', space=sflag, size = 0x4, scoped, tag = 'scoped memory for _lambda_.18']
    #allocation10 [shape = 'u8[98304]{0}', space=vmem, size = 0x18000, scoped, tag = 'input window, operand 4']
    #allocation11 [shape = 'u8[98304]{0}', space=vmem, size = 0x18000, scoped, tag = 'output window, operand 0']
    %10 = vsyncpa [#allocation3], 0
    %s11 = scalar_lea.sflag [#allocation3], 1
    %12 = vsyncpa %s11, 0
    %13 = vsyncpa [#allocation6], 0
    %14 = vsyncpa [#allocation9], 0
    %15 = vsyncpa [#allocation4], 0
    %s16 = scalar_lea.sflag [#allocation4], 1
    %17 = vsyncpa %s16, 0
    loop: start=0, step=1, limit=4
    $region2: #{_lambda_.18} parent=1 // loop_pre_header
      _
    $region3: #{_lambda_.18} parent=1 // loop_header
      %s19 = sphi 0, %s23
      %p20 = scmp.ge.s32.totalorder %s19, 4
      %s29 = sphi 0, %s31
      %s32 = sphi 0, %s29
      %s33 = sphi 0, %s32
      %s49 = sphi 0, %s33
      %s53 = sphi 0, %s53
      %s55 = sphi 0, %s53
      %s56 = sphi 0, %s55
      %s70 = sphi 0, %s56
      %s74 = sphi 0, %s74
      %s76 = sphi 0, %s74
      %s77 = sphi 0, %s76
      %s91 = sphi 0, %s77
      %s95 = sphi 0, %s95
      %s97 = sphi 0, %s95
      %s98 = sphi 0, %s97
      %s112 = sphi 0, %s98
      %s118 = sphi 0, %s120
      %s121 = sphi 0, %s118
      %s122 = sphi 0, %s121
      %s138 = sphi 0, %s122
      %s144 = sphi 0, %s146
      %s147 = sphi 0, %s144
      %s148 = sphi 0, %s147
      %s164 = sphi 0, %s148
    $region4: #{_lambda_.18} parent=1 // loop_header_branch
      %22 = sbr.rel (%p20) target = $region8
    $region5: #{_lambda_.18} parent=1 // loop_body
      %s24 = ssub.s32 %s19, 1
      %s25 = ssub.s32 %s19, 2
      %s26 = sadd.s32 %s19, 1
      %s27 = ssub.s32 %s19, %s26
      %p28 = scmp.eq.s32.totalorder %s27, 0
      %s30 = sadd.s32 %s29, 1
      %s31 = scalar_select %p28, %s29, %s30
      %p34 = pneg %p28
      %p35 = scmp.eq.s32.totalorder %s19, 1
      %p36 = por %p34, %p35
      %p37 = scmp.ne.s32.totalorder %s29, %s32
      %p38 = scmp.eq.s32.totalorder %s19, 0
      %p39 = por %p37, %p38
      %p40 = scmp.ne.s32.totalorder %s29, %s32
      %p41 = scmp.eq.s32.totalorder %s24, 1
      %p42 = por %p40, %p41
      %p43 = scmp.ne.s32.totalorder %s32, %s33
      %p44 = scmp.eq.s32.totalorder %s24, 0
      %p45 = por %p43, %p44
      %p46 = scmp.ne.s32.totalorder %s32, %s33
      %p47 = scmp.eq.s32.totalorder %s25, 1
      %p48 = por %p46, %p47
      %p50 = scmp.ne.s32.totalorder %s33, %s49
      %p51 = scmp.eq.s32.totalorder %s25, 0
      %p52 = por %p50, %p51
      %s54 = sadd.s32 %s53, 1
      %p57 = scmp.eq.s32.totalorder %s19, 1
      %p58 = scmp.ne.s32.totalorder %s53, %s55
      %p59 = scmp.eq.s32.totalorder %s19, 0
      %p60 = por %p58, %p59
      %p61 = scmp.ne.s32.totalorder %s53, %s55
      %p62 = scmp.eq.s32.totalorder %s24, 1
      %p63 = por %p61, %p62
      %p64 = scmp.ne.s32.totalorder %s55, %s56
      %p65 = scmp.eq.s32.totalorder %s24, 0
      %p66 = por %p64, %p65
      %p67 = scmp.ne.s32.totalorder %s55, %s56
      %p68 = scmp.eq.s32.totalorder %s25, 1
      %p69 = por %p67, %p68
      %p71 = scmp.ne.s32.totalorder %s56, %s70
      %p72 = scmp.eq.s32.totalorder %s25, 0
      %p73 = por %p71, %p72
      %s75 = sadd.s32 %s74, 1
      %p78 = scmp.eq.s32.totalorder %s19, 1
      %p79 = scmp.ne.s32.totalorder %s74, %s76
      %p80 = scmp.eq.s32.totalorder %s19, 0
      %p81 = por %p79, %p80
      %p82 = scmp.ne.s32.totalorder %s74, %s76
      %p83 = scmp.eq.s32.totalorder %s24, 1
      %p84 = por %p82, %p83
      %p85 = scmp.ne.s32.totalorder %s76, %s77
      %p86 = scmp.eq.s32.totalorder %s24, 0
      %p87 = por %p85, %p86
      %p88 = scmp.ne.s32.totalorder %s76, %s77
      %p89 = scmp.eq.s32.totalorder %s25, 1
      %p90 = por %p88, %p89
      %p92 = scmp.ne.s32.totalorder %s77, %s91
      %p93 = scmp.eq.s32.totalorder %s25, 0
      %p94 = por %p92, %p93
      %s96 = sadd.s32 %s95, 1
      %p99 = scmp.eq.s32.totalorder %s19, 1
      %p100 = scmp.ne.s32.totalorder %s95, %s97
      %p101 = scmp.eq.s32.totalorder %s19, 0
      %p102 = por %p100, %p101
      %p103 = scmp.ne.s32.totalorder %s95, %s97
      %p104 = scmp.eq.s32.totalorder %s24, 1
      %p105 = por %p103, %p104
      %p106 = scmp.ne.s32.totalorder %s97, %s98
      %p107 = scmp.eq.s32.totalorder %s24, 0
      %p108 = por %p106, %p107
      %p109 = scmp.ne.s32.totalorder %s97, %s98
      %p110 = scmp.eq.s32.totalorder %s25, 1
      %p111 = por %p109, %p110
      %p113 = scmp.ne.s32.totalorder %s98, %s112
      %p114 = scmp.eq.s32.totalorder %s25, 0
      %p115 = por %p113, %p114
      %s116 = ssub.s32 %s19, %s26
      %p117 = scmp.eq.s32.totalorder %s116, 0
      %s119 = sadd.s32 %s118, 1
      %s120 = scalar_select %p117, %s118, %s119
      %p123 = pneg %p117
      %p124 = scmp.eq.s32.totalorder %s19, 1
      %p125 = por %p123, %p124
      %p126 = scmp.ne.s32.totalorder %s118, %s121
      %p127 = scmp.eq.s32.totalorder %s19, 0
      %p128 = por %p126, %p127
      %p129 = scmp.ne.s32.totalorder %s118, %s121
      %p130 = scmp.eq.s32.totalorder %s24, 1
      %p131 = por %p129, %p130
      %p132 = scmp.ne.s32.totalorder %s121, %s122
      %p133 = scmp.eq.s32.totalorder %s24, 0
      %p134 = por %p132, %p133
      %p135 = scmp.ne.s32.totalorder %s121, %s122
      %p136 = scmp.eq.s32.totalorder %s25, 1
      %p137 = por %p135, %p136
      %p139 = scmp.ne.s32.totalorder %s122, %s138
      %p140 = scmp.eq.s32.totalorder %s25, 0
      %p141 = por %p139, %p140
      %s142 = ssub.s32 %s19, %s26
      %p143 = scmp.eq.s32.totalorder %s142, 0
      %s145 = sadd.s32 %s144, 1
      %s146 = scalar_select %p143, %s144, %s145
      %p149 = pneg %p143
      %p150 = scmp.eq.s32.totalorder %s19, 1
      %p151 = por %p149, %p150
      %p152 = scmp.ne.s32.totalorder %s144, %s147
      %p153 = scmp.eq.s32.totalorder %s19, 0
      %p154 = por %p152, %p153
      %p155 = scmp.ne.s32.totalorder %s144, %s147
      %p156 = scmp.eq.s32.totalorder %s24, 1
      %p157 = por %p155, %p156
      %p158 = scmp.ne.s32.totalorder %s147, %s148
      %p159 = scmp.eq.s32.totalorder %s24, 0
      %p160 = por %p158, %p159
      %p161 = scmp.ne.s32.totalorder %s147, %s148
      %p162 = scmp.eq.s32.totalorder %s25, 1
      %p163 = por %p161, %p162
      %p165 = scmp.ne.s32.totalorder %s148, %s164
      %p166 = scmp.eq.s32.totalorder %s25, 0
      %p167 = por %p165, %p166
      %p168 = scmp.le.s32.totalorder 1, %s19
      %p169 = scmp.lt.s32.totalorder %s19, 3
      %p170 = pnand %p168, %p169
      %p171 = pneg %p170
      // Predicated region
      $region9: #{_lambda_.18} parent=5 // pred_check
        _
      $region10: #{_lambda_.18} parent=5 // pred_check_branch
        %173 = sbr.rel (%p170) target = $region12
      $region11: #{_lambda_.18} parent=5 // pred_region
        %s174 = ssub.s32 %s19, 1
        // Predicated region
        $region13: #{_lambda_.18} parent=11 // pred_check
          %p175 = pneg %p66
        $region14: #{_lambda_.18} parent=11 // pred_check_branch
          %177 = sbr.rel (%p175) target = $region16
        $region15: #{_lambda_.18} parent=11 // pred_region
          %s179 = ssub.s32 4608, 4608
          %180 = vsyncadd [#allocation6], %s179
          %s181 = sshll.u32 [#allocation5], 4
          %s182 = int_to_ptr.vmem [resolvable:$true] %s181
          %187 = dma.hbm_to_vmem [thread:$0]  %s1, 4608, %s182, [#allocation6], 64, 64, 4
        $region16: #{_lambda_.18} parent=11 // pred_fallthru
          _
        // Predicated region
        $region17: #{_lambda_.18} parent=11 // pred_check
          %p188 = pneg %p87
        $region18: #{_lambda_.18} parent=11 // pred_check_branch
          %190 = sbr.rel (%p188) target = $region20
        $region19: #{_lambda_.18} parent=11 // pred_region
          %s192 = ssub.s32 1024, 1024
          %193 = vsyncadd [#allocation6], %s192
          %s194 = sshll.u32 [#allocation7], 4
          %s195 = int_to_ptr.vmem [resolvable:$true] %s194
          %200 = dma.hbm_to_vmem [thread:$0]  %s2, 1024, %s195, [#allocation6], 128, 128, 8
        $region20: #{_lambda_.18} parent=11 // pred_fallthru
          _
        // Predicated region
        $region21: #{_lambda_.18} parent=11 // pred_check
          %p201 = pneg %p108
        $region22: #{_lambda_.18} parent=11 // pred_check_branch
          %203 = sbr.rel (%p201) target = $region24
        $region23: #{_lambda_.18} parent=11 // pred_region
          %s205 = ssub.s32 16, 16
          %206 = vsyncadd [#allocation9], %s205
          %s208 = sshll.u32 [#allocation8], 4
          %s209 = int_to_ptr.vmem [resolvable:$true] %s208
          %211 = dma.hbm_to_vmem [thread:$0]  %s3, 16, %s209, [#allocation9]
        $region24: #{_lambda_.18} parent=11 // pred_fallthru
          _
      $region12: #{_lambda_.18} parent=5 // pred_fallthru
        _
      %p212 = scmp.lt.s32.totalorder %s19, 2
      // Predicated region
      $region25: #{_lambda_.18} parent=5 // pred_check
        %p213 = pneg %p212
      $region26: #{_lambda_.18} parent=5 // pred_check_branch
        %215 = sbr.rel (%p213) target = $region28
      $region27: #{_lambda_.18} parent=5 // pred_region
        // Predicated region
        $region29: #{_lambda_.18} parent=27 // pred_check
          %p216 = pneg %p39
        $region30: #{_lambda_.18} parent=27 // pred_check_branch
          %218 = sbr.rel (%p216) target = $region32
        $region31: #{_lambda_.18} parent=27 // pred_region
          %s219 = sand.u32 %s19, 1
          %s220 = scalar_lea.sflag [#allocation3], %s219
          %s221 = sand.u32 %s29, 1
          %s222 = smul.addr %s221, 96
          %s223 = scalar_lea.vmem [#allocation2], %s222
          %s225 = ssub.s32 1536, 1536
          %226 = vsyncadd %s220, %s225
          %s227 = smul.addr %s19, 24
          %s228 = smul.addr %s227, 64
          %s229 = scalar_lea.hbm %s0, %s228
          %s230 = sshll.u32 %s223, 4
          %s231 = int_to_ptr.vmem [resolvable:$true] %s230
          %236 = dma.hbm_to_vmem [thread:$0]  %s229, 1536, %s231, %s220, 192, 192, 12
        $region32: #{_lambda_.18} parent=27 // pred_fallthru
          _
        // Predicated region
        $region33: #{_lambda_.18} parent=27 // pred_check
          %p237 = pneg %p128
        $region34: #{_lambda_.18} parent=27 // pred_check_branch
          %239 = sbr.rel (%p237) target = $region36
        $region35: #{_lambda_.18} parent=27 // pred_region
          %s240 = sand.u32 %s19, 1
          %s241 = scalar_lea.sflag [#allocation3], %s240
          %s242 = sand.u32 %s118, 1
          %s243 = smul.addr %s242, 96
          %s244 = scalar_lea.vmem [#allocation10], %s243
          %s246 = ssub.s32 1536, 1536
          %247 = vsyncadd %s241, %s246
          %s248 = smul.addr %s19, 24
          %s249 = smul.addr %s248, 64
          %s250 = scalar_lea.hbm %s4, %s249
          %s251 = sshll.u32 %s244, 4
          %s252 = int_to_ptr.vmem [resolvable:$true] %s251
          %257 = dma.hbm_to_vmem [thread:$0]  %s250, 1536, %s252, %s241, 192, 192, 12
        $region36: #{_lambda_.18} parent=27 // pred_fallthru
          _
      $region28: #{_lambda_.18} parent=5 // pred_fallthru
        _
      %p258 = scmp.le.s32.totalorder 1, %s19
      %p259 = scmp.lt.s32.totalorder %s19, 3
      %p260 = pnand %p258, %p259
      %p261 = pneg %p260
      // Predicated region
      $region37: #{_lambda_.18} parent=5 // pred_check
        _
      $region38: #{_lambda_.18} parent=5 // pred_check_branch
        %263 = sbr.rel (%p260) target = $region40
      $region39: #{_lambda_.18} parent=5 // pred_region
        %s264 = ssub.s32 %s19, 1
        %s265 = sand.u32 %s24, 1
        %s266 = scalar_lea.sflag [#allocation3], %s265
        %s267 = sand.u32 %s32, 1
        %s268 = smul.addr %s267, 96
        %s269 = scalar_lea.vmem [#allocation2], %s268
        // Predicated region
        $region41: #{_lambda_.18} parent=39 // pred_check
          %p270 = pneg %p45
        $region42: #{_lambda_.18} parent=39 // pred_check_branch
          %272 = sbr.rel (%p270) target = $region44
        $region43: #{_lambda_.18} parent=39 // pred_region
          %273 = dma.done %s266, 1536
        $region44: #{_lambda_.18} parent=39 // pred_fallthru
          _
        // Predicated region
        $region45: #{_lambda_.18} parent=39 // pred_check
          %p274 = pneg %p66
        $region46: #{_lambda_.18} parent=39 // pred_check_branch
          %276 = sbr.rel (%p274) target = $region48
        $region47: #{_lambda_.18} parent=39 // pred_region
          %277 = dma.done [#allocation6], 4608
        $region48: #{_lambda_.18} parent=39 // pred_fallthru
          _
        // Predicated region
        $region49: #{_lambda_.18} parent=39 // pred_check
          %p278 = pneg %p87
        $region50: #{_lambda_.18} parent=39 // pred_check_branch
          %280 = sbr.rel (%p278) target = $region52
        $region51: #{_lambda_.18} parent=39 // pred_region
          %281 = dma.done [#allocation6], 1024
        $region52: #{_lambda_.18} parent=39 // pred_fallthru
          _
        // Predicated region
        $region53: #{_lambda_.18} parent=39 // pred_check
          %p282 = pneg %p108
        $region54: #{_lambda_.18} parent=39 // pred_check_branch
          %284 = sbr.rel (%p282) target = $region56
        $region55: #{_lambda_.18} parent=39 // pred_region
          %285 = dma.done [#allocation9], 16
        $region56: #{_lambda_.18} parent=39 // pred_fallthru
          _
        %s286 = sand.u32 %s24, 1
        %s287 = scalar_lea.sflag [#allocation3], %s286
        %s288 = sand.u32 %s121, 1
        %s289 = smul.addr %s288, 96
        %s290 = scalar_lea.vmem [#allocation10], %s289
        // Predicated region
        $region57: #{_lambda_.18} parent=39 // pred_check
          %p291 = pneg %p134
        $region58: #{_lambda_.18} parent=39 // pred_check_branch
          %293 = sbr.rel (%p291) target = $region60
        $region59: #{_lambda_.18} parent=39 // pred_region
          %294 = dma.done %s287, 1536
        $region60: #{_lambda_.18} parent=39 // pred_fallthru
          _
        %s295 = sand.u32 %s24, 1
        %s296 = scalar_lea.sflag [#allocation3], %s295
        %s297 = sand.u32 %s32, 1
        %s298 = smul.addr %s297, 96
        %s299 = scalar_lea.vmem [#allocation2], %s298
        %p300 = pneg %p45
        %p301 = pneg %p42
        %p302 = pneg %p66
        %p303 = pneg %p63
        %p304 = pneg %p87
        %p305 = pneg %p84
        %p306 = pneg %p108
        %p307 = pneg %p105
        %s308 = sand.u32 %s24, 1
        %s309 = scalar_lea.sflag [#allocation3], %s308
        %s310 = sand.u32 %s121, 1
        %s311 = smul.addr %s310, 96
        %s312 = scalar_lea.vmem [#allocation10], %s311
        %p313 = pneg %p134
        %p314 = pneg %p131
        %p315 = pneg %p160
        %p316 = pneg %p157
        %s317 = sand.u32 %s147, 1
        %s318 = scalar_lea.sflag [#allocation4], %s317
        %s319 = sand.u32 %s147, 1
        %s320 = smul.addr %s319, 96
        %s321 = scalar_lea.vmem [#allocation11], %s320
        %v323 = vld [vmem:[#allocation5] sm:$0xf]
        %v324 = vld [vmem:[#allocation5 + $0x4] sm:$0xf]
        %v325 = vld [vmem:[#allocation5 + $0x8] sm:$0xf]
        %v326 = vld [vmem:[#allocation5 + $0xc] sm:$0xf]
        %v327 = vld [vmem:[#allocation5 + $0x10] sm:$0xf]
        %v328 = vld [vmem:[#allocation5 + $0x14] sm:$0xf]
        %v329 = vld [vmem:[#allocation5 + $0x18] sm:$0xf]
        %v330 = vld [vmem:[#allocation5 + $0x1c] sm:$0xf]
        %v331 = vld [vmem:[%s269] sm:$0xff]
        %v332 = vld [vmem:[%s269 + $0xc] sm:$0xff]
        %v333 = vld [vmem:[%s269 + $0x18] sm:$0xff]
        %v334 = vld [vmem:[%s269 + $0x24] sm:$0xff]
        %v335 = vld [vmem:[%s269 + $0x30] sm:$0xff]
        %v336 = vld [vmem:[%s269 + $0x3c] sm:$0xff]
        %v337 = vld [vmem:[%s269 + $0x48] sm:$0xff]
        %v338 = vld [vmem:[%s269 + $0x54] sm:$0xff]
        %s339 = scalar_lea.vmem [#allocation5], 32
        %v340 = vld [vmem:[%s339] sm:$0xf]
        %v341 = vld [vmem:[%s339 + $0x4] sm:$0xf]
        %v342 = vld [vmem:[%s339 + $0x8] sm:$0xf]
        %v343 = vld [vmem:[%s339 + $0xc] sm:$0xf]
        %v344 = vld [vmem:[%s339 + $0x10] sm:$0xf]
        %v345 = vld [vmem:[%s339 + $0x14] sm:$0xf]
        %v346 = vld [vmem:[%s339 + $0x18] sm:$0xf]
        %v347 = vld [vmem:[%s339 + $0x1c] sm:$0xf]
        %v356 = vunpack.c.l.b16 %v340
        %v357 = vunpack.c.l.b16 %v341
        %v358 = vunpack.c.l.b16 %v342
        %v359 = vunpack.c.l.b16 %v343
        %v360 = vunpack.c.l.b16 %v344
        %v361 = vunpack.c.l.b16 %v345
        %v362 = vunpack.c.l.b16 %v346
        %v363 = vunpack.c.l.b16 %v347
        %v364 = vpack.c.b16 %v357, %v356
        %v365 = vpack.c.b16 %v359, %v358
        %v366 = vpack.c.b16 %v361, %v360
        %v367 = vpack.c.b16 %v363, %v362
        %v376 = vunpack.c.l.b16 %v331
        %v377 = vunpack.c.h.b16 %v331
        %v378 = vunpack.c.l.b16 %v332
        %v379 = vunpack.c.h.b16 %v332
        %v380 = vunpack.c.l.b16 %v333
        %v381 = vunpack.c.h.b16 %v333
        %v382 = vunpack.c.l.b16 %v334
        %v383 = vunpack.c.h.b16 %v334
        %v384 = vunpack.c.l.b16 %v335
        %v385 = vunpack.c.h.b16 %v335
        %v386 = vunpack.c.l.b16 %v336
        %v387 = vunpack.c.h.b16 %v336
        %v388 = vunpack.c.l.b16 %v337
        %v389 = vunpack.c.h.b16 %v337
        %v390 = vunpack.c.l.b16 %v338
        %v391 = vunpack.c.h.b16 %v338
        %v392 = vpack.c.b16 %v378, %v376
        %v393 = vpack.c.b16 %v379, %v377
        %v394 = vpack.c.b16 %v382, %v380
        %v395 = vpack.c.b16 %v383, %v381
        %v396 = vpack.c.b16 %v386, %v384
        %v397 = vpack.c.b16 %v387, %v385
        %v398 = vpack.c.b16 %v390, %v388
        %v399 = vpack.c.b16 %v391, %v389
        %400 = vrot.lane.b32.xlu0 %v392, 6
        %v401 = vpop.permute.xlu0 %400
        %402 = vrot.lane.b32.xlu0 %v393, 6
        %v403 = vpop.permute.xlu0 %402
        %404 = vrot.lane.b32.xlu0 %v394, 6
        %v405 = vpop.permute.xlu0 %404
        %406 = vrot.lane.b32.xlu0 %v395, 6
        %v407 = vpop.permute.xlu0 %406
        %408 = vrot.lane.b32.xlu0 %v396, 6
        %v409 = vpop.permute.xlu0 %408
        %410 = vrot.lane.b32.xlu0 %v397, 6
        %v411 = vpop.permute.xlu0 %410
        %412 = vrot.lane.b32.xlu0 %v398, 6
        %v413 = vpop.permute.xlu0 %412
        %414 = vrot.lane.b32.xlu0 %v399, 6
        %v415 = vpop.permute.xlu0 %414
        %vm416 = vcmask 48128
        %v417 = vsel %vm416, %v401, %v403
        %v418 = vsel %vm416, %v405, %v407
        %v419 = vsel %vm416, %v409, %v411
        %v420 = vsel %vm416, %v413, %v415
        %vm425 = vcmask 523264
        %v427 = vsel %vm425, %v364, 0
        %v430 = vsel %vm425, %v365, 0
        %v433 = vsel %vm425, %v366, 0
        %v436 = vsel %vm425, %v367, 0
        %438 = vmatprep.subr.bf16.mxu0 0
        %439 = vmatpush1.bf16.msra.mxu0 %v417
        %440 = vmatprep.subr.bf16.mxu0 0
        %441 = vmatpush1.bf16.msra.mxu0 %v418
        %442 = vmatprep.subr.bf16.mxu0 0
        %443 = vmatpush1.bf16.msra.mxu0 %v419
        %444 = vmatprep.subr.bf16.mxu0 0
        %445 = vmatpush1.bf16.msra.mxu0 %v420
        %446 = vmatprep.subr.bf16.mxu0 0
        %447 = vmatpush1.bf16.msra.mxu0 0
        %448 = vmatprep.subr.bf16.mxu0 0
        %449 = vmatpush1.bf16.msra.mxu0 0
        %450 = vmatprep.subr.bf16.mxu0 0
        %451 = vmatpush1.bf16.msra.mxu0 0
        %452 = vmatprep.subr.bf16.mxu0 0
        %453 = vmatpush1.bf16.msra.mxu0 0
        %454 = vmatprep.subr.bf16.mxu0 0
        %455 = vmatpush1.bf16.msra.mxu0 0
        %456 = vmatprep.subr.bf16.mxu0 0
        %457 = vmatpush1.bf16.msra.mxu0 0
        %458 = vmatprep.subr.bf16.mxu0 0
        %459 = vmatpush1.bf16.msra.mxu0 0
        %460 = vmatprep.subr.bf16.mxu0 0
        %461 = vmatpush1.bf16.msra.mxu0 0
        %462 = vmatprep.subr.bf16.mxu0 0
        %463 = vmatpush1.bf16.msra.mxu0 0
        %464 = vmatprep.subr.bf16.mxu0 0
        %465 = vmatpush1.bf16.msra.mxu0 0
        %466 = vmatprep.subr.bf16.mxu0 0
        %467 = vmatpush1.bf16.msra.mxu0 0
        %468 = vmatprep.subr.bf16.mxu0 0
        %469 = vmatpush1.bf16.msra.mxu0 0
        %470 = vmatprep.mubr.bf16.mxu0 0
        %471 = vmatmul.mubr.bf16.gmra.mrb[0].mxu0 %v427
        %v472 = vpop.f32.mrb[0].mxu0
        %v473 = vadd.f32 0.0, %v472
        %v474 = vpop.f32.mrb[0].mxu0
        %v475 = vpop.f32.mrb[0].mxu0
        %v476 = vadd.f32 0.0, %v475
        %v477 = vpop.f32.mrb[0].mxu0
        %478 = vmatprep.mubr.bf16.mxu0 0
        %479 = vmatmul.mubr.bf16.gmra.mrb[0].mxu0 %v430
        %v480 = vpop.f32.mrb[0].mxu0
        %v481 = vadd.f32 0.0, %v480
        %v482 = vpop.f32.mrb[0].mxu0
        %v483 = vpop.f32.mrb[0].mxu0
        %v484 = vadd.f32 0.0, %v483
        %v485 = vpop.f32.mrb[0].mxu0
        %486 = vmatprep.mubr.bf16.mxu0 0
        %487 = vmatmul.mubr.bf16.gmra.mrb[0].mxu0 %v433
        %v488 = vpop.f32.mrb[0].mxu0
        %v489 = vadd.f32 0.0, %v488
        %v490 = vpop.f32.mrb[0].mxu0
        %v491 = vpop.f32.mrb[0].mxu0
        %v492 = vadd.f32 0.0, %v491
        %v493 = vpop.f32.mrb[0].mxu0
        %494 = vmatprep.mubr.bf16.mxu0 0
        %495 = vmatmul.mubr.bf16.gmra.mrb[0].mxu0 %v436
        %v496 = vpop.f32.mrb[0].mxu0
        %v497 = vadd.f32 0.0, %v496
        %v498 = vpop.f32.mrb[0].mxu0
        %v499 = vpop.f32.mrb[0].mxu0
        %v500 = vadd.f32 0.0, %v499
        %v501 = vpop.f32.mrb[0].mxu0
        %502 = vdwg.mxu0
        %v511 = vunpack.c.l.b16 %v323
        %v512 = vunpack.c.l.b16 %v324
        %v513 = vunpack.c.l.b16 %v325
        %v514 = vunpack.c.l.b16 %v326
        %v515 = vunpack.c.l.b16 %v327
        %v516 = vunpack.c.l.b16 %v328
        %v517 = vunpack.c.l.b16 %v329
        %v518 = vunpack.c.l.b16 %v330
        %v519 = vpack.c.b16 %v512, %v511
        %v520 = vpack.c.b16 %v514, %v513
        %v521 = vpack.c.b16 %v516, %v515
        %v522 = vpack.c.b16 %v518, %v517
        %523 = vrot.lane.b32.xlu0 %v392, 7
        %v524 = vpop.permute.xlu0 %523
        %525 = vrot.lane.b32.xlu0 %v393, 7
        %v526 = vpop.permute.xlu0 %525
        %527 = vrot.lane.b32.xlu0 %v394, 7
        %v528 = vpop.permute.xlu0 %527
        %529 = vrot.lane.b32.xlu0 %v395, 7
        %v530 = vpop.permute.xlu0 %529
        %531 = vrot.lane.b32.xlu0 %v396, 7
        %v532 = vpop.permute.xlu0 %531
        %533 = vrot.lane.b32.xlu0 %v397, 7
        %v534 = vpop.permute.xlu0 %533
        %535 = vrot.lane.b32.xlu0 %v398, 7
        %v536 = vpop.permute.xlu0 %535
        %537 = vrot.lane.b32.xlu0 %v399, 7
        %v538 = vpop.permute.xlu0 %537
        %vm539 = vcmask 56320
        %v540 = vsel %vm539, %v524, %v526
        %v541 = vsel %vm539, %v528, %v530
        %v542 = vsel %vm539, %v532, %v534
        %v543 = vsel %vm539, %v536, %v538
        %v549 = vsel %vm425, %v519, 0
        %v552 = vsel %vm425, %v520, 0
        %v555 = vsel %vm425, %v521, 0
        %v558 = vsel %vm425, %v522, 0
        %560 = vmatprep.subr.bf16.mxu0 0
        %561 = vmatpush1.bf16.msra.mxu0 %v540
        %562 = vmatprep.subr.bf16.mxu0 0
        %563 = vmatpush1.bf16.msra.mxu0 %v541
        %564 = vmatprep.subr.bf16.mxu0 0
        %565 = vmatpush1.bf16.msra.mxu0 %v542
        %566 = vmatprep.subr.bf16.mxu0 0
        %567 = vmatpush1.bf16.msra.mxu0 %v543
        %568 = vmatprep.subr.bf16.mxu0 0
        %569 = vmatpush1.bf16.msra.mxu0 0
        %570 = vmatprep.subr.bf16.mxu0 0
        %571 = vmatpush1.bf16.msra.mxu0 0
        %572 = vmatprep.subr.bf16.mxu0 0
        %573 = vmatpush1.bf16.msra.mxu0 0
        %574 = vmatprep.subr.bf16.mxu0 0
        %575 = vmatpush1.bf16.msra.mxu0 0
        %576 = vmatprep.subr.bf16.mxu0 0
        %577 = vmatpush1.bf16.msra.mxu0 0
        %578 = vmatprep.subr.bf16.mxu0 0
        %579 = vmatpush1.bf16.msra.mxu0 0
        %580 = vmatprep.subr.bf16.mxu0 0
        %581 = vmatpush1.bf16.msra.mxu0 0
        %582 = vmatprep.subr.bf16.mxu0 0
        %583 = vmatpush1.bf16.msra.mxu0 0
        %584 = vmatprep.subr.bf16.mxu0 0
        %585 = vmatpush1.bf16.msra.mxu0 0
        %586 = vmatprep.subr.bf16.mxu0 0
        %587 = vmatpush1.bf16.msra.mxu0 0
        %588 = vmatprep.subr.bf16.mxu0 0
        %589 = vmatpush1.bf16.msra.mxu0 0
        %590 = vmatprep.subr.bf16.mxu0 0
        %591 = vmatpush1.bf16.msra.mxu0 0
        %592 = vmatprep.mubr.bf16.mxu0 0
        %593 = vmatmul.mubr.bf16.gmra.mrb[0].mxu0 %v549
        %v594 = vpop.f32.mrb[0].mxu0
        %v595 = vadd.f32 %v473, %v594
        %v596 = vpop.f32.mrb[0].mxu0
        %v597 = vpop.f32.mrb[0].mxu0
        %v598 = vadd.f32 %v476, %v597
        %v599 = vpop.f32.mrb[0].mxu0
        %600 = vmatprep.mubr.bf16.mxu0 0
        %601 = vmatmul.mubr.bf16.gmra.mrb[0].mxu0 %v552
        %v602 = vpop.f32.mrb[0].mxu0
        %v603 = vadd.f32 %v481, %v602
        %v604 = vpop.f32.mrb[0].mxu0
        %v605 = vpop.f32.mrb[0].mxu0
        %v606 = vadd.f32 %v484, %v605
        %v607 = vpop.f32.mrb[0].mxu0
        %608 = vmatprep.mubr.bf16.mxu0 0
        %609 = vmatmul.mubr.bf16.gmra.mrb[0].mxu0 %v555
        %v610 = vpop.f32.mrb[0].mxu0
        %v611 = vadd.f32 %v489, %v610
        %v612 = vpop.f32.mrb[0].mxu0
        %v613 = vpop.f32.mrb[0].mxu0
        %v614 = vadd.f32 %v492, %v613
        %v615 = vpop.f32.mrb[0].mxu0
        %616 = vmatprep.mubr.bf16.mxu0 0
        %617 = vmatmul.mubr.bf16.gmra.mrb[0].mxu0 %v558
        %v618 = vpop.f32.mrb[0].mxu0
        %v619 = vadd.f32 %v497, %v618
        %v620 = vpop.f32.mrb[0].mxu0
        %v621 = vpop.f32.mrb[0].mxu0
        %v622 = vadd.f32 %v500, %v621
        %v623 = vpop.f32.mrb[0].mxu0
        %624 = vdwg.mxu0
        %s625 = scalar_lea.vmem [#allocation5], 64
        %v626 = vld [vmem:[%s625] sm:$0xf]
        %v627 = vld [vmem:[%s625 + $0x4] sm:$0xf]
        %v628 = vld [vmem:[%s625 + $0x8] sm:$0xf]
        %v629 = vld [vmem:[%s625 + $0xc] sm:$0xf]
        %v630 = vld [vmem:[%s625 + $0x10] sm:$0xf]
        %v631 = vld [vmem:[%s625 + $0x14] sm:$0xf]
        %v632 = vld [vmem:[%s625 + $0x18] sm:$0xf]
        %v633 = vld [vmem:[%s625 + $0x1c] sm:$0xf]
        %v642 = vunpack.c.l.b16 %v626
        %v643 = vunpack.c.l.b16 %v627
        %v644 = vunpack.c.l.b16 %v628
        %v645 = vunpack.c.l.b16 %v629
        %v646 = vunpack.c.l.b16 %v630
        %v647 = vunpack.c.l.b16 %v631
        %v648 = vunpack.c.l.b16 %v632
        %v649 = vunpack.c.l.b16 %v633
        %v650 = vpack.c.b16 %v643, %v642
        %v651 = vpack.c.b16 %v645, %v644
        %v652 = vpack.c.b16 %v647, %v646
        %v653 = vpack.c.b16 %v649, %v648
        %654 = vrot.lane.b32.xlu0 %v392, 5
        %v655 = vpop.permute.xlu0 %654
        %656 = vrot.lane.b32.xlu0 %v393, 5
        %v657 = vpop.permute.xlu0 %656
        %658 = vrot.lane.b32.xlu0 %v394, 5
        %v659 = vpop.permute.xlu0 %658
        %660 = vrot.lane.b32.xlu0 %v395, 5
        %v661 = vpop.permute.xlu0 %660
        %662 = vrot.lane.b32.xlu0 %v396, 5
        %v663 = vpop.permute.xlu0 %662
        %664 = vrot.lane.b32.xlu0 %v397, 5
        %v665 = vpop.permute.xlu0 %664
        %666 = vrot.lane.b32.xlu0 %v398, 5
        %v667 = vpop.permute.xlu0 %666
        %668 = vrot.lane.b32.xlu0 %v399, 5
        %v669 = vpop.permute.xlu0 %668
        %vm670 = vcmask 39936
        %v671 = vsel %vm670, %v655, %v657
        %v672 = vsel %vm670, %v659, %v661
        %v673 = vsel %vm670, %v663, %v665
        %v674 = vsel %vm670, %v667, %v669
        %v680 = vsel %vm425, %v650, 0
        %v683 = vsel %vm425, %v651, 0
        %v686 = vsel %vm425, %v652, 0
        %v689 = vsel %vm425, %v653, 0
        %691 = vmatprep.subr.bf16.mxu0 0
        %692 = vmatpush1.bf16.msra.mxu0 %v671
        %693 = vmatprep.subr.bf16.mxu0 0
        %694 = vmatpush1.bf16.msra.mxu0 %v672
        %695 = vmatprep.subr.bf16.mxu0 0
        %696 = vmatpush1.bf16.msra.mxu0 %v673
        %697 = vmatprep.subr.bf16.mxu0 0
        %698 = vmatpush1.bf16.msra.mxu0 %v674
        %699 = vmatprep.subr.bf16.mxu0 0
        %700 = vmatpush1.bf16.msra.mxu0 0
        %701 = vmatprep.subr.bf16.mxu0 0
        %702 = vmatpush1.bf16.msra.mxu0 0
        %703 = vmatprep.subr.bf16.mxu0 0
        %704 = vmatpush1.bf16.msra.mxu0 0
        %705 = vmatprep.subr.bf16.mxu0 0
        %706 = vmatpush1.bf16.msra.mxu0 0
        %707 = vmatprep.subr.bf16.mxu0 0
        %708 = vmatpush1.bf16.msra.mxu0 0
        %709 = vmatprep.subr.bf16.mxu0 0
        %710 = vmatpush1.bf16.msra.mxu0 0
        %711 = vmatprep.subr.bf16.mxu0 0
        %712 = vmatpush1.bf16.msra.mxu0 0
        %713 = vmatprep.subr.bf16.mxu0 0
        %714 = vmatpush1.bf16.msra.mxu0 0
        %715 = vmatprep.subr.bf16.mxu0 0
        %716 = vmatpush1.bf16.msra.mxu0 0
        %717 = vmatprep.subr.bf16.mxu0 0
        %718 = vmatpush1.bf16.msra.mxu0 0
        %719 = vmatprep.subr.bf16.mxu0 0
        %720 = vmatpush1.bf16.msra.mxu0 0
        %721 = vmatprep.subr.bf16.mxu0 0
        %722 = vmatpush1.bf16.msra.mxu0 0
        %723 = vmatprep.mubr.bf16.mxu0 0
        %724 = vmatmul.mubr.bf16.gmra.mrb[0].mxu0 %v680
        %v725 = vpop.f32.mrb[0].mxu0
        %v726 = vadd.f32 0.0, %v725
        %v727 = vpop.f32.mrb[0].mxu0
        %v728 = vpop.f32.mrb[0].mxu0
        %v729 = vadd.f32 0.0, %v728
        %v730 = vpop.f32.mrb[0].mxu0
        %731 = vmatprep.mubr.bf16.mxu0 0
        %732 = vmatmul.mubr.bf16.gmra.mrb[0].mxu0 %v683
        %v733 = vpop.f32.mrb[0].mxu0
        %v734 = vadd.f32 0.0, %v733
        %v735 = vpop.f32.mrb[0].mxu0
        %v736 = vpop.f32.mrb[0].mxu0
        %v737 = vadd.f32 0.0, %v736
        %v738 = vpop.f32.mrb[0].mxu0
        %739 = vmatprep.mubr.bf16.mxu0 0
        %740 = vmatmul.mubr.bf16.gmra.mrb[0].mxu0 %v686
        %v741 = vpop.f32.mrb[0].mxu0
        %v742 = vadd.f32 0.0, %v741
        %v743 = vpop.f32.mrb[0].mxu0
        %v744 = vpop.f32.mrb[0].mxu0
        %v745 = vadd.f32 0.0, %v744
        %v746 = vpop.f32.mrb[0].mxu0
        %747 = vmatprep.mubr.bf16.mxu0 0
        %748 = vmatmul.mubr.bf16.gmra.mrb[0].mxu0 %v689
        %v749 = vpop.f32.mrb[0].mxu0
        %v750 = vadd.f32 0.0, %v749
        %v751 = vpop.f32.mrb[0].mxu0
        %v752 = vpop.f32.mrb[0].mxu0
        %v753 = vadd.f32 0.0, %v752
        %v754 = vpop.f32.mrb[0].mxu0
        %755 = vdwg.mxu0
        %v756 = vadd.f32 %v595, %v726
        %v757 = vadd.f32 %v598, %v729
        %v758 = vadd.f32 %v603, %v734
        %v759 = vadd.f32 %v606, %v737
        %v760 = vadd.f32 %v611, %v742
        %v761 = vadd.f32 %v614, %v745
        %v762 = vadd.f32 %v619, %v750
        %v763 = vadd.f32 %v622, %v753
        %s764 = scalar_lea.vmem [#allocation5], 96
        %v765 = vld [vmem:[%s764] sm:$0xf]
        %v766 = vld [vmem:[%s764 + $0x4] sm:$0xf]
        %v767 = vld [vmem:[%s764 + $0x8] sm:$0xf]
        %v768 = vld [vmem:[%s764 + $0xc] sm:$0xf]
        %v769 = vld [vmem:[%s764 + $0x10] sm:$0xf]
        %v770 = vld [vmem:[%s764 + $0x14] sm:$0xf]
        %v771 = vld [vmem:[%s764 + $0x18] sm:$0xf]
        %v772 = vld [vmem:[%s764 + $0x1c] sm:$0xf]
        %v781 = vunpack.c.l.b16 %v765
        %v782 = vunpack.c.l.b16 %v766
        %v783 = vunpack.c.l.b16 %v767
        %v784 = vunpack.c.l.b16 %v768
        %v785 = vunpack.c.l.b16 %v769
        %v786 = vunpack.c.l.b16 %v770
        %v787 = vunpack.c.l.b16 %v771
        %v788 = vunpack.c.l.b16 %v772
        %v789 = vpack.c.b16 %v782, %v781
        %v790 = vpack.c.b16 %v784, %v783
        %v791 = vpack.c.b16 %v786, %v785
        %v792 = vpack.c.b16 %v788, %v787
        %793 = vrot.lane.b32.xlu0 %v392, 1
        %v794 = vpop.permute.xlu0 %793
        %795 = vrot.lane.b32.xlu0 %v393, 1
        %v796 = vpop.permute.xlu0 %795
        %797 = vrot.lane.b32.xlu0 %v394, 1
        %v798 = vpop.permute.xlu0 %797
        %799 = vrot.lane.b32.xlu0 %v395, 1
        %v800 = vpop.permute.xlu0 %799
        %801 = vrot.lane.b32.xlu0 %v396, 1
        %v802 = vpop.permute.xlu0 %801
        %803 = vrot.lane.b32.xlu0 %v397, 1
        %v804 = vpop.permute.xlu0 %803
        %805 = vrot.lane.b32.xlu0 %v398, 1
        %v806 = vpop.permute.xlu0 %805
        %807 = vrot.lane.b32.xlu0 %v399, 1
        %v808 = vpop.permute.xlu0 %807
        %vm809 = vcmask 7168
        %v810 = vsel %vm809, %v794, %v796
        %v811 = vsel %vm809, %v798, %v800
        %v812 = vsel %vm809, %v802, %v804
        %v813 = vsel %vm809, %v806, %v808
        %v819 = vsel %vm425, %v789, 0
        %v822 = vsel %vm425, %v790, 0
        %v825 = vsel %vm425, %v791, 0
        %v828 = vsel %vm425, %v792, 0
        %830 = vmatprep.subr.bf16.mxu0 0
        %831 = vmatpush1.bf16.msra.mxu0 %v810
        %832 = vmatprep.subr.bf16.mxu0 0
        %833 = vmatpush1.bf16.msra.mxu0 %v811
        %834 = vmatprep.subr.bf16.mxu0 0
        %835 = vmatpush1.bf16.msra.mxu0 %v812
        %836 = vmatprep.subr.bf16.mxu0 0
        %837 = vmatpush1.bf16.msra.mxu0 %v813
        %838 = vmatprep.subr.bf16.mxu0 0
        %839 = vmatpush1.bf16.msra.mxu0 0
        %840 = vmatprep.subr.bf16.mxu0 0
        %841 = vmatpush1.bf16.msra.mxu0 0
        %842 = vmatprep.subr.bf16.mxu0 0
        %843 = vmatpush1.bf16.msra.mxu0 0
        %844 = vmatprep.subr.bf16.mxu0 0
        %845 = vmatpush1.bf16.msra.mxu0 0
        %846 = vmatprep.subr.bf16.mxu0 0
        %847 = vmatpush1.bf16.msra.mxu0 0
        %848 = vmatprep.subr.bf16.mxu0 0
        %849 = vmatpush1.bf16.msra.mxu0 0
        %850 = vmatprep.subr.bf16.mxu0 0
        %851 = vmatpush1.bf16.msra.mxu0 0
        %852 = vmatprep.subr.bf16.mxu0 0
        %853 = vmatpush1.bf16.msra.mxu0 0
        %854 = vmatprep.subr.bf16.mxu0 0
        %855 = vmatpush1.bf16.msra.mxu0 0
        %856 = vmatprep.subr.bf16.mxu0 0
        %857 = vmatpush1.bf16.msra.mxu0 0
        %858 = vmatprep.subr.bf16.mxu0 0
        %859 = vmatpush1.bf16.msra.mxu0 0
        %860 = vmatprep.subr.bf16.mxu0 0
        %861 = vmatpush1.bf16.msra.mxu0 0
        %862 = vmatprep.mubr.bf16.mxu0 0
        %863 = vmatmul.mubr.bf16.gmra.mrb[0].mxu0 %v819
        %v864 = vpop.f32.mrb[0].mxu0
        %v865 = vadd.f32 0.0, %v864
        %v866 = vpop.f32.mrb[0].mxu0
        %v867 = vpop.f32.mrb[0].mxu0
        %v868 = vadd.f32 0.0, %v867
        %v869 = vpop.f32.mrb[0].mxu0
        %870 = vmatprep.mubr.bf16.mxu0 0
        %871 = vmatmul.mubr.bf16.gmra.mrb[0].mxu0 %v822
        %v872 = vpop.f32.mrb[0].mxu0
        %v873 = vadd.f32 0.0, %v872
        %v874 = vpop.f32.mrb[0].mxu0
        %v875 = vpop.f32.mrb[0].mxu0
        %v876 = vadd.f32 0.0, %v875
        %v877 = vpop.f32.mrb[0].mxu0
        %878 = vmatprep.mubr.bf16.mxu0 0
        %879 = vmatmul.mubr.bf16.gmra.mrb[0].mxu0 %v825
        %v880 = vpop.f32.mrb[0].mxu0
        %v881 = vadd.f32 0.0, %v880
        %v882 = vpop.f32.mrb[0].mxu0
        %v883 = vpop.f32.mrb[0].mxu0
        %v884 = vadd.f32 0.0, %v883
        %v885 = vpop.f32.mrb[0].mxu0
        %886 = vmatprep.mubr.bf16.mxu0 0
        %887 = vmatmul.mubr.bf16.gmra.mrb[0].mxu0 %v828
        %v888 = vpop.f32.mrb[0].mxu0
        %v889 = vadd.f32 0.0, %v888
        %v890 = vpop.f32.mrb[0].mxu0
        %v891 = vpop.f32.mrb[0].mxu0
        %v892 = vadd.f32 0.0, %v891
        %v893 = vpop.f32.mrb[0].mxu0
        %894 = vdwg.mxu0
        %v895 = vadd.f32 %v756, %v865
        %v896 = vadd.f32 %v757, %v868
        %v897 = vadd.f32 %v758, %v873
        %v898 = vadd.f32 %v759, %v876
        %v899 = vadd.f32 %v760, %v881
        %v900 = vadd.f32 %v761, %v884
        %v901 = vadd.f32 %v762, %v889
        %v902 = vadd.f32 %v763, %v892
        %s903 = scalar_lea.vmem [#allocation5], 128
        %v904 = vld [vmem:[%s903] sm:$0xf]
        %v905 = vld [vmem:[%s903 + $0x4] sm:$0xf]
        %v906 = vld [vmem:[%s903 + $0x8] sm:$0xf]
        %v907 = vld [vmem:[%s903 + $0xc] sm:$0xf]
        %v908 = vld [vmem:[%s903 + $0x10] sm:$0xf]
        %v909 = vld [vmem:[%s903 + $0x14] sm:$0xf]
        %v910 = vld [vmem:[%s903 + $0x18] sm:$0xf]
        %v911 = vld [vmem:[%s903 + $0x1c] sm:$0xf]
        %v912 = vld [vmem:[%s269 + $0x4] sm:$0xf]
        %v913 = vld [vmem:[%s269 + $0x10] sm:$0xf]
        %v914 = vld [vmem:[%s269 + $0x1c] sm:$0xf]
        %v915 = vld [vmem:[%s269 + $0x28] sm:$0xf]
        %v916 = vld [vmem:[%s269 + $0x34] sm:$0xf]
        %v917 = vld [vmem:[%s269 + $0x40] sm:$0xf]
        %v918 = vld [vmem:[%s269 + $0x4c] sm:$0xf]
        %v919 = vld [vmem:[%s269 + $0x58] sm:$0xf]
        %v928 = vunpack.c.l.b16 %v904
        %v929 = vunpack.c.l.b16 %v905
        %v930 = vunpack.c.l.b16 %v906
        %v931 = vunpack.c.l.b16 %v907
        %v932 = vunpack.c.l.b16 %v908
        %v933 = vunpack.c.l.b16 %v909
        %v934 = vunpack.c.l.b16 %v910
        %v935 = vunpack.c.l.b16 %v911
        %v936 = vpack.c.b16 %v929, %v928
        %v937 = vpack.c.b16 %v931, %v930
        %v938 = vpack.c.b16 %v933, %v932
        %v939 = vpack.c.b16 %v935, %v934
        %v948 = vunpack.c.l.b16 %v912
        %v949 = vunpack.c.l.b16 %v913
        %v950 = vunpack.c.l.b16 %v914
        %v951 = vunpack.c.l.b16 %v915
        %v952 = vunpack.c.l.b16 %v916
        %v953 = vunpack.c.l.b16 %v917
        %v954 = vunpack.c.l.b16 %v918
        %v955 = vunpack.c.l.b16 %v919
        %v956 = vpack.c.b16 %v949, %v948
        %v957 = vpack.c.b16 %v951, %v950
        %v958 = vpack.c.b16 %v953, %v952
        %v959 = vpack.c.b16 %v955, %v954
        %v965 = vsel %vm425, %v936, 0
        %v968 = vsel %vm425, %v937, 0
        %v971 = vsel %vm425, %v938, 0
        %v974 = vsel %vm425, %v939, 0
        %976 = vmatprep.subr.bf16.mxu0 0
        %977 = vmatpush1.bf16.msra.mxu0 %v956
        %978 = vmatprep.subr.bf16.mxu0 0
        %979 = vmatpush1.bf16.msra.mxu0 %v957
        %980 = vmatprep.subr.bf16.mxu0 0
        %981 = vmatpush1.bf16.msra.mxu0 %v958
        %982 = vmatprep.subr.bf16.mxu0 0
        %983 = vmatpush1.bf16.msra.mxu0 %v959
        %984 = vmatprep.subr.bf16.mxu0 0
        %985 = vmatpush1.bf16.msra.mxu0 0
        %986 = vmatprep.subr.bf16.mxu0 0
        %987 = vmatpush1.bf16.msra.mxu0 0
        %988 = vmatprep.subr.bf16.mxu0 0
        %989 = vmatpush1.bf16.msra.mxu0 0
        %990 = vmatprep.subr.bf16.mxu0 0
        %991 = vmatpush1.bf16.msra.mxu0 0
        %992 = vmatprep.subr.bf16.mxu0 0
        %993 = vmatpush1.bf16.msra.mxu0 0
        %994 = vmatprep.subr.bf16.mxu0 0
        %995 = vmatpush1.bf16.msra.mxu0 0
        %996 = vmatprep.subr.bf16.mxu0 0
        %997 = vmatpush1.bf16.msra.mxu0 0
        %998 = vmatprep.subr.bf16.mxu0 0
        %999 = vmatpush1.bf16.msra.mxu0 0
        %1000 = vmatprep.subr.bf16.mxu0 0
        %1001 = vmatpush1.bf16.msra.mxu0 0
        %1002 = vmatprep.subr.bf16.mxu0 0
        %1003 = vmatpush1.bf16.msra.mxu0 0
        %1004 = vmatprep.subr.bf16.mxu0 0
        %1005 = vmatpush1.bf16.msra.mxu0 0
        %1006 = vmatprep.subr.bf16.mxu0 0
        %1007 = vmatpush1.bf16.msra.mxu0 0
        %1008 = vmatprep.mubr.bf16.mxu0 0
        %1009 = vmatmul.mubr.bf16.gmra.mrb[0].mxu0 %v965
        %v1010 = vpop.f32.mrb[0].mxu0
        %v1011 = vadd.f32 0.0, %v1010
        %v1012 = vpop.f32.mrb[0].mxu0
        %v1013 = vpop.f32.mrb[0].mxu0
        %v1014 = vadd.f32 0.0, %v1013
        %v1015 = vpop.f32.mrb[0].mxu0
        %1016 = vmatprep.mubr.bf16.mxu0 0
        %1017 = vmatmul.mubr.bf16.gmra.mrb[0].mxu0 %v968
        %v1018 = vpop.f32.mrb[0].mxu0
        %v1019 = vadd.f32 0.0, %v1018
        %v1020 = vpop.f32.mrb[0].mxu0
        %v1021 = vpop.f32.mrb[0].mxu0
        %v1022 = vadd.f32 0.0, %v1021
        %v1023 = vpop.f32.mrb[0].mxu0
        %1024 = vmatprep.mubr.bf16.mxu0 0
        %1025 = vmatmul.mubr.bf16.gmra.mrb[0].mxu0 %v971
        %v1026 = vpop.f32.mrb[0].mxu0
        %v1027 = vadd.f32 0.0, %v1026
        %v1028 = vpop.f32.mrb[0].mxu0
        %v1029 = vpop.f32.mrb[0].mxu0
        %v1030 = vadd.f32 0.0, %v1029
        %v1031 = vpop.f32.mrb[0].mxu0
        %1032 = vmatprep.mubr.bf16.mxu0 0
        %1033 = vmatmul.mubr.bf16.gmra.mrb[0].mxu0 %v974
        %v1034 = vpop.f32.mrb[0].mxu0
        %v1035 = vadd.f32 0.0, %v1034
        %v1036 = vpop.f32.mrb[0].mxu0
        %v1037 = vpop.f32.mrb[0].mxu0
        %v1038 = vadd.f32 0.0, %v1037
        %v1039 = vpop.f32.mrb[0].mxu0
        %1040 = vdwg.mxu0
        %v1041 = vadd.f32 %v895, %v1011
        %v1042 = vadd.f32 %v896, %v1014
        %v1043 = vadd.f32 %v897, %v1019
        %v1044 = vadd.f32 %v898, %v1022
        %v1045 = vadd.f32 %v899, %v1027
        %v1046 = vadd.f32 %v900, %v1030
        %v1047 = vadd.f32 %v901, %v1035
        %v1048 = vadd.f32 %v902, %v1038
        %s1049 = scalar_lea.vmem [#allocation5], 160
        %v1050 = vld [vmem:[%s1049] sm:$0xf]
        %v1051 = vld [vmem:[%s1049 + $0x4] sm:$0xf]
        %v1052 = vld [vmem:[%s1049 + $0x8] sm:$0xf]
        %v1053 = vld [vmem:[%s1049 + $0xc] sm:$0xf]
        %v1054 = vld [vmem:[%s1049 + $0x10] sm:$0xf]
        %v1055 = vld [vmem:[%s1049 + $0x14] sm:$0xf]
        %v1056 = vld [vmem:[%s1049 + $0x18] sm:$0xf]
        %v1057 = vld [vmem:[%s1049 + $0x1c] sm:$0xf]
        %v1066 = vunpack.c.l.b16 %v1050
        %v1067 = vunpack.c.l.b16 %v1051
        %v1068 = vunpack.c.l.b16 %v1052
        %v1069 = vunpack.c.l.b16 %v1053
        %v1070 = vunpack.c.l.b16 %v1054
        %v1071 = vunpack.c.l.b16 %v1055
        %v1072 = vunpack.c.l.b16 %v1056
        %v1073 = vunpack.c.l.b16 %v1057
        %v1074 = vpack.c.b16 %v1067, %v1066
        %v1075 = vpack.c.b16 %v1069, %v1068
        %v1076 = vpack.c.b16 %v1071, %v1070
        %v1077 = vpack.c.b16 %v1073, %v1072
        %1078 = vrot.lane.b32.xlu0 %v956, 127
        %v1079 = vpop.permute.xlu0 %1078
        %1080 = vrot.lane.b32.xlu0 %v957, 127
        %v1081 = vpop.permute.xlu0 %1080
        %1082 = vrot.lane.b32.xlu0 %v958, 127
        %v1083 = vpop.permute.xlu0 %1082
        %1084 = vrot.lane.b32.xlu0 %v959, 127
        %v1085 = vpop.permute.xlu0 %1084
        %v1091 = vsel %vm425, %v1074, 0
        %v1094 = vsel %vm425, %v1075, 0
        %v1097 = vsel %vm425, %v1076, 0
        %v1100 = vsel %vm425, %v1077, 0
        %1102 = vmatprep.subr.bf16.mxu0 0
        %1103 = vmatpush1.bf16.msra.mxu0 %v1079
        %1104 = vmatprep.subr.bf16.mxu0 0
        %1105 = vmatpush1.bf16.msra.mxu0 %v1081
        %1106 = vmatprep.subr.bf16.mxu0 0
        %1107 = vmatpush1.bf16.msra.mxu0 %v1083
        %1108 = vmatprep.subr.bf16.mxu0 0
        %1109 = vmatpush1.bf16.msra.mxu0 %v1085
        %1110 = vmatprep.subr.bf16.mxu0 0
        %1111 = vmatpush1.bf16.msra.mxu0 0
        %1112 = vmatprep.subr.bf16.mxu0 0
        %1113 = vmatpush1.bf16.msra.mxu0 0
        %1114 = vmatprep.subr.bf16.mxu0 0
        %1115 = vmatpush1.bf16.msra.mxu0 0
        %1116 = vmatprep.subr.bf16.mxu0 0
        %1117 = vmatpush1.bf16.msra.mxu0 0
        %1118 = vmatprep.subr.bf16.mxu0 0
        %1119 = vmatpush1.bf16.msra.mxu0 0
        %1120 = vmatprep.subr.bf16.mxu0 0
        %1121 = vmatpush1.bf16.msra.mxu0 0
        %1122 = vmatprep.subr.bf16.mxu0 0
        %1123 = vmatpush1.bf16.msra.mxu0 0
        %1124 = vmatprep.subr.bf16.mxu0 0
        %1125 = vmatpush1.bf16.msra.mxu0 0
        %1126 = vmatprep.subr.bf16.mxu0 0
        %1127 = vmatpush1.bf16.msra.mxu0 0
        %1128 = vmatprep.subr.bf16.mxu0 0
        %1129 = vmatpush1.bf16.msra.mxu0 0
        %1130 = vmatprep.subr.bf16.mxu0 0
        %1131 = vmatpush1.bf16.msra.mxu0 0
        %1132 = vmatprep.subr.bf16.mxu0 0
        %1133 = vmatpush1.bf16.msra.mxu0 0
        %1134 = vmatprep.mubr.bf16.mxu0 0
        %1135 = vmatmul.mubr.bf16.gmra.mrb[0].mxu0 %v1091
        %v1136 = vpop.f32.mrb[0].mxu0
        %v1137 = vadd.f32 0.0, %v1136
        %v1138 = vpop.f32.mrb[0].mxu0
        %v1139 = vpop.f32.mrb[0].mxu0
        %v1140 = vadd.f32 0.0, %v1139
        %v1141 = vpop.f32.mrb[0].mxu0
        %1142 = vmatprep.mubr.bf16.mxu0 0
        %1143 = vmatmul.mubr.bf16.gmra.mrb[0].mxu0 %v1094
        %v1144 = vpop.f32.mrb[0].mxu0
        %v1145 = vadd.f32 0.0, %v1144
        %v1146 = vpop.f32.mrb[0].mxu0
        %v1147 = vpop.f32.mrb[0].mxu0
        %v1148 = vadd.f32 0.0, %v1147
        %v1149 = vpop.f32.mrb[0].mxu0
        %1150 = vmatprep.mubr.bf16.mxu0 0
        %1151 = vmatmul.mubr.bf16.gmra.mrb[0].mxu0 %v1097
        %v1152 = vpop.f32.mrb[0].mxu0
        %v1153 = vadd.f32 0.0, %v1152
        %v1154 = vpop.f32.mrb[0].mxu0
        %v1155 = vpop.f32.mrb[0].mxu0
        %v1156 = vadd.f32 0.0, %v1155
        %v1157 = vpop.f32.mrb[0].mxu0
        %1158 = vmatprep.mubr.bf16.mxu0 0
        %1159 = vmatmul.mubr.bf16.gmra.mrb[0].mxu0 %v1100
        %v1160 = vpop.f32.mrb[0].mxu0
        %v1161 = vadd.f32 0.0, %v1160
        %v1162 = vpop.f32.mrb[0].mxu0
        %v1163 = vpop.f32.mrb[0].mxu0
        %v1164 = vadd.f32 0.0, %v1163
        %v1165 = vpop.f32.mrb[0].mxu0
        %1166 = vdwg.mxu0
        %v1167 = vadd.f32 %v1041, %v1137
        %v1168 = vadd.f32 %v1042, %v1140
        %v1169 = vadd.f32 %v1043, %v1145
        %v1170 = vadd.f32 %v1044, %v1148
        %v1171 = vadd.f32 %v1045, %v1153
        %v1172 = vadd.f32 %v1046, %v1156
        %v1173 = vadd.f32 %v1047, %v1161
        %v1174 = vadd.f32 %v1048, %v1164
        %s1175 = scalar_lea.vmem [#allocation5], 192
        %v1176 = vld [vmem:[%s1175] sm:$0xf]
        %v1177 = vld [vmem:[%s1175 + $0x4] sm:$0xf]
        %v1178 = vld [vmem:[%s1175 + $0x8] sm:$0xf]
        %v1179 = vld [vmem:[%s1175 + $0xc] sm:$0xf]
        %v1180 = vld [vmem:[%s1175 + $0x10] sm:$0xf]
        %v1181 = vld [vmem:[%s1175 + $0x14] sm:$0xf]
        %v1182 = vld [vmem:[%s1175 + $0x18] sm:$0xf]
        %v1183 = vld [vmem:[%s1175 + $0x1c] sm:$0xf]
        %v1192 = vunpack.c.l.b16 %v1176
        %v1193 = vunpack.c.l.b16 %v1177
        %v1194 = vunpack.c.l.b16 %v1178
        %v1195 = vunpack.c.l.b16 %v1179
        %v1196 = vunpack.c.l.b16 %v1180
        %v1197 = vunpack.c.l.b16 %v1181
        %v1198 = vunpack.c.l.b16 %v1182
        %v1199 = vunpack.c.l.b16 %v1183
        %v1200 = vpack.c.b16 %v1193, %v1192
        %v1201 = vpack.c.b16 %v1195, %v1194
        %v1202 = vpack.c.b16 %v1197, %v1196
        %v1203 = vpack.c.b16 %v1199, %v1198
        %1204 = vrot.lane.b32.xlu0 %v956, 123
        %v1205 = vpop.permute.xlu0 %1204
        %1206 = vrot.lane.b32.xlu0 %v957, 123
        %v1207 = vpop.permute.xlu0 %1206
        %1208 = vrot.lane.b32.xlu0 %v958, 123
        %v1209 = vpop.permute.xlu0 %1208
        %1210 = vrot.lane.b32.xlu0 %v959, 123
        %v1211 = vpop.permute.xlu0 %1210
        %v1217 = vsel %vm425, %v1200, 0
        %v1220 = vsel %vm425, %v1201, 0
        %v1223 = vsel %vm425, %v1202, 0
        %v1226 = vsel %vm425, %v1203, 0
        %1228 = vmatprep.subr.bf16.mxu0 0
        %1229 = vmatpush1.bf16.msra.mxu0 %v1205
        %1230 = vmatprep.subr.bf16.mxu0 0
        %1231 = vmatpush1.bf16.msra.mxu0 %v1207
        %1232 = vmatprep.subr.bf16.mxu0 0
        %1233 = vmatpush1.bf16.msra.mxu0 %v1209
        %1234 = vmatprep.subr.bf16.mxu0 0
        %1235 = vmatpush1.bf16.msra.mxu0 %v1211
        %1236 = vmatprep.subr.bf16.mxu0 0
        %1237 = vmatpush1.bf16.msra.mxu0 0
        %1238 = vmatprep.subr.bf16.mxu0 0
        %1239 = vmatpush1.bf16.msra.mxu0 0
        %1240 = vmatprep.subr.bf16.mxu0 0
        %1241 = vmatpush1.bf16.msra.mxu0 0
        %1242 = vmatprep.subr.bf16.mxu0 0
        %1243 = vmatpush1.bf16.msra.mxu0 0
        %1244 = vmatprep.subr.bf16.mxu0 0
        %1245 = vmatpush1.bf16.msra.mxu0 0
        %1246 = vmatprep.subr.bf16.mxu0 0
        %1247 = vmatpush1.bf16.msra.mxu0 0
        %1248 = vmatprep.subr.bf16.mxu0 0
        %1249 = vmatpush1.bf16.msra.mxu0 0
        %1250 = vmatprep.subr.bf16.mxu0 0
        %1251 = vmatpush1.bf16.msra.mxu0 0
        %1252 = vmatprep.subr.bf16.mxu0 0
        %1253 = vmatpush1.bf16.msra.mxu0 0
        %1254 = vmatprep.subr.bf16.mxu0 0
        %1255 = vmatpush1.bf16.msra.mxu0 0
        %1256 = vmatprep.subr.bf16.mxu0 0
        %1257 = vmatpush1.bf16.msra.mxu0 0
        %1258 = vmatprep.subr.bf16.mxu0 0
        %1259 = vmatpush1.bf16.msra.mxu0 0
        %1260 = vmatprep.mubr.bf16.mxu0 0
        %1261 = vmatmul.mubr.bf16.gmra.mrb[0].mxu0 %v1217
        %v1262 = vpop.f32.mrb[0].mxu0
        %v1263 = vadd.f32 0.0, %v1262
        %v1264 = vpop.f32.mrb[0].mxu0
        %v1265 = vpop.f32.mrb[0].mxu0
        %v1266 = vadd.f32 0.0, %v1265
        %v1267 = vpop.f32.mrb[0].mxu0
        %1268 = vmatprep.mubr.bf16.mxu0 0
        %1269 = vmatmul.mubr.bf16.gmra.mrb[0].mxu0 %v1220
        %v1270 = vpop.f32.mrb[0].mxu0
        %v1271 = vadd.f32 0.0, %v1270
        %v1272 = vpop.f32.mrb[0].mxu0
        %v1273 = vpop.f32.mrb[0].mxu0
        %v1274 = vadd.f32 0.0, %v1273
        %v1275 = vpop.f32.mrb[0].mxu0
        %1276 = vmatprep.mubr.bf16.mxu0 0
        %1277 = vmatmul.mubr.bf16.gmra.mrb[0].mxu0 %v1223
        %v1278 = vpop.f32.mrb[0].mxu0
        %v1279 = vadd.f32 0.0, %v1278
        %v1280 = vpop.f32.mrb[0].mxu0
        %v1281 = vpop.f32.mrb[0].mxu0
        %v1282 = vadd.f32 0.0, %v1281
        %v1283 = vpop.f32.mrb[0].mxu0
        %1284 = vmatprep.mubr.bf16.mxu0 0
        %1285 = vmatmul.mubr.bf16.gmra.mrb[0].mxu0 %v1226
        %v1286 = vpop.f32.mrb[0].mxu0
        %v1287 = vadd.f32 0.0, %v1286
        %v1288 = vpop.f32.mrb[0].mxu0
        %v1289 = vpop.f32.mrb[0].mxu0
        %v1290 = vadd.f32 0.0, %v1289
        %v1291 = vpop.f32.mrb[0].mxu0
        %1292 = vdwg.mxu0
        %v1293 = vadd.f32 %v1167, %v1263
        %v1294 = vadd.f32 %v1168, %v1266
        %v1295 = vadd.f32 %v1169, %v1271
        %v1296 = vadd.f32 %v1170, %v1274
        %v1297 = vadd.f32 %v1171, %v1279
        %v1298 = vadd.f32 %v1172, %v1282
        %v1299 = vadd.f32 %v1173, %v1287
        %v1300 = vadd.f32 %v1174, %v1290
        %s1301 = scalar_lea.vmem [#allocation5], 224
        %v1302 = vld [vmem:[%s1301] sm:$0xf]
        %v1303 = vld [vmem:[%s1301 + $0x4] sm:$0xf]
        %v1304 = vld [vmem:[%s1301 + $0x8] sm:$0xf]
        %v1305 = vld [vmem:[%s1301 + $0xc] sm:$0xf]
        %v1306 = vld [vmem:[%s1301 + $0x10] sm:$0xf]
        %v1307 = vld [vmem:[%s1301 + $0x14] sm:$0xf]
        %v1308 = vld [vmem:[%s1301 + $0x18] sm:$0xf]
        %v1309 = vld [vmem:[%s1301 + $0x1c] sm:$0xf]
        %v1318 = vunpack.c.l.b16 %v1302
        %v1319 = vunpack.c.l.b16 %v1303
        %v1320 = vunpack.c.l.b16 %v1304
        %v1321 = vunpack.c.l.b16 %v1305
        %v1322 = vunpack.c.l.b16 %v1306
        %v1323 = vunpack.c.l.b16 %v1307
        %v1324 = vunpack.c.l.b16 %v1308
        %v1325 = vunpack.c.l.b16 %v1309
        %v1326 = vpack.c.b16 %v1319, %v1318
        %v1327 = vpack.c.b16 %v1321, %v1320
        %v1328 = vpack.c.b16 %v1323, %v1322
        %v1329 = vpack.c.b16 %v1325, %v1324
        %1330 = vrot.lane.b32.xlu0 %v956, 122
        %v1331 = vpop.permute.xlu0 %1330
        %1332 = vrot.lane.b32.xlu0 %v957, 122
        %v1333 = vpop.permute.xlu0 %1332
        %1334 = vrot.lane.b32.xlu0 %v958, 122
        %v1335 = vpop.permute.xlu0 %1334
        %1336 = vrot.lane.b32.xlu0 %v959, 122
        %v1337 = vpop.permute.xlu0 %1336
        %v1343 = vsel %vm425, %v1326, 0
        %v1346 = vsel %vm425, %v1327, 0
        %v1349 = vsel %vm425, %v1328, 0
        %v1352 = vsel %vm425, %v1329, 0
        %1354 = vmatprep.subr.bf16.mxu0 0
        %1355 = vmatpush1.bf16.msra.mxu0 %v1331
        %1356 = vmatprep.subr.bf16.mxu0 0
        %1357 = vmatpush1.bf16.msra.mxu0 %v1333
        %1358 = vmatprep.subr.bf16.mxu0 0
        %1359 = vmatpush1.bf16.msra.mxu0 %v1335
        %1360 = vmatprep.subr.bf16.mxu0 0
        %1361 = vmatpush1.bf16.msra.mxu0 %v1337
        %1362 = vmatprep.subr.bf16.mxu0 0
        %1363 = vmatpush1.bf16.msra.mxu0 0
        %1364 = vmatprep.subr.bf16.mxu0 0
        %1365 = vmatpush1.bf16.msra.mxu0 0
        %1366 = vmatprep.subr.bf16.mxu0 0
        %1367 = vmatpush1.bf16.msra.mxu0 0
        %1368 = vmatprep.subr.bf16.mxu0 0
        %1369 = vmatpush1.bf16.msra.mxu0 0
        %1370 = vmatprep.subr.bf16.mxu0 0
        %1371 = vmatpush1.bf16.msra.mxu0 0
        %1372 = vmatprep.subr.bf16.mxu0 0
        %1373 = vmatpush1.bf16.msra.mxu0 0
        %1374 = vmatprep.subr.bf16.mxu0 0
        %1375 = vmatpush1.bf16.msra.mxu0 0
        %1376 = vmatprep.subr.bf16.mxu0 0
        %1377 = vmatpush1.bf16.msra.mxu0 0
        %1378 = vmatprep.subr.bf16.mxu0 0
        %1379 = vmatpush1.bf16.msra.mxu0 0
        %1380 = vmatprep.subr.bf16.mxu0 0
        %1381 = vmatpush1.bf16.msra.mxu0 0
        %1382 = vmatprep.subr.bf16.mxu0 0
        %1383 = vmatpush1.bf16.msra.mxu0 0
        %1384 = vmatprep.subr.bf16.mxu0 0
        %1385 = vmatpush1.bf16.msra.mxu0 0
        %1386 = vmatprep.mubr.bf16.mxu0 0
        %1387 = vmatmul.mubr.bf16.gmra.mrb[0].mxu0 %v1343
        %v1388 = vpop.f32.mrb[0].mxu0
        %v1389 = vadd.f32 0.0, %v1388
        %v1390 = vpop.f32.mrb[0].mxu0
        %v1391 = vpop.f32.mrb[0].mxu0
        %v1392 = vadd.f32 0.0, %v1391
        %v1393 = vpop.f32.mrb[0].mxu0
        %1394 = vmatprep.mubr.bf16.mxu0 0
        %1395 = vmatmul.mubr.bf16.gmra.mrb[0].mxu0 %v1346
        %v1396 = vpop.f32.mrb[0].mxu0
        %v1397 = vadd.f32 0.0, %v1396
        %v1398 = vpop.f32.mrb[0].mxu0
        %v1399 = vpop.f32.mrb[0].mxu0
        %v1400 = vadd.f32 0.0, %v1399
        %v1401 = vpop.f32.mrb[0].mxu0
        %1402 = vmatprep.mubr.bf16.mxu0 0
        %1403 = vmatmul.mubr.bf16.gmra.mrb[0].mxu0 %v1349
        %v1404 = vpop.f32.mrb[0].mxu0
        %v1405 = vadd.f32 0.0, %v1404
        %v1406 = vpop.f32.mrb[0].mxu0
        %v1407 = vpop.f32.mrb[0].mxu0
        %v1408 = vadd.f32 0.0, %v1407
        %v1409 = vpop.f32.mrb[0].mxu0
        %1410 = vmatprep.mubr.bf16.mxu0 0
        %1411 = vmatmul.mubr.bf16.gmra.mrb[0].mxu0 %v1352
        %v1412 = vpop.f32.mrb[0].mxu0
        %v1413 = vadd.f32 0.0, %v1412
        %v1414 = vpop.f32.mrb[0].mxu0
        %v1415 = vpop.f32.mrb[0].mxu0
        %v1416 = vadd.f32 0.0, %v1415
        %v1417 = vpop.f32.mrb[0].mxu0
        %1418 = vdwg.mxu0
        %v1419 = vadd.f32 %v1293, %v1389
        %v1420 = vadd.f32 %v1294, %v1392
        %v1421 = vadd.f32 %v1295, %v1397
        %v1422 = vadd.f32 %v1296, %v1400
        %v1423 = vadd.f32 %v1297, %v1405
        %v1424 = vadd.f32 %v1298, %v1408
        %v1425 = vadd.f32 %v1299, %v1413
        %v1426 = vadd.f32 %v1300, %v1416
        %s1427 = scalar_lea.vmem [#allocation5], 256
        %v1428 = vld [vmem:[%s1427] sm:$0xf]
        %v1429 = vld [vmem:[%s1427 + $0x4] sm:$0xf]
        %v1430 = vld [vmem:[%s1427 + $0x8] sm:$0xf]
        %v1431 = vld [vmem:[%s1427 + $0xc] sm:$0xf]
        %v1432 = vld [vmem:[%s1427 + $0x10] sm:$0xf]
        %v1433 = vld [vmem:[%s1427 + $0x14] sm:$0xf]
        %v1434 = vld [vmem:[%s1427 + $0x18] sm:$0xf]
        %v1435 = vld [vmem:[%s1427 + $0x1c] sm:$0xf]
        %v1444 = vunpack.c.l.b16 %v1428
        %v1445 = vunpack.c.l.b16 %v1429
        %v1446 = vunpack.c.l.b16 %v1430
        %v1447 = vunpack.c.l.b16 %v1431
        %v1448 = vunpack.c.l.b16 %v1432
        %v1449 = vunpack.c.l.b16 %v1433
        %v1450 = vunpack.c.l.b16 %v1434
        %v1451 = vunpack.c.l.b16 %v1435
        %v1452 = vpack.c.b16 %v1445, %v1444
        %v1453 = vpack.c.b16 %v1447, %v1446
        %v1454 = vpack.c.b16 %v1449, %v1448
        %v1455 = vpack.c.b16 %v1451, %v1450
        %1456 = vrot.lane.b32.xlu0 %v956, 121
        %v1457 = vpop.permute.xlu0 %1456
        %1458 = vrot.lane.b32.xlu0 %v957, 121
        %v1459 = vpop.permute.xlu0 %1458
        %1460 = vrot.lane.b32.xlu0 %v958, 121
        %v1461 = vpop.permute.xlu0 %1460
        %1462 = vrot.lane.b32.xlu0 %v959, 121
        %v1463 = vpop.permute.xlu0 %1462
        %v1469 = vsel %vm425, %v1452, 0
        %v1472 = vsel %vm425, %v1453, 0
        %v1475 = vsel %vm425, %v1454, 0
        %v1478 = vsel %vm425, %v1455, 0
        %1480 = vmatprep.subr.bf16.mxu0 0
        %1481 = vmatpush1.bf16.msra.mxu0 %v1457
        %1482 = vmatprep.subr.bf16.mxu0 0
        %1483 = vmatpush1.bf16.msra.mxu0 %v1459
        %1484 = vmatprep.subr.bf16.mxu0 0
        %1485 = vmatpush1.bf16.msra.mxu0 %v1461
        %1486 = vmatprep.subr.bf16.mxu0 0
        %1487 = vmatpush1.bf16.msra.mxu0 %v1463
        %1488 = vmatprep.subr.bf16.mxu0 0
        %1489 = vmatpush1.bf16.msra.mxu0 0
        %1490 = vmatprep.subr.bf16.mxu0 0
        %1491 = vmatpush1.bf16.msra.mxu0 0
        %1492 = vmatprep.subr.bf16.mxu0 0
        %1493 = vmatpush1.bf16.msra.mxu0 0
        %1494 = vmatprep.subr.bf16.mxu0 0
        %1495 = vmatpush1.bf16.msra.mxu0 0
        %1496 = vmatprep.subr.bf16.mxu0 0
        %1497 = vmatpush1.bf16.msra.mxu0 0
        %1498 = vmatprep.subr.bf16.mxu0 0
        %1499 = vmatpush1.bf16.msra.mxu0 0
        %1500 = vmatprep.subr.bf16.mxu0 0
        %1501 = vmatpush1.bf16.msra.mxu0 0
        %1502 = vmatprep.subr.bf16.mxu0 0
        %1503 = vmatpush1.bf16.msra.mxu0 0
        %1504 = vmatprep.subr.bf16.mxu0 0
        %1505 = vmatpush1.bf16.msra.mxu0 0
        %1506 = vmatprep.subr.bf16.mxu0 0
        %1507 = vmatpush1.bf16.msra.mxu0 0
        %1508 = vmatprep.subr.bf16.mxu0 0
        %1509 = vmatpush1.bf16.msra.mxu0 0
        %1510 = vmatprep.subr.bf16.mxu0 0
        %1511 = vmatpush1.bf16.msra.mxu0 0
        %1512 = vmatprep.mubr.bf16.mxu0 0
        %1513 = vmatmul.mubr.bf16.gmra.mrb[0].mxu0 %v1469
        %v1514 = vpop.f32.mrb[0].mxu0
        %v1515 = vadd.f32 0.0, %v1514
        %v1516 = vpop.f32.mrb[0].mxu0
        %v1517 = vpop.f32.mrb[0].mxu0
        %v1518 = vadd.f32 0.0, %v1517
        %v1519 = vpop.f32.mrb[0].mxu0
        %1520 = vmatprep.mubr.bf16.mxu0 0
        %1521 = vmatmul.mubr.bf16.gmra.mrb[0].mxu0 %v1472
        %v1522 = vpop.f32.mrb[0].mxu0
        %v1523 = vadd.f32 0.0, %v1522
        %v1524 = vpop.f32.mrb[0].mxu0
        %v1525 = vpop.f32.mrb[0].mxu0
        %v1526 = vadd.f32 0.0, %v1525
        %v1527 = vpop.f32.mrb[0].mxu0
        %1528 = vmatprep.mubr.bf16.mxu0 0
        %1529 = vmatmul.mubr.bf16.gmra.mrb[0].mxu0 %v1475
        %v1530 = vpop.f32.mrb[0].mxu0
        %v1531 = vadd.f32 0.0, %v1530
        %v1532 = vpop.f32.mrb[0].mxu0
        %v1533 = vpop.f32.mrb[0].mxu0
        %v1534 = vadd.f32 0.0, %v1533
        %v1535 = vpop.f32.mrb[0].mxu0
        %1536 = vmatprep.mubr.bf16.mxu0 0
        %1537 = vmatmul.mubr.bf16.gmra.mrb[0].mxu0 %v1478
        %v1538 = vpop.f32.mrb[0].mxu0
        %v1539 = vadd.f32 0.0, %v1538
        %v1540 = vpop.f32.mrb[0].mxu0
        %v1541 = vpop.f32.mrb[0].mxu0
        %v1542 = vadd.f32 0.0, %v1541
        %v1543 = vpop.f32.mrb[0].mxu0
        %1544 = vdwg.mxu0
        %v1545 = vadd.f32 %v1419, %v1515
        %v1546 = vadd.f32 %v1420, %v1518
        %v1547 = vadd.f32 %v1421, %v1523
        %v1548 = vadd.f32 %v1422, %v1526
        %v1549 = vadd.f32 %v1423, %v1531
        %v1550 = vadd.f32 %v1424, %v1534
        %v1551 = vadd.f32 %v1425, %v1539
        %v1552 = vadd.f32 %v1426, %v1542
        %v1553 = vld [vmem:[#allocation7] sm:$0xff]
        %v1554 = vld [vmem:[#allocation7 + $0x8] sm:$0xff]
        %v1555 = vld [vmem:[#allocation7 + $0x10] sm:$0xff]
        %v1556 = vld [vmem:[#allocation7 + $0x18] sm:$0xff]
        %v1557 = vld [vmem:[#allocation7 + $0x20] sm:$0xff]
        %v1558 = vld [vmem:[#allocation7 + $0x28] sm:$0xff]
        %v1559 = vld [vmem:[#allocation7 + $0x30] sm:$0xff]
        %v1560 = vld [vmem:[#allocation7 + $0x38] sm:$0xff]
        %1562 = vset.pattern.permute.xlu0 0
        %1563 = vperm.xlu0 %1562, %v1553
        %v1564 = vpop.permute.xlu0 %1563
        %1567 = vset.pattern.permute.xlu0 0
        %1568 = vperm.xlu0 %1567, %v1554
        %v1569 = vpop.permute.xlu0 %1568
        %1572 = vset.pattern.permute.xlu0 0
        %1573 = vperm.xlu0 %1572, %v1555
        %v1574 = vpop.permute.xlu0 %1573
        %1577 = vset.pattern.permute.xlu0 0
        %1578 = vperm.xlu0 %1577, %v1556
        %v1579 = vpop.permute.xlu0 %1578
        %1582 = vset.pattern.permute.xlu0 0
        %1583 = vperm.xlu0 %1582, %v1557
        %v1584 = vpop.permute.xlu0 %1583
        %1587 = vset.pattern.permute.xlu0 0
        %1588 = vperm.xlu0 %1587, %v1558
        %v1589 = vpop.permute.xlu0 %1588
        %1592 = vset.pattern.permute.xlu0 0
        %1593 = vperm.xlu0 %1592, %v1559
        %v1594 = vpop.permute.xlu0 %1593
        %1597 = vset.pattern.permute.xlu0 0
        %1598 = vperm.xlu0 %1597, %v1560
        %v1599 = vpop.permute.xlu0 %1598
        %v1601 = vadd.f32 %v1545, %v1564
        %v1602 = vadd.f32 %v1546, %v1569
        %v1603 = vadd.f32 %v1547, %v1574
        %v1604 = vadd.f32 %v1548, %v1579
        %v1605 = vadd.f32 %v1549, %v1584
        %v1606 = vadd.f32 %v1550, %v1589
        %v1607 = vadd.f32 %v1551, %v1594
        %v1608 = vadd.f32 %v1552, %v1599
        %v1609 = vld [vmem:[%s290 + $0x4] sm:$0xf]
        %v1610 = vld [vmem:[%s290 + $0x10] sm:$0xf]
        %v1611 = vld [vmem:[%s290 + $0x1c] sm:$0xf]
        %v1612 = vld [vmem:[%s290 + $0x28] sm:$0xf]
        %v1613 = vld [vmem:[%s290 + $0x34] sm:$0xf]
        %v1614 = vld [vmem:[%s290 + $0x40] sm:$0xf]
        %v1615 = vld [vmem:[%s290 + $0x4c] sm:$0xf]
        %v1616 = vld [vmem:[%s290 + $0x58] sm:$0xf]
        %v1617 = vunpack.c.l.bf16 %v1609
        %v1618 = vunpack.c.l.bf16 %v1610
        %v1619 = vunpack.c.l.bf16 %v1611
        %v1620 = vunpack.c.l.bf16 %v1612
        %v1621 = vunpack.c.l.bf16 %v1613
        %v1622 = vunpack.c.l.bf16 %v1614
        %v1623 = vunpack.c.l.bf16 %v1615
        %v1624 = vunpack.c.l.bf16 %v1616
        %v1625 = vadd.f32 %v1601, %v1617
        %v1626 = vadd.f32 %v1602, %v1618
        %v1627 = vadd.f32 %v1603, %v1619
        %v1628 = vadd.f32 %v1604, %v1620
        %v1629 = vadd.f32 %v1605, %v1621
        %v1630 = vadd.f32 %v1606, %v1622
        %v1631 = vadd.f32 %v1607, %v1623
        %v1632 = vadd.f32 %v1608, %v1624
        %v1633 = vmax.f32 %v1625, 0.0
        %v1634 = vmax.f32 %v1626, 0.0
        %v1635 = vmax.f32 %v1627, 0.0
        %v1636 = vmax.f32 %v1628, 0.0
        %v1637 = vmax.f32 %v1629, 0.0
        %v1638 = vmax.f32 %v1630, 0.0
        %v1639 = vmax.f32 %v1631, 0.0
        %v1640 = vmax.f32 %v1632, 0.0
        %v1641 = vld [vmem:[#allocation8] sm:$0x1]
        %vm1642 = vcmp.gt.f32.partialorder %v1641, 0.0
        %v1643 = vsel %vm1642, 1, 0
        %v1644 = vlaneseq
        %v1645 = vshrl.u32 %v1644, 7
        %v1646 = vsub.s32 0, %v1645
        %v1647 = vrot.slane %v1643, %v1646
        %vm1648 = vcmp.eq.s32.totalorder %v1647, 1
        %v1649 = vsel %vm1648, %v1633, 0.0
        %v1650 = vsel %vm1648, %v1634, 0.0
        %v1651 = vsel %vm1648, %v1635, 0.0
        %v1652 = vsel %vm1648, %v1636, 0.0
        %v1653 = vsel %vm1648, %v1637, 0.0
        %v1654 = vsel %vm1648, %v1638, 0.0
        %v1655 = vsel %vm1648, %v1639, 0.0
        %v1656 = vsel %vm1648, %v1640, 0.0
        %v1657 = vpack.c.bf16 %v1650, %v1649
        %v1658 = vpack.c.bf16 %v1652, %v1651
        %v1659 = vpack.c.bf16 %v1654, %v1653
        %v1660 = vpack.c.bf16 %v1656, %v1655
        %v1665 = vunpack.c.l.b16 %v1657
        %v1666 = vunpack.c.h.b16 %v1657
        %v1667 = vunpack.c.l.b16 %v1658
        %v1668 = vunpack.c.h.b16 %v1658
        %v1669 = vunpack.c.l.b16 %v1659
        %v1670 = vunpack.c.h.b16 %v1659
        %v1671 = vunpack.c.l.b16 %v1660
        %v1672 = vunpack.c.h.b16 %v1660
        %v1673 = vpack.c.b16 %v1665, %v1665
        %v1674 = vpack.c.b16 %v1666, %v1666
        %v1675 = vpack.c.b16 %v1667, %v1667
        %v1676 = vpack.c.b16 %v1668, %v1668
        %v1677 = vpack.c.b16 %v1669, %v1669
        %v1678 = vpack.c.b16 %v1670, %v1670
        %v1679 = vpack.c.b16 %v1671, %v1671
        %v1680 = vpack.c.b16 %v1672, %v1672
        %vm1689 = vcmask 289792
        %1690 = vst.msk [vmem:[%s321 + $0x4] sm:$0xf] %vm1689, %v1673
        %1691 = vst.msk [vmem:[%s321 + $0x10] sm:$0xf] %vm1689, %v1674
        %1692 = vst.msk [vmem:[%s321 + $0x1c] sm:$0xf] %vm1689, %v1675
        %1693 = vst.msk [vmem:[%s321 + $0x28] sm:$0xf] %vm1689, %v1676
        %1694 = vst.msk [vmem:[%s321 + $0x34] sm:$0xf] %vm1689, %v1677
        %1695 = vst.msk [vmem:[%s321 + $0x40] sm:$0xf] %vm1689, %v1678
        %1696 = vst.msk [vmem:[%s321 + $0x4c] sm:$0xf] %vm1689, %v1679
        %1697 = vst.msk [vmem:[%s321 + $0x58] sm:$0xf] %vm1689, %v1680
        %1698 = vst [vmem:[%s321] sm:$0xf] 0
        %1699 = vst [vmem:[%s321 + $0xc] sm:$0xf] 0
        %1700 = vst [vmem:[%s321 + $0x18] sm:$0xf] 0
        %1701 = vst [vmem:[%s321 + $0x24] sm:$0xf] 0
        %1702 = vst [vmem:[%s321 + $0x30] sm:$0xf] 0
        %1703 = vst [vmem:[%s321 + $0x3c] sm:$0xf] 0
        %1704 = vst [vmem:[%s321 + $0x48] sm:$0xf] 0
        %1705 = vst [vmem:[%s321 + $0x54] sm:$0xf] 0
        %vm1706 = vcmask 1043744
        %vm1707 = vcmask 293892
        %vm1708 = vmor %vm1707, %vm1706
        %1709 = vst.msk [vmem:[%s321 + $0x4] sm:$0xff] %vm1708, 0
        %1710 = vst.msk [vmem:[%s321 + $0x10] sm:$0xff] %vm1708, 0
        %1711 = vst.msk [vmem:[%s321 + $0x1c] sm:$0xff] %vm1708, 0
        %1712 = vst.msk [vmem:[%s321 + $0x28] sm:$0xff] %vm1708, 0
        %1713 = vst.msk [vmem:[%s321 + $0x34] sm:$0xff] %vm1708, 0
        %1714 = vst.msk [vmem:[%s321 + $0x40] sm:$0xff] %vm1708, 0
        %1715 = vst.msk [vmem:[%s321 + $0x4c] sm:$0xff] %vm1708, 0
        %1716 = vst.msk [vmem:[%s321 + $0x58] sm:$0xff] %vm1708, 0
        %s1717 = sand.u32 %s147, 1
        %s1718 = scalar_lea.sflag [#allocation4], %s1717
        %s1719 = sand.u32 %s147, 1
        %s1720 = smul.addr %s1719, 96
        %s1721 = scalar_lea.vmem [#allocation11], %s1720
        // Predicated region
        $region61: #{_lambda_.18} parent=39 // pred_check
          %p1722 = pneg %p157
        $region62: #{_lambda_.18} parent=39 // pred_check_branch
          %1724 = sbr.rel (%p1722) target = $region64
        $region63: #{_lambda_.18} parent=39 // pred_region
          %s1726 = ssub.s32 1536, 1536
          %1727 = vsyncadd %s1718, %s1726
          %s1728 = smul.addr %s24, 24
          %s1729 = smul.addr %s1728, 64
          %s1730 = scalar_lea.hbm %s5, %s1729
          %s1731 = sshll.u32 %s1721, 4
          %s1732 = int_to_ptr.vmem [resolvable:$true] %s1731
          %1737 = dma.vmem_to_hbm [thread:$0]  %s1732, 1536, %s1730, %s1718, 192, 192, 12
        $region64: #{_lambda_.18} parent=39 // pred_fallthru
          _
      $region40: #{_lambda_.18} parent=5 // pred_fallthru
        _
      %p1738 = scmp.le.s32.totalorder 2, %s19
      // Predicated region
      $region65: #{_lambda_.18} parent=5 // pred_check
        %p1739 = pneg %p1738
      $region66: #{_lambda_.18} parent=5 // pred_check_branch
        %1741 = sbr.rel (%p1739) target = $region68
      $region67: #{_lambda_.18} parent=5 // pred_region
        %s1742 = ssub.s32 %s19, 2
        // Predicated region
        $region69: #{_lambda_.18} parent=67 // pred_check
          %p1743 = pneg %p163
        $region70: #{_lambda_.18} parent=67 // pred_check_branch
          %1745 = sbr.rel (%p1743) target = $region72
        $region71: #{_lambda_.18} parent=67 // pred_region
          %s1746 = sand.u32 %s148, 1
          %s1747 = scalar_lea.sflag [#allocation4], %s1746
          %s1748 = sand.u32 %s148, 1
          %s1749 = smul.addr %s1748, 96
          %s1750 = scalar_lea.vmem [#allocation11], %s1749
          %1751 = dma.done %s1747, 1536
        $region72: #{_lambda_.18} parent=67 // pred_fallthru
          _
      $region68: #{_lambda_.18} parent=5 // pred_fallthru
        _
    $region6: #{_lambda_.18} parent=1 // loop_footer
      %s23 = sadd.s32 1, %s19
    $region7: #{_lambda_.18} parent=1 // loop_footer_branch
      %18 = sbr.rel target = $region3
    $region8: #{_lambda_.18} parent=1 // loop_exit
      _
    %1752 = vsyncpa [#allocation3], 1
    %s1753 = scalar_lea.sflag [#allocation3], 1
    %1754 = vsyncpa %s1753, 1
    %1755 = vsyncpa [#allocation6], 1
    %1756 = vsyncpa [#allocation9], 1
    %1757 = vsyncpa [#allocation4], 1
    %s1758 = scalar_lea.sflag [#allocation4], 1
    %1759 = vsyncpa %s1758, 1

</llo_original>
